<compile_context>
chip_gen: v5e
topology: v5e:2x2
jax: 0.10.0
libtpu: 0.0.40
codegen_flags: <defaults>
</compile_context>

<pallas_src>
import functools

import jax
import jax.numpy as jnp
from jax.experimental import pallas as pl
from jax.experimental.pallas import tpu as pltpu

_BN_EPS = 1e-5
_LANE = 128


def _round_up(v, m):
    return ((v + m - 1) // m) * m


# --------------------------- in-kernel helpers ---------------------------
def _fill_halo(xp_ref, interior, H, W, Cp):
    """Write `interior` (H, W, Cp) into the (H+2, W+2, Cp) halo buffer.

    Only the 1-wide border is zeroed (4 thin slabs); the interior is written
    exactly once — no full-buffer zero + overwrite."""
    zrow = jnp.zeros((1, W + 2, Cp), xp_ref.dtype)
    xp_ref[0:1, :, :] = zrow
    xp_ref[H + 1:H + 2, :, :] = zrow
    zcol = jnp.zeros((H, 1, Cp), xp_ref.dtype)
    xp_ref[1:H + 1, 0:1, :] = zcol
    xp_ref[1:H + 1, W + 1:W + 2, :] = zcol
    xp_ref[1:H + 1, 1:W + 1, :] = interior


def _conv3x3(xp_ref, w_ref, H, W, Cp):
    """3x3 SAME conv, per-kh grouped im2col.

    xp_ref: (H+2, W+2, Cp) bf16 halo buffer (border = 0).
    w_ref : (3, 3*Cp, Cp)  bf16 packed weights, (kw, cin) row order per kh.
    Returns (H*W, Cp) f32 — three K=3*Cp MXU dots accumulated in f32."""
    M = H * W
    acc = None
    for kh in range(3):
        slabs = [xp_ref[kh:kh + H, kw:kw + W, :].reshape(M, Cp)
                 for kw in range(3)]
        patches = jnp.concatenate(slabs, axis=-1)           # (M, 3*Cp) bf16
        part = jnp.dot(patches, w_ref[kh],
                       preferred_element_type=jnp.float32)  # (M, Cp) f32
        acc = part if acc is None else acc + part
    return acc


def _write_stats(stats_ref, y):
    """One-pass per-image BN statistics: [sum, sum_sq] over rows, f32."""
    s0 = jnp.sum(y, axis=0, keepdims=True)                  # (1, Cp)
    s1 = jnp.sum(y * y, axis=0, keepdims=True)              # (1, Cp)
    stats_ref[0] = jnp.concatenate([s0, s1], axis=0)        # (2, Cp)


# ------------------------------- kernels ---------------------------------
def _conv1_kernel(x_ref, w_ref, y_ref, stats_ref, xp_ref, *, H, W, Cp):
    """conv1 for one image + per-image BN1 partial statistics."""
    _fill_halo(xp_ref, x_ref[0].astype(xp_ref.dtype), H, W, Cp)
    y = _conv3x3(xp_ref, w_ref, H, W, Cp)                   # (M, Cp) f32
    _write_stats(stats_ref, y)
    y_ref[0] = y.reshape(H, W, Cp)


def _bn_relu_conv_kernel(y1_ref, scale_ref, shift_ref, w_ref,
                         y_ref, stats_ref, xp_ref, *, H, W, Cp):
    """bn1-apply (folded scale/shift) + relu + conv2 + BN2 partial stats."""
    M = H * W
    y1 = y1_ref[0].reshape(M, Cp)                           # f32
    y1 = jnp.maximum(y1 * scale_ref[...] + shift_ref[...], 0.0)
    _fill_halo(xp_ref, y1.reshape(H, W, Cp).astype(xp_ref.dtype), H, W, Cp)
    y = _conv3x3(xp_ref, w_ref, H, W, Cp)                   # (M, Cp) f32
    _write_stats(stats_ref, y)
    y_ref[0] = y.reshape(H, W, Cp)


def _bn_add_relu_kernel(y2_ref, x_ref, scale_ref, shift_ref, out_ref,
                        *, Cp):
    """bn2-apply (folded) + residual add + relu, all f32."""
    scale = scale_ref[...].reshape(1, 1, Cp)
    shift = shift_ref[...].reshape(1, 1, Cp)
    out_ref[0] = jnp.maximum(y2_ref[0] * scale + shift + x_ref[0], 0.0)


# ------------------------------- wrapper ----------------------------------
def _pack_w(w_hwio, C, Cp):
    """(3,3,C,C) -> (3, 3*Cp, Cp) bf16; row order per kh = (kw, cin)."""
    wp = jnp.zeros((3, 3, Cp, Cp), jnp.float32)
    wp = wp.at[:, :, :C, :C].set(w_hwio)
    return wp.reshape(3, 3 * Cp, Cp).astype(jnp.bfloat16)


def _pad_vec(v, Cp):
    C = v.shape[0]
    if C == Cp:
        return v
    return jnp.concatenate([v, jnp.zeros((Cp - C,), v.dtype)])


def _finalize_bn(stats, gamma_p, beta_p, count, eps=_BN_EPS):
    """(N, 2, Cp) per-image [sum, sum_sq] -> folded (1, Cp) scale / shift."""
    s = jnp.sum(stats, axis=0)                              # (2, Cp) f32
    mean = s[0] / count
    var = jnp.maximum(s[1] / count - mean * mean, 0.0)      # biased variance
    scale = gamma_p * jax.lax.rsqrt(var + eps)
    shift = beta_p - mean * scale
    return scale.reshape(1, -1), shift.reshape(1, -1)


def _mosaic_params(byte_estimate):
    limit = int(min(max(2 * byte_estimate + (8 << 20), 32 << 20), 64 << 20))
    return pltpu.CompilerParams(dimension_semantics=("parallel",),
                                vmem_limit_bytes=limit)


@jax.jit
def basic_block_forward(x_nhwc, w1_hwio, w2_hwio, g1, b1, g2, b2):
    """BasicBlock forward (stride=1, no downsample). NHWC f32 in / NHWC f32 out."""
    N, H, W, C = x_nhwc.shape
    Cp = _round_up(C, _LANE)
    M = H * W
    count = float(N * M)

    w1p = _pack_w(w1_hwio, C, Cp)
    w2p = _pack_w(w2_hwio, C, Cp)
    xp = x_nhwc if C == Cp else jnp.pad(
        x_nhwc, ((0, 0), (0, 0), (0, 0), (0, Cp - C)))      # lane-dense channels

    img_spec = pl.BlockSpec((1, H, W, Cp), lambda n: (n, 0, 0, 0))
    w_spec = pl.BlockSpec((3, 3 * Cp, Cp), lambda n: (0, 0, 0))   # resident
    vec_spec = pl.BlockSpec((1, Cp), lambda n: (0, 0))            # resident
    stats_spec = pl.BlockSpec((1, 2, Cp), lambda n: (n, 0, 0))
    halo_scratch = pltpu.VMEM((H + 2, W + 2, Cp), jnp.bfloat16)

    act_bytes = M * Cp * 4
    w_bytes = w1p.size * 2
    conv_vmem = (4 * act_bytes                      # image in/out blocks
                 + 4 * M * 3 * Cp * 2               # kw slabs + patch concat
                 + act_bytes                        # f32 accumulator
                 + w_bytes
                 + (H + 2) * (W + 2) * Cp * 2)      # halo scratch
    conv_cost = pl.CostEstimate(
        flops=2 * N * M * (9 * Cp) * Cp, transcendentals=0,
        bytes_accessed=2 * N * act_bytes + w_bytes + N * 2 * Cp * 4)

    # ---- pass 1: conv1 + per-image BN1 statistics -------------------------
    y1_raw, stats1 = pl.pallas_call(
        functools.partial(_conv1_kernel, H=H, W=W, Cp=Cp),
        grid=(N,),
        in_specs=[img_spec, w_spec],
        out_specs=[img_spec, stats_spec],
        out_shape=[jax.ShapeDtypeStruct((N, H, W, Cp), jnp.float32),
                   jax.ShapeDtypeStruct((N, 2, Cp), jnp.float32)],
        scratch_shapes=[halo_scratch],
        compiler_params=_mosaic_params(conv_vmem),
        cost_estimate=conv_cost,
    )(xp, w1p)

    scale1, shift1 = _finalize_bn(stats1, _pad_vec(g1, Cp), _pad_vec(b1, Cp),
                                  count)

    # ---- pass 2: bn1-apply + relu + conv2 + per-image BN2 statistics ------
    y2_raw, stats2 = pl.pallas_call(
        functools.partial(_bn_relu_conv_kernel, H=H, W=W, Cp=Cp),
        grid=(N,),
        in_specs=[img_spec, vec_spec, vec_spec, w_spec],
        out_specs=[img_spec, stats_spec],
        out_shape=[jax.ShapeDtypeStruct((N, H, W, Cp), jnp.float32),
                   jax.ShapeDtypeStruct((N, 2, Cp), jnp.float32)],
        scratch_shapes=[halo_scratch],
        compiler_params=_mosaic_params(conv_vmem),
        cost_estimate=conv_cost,
    )(y1_raw, scale1, shift1, w2p)

    scale2, shift2 = _finalize_bn(stats2, _pad_vec(g2, Cp), _pad_vec(b2, Cp),
                                  count)

    # ---- pass 3: bn2-apply + residual add + relu ---------------------------
    out = pl.pallas_call(
        functools.partial(_bn_add_relu_kernel, Cp=Cp),
        grid=(N,),
        in_specs=[img_spec, img_spec, vec_spec, vec_spec],
        out_specs=img_spec,
        out_shape=jax.ShapeDtypeStruct((N, H, W, Cp), jnp.float32),
        compiler_params=_mosaic_params(6 * act_bytes),
        cost_estimate=pl.CostEstimate(
            flops=4 * N * M * Cp, transcendentals=0,
            bytes_accessed=3 * N * act_bytes),
    )(y2_raw, xp, scale2, shift2)

    return out[..., :C]


# ---------------- pure-JAX reference (for verification) ----------------
def _bn_ref(y, gamma, beta, eps=_BN_EPS):
    mean = y.mean(axis=(0, 1, 2), keepdims=True)
    var = jnp.square(y - mean).mean(axis=(0, 1, 2), keepdims=True)
    return (y - mean) * jax.lax.rsqrt(var + eps) * gamma + beta


def reference_forward(x, w1_hwio, w2_hwio, g1, b1, g2, b2,
                      conv_dtype=jnp.float32):
    """Pure-JAX reference. conv_dtype=bf16 mirrors the kernel's MXU input cast."""
    dn = ("NHWC", "HWIO", "NHWC")

    def conv(a, w):
        return jax.lax.conv_general_dilated(
            a.astype(conv_dtype), w.astype(conv_dtype), (1, 1), "SAME",
            dimension_numbers=dn, preferred_element_type=jnp.float32)

    y = jnp.maximum(_bn_ref(conv(x, w1_hwio), g1, b1), 0.0)
    y = _bn_ref(conv(y, w2_hwio), g2, b2) + x
    return jnp.maximum(y, 0.0)


if __name__ == "__main__":
    key = jax.random.PRNGKey(0)
    N, C, H, W = 2, 4, 16, 16  # in_channels == out_channels, stride=1

    k1, k2, k3, k4, k5, k6, k7 = jax.random.split(key, 7)
    x_nchw = jax.random.normal(k1, (N, C, H, W), jnp.float32)
    x = jnp.transpose(x_nchw, (0, 2, 3, 1))  # NCHW -> NHWC

    std = (2.0 / (C * 9)) ** 0.5  # kaiming-like fan-in scale for 3x3 convs
    w1 = jax.random.normal(k2, (3, 3, C, C), jnp.float32) * std
    w2 = jax.random.normal(k3, (3, 3, C, C), jnp.float32) * std
    g1 = 1.0 + 0.1 * jax.random.normal(k4, (C,), jnp.float32)
    b1 = 0.1 * jax.random.normal(k5, (C,), jnp.float32)
    g2 = 1.0 + 0.1 * jax.random.normal(k6, (C,), jnp.float32)
    b2 = 0.1 * jax.random.normal(k7, (C,), jnp.float32)

    out = jax.block_until_ready(basic_block_forward(x, w1, w2, g1, b1, g2, b2))
    assert out.shape == (N, H, W, C), out.shape

    # Check against a reference that also feeds bf16 to the convs
    # (same MXU input precision as the kernel, f32 accumulation / BN).
    ref_bf16 = jax.block_until_ready(
        reference_forward(x, w1, w2, g1, b1, g2, b2, conv_dtype=jnp.bfloat16))
    err_bf16 = float(jnp.max(jnp.abs(out - ref_bf16)))
    assert err_bf16 < 5e-3, f"max abs error vs bf16-conv reference {err_bf16}"

    # Loose check against the exact f32 PyTorch-semantics reference
    # (difference bounded by bf16 quantization of the conv inputs).
    ref_f32 = jax.block_until_ready(
        reference_forward(x, w1, w2, g1, b1, g2, b2, conv_dtype=jnp.float32))
    err_f32 = float(jnp.max(jnp.abs(out - ref_f32)))
    assert err_f32 < 1e-1, f"max abs error vs f32 reference {err_f32}"

    print("KERNEL_OK")
</pallas_src>

<mosaic_0001>
module attributes {stable_mosaic.version = 11 : i64} {
  func.func @_bn_relu_conv_kernel(%arg0: i32, %arg1: memref<1x16x16x128xf32, #tpu.memory_space<vmem>>, %arg2: memref<1x128xf32, #tpu.memory_space<vmem>>, %arg3: memref<1x128xf32, #tpu.memory_space<vmem>>, %arg4: memref<3x384x128xbf16, #tpu.memory_space<vmem>>, %arg5: memref<1x16x16x128xf32, #tpu.memory_space<vmem>>, %arg6: memref<1x2x128xf32, #tpu.memory_space<vmem>>, %arg7: memref<18x18x128xbf16, #tpu.memory_space<vmem>>) attributes {dimension_semantics = [#tpu.dimension_semantics<parallel>], iteration_bounds = array<i64: 2>, scalar_prefetch = 0 : i64, scratch_operands = 1 : i64, tpu.core_type = #tpu.core_type<tc>, window_params = [{transform_indices = @transform_0, window_bounds = array<i64: 1, 16, 16, 128>}, {pipeline_mode = #tpu.pipeline_mode<synchronous>, transform_indices = @transform_1, window_bounds = array<i64: 1, 128>}, {pipeline_mode = #tpu.pipeline_mode<synchronous>, transform_indices = @transform_2, window_bounds = array<i64: 1, 128>}, {pipeline_mode = #tpu.pipeline_mode<synchronous>, transform_indices = @transform_3, window_bounds = array<i64: 3, 384, 128>}, {transform_indices = @transform_4, window_bounds = array<i64: 1, 16, 16, 128>}, {transform_indices = @transform_5, window_bounds = array<i64: 1, 2, 128>}]} {
    %c0 = arith.constant 0 : index
    %c0_0 = arith.constant 0 : index
    %c0_1 = arith.constant 0 : index
    %c0_2 = arith.constant 0 : index
    %0 = vector.load %arg1[%c0, %c0_0, %c0_1, %c0_2] : memref<1x16x16x128xf32, #tpu.memory_space<vmem>>, vector<1x16x16x128xf32>
    %1 = vector.shape_cast %0 : vector<1x16x16x128xf32> to vector<16x16x128xf32>
    %2 = vector.shape_cast %1 : vector<16x16x128xf32> to vector<256x128xf32>
    %c0_3 = arith.constant 0 : index
    %c0_4 = arith.constant 0 : index
    %3 = vector.load %arg2[%c0_3, %c0_4] : memref<1x128xf32, #tpu.memory_space<vmem>>, vector<1x128xf32>
    %4 = vector.broadcast %3 : vector<1x128xf32> to vector<256x128xf32>
    %5 = arith.mulf %2, %4 : vector<256x128xf32>
    %c0_5 = arith.constant 0 : index
    %c0_6 = arith.constant 0 : index
    %6 = vector.load %arg3[%c0_5, %c0_6] : memref<1x128xf32, #tpu.memory_space<vmem>>, vector<1x128xf32>
    %7 = vector.broadcast %6 : vector<1x128xf32> to vector<256x128xf32>
    %8 = arith.addf %5, %7 : vector<256x128xf32>
    %cst = arith.constant 0.000000e+00 : f32
    %9 = vector.broadcast %cst : f32 to vector<256x128xf32>
    %10 = arith.maximumf %8, %9 : vector<256x128xf32>
    %11 = vector.shape_cast %10 : vector<256x128xf32> to vector<16x16x128xf32>
    %12 = arith.truncf %11 : vector<16x16x128xf32> to vector<16x16x128xbf16>
    %cst_7 = arith.constant 0.000000e+00 : bf16
    %13 = vector.broadcast %cst_7 : bf16 to vector<1x18x128xbf16>
    %c0_8 = arith.constant 0 : index
    %c0_9 = arith.constant 0 : index
    %c0_10 = arith.constant 0 : index
    %14 = vector.load %arg7[%c0_8, %c0_9, %c0_10] : memref<18x18x128xbf16, #tpu.memory_space<vmem>>, vector<1x18x128xbf16>
    tpu.vector_store %arg7[%c0_8, %c0_9, %c0_10], %13 {strides = array<i32>} : memref<18x18x128xbf16, #tpu.memory_space<vmem>>, vector<1x18x128xbf16>,
    %c17 = arith.constant 17 : index
    %c0_11 = arith.constant 0 : index
    %c0_12 = arith.constant 0 : index
    %15 = vector.load %arg7[%c17, %c0_11, %c0_12] : memref<18x18x128xbf16, #tpu.memory_space<vmem>>, vector<1x18x128xbf16>
    tpu.vector_store %arg7[%c17, %c0_11, %c0_12], %13 {strides = array<i32>} : memref<18x18x128xbf16, #tpu.memory_space<vmem>>, vector<1x18x128xbf16>,
    %cst_13 = arith.constant 0.000000e+00 : bf16
    %16 = vector.broadcast %cst_13 : bf16 to vector<16x1x128xbf16>
    %c1 = arith.constant 1 : index
    %c0_14 = arith.constant 0 : index
    %c0_15 = arith.constant 0 : index
    %17 = vector.load %arg7[%c1, %c0_14, %c0_15] : memref<18x18x128xbf16, #tpu.memory_space<vmem>>, vector<16x1x128xbf16>
    tpu.vector_store %arg7[%c1, %c0_14, %c0_15], %16 {strides = array<i32>} : memref<18x18x128xbf16, #tpu.memory_space<vmem>>, vector<16x1x128xbf16>,
    %c1_16 = arith.constant 1 : index
    %c17_17 = arith.constant 17 : index
    %c0_18 = arith.constant 0 : index
    %18 = vector.load %arg7[%c1_16, %c17_17, %c0_18] : memref<18x18x128xbf16, #tpu.memory_space<vmem>>, vector<16x1x128xbf16>
    tpu.vector_store %arg7[%c1_16, %c17_17, %c0_18], %16 {strides = array<i32>} : memref<18x18x128xbf16, #tpu.memory_space<vmem>>, vector<16x1x128xbf16>,
    %c1_19 = arith.constant 1 : index
    %c1_20 = arith.constant 1 : index
    %c0_21 = arith.constant 0 : index
    %19 = vector.load %arg7[%c1_19, %c1_20, %c0_21] : memref<18x18x128xbf16, #tpu.memory_space<vmem>>, vector<16x16x128xbf16>
    tpu.vector_store %arg7[%c1_19, %c1_20, %c0_21], %12 {strides = array<i32>} : memref<18x18x128xbf16, #tpu.memory_space<vmem>>, vector<16x16x128xbf16>,
    %c0_22 = arith.constant 0 : index
    %c0_23 = arith.constant 0 : index
    %c0_24 = arith.constant 0 : index
    %20 = vector.load %arg7[%c0_22, %c0_23, %c0_24] : memref<18x18x128xbf16, #tpu.memory_space<vmem>>, vector<16x16x128xbf16>
    %21 = vector.shape_cast %20 : vector<16x16x128xbf16> to vector<256x128xbf16>
    %c0_25 = arith.constant 0 : index
    %c1_26 = arith.constant 1 : index
    %c0_27 = arith.constant 0 : index
    %22 = vector.load %arg7[%c0_25, %c1_26, %c0_27] : memref<18x18x128xbf16, #tpu.memory_space<vmem>>, vector<16x16x128xbf16>
    %23 = vector.shape_cast %22 : vector<16x16x128xbf16> to vector<256x128xbf16>
    %c0_28 = arith.constant 0 : index
    %c2 = arith.constant 2 : index
    %c0_29 = arith.constant 0 : index
    %24 = vector.load %arg7[%c0_28, %c2, %c0_29] : memref<18x18x128xbf16, #tpu.memory_space<vmem>>, vector<16x16x128xbf16>
    %25 = vector.shape_cast %24 : vector<16x16x128xbf16> to vector<256x128xbf16>
    %26 = tpu.concatenate %21, %23, %25 in 1 : vector<256x128xbf16>, vector<256x128xbf16>, vector<256x128xbf16> -> vector<256x384xbf16>
    %c0_30 = arith.constant 0 : index
    %c0_31 = arith.constant 0 : index
    %c0_32 = arith.constant 0 : index
    %27 = vector.load %arg4[%c0_30, %c0_31, %c0_32] : memref<3x384x128xbf16, #tpu.memory_space<vmem>>, vector<1x384x128xbf16>
    %28 = vector.shape_cast %27 : vector<1x384x128xbf16> to vector<384x128xbf16>
    %cst_33 = arith.constant dense<0.000000e+00> : vector<256x128xf32>
    %29 = tpu.matmul %26, %28, %cst_33 {dimension_numbers = #tpu.dot_dimension_numbers<[1], [0], [0], [1], [0, 0, 1, 1], [], []>} : vector<256x384xbf16>, vector<384x128xbf16>, vector<256x128xf32> -> vector<256x128xf32>
    %c1_34 = arith.constant 1 : index
    %c0_35 = arith.constant 0 : index
    %c0_36 = arith.constant 0 : index
    %30 = vector.load %arg7[%c1_34, %c0_35, %c0_36] : memref<18x18x128xbf16, #tpu.memory_space<vmem>>, vector<16x16x128xbf16>
    %31 = vector.shape_cast %30 : vector<16x16x128xbf16> to vector<256x128xbf16>
    %c1_37 = arith.constant 1 : index
    %c1_38 = arith.constant 1 : index
    %c0_39 = arith.constant 0 : index
    %32 = vector.load %arg7[%c1_37, %c1_38, %c0_39] : memref<18x18x128xbf16, #tpu.memory_space<vmem>>, vector<16x16x128xbf16>
    %33 = vector.shape_cast %32 : vector<16x16x128xbf16> to vector<256x128xbf16>
    %c1_40 = arith.constant 1 : index
    %c2_41 = arith.constant 2 : index
    %c0_42 = arith.constant 0 : index
    %34 = vector.load %arg7[%c1_40, %c2_41, %c0_42] : memref<18x18x128xbf16, #tpu.memory_space<vmem>>, vector<16x16x128xbf16>
    %35 = vector.shape_cast %34 : vector<16x16x128xbf16> to vector<256x128xbf16>
    %36 = tpu.concatenate %31, %33, %35 in 1 : vector<256x128xbf16>, vector<256x128xbf16>, vector<256x128xbf16> -> vector<256x384xbf16>
    %c1_43 = arith.constant 1 : index
    %c0_44 = arith.constant 0 : index
    %c0_45 = arith.constant 0 : index
    %37 = vector.load %arg4[%c1_43, %c0_44, %c0_45] : memref<3x384x128xbf16, #tpu.memory_space<vmem>>, vector<1x384x128xbf16>
    %38 = vector.shape_cast %37 : vector<1x384x128xbf16> to vector<384x128xbf16>
    %cst_46 = arith.constant dense<0.000000e+00> : vector<256x128xf32>
    %39 = tpu.matmul %36, %38, %cst_46 {dimension_numbers = #tpu.dot_dimension_numbers<[1], [0], [0], [1], [0, 0, 1, 1], [], []>} : vector<256x384xbf16>, vector<384x128xbf16>, vector<256x128xf32> -> vector<256x128xf32>
    %40 = arith.addf %29, %39 : vector<256x128xf32>
    %c2_47 = arith.constant 2 : index
    %c0_48 = arith.constant 0 : index
    %c0_49 = arith.constant 0 : index
    %41 = vector.load %arg7[%c2_47, %c0_48, %c0_49] : memref<18x18x128xbf16, #tpu.memory_space<vmem>>, vector<16x16x128xbf16>
    %42 = vector.shape_cast %41 : vector<16x16x128xbf16> to vector<256x128xbf16>
    %c2_50 = arith.constant 2 : index
    %c1_51 = arith.constant 1 : index
    %c0_52 = arith.constant 0 : index
    %43 = vector.load %arg7[%c2_50, %c1_51, %c0_52] : memref<18x18x128xbf16, #tpu.memory_space<vmem>>, vector<16x16x128xbf16>
    %44 = vector.shape_cast %43 : vector<16x16x128xbf16> to vector<256x128xbf16>
    %c2_53 = arith.constant 2 : index
    %c2_54 = arith.constant 2 : index
    %c0_55 = arith.constant 0 : index
    %45 = vector.load %arg7[%c2_53, %c2_54, %c0_55] : memref<18x18x128xbf16, #tpu.memory_space<vmem>>, vector<16x16x128xbf16>
    %46 = vector.shape_cast %45 : vector<16x16x128xbf16> to vector<256x128xbf16>
    %47 = tpu.concatenate %42, %44, %46 in 1 : vector<256x128xbf16>, vector<256x128xbf16>, vector<256x128xbf16> -> vector<256x384xbf16>
    %c2_56 = arith.constant 2 : index
    %c0_57 = arith.constant 0 : index
    %c0_58 = arith.constant 0 : index
    %48 = vector.load %arg4[%c2_56, %c0_57, %c0_58] : memref<3x384x128xbf16, #tpu.memory_space<vmem>>, vector<1x384x128xbf16>
    %49 = vector.shape_cast %48 : vector<1x384x128xbf16> to vector<384x128xbf16>
    %cst_59 = arith.constant dense<0.000000e+00> : vector<256x128xf32>
    %50 = tpu.matmul %47, %49, %cst_59 {dimension_numbers = #tpu.dot_dimension_numbers<[1], [0], [0], [1], [0, 0, 1, 1], [], []>} : vector<256x384xbf16>, vector<384x128xbf16>, vector<256x128xf32> -> vector<256x128xf32>
    %51 = arith.addf %40, %50 : vector<256x128xf32>
    %cst_60 = arith.constant dense<0.000000e+00> : vector<128xf32>
    %52 = vector.multi_reduction <add>, %51, %cst_60 [0] : vector<256x128xf32> to vector<128xf32>
    %53 = vector.shape_cast %52 : vector<128xf32> to vector<1x128xf32>
    %54 = arith.mulf %51, %51 : vector<256x128xf32>
    %cst_61 = arith.constant dense<0.000000e+00> : vector<128xf32>
    %55 = vector.multi_reduction <add>, %54, %cst_61 [0] : vector<256x128xf32> to vector<128xf32>
    %56 = vector.shape_cast %55 : vector<128xf32> to vector<1x128xf32>
    %57 = tpu.concatenate %53, %56 in 0 : vector<1x128xf32>, vector<1x128xf32> -> vector<2x128xf32>
    %c0_62 = arith.constant 0 : index
    %c0_63 = arith.constant 0 : index
    %c0_64 = arith.constant 0 : index
    %58 = vector.load %arg6[%c0_62, %c0_63, %c0_64] : memref<1x2x128xf32, #tpu.memory_space<vmem>>, vector<1x2x128xf32>
    %59 = vector.shape_cast %58 : vector<1x2x128xf32> to vector<2x128xf32>
    %60 = vector.shape_cast %57 : vector<2x128xf32> to vector<1x2x128xf32>
    tpu.vector_store %arg6[%c0_62, %c0_63, %c0_64], %60 {strides = array<i32>} : memref<1x2x128xf32, #tpu.memory_space<vmem>>, vector<1x2x128xf32>,
    %61 = vector.shape_cast %51 : vector<256x128xf32> to vector<16x16x128xf32>
    %c0_65 = arith.constant 0 : index
    %c0_66 = arith.constant 0 : index
    %c0_67 = arith.constant 0 : index
    %c0_68 = arith.constant 0 : index
    %62 = vector.load %arg5[%c0_65, %c0_66, %c0_67, %c0_68] : memref<1x16x16x128xf32, #tpu.memory_space<vmem>>, vector<1x16x16x128xf32>
    %63 = vector.shape_cast %62 : vector<1x16x16x128xf32> to vector<16x16x128xf32>
    %64 = vector.shape_cast %61 : vector<16x16x128xf32> to vector<1x16x16x128xf32>
    tpu.vector_store %arg5[%c0_65, %c0_66, %c0_67, %c0_68], %64 {strides = array<i32>} : memref<1x16x16x128xf32, #tpu.memory_space<vmem>>, vector<1x16x16x128xf32>,
    return
  }
  func.func @transform_0(%arg0: i32) -> (i32, i32, i32, i32) {
    %c0_i32 = arith.constant 0 : i32
    %c0_i32_0 = arith.constant 0 : i32
    %c0_i32_1 = arith.constant 0 : i32
    %c0_i32_2 = arith.constant 0 : i32
    return %arg0, %c0_i32, %c0_i32_0, %c0_i32_1 : i32, i32, i32, i32
  }
  func.func @transform_1(%arg0: i32) -> (i32, i32) {
    %c0_i32 = arith.constant 0 : i32
    %c0_i32_0 = arith.constant 0 : i32
    %c0_i32_1 = arith.constant 0 : i32
    return %c0_i32, %c0_i32_0 : i32, i32
  }
  func.func @transform_2(%arg0: i32) -> (i32, i32) {
    %c0_i32 = arith.constant 0 : i32
    %c0_i32_0 = arith.constant 0 : i32
    %c0_i32_1 = arith.constant 0 : i32
    return %c0_i32, %c0_i32_0 : i32, i32
  }
  func.func @transform_3(%arg0: i32) -> (i32, i32, i32) {
    %c0_i32 = arith.constant 0 : i32
    %c0_i32_0 = arith.constant 0 : i32
    %c0_i32_1 = arith.constant 0 : i32
    %c0_i32_2 = arith.constant 0 : i32
    return %c0_i32, %c0_i32_0, %c0_i32_1 : i32, i32, i32
  }
  func.func @transform_4(%arg0: i32) -> (i32, i32, i32, i32) {
    %c0_i32 = arith.constant 0 : i32
    %c0_i32_0 = arith.constant 0 : i32
    %c0_i32_1 = arith.constant 0 : i32
    %c0_i32_2 = arith.constant 0 : i32
    return %arg0, %c0_i32, %c0_i32_0, %c0_i32_1 : i32, i32, i32, i32
  }
  func.func @transform_5(%arg0: i32) -> (i32, i32, i32) {
    %c0_i32 = arith.constant 0 : i32
    %c0_i32_0 = arith.constant 0 : i32
    %c0_i32_1 = arith.constant 0 : i32
    return %arg0, %c0_i32, %c0_i32_0 : i32, i32, i32
  }
}

module attributes {stable_mosaic.version = 11 : i64} {
  func.func @_conv1_kernel(%arg0: i32, %arg1: memref<1x16x16x128xf32, #tpu.memory_space<vmem>>, %arg2: memref<3x384x128xbf16, #tpu.memory_space<vmem>>, %arg3: memref<1x16x16x128xf32, #tpu.memory_space<vmem>>, %arg4: memref<1x2x128xf32, #tpu.memory_space<vmem>>, %arg5: memref<18x18x128xbf16, #tpu.memory_space<vmem>>) attributes {dimension_semantics = [#tpu.dimension_semantics<parallel>], iteration_bounds = array<i64: 2>, scalar_prefetch = 0 : i64, scratch_operands = 1 : i64, tpu.core_type = #tpu.core_type<tc>, window_params = [{transform_indices = @transform_0, window_bounds = array<i64: 1, 16, 16, 128>}, {pipeline_mode = #tpu.pipeline_mode<synchronous>, transform_indices = @transform_1, window_bounds = array<i64: 3, 384, 128>}, {transform_indices = @transform_2, window_bounds = array<i64: 1, 16, 16, 128>}, {transform_indices = @transform_3, window_bounds = array<i64: 1, 2, 128>}]} {
    %c0 = arith.constant 0 : index
    %c0_0 = arith.constant 0 : index
    %c0_1 = arith.constant 0 : index
    %c0_2 = arith.constant 0 : index
    %0 = vector.load %arg1[%c0, %c0_0, %c0_1, %c0_2] : memref<1x16x16x128xf32, #tpu.memory_space<vmem>>, vector<1x16x16x128xf32>
    %1 = vector.shape_cast %0 : vector<1x16x16x128xf32> to vector<16x16x128xf32>
    %2 = arith.truncf %1 : vector<16x16x128xf32> to vector<16x16x128xbf16>
    %cst = arith.constant 0.000000e+00 : bf16
    %3 = vector.broadcast %cst : bf16 to vector<1x18x128xbf16>
    %c0_3 = arith.constant 0 : index
    %c0_4 = arith.constant 0 : index
    %c0_5 = arith.constant 0 : index
    %4 = vector.load %arg5[%c0_3, %c0_4, %c0_5] : memref<18x18x128xbf16, #tpu.memory_space<vmem>>, vector<1x18x128xbf16>
    tpu.vector_store %arg5[%c0_3, %c0_4, %c0_5], %3 {strides = array<i32>} : memref<18x18x128xbf16, #tpu.memory_space<vmem>>, vector<1x18x128xbf16>,
    %c17 = arith.constant 17 : index
    %c0_6 = arith.constant 0 : index
    %c0_7 = arith.constant 0 : index
    %5 = vector.load %arg5[%c17, %c0_6, %c0_7] : memref<18x18x128xbf16, #tpu.memory_space<vmem>>, vector<1x18x128xbf16>
    tpu.vector_store %arg5[%c17, %c0_6, %c0_7], %3 {strides = array<i32>} : memref<18x18x128xbf16, #tpu.memory_space<vmem>>, vector<1x18x128xbf16>,
    %cst_8 = arith.constant 0.000000e+00 : bf16
    %6 = vector.broadcast %cst_8 : bf16 to vector<16x1x128xbf16>
    %c1 = arith.constant 1 : index
    %c0_9 = arith.constant 0 : index
    %c0_10 = arith.constant 0 : index
    %7 = vector.load %arg5[%c1, %c0_9, %c0_10] : memref<18x18x128xbf16, #tpu.memory_space<vmem>>, vector<16x1x128xbf16>
    tpu.vector_store %arg5[%c1, %c0_9, %c0_10], %6 {strides = array<i32>} : memref<18x18x128xbf16, #tpu.memory_space<vmem>>, vector<16x1x128xbf16>,
    %c1_11 = arith.constant 1 : index
    %c17_12 = arith.constant 17 : index
    %c0_13 = arith.constant 0 : index
    %8 = vector.load %arg5[%c1_11, %c17_12, %c0_13] : memref<18x18x128xbf16, #tpu.memory_space<vmem>>, vector<16x1x128xbf16>
    tpu.vector_store %arg5[%c1_11, %c17_12, %c0_13], %6 {strides = array<i32>} : memref<18x18x128xbf16, #tpu.memory_space<vmem>>, vector<16x1x128xbf16>,
    %c1_14 = arith.constant 1 : index
    %c1_15 = arith.constant 1 : index
    %c0_16 = arith.constant 0 : index
    %9 = vector.load %arg5[%c1_14, %c1_15, %c0_16] : memref<18x18x128xbf16, #tpu.memory_space<vmem>>, vector<16x16x128xbf16>
    tpu.vector_store %arg5[%c1_14, %c1_15, %c0_16], %2 {strides = array<i32>} : memref<18x18x128xbf16, #tpu.memory_space<vmem>>, vector<16x16x128xbf16>,
    %c0_17 = arith.constant 0 : index
    %c0_18 = arith.constant 0 : index
    %c0_19 = arith.constant 0 : index
    %10 = vector.load %arg5[%c0_17, %c0_18, %c0_19] : memref<18x18x128xbf16, #tpu.memory_space<vmem>>, vector<16x16x128xbf16>
    %11 = vector.shape_cast %10 : vector<16x16x128xbf16> to vector<256x128xbf16>
    %c0_20 = arith.constant 0 : index
    %c1_21 = arith.constant 1 : index
    %c0_22 = arith.constant 0 : index
    %12 = vector.load %arg5[%c0_20, %c1_21, %c0_22] : memref<18x18x128xbf16, #tpu.memory_space<vmem>>, vector<16x16x128xbf16>
    %13 = vector.shape_cast %12 : vector<16x16x128xbf16> to vector<256x128xbf16>
    %c0_23 = arith.constant 0 : index
    %c2 = arith.constant 2 : index
    %c0_24 = arith.constant 0 : index
    %14 = vector.load %arg5[%c0_23, %c2, %c0_24] : memref<18x18x128xbf16, #tpu.memory_space<vmem>>, vector<16x16x128xbf16>
    %15 = vector.shape_cast %14 : vector<16x16x128xbf16> to vector<256x128xbf16>
    %16 = tpu.concatenate %11, %13, %15 in 1 : vector<256x128xbf16>, vector<256x128xbf16>, vector<256x128xbf16> -> vector<256x384xbf16>
    %c0_25 = arith.constant 0 : index
    %c0_26 = arith.constant 0 : index
    %c0_27 = arith.constant 0 : index
    %17 = vector.load %arg2[%c0_25, %c0_26, %c0_27] : memref<3x384x128xbf16, #tpu.memory_space<vmem>>, vector<1x384x128xbf16>
    %18 = vector.shape_cast %17 : vector<1x384x128xbf16> to vector<384x128xbf16>
    %cst_28 = arith.constant dense<0.000000e+00> : vector<256x128xf32>
    %19 = tpu.matmul %16, %18, %cst_28 {dimension_numbers = #tpu.dot_dimension_numbers<[1], [0], [0], [1], [0, 0, 1, 1], [], []>} : vector<256x384xbf16>, vector<384x128xbf16>, vector<256x128xf32> -> vector<256x128xf32>
    %c1_29 = arith.constant 1 : index
    %c0_30 = arith.constant 0 : index
    %c0_31 = arith.constant 0 : index
    %20 = vector.load %arg5[%c1_29, %c0_30, %c0_31] : memref<18x18x128xbf16, #tpu.memory_space<vmem>>, vector<16x16x128xbf16>
    %21 = vector.shape_cast %20 : vector<16x16x128xbf16> to vector<256x128xbf16>
    %c1_32 = arith.constant 1 : index
    %c1_33 = arith.constant 1 : index
    %c0_34 = arith.constant 0 : index
    %22 = vector.load %arg5[%c1_32, %c1_33, %c0_34] : memref<18x18x128xbf16, #tpu.memory_space<vmem>>, vector<16x16x128xbf16>
    %23 = vector.shape_cast %22 : vector<16x16x128xbf16> to vector<256x128xbf16>
    %c1_35 = arith.constant 1 : index
    %c2_36 = arith.constant 2 : index
    %c0_37 = arith.constant 0 : index
    %24 = vector.load %arg5[%c1_35, %c2_36, %c0_37] : memref<18x18x128xbf16, #tpu.memory_space<vmem>>, vector<16x16x128xbf16>
    %25 = vector.shape_cast %24 : vector<16x16x128xbf16> to vector<256x128xbf16>
    %26 = tpu.concatenate %21, %23, %25 in 1 : vector<256x128xbf16>, vector<256x128xbf16>, vector<256x128xbf16> -> vector<256x384xbf16>
    %c1_38 = arith.constant 1 : index
    %c0_39 = arith.constant 0 : index
    %c0_40 = arith.constant 0 : index
    %27 = vector.load %arg2[%c1_38, %c0_39, %c0_40] : memref<3x384x128xbf16, #tpu.memory_space<vmem>>, vector<1x384x128xbf16>
    %28 = vector.shape_cast %27 : vector<1x384x128xbf16> to vector<384x128xbf16>
    %cst_41 = arith.constant dense<0.000000e+00> : vector<256x128xf32>
    %29 = tpu.matmul %26, %28, %cst_41 {dimension_numbers = #tpu.dot_dimension_numbers<[1], [0], [0], [1], [0, 0, 1, 1], [], []>} : vector<256x384xbf16>, vector<384x128xbf16>, vector<256x128xf32> -> vector<256x128xf32>
    %30 = arith.addf %19, %29 : vector<256x128xf32>
    %c2_42 = arith.constant 2 : index
    %c0_43 = arith.constant 0 : index
    %c0_44 = arith.constant 0 : index
    %31 = vector.load %arg5[%c2_42, %c0_43, %c0_44] : memref<18x18x128xbf16, #tpu.memory_space<vmem>>, vector<16x16x128xbf16>
    %32 = vector.shape_cast %31 : vector<16x16x128xbf16> to vector<256x128xbf16>
    %c2_45 = arith.constant 2 : index
    %c1_46 = arith.constant 1 : index
    %c0_47 = arith.constant 0 : index
    %33 = vector.load %arg5[%c2_45, %c1_46, %c0_47] : memref<18x18x128xbf16, #tpu.memory_space<vmem>>, vector<16x16x128xbf16>
    %34 = vector.shape_cast %33 : vector<16x16x128xbf16> to vector<256x128xbf16>
    %c2_48 = arith.constant 2 : index
    %c2_49 = arith.constant 2 : index
    %c0_50 = arith.constant 0 : index
    %35 = vector.load %arg5[%c2_48, %c2_49, %c0_50] : memref<18x18x128xbf16, #tpu.memory_space<vmem>>, vector<16x16x128xbf16>
    %36 = vector.shape_cast %35 : vector<16x16x128xbf16> to vector<256x128xbf16>
    %37 = tpu.concatenate %32, %34, %36 in 1 : vector<256x128xbf16>, vector<256x128xbf16>, vector<256x128xbf16> -> vector<256x384xbf16>
    %c2_51 = arith.constant 2 : index
    %c0_52 = arith.constant 0 : index
    %c0_53 = arith.constant 0 : index
    %38 = vector.load %arg2[%c2_51, %c0_52, %c0_53] : memref<3x384x128xbf16, #tpu.memory_space<vmem>>, vector<1x384x128xbf16>
    %39 = vector.shape_cast %38 : vector<1x384x128xbf16> to vector<384x128xbf16>
    %cst_54 = arith.constant dense<0.000000e+00> : vector<256x128xf32>
    %40 = tpu.matmul %37, %39, %cst_54 {dimension_numbers = #tpu.dot_dimension_numbers<[1], [0], [0], [1], [0, 0, 1, 1], [], []>} : vector<256x384xbf16>, vector<384x128xbf16>, vector<256x128xf32> -> vector<256x128xf32>
    %41 = arith.addf %30, %40 : vector<256x128xf32>
    %cst_55 = arith.constant dense<0.000000e+00> : vector<128xf32>
    %42 = vector.multi_reduction <add>, %41, %cst_55 [0] : vector<256x128xf32> to vector<128xf32>
    %43 = vector.shape_cast %42 : vector<128xf32> to vector<1x128xf32>
    %44 = arith.mulf %41, %41 : vector<256x128xf32>
    %cst_56 = arith.constant dense<0.000000e+00> : vector<128xf32>
    %45 = vector.multi_reduction <add>, %44, %cst_56 [0] : vector<256x128xf32> to vector<128xf32>
    %46 = vector.shape_cast %45 : vector<128xf32> to vector<1x128xf32>
    %47 = tpu.concatenate %43, %46 in 0 : vector<1x128xf32>, vector<1x128xf32> -> vector<2x128xf32>
    %c0_57 = arith.constant 0 : index
    %c0_58 = arith.constant 0 : index
    %c0_59 = arith.constant 0 : index
    %48 = vector.load %arg4[%c0_57, %c0_58, %c0_59] : memref<1x2x128xf32, #tpu.memory_space<vmem>>, vector<1x2x128xf32>
    %49 = vector.shape_cast %48 : vector<1x2x128xf32> to vector<2x128xf32>
    %50 = vector.shape_cast %47 : vector<2x128xf32> to vector<1x2x128xf32>
    tpu.vector_store %arg4[%c0_57, %c0_58, %c0_59], %50 {strides = array<i32>} : memref<1x2x128xf32, #tpu.memory_space<vmem>>, vector<1x2x128xf32>,
    %51 = vector.shape_cast %41 : vector<256x128xf32> to vector<16x16x128xf32>
    %c0_60 = arith.constant 0 : index
    %c0_61 = arith.constant 0 : index
    %c0_62 = arith.constant 0 : index
    %c0_63 = arith.constant 0 : index
    %52 = vector.load %arg3[%c0_60, %c0_61, %c0_62, %c0_63] : memref<1x16x16x128xf32, #tpu.memory_space<vmem>>, vector<1x16x16x128xf32>
    %53 = vector.shape_cast %52 : vector<1x16x16x128xf32> to vector<16x16x128xf32>
    %54 = vector.shape_cast %51 : vector<16x16x128xf32> to vector<1x16x16x128xf32>
    tpu.vector_store %arg3[%c0_60, %c0_61, %c0_62, %c0_63], %54 {strides = array<i32>} : memref<1x16x16x128xf32, #tpu.memory_space<vmem>>, vector<1x16x16x128xf32>,
    return
  }
  func.func @transform_0(%arg0: i32) -> (i32, i32, i32, i32) {
    %c0_i32 = arith.constant 0 : i32
    %c0_i32_0 = arith.constant 0 : i32
    %c0_i32_1 = arith.constant 0 : i32
    %c0_i32_2 = arith.constant 0 : i32
    return %arg0, %c0_i32, %c0_i32_0, %c0_i32_1 : i32, i32, i32, i32
  }
  func.func @transform_1(%arg0: i32) -> (i32, i32, i32) {
    %c0_i32 = arith.constant 0 : i32
    %c0_i32_0 = arith.constant 0 : i32
    %c0_i32_1 = arith.constant 0 : i32
    %c0_i32_2 = arith.constant 0 : i32
    return %c0_i32, %c0_i32_0, %c0_i32_1 : i32, i32, i32
  }
  func.func @transform_2(%arg0: i32) -> (i32, i32, i32, i32) {
    %c0_i32 = arith.constant 0 : i32
    %c0_i32_0 = arith.constant 0 : i32
    %c0_i32_1 = arith.constant 0 : i32
    %c0_i32_2 = arith.constant 0 : i32
    return %arg0, %c0_i32, %c0_i32_0, %c0_i32_1 : i32, i32, i32, i32
  }
  func.func @transform_3(%arg0: i32) -> (i32, i32, i32) {
    %c0_i32 = arith.constant 0 : i32
    %c0_i32_0 = arith.constant 0 : i32
    %c0_i32_1 = arith.constant 0 : i32
    return %arg0, %c0_i32, %c0_i32_0 : i32, i32, i32
  }
}

module attributes {stable_mosaic.version = 11 : i64} {
  func.func @_bn_add_relu_kernel(%arg0: i32, %arg1: memref<1x16x16x128xf32, #tpu.memory_space<vmem>>, %arg2: memref<1x16x16x128xf32, #tpu.memory_space<vmem>>, %arg3: memref<1x128xf32, #tpu.memory_space<vmem>>, %arg4: memref<1x128xf32, #tpu.memory_space<vmem>>, %arg5: memref<1x16x16x128xf32, #tpu.memory_space<vmem>>) attributes {dimension_semantics = [#tpu.dimension_semantics<parallel>], iteration_bounds = array<i64: 2>, scalar_prefetch = 0 : i64, scratch_operands = 0 : i64, tpu.core_type = #tpu.core_type<tc>, window_params = [{transform_indices = @transform_0, window_bounds = array<i64: 1, 16, 16, 128>}, {transform_indices = @transform_1, window_bounds = array<i64: 1, 16, 16, 128>}, {pipeline_mode = #tpu.pipeline_mode<synchronous>, transform_indices = @transform_2, window_bounds = array<i64: 1, 128>}, {pipeline_mode = #tpu.pipeline_mode<synchronous>, transform_indices = @transform_3, window_bounds = array<i64: 1, 128>}, {transform_indices = @transform_4, window_bounds = array<i64: 1, 16, 16, 128>}]} {
    %c0 = arith.constant 0 : index
    %c0_0 = arith.constant 0 : index
    %0 = vector.load %arg3[%c0, %c0_0] : memref<1x128xf32, #tpu.memory_space<vmem>>, vector<1x128xf32>
    %1 = vector.shape_cast %0 : vector<1x128xf32> to vector<1x1x128xf32>
    %c0_1 = arith.constant 0 : index
    %c0_2 = arith.constant 0 : index
    %2 = vector.load %arg4[%c0_1, %c0_2] : memref<1x128xf32, #tpu.memory_space<vmem>>, vector<1x128xf32>
    %3 = vector.shape_cast %2 : vector<1x128xf32> to vector<1x1x128xf32>
    %c0_3 = arith.constant 0 : index
    %c0_4 = arith.constant 0 : index
    %c0_5 = arith.constant 0 : index
    %c0_6 = arith.constant 0 : index
    %4 = vector.load %arg1[%c0_3, %c0_4, %c0_5, %c0_6] : memref<1x16x16x128xf32, #tpu.memory_space<vmem>>, vector<1x16x16x128xf32>
    %5 = vector.shape_cast %4 : vector<1x16x16x128xf32> to vector<16x16x128xf32>
    %6 = vector.broadcast %1 : vector<1x1x128xf32> to vector<16x16x128xf32>
    %7 = arith.mulf %5, %6 : vector<16x16x128xf32>
    %8 = vector.broadcast %3 : vector<1x1x128xf32> to vector<16x16x128xf32>
    %9 = arith.addf %7, %8 : vector<16x16x128xf32>
    %c0_7 = arith.constant 0 : index
    %c0_8 = arith.constant 0 : index
    %c0_9 = arith.constant 0 : index
    %c0_10 = arith.constant 0 : index
    %10 = vector.load %arg2[%c0_7, %c0_8, %c0_9, %c0_10] : memref<1x16x16x128xf32, #tpu.memory_space<vmem>>, vector<1x16x16x128xf32>
    %11 = vector.shape_cast %10 : vector<1x16x16x128xf32> to vector<16x16x128xf32>
    %12 = arith.addf %9, %11 : vector<16x16x128xf32>
    %cst = arith.constant 0.000000e+00 : f32
    %13 = vector.broadcast %cst : f32 to vector<16x16x128xf32>
    %14 = arith.maximumf %12, %13 : vector<16x16x128xf32>
    %c0_11 = arith.constant 0 : index
    %c0_12 = arith.constant 0 : index
    %c0_13 = arith.constant 0 : index
    %c0_14 = arith.constant 0 : index
    %15 = vector.load %arg5[%c0_11, %c0_12, %c0_13, %c0_14] : memref<1x16x16x128xf32, #tpu.memory_space<vmem>>, vector<1x16x16x128xf32>
    %16 = vector.shape_cast %15 : vector<1x16x16x128xf32> to vector<16x16x128xf32>
    %17 = vector.shape_cast %14 : vector<16x16x128xf32> to vector<1x16x16x128xf32>
    tpu.vector_store %arg5[%c0_11, %c0_12, %c0_13, %c0_14], %17 {strides = array<i32>} : memref<1x16x16x128xf32, #tpu.memory_space<vmem>>, vector<1x16x16x128xf32>,
    return
  }
  func.func @transform_0(%arg0: i32) -> (i32, i32, i32, i32) {
    %c0_i32 = arith.constant 0 : i32
    %c0_i32_0 = arith.constant 0 : i32
    %c0_i32_1 = arith.constant 0 : i32
    %c0_i32_2 = arith.constant 0 : i32
    return %arg0, %c0_i32, %c0_i32_0, %c0_i32_1 : i32, i32, i32, i32
  }
  func.func @transform_1(%arg0: i32) -> (i32, i32, i32, i32) {
    %c0_i32 = arith.constant 0 : i32
    %c0_i32_0 = arith.constant 0 : i32
    %c0_i32_1 = arith.constant 0 : i32
    %c0_i32_2 = arith.constant 0 : i32
    return %arg0, %c0_i32, %c0_i32_0, %c0_i32_1 : i32, i32, i32, i32
  }
  func.func @transform_2(%arg0: i32) -> (i32, i32) {
    %c0_i32 = arith.constant 0 : i32
    %c0_i32_0 = arith.constant 0 : i32
    %c0_i32_1 = arith.constant 0 : i32
    return %c0_i32, %c0_i32_0 : i32, i32
  }
  func.func @transform_3(%arg0: i32) -> (i32, i32) {
    %c0_i32 = arith.constant 0 : i32
    %c0_i32_0 = arith.constant 0 : i32
    %c0_i32_1 = arith.constant 0 : i32
    return %c0_i32, %c0_i32_0 : i32, i32
  }
  func.func @transform_4(%arg0: i32) -> (i32, i32, i32, i32) {
    %c0_i32 = arith.constant 0 : i32
    %c0_i32_0 = arith.constant 0 : i32
    %c0_i32_1 = arith.constant 0 : i32
    %c0_i32_2 = arith.constant 0 : i32
    return %arg0, %c0_i32, %c0_i32_0, %c0_i32_1 : i32, i32, i32, i32
  }
}

</mosaic_0001>

<llo_original>
// kernel: basic_block_forward.5
$region0: #{basic_block_forward.5}
  #allocation0 [shape = 'u32[]', space=smem, size = 0x4, offset = 0x4, fixed_abs, tag = 'smem constant byte address 0x4 - core index']
  #allocation1 [shape = 'u32[72,128]{1,0:T(1,128)}', space=vmem, size = 0x9000, scoped, tag = 'internal scratch']
  %s0 = inlined_call_operand.vmem [shape: f32[2,16,16,128], index: 0, kind: input, shape index: {}]
  %s1 = inlined_call_operand.vmem [shape: f32[2,16,16,128], index: 1, kind: input, shape index: {}]
  %s2 = inlined_call_operand.vmem [shape: f32[1,128], index: 2, kind: input, shape index: {}]
  %s3 = inlined_call_operand.vmem [shape: f32[1,128], index: 3, kind: input, shape index: {}]
  %s4 = inlined_call_operand.vmem [shape: f32[2,16,16,128], index: 4, kind: output, shape index: {}]
  %s5 = sld [smem:[#allocation0]]
  $region49: #{basic_block_forward.5} parent=0
    _
  %s7 = ssub.s32 1, %s5
  %s8 = scalar_select 0, %s7, %s5
  loop: start=0, step=1, limit=4
  $region2: #{basic_block_forward.5} parent=0 // loop_pre_header
    _
  $region3: #{basic_block_forward.5} parent=0 // loop_header
    %s10 = sphi 0, %s14
    %p11 = scmp.ge.s32.totalorder %s10, 4
    %s20 = sphi 0, %s22
    %s23 = sphi 0, %s20
    %s24 = sphi 0, %s23
    %s40 = sphi 0, %s24
    %s46 = sphi 0, %s48
    %s49 = sphi 0, %s46
    %s50 = sphi 0, %s49
    %s66 = sphi 0, %s50
    %s70 = sphi 0, %s70
    %s72 = sphi 0, %s70
    %s73 = sphi 0, %s72
    %s87 = sphi 0, %s73
    %s91 = sphi 0, %s91
    %s93 = sphi 0, %s91
    %s94 = sphi 0, %s93
    %s108 = sphi 0, %s94
    %s114 = sphi 0, %s116
    %s117 = sphi 0, %s114
    %s118 = sphi 0, %s117
    %s134 = sphi 0, %s118
  $region4: #{basic_block_forward.5} parent=0 // loop_header_branch
    %13 = sbr.rel (%p11) target = $region8
  $region5: #{basic_block_forward.5} parent=0 // loop_body
    %s15 = ssub.s32 %s10, 1
    %s16 = ssub.s32 %s10, 2
    %s17 = sadd.s32 %s10, 1
    %s18 = ssub.s32 %s10, %s17
    %p19 = scmp.eq.s32.totalorder %s18, 0
    %s21 = sadd.s32 %s20, 1
    %s22 = scalar_select %p19, %s20, %s21
    %p25 = pneg %p19
    %p26 = scmp.eq.s32.totalorder %s10, 1
    %p27 = por %p25, %p26
    %p28 = scmp.ne.s32.totalorder %s20, %s23
    %p29 = scmp.eq.s32.totalorder %s10, 0
    %p30 = por %p28, %p29
    %p31 = scmp.ne.s32.totalorder %s20, %s23
    %p32 = scmp.eq.s32.totalorder %s15, 1
    %p33 = por %p31, %p32
    %p34 = scmp.ne.s32.totalorder %s23, %s24
    %p35 = scmp.eq.s32.totalorder %s15, 0
    %p36 = por %p34, %p35
    %p37 = scmp.ne.s32.totalorder %s23, %s24
    %p38 = scmp.eq.s32.totalorder %s16, 1
    %p39 = por %p37, %p38
    %p41 = scmp.ne.s32.totalorder %s24, %s40
    %p42 = scmp.eq.s32.totalorder %s16, 0
    %p43 = por %p41, %p42
    %s44 = ssub.s32 %s10, %s17
    %p45 = scmp.eq.s32.totalorder %s44, 0
    %s47 = sadd.s32 %s46, 1
    %s48 = scalar_select %p45, %s46, %s47
    %p51 = pneg %p45
    %p52 = scmp.eq.s32.totalorder %s10, 1
    %p53 = por %p51, %p52
    %p54 = scmp.ne.s32.totalorder %s46, %s49
    %p55 = scmp.eq.s32.totalorder %s10, 0
    %p56 = por %p54, %p55
    %p57 = scmp.ne.s32.totalorder %s46, %s49
    %p58 = scmp.eq.s32.totalorder %s15, 1
    %p59 = por %p57, %p58
    %p60 = scmp.ne.s32.totalorder %s49, %s50
    %p61 = scmp.eq.s32.totalorder %s15, 0
    %p62 = por %p60, %p61
    %p63 = scmp.ne.s32.totalorder %s49, %s50
    %p64 = scmp.eq.s32.totalorder %s16, 1
    %p65 = por %p63, %p64
    %p67 = scmp.ne.s32.totalorder %s50, %s66
    %p68 = scmp.eq.s32.totalorder %s16, 0
    %p69 = por %p67, %p68
    %s71 = sadd.s32 %s70, 1
    %p74 = scmp.eq.s32.totalorder %s10, 1
    %p75 = scmp.ne.s32.totalorder %s70, %s72
    %p76 = scmp.eq.s32.totalorder %s10, 0
    %p77 = por %p75, %p76
    %p78 = scmp.ne.s32.totalorder %s70, %s72
    %p79 = scmp.eq.s32.totalorder %s15, 1
    %p80 = por %p78, %p79
    %p81 = scmp.ne.s32.totalorder %s72, %s73
    %p82 = scmp.eq.s32.totalorder %s15, 0
    %p83 = por %p81, %p82
    %p84 = scmp.ne.s32.totalorder %s72, %s73
    %p85 = scmp.eq.s32.totalorder %s16, 1
    %p86 = por %p84, %p85
    %p88 = scmp.ne.s32.totalorder %s73, %s87
    %p89 = scmp.eq.s32.totalorder %s16, 0
    %p90 = por %p88, %p89
    %s92 = sadd.s32 %s91, 1
    %p95 = scmp.eq.s32.totalorder %s10, 1
    %p96 = scmp.ne.s32.totalorder %s91, %s93
    %p97 = scmp.eq.s32.totalorder %s10, 0
    %p98 = por %p96, %p97
    %p99 = scmp.ne.s32.totalorder %s91, %s93
    %p100 = scmp.eq.s32.totalorder %s15, 1
    %p101 = por %p99, %p100
    %p102 = scmp.ne.s32.totalorder %s93, %s94
    %p103 = scmp.eq.s32.totalorder %s15, 0
    %p104 = por %p102, %p103
    %p105 = scmp.ne.s32.totalorder %s93, %s94
    %p106 = scmp.eq.s32.totalorder %s16, 1
    %p107 = por %p105, %p106
    %p109 = scmp.ne.s32.totalorder %s94, %s108
    %p110 = scmp.eq.s32.totalorder %s16, 0
    %p111 = por %p109, %p110
    %s112 = ssub.s32 %s10, %s17
    %p113 = scmp.eq.s32.totalorder %s112, 0
    %s115 = sadd.s32 %s114, 1
    %s116 = scalar_select %p113, %s114, %s115
    %p119 = pneg %p113
    %p120 = scmp.eq.s32.totalorder %s10, 1
    %p121 = por %p119, %p120
    %p122 = scmp.ne.s32.totalorder %s114, %s117
    %p123 = scmp.eq.s32.totalorder %s10, 0
    %p124 = por %p122, %p123
    %p125 = scmp.ne.s32.totalorder %s114, %s117
    %p126 = scmp.eq.s32.totalorder %s15, 1
    %p127 = por %p125, %p126
    %p128 = scmp.ne.s32.totalorder %s117, %s118
    %p129 = scmp.eq.s32.totalorder %s15, 0
    %p130 = por %p128, %p129
    %p131 = scmp.ne.s32.totalorder %s117, %s118
    %p132 = scmp.eq.s32.totalorder %s16, 1
    %p133 = por %p131, %p132
    %p135 = scmp.ne.s32.totalorder %s118, %s134
    %p136 = scmp.eq.s32.totalorder %s16, 0
    %p137 = por %p135, %p136
    %p138 = scmp.le.s32.totalorder 1, %s10
    %p139 = scmp.lt.s32.totalorder %s10, 3
    %p140 = pnand %p138, %p139
    %p141 = pneg %p140
    // Predicated region
    $region9: #{basic_block_forward.5} parent=5 // pred_check
      _
    $region10: #{basic_block_forward.5} parent=5 // pred_check_branch
      %143 = sbr.rel (%p140) target = $region12
    $region11: #{basic_block_forward.5} parent=5 // pred_region
      %s144 = ssub.s32 %s10, 1
      // Predicated region
      $region13: #{basic_block_forward.5} parent=11 // pred_check
        %p145 = pneg %p83
      $region14: #{basic_block_forward.5} parent=11 // pred_check_branch
        %147 = sbr.rel (%p145) target = $region16
      $region15: #{basic_block_forward.5} parent=11 // pred_region
        _
      $region16: #{basic_block_forward.5} parent=11 // pred_fallthru
        _
      // Predicated region
      $region17: #{basic_block_forward.5} parent=11 // pred_check
        %p148 = pneg %p104
      $region18: #{basic_block_forward.5} parent=11 // pred_check_branch
        %150 = sbr.rel (%p148) target = $region20
      $region19: #{basic_block_forward.5} parent=11 // pred_region
        _
      $region20: #{basic_block_forward.5} parent=11 // pred_fallthru
        _
    $region12: #{basic_block_forward.5} parent=5 // pred_fallthru
      _
    %p151 = scmp.lt.s32.totalorder %s10, 2
    // Predicated region
    $region21: #{basic_block_forward.5} parent=5 // pred_check
      %p152 = pneg %p151
    $region22: #{basic_block_forward.5} parent=5 // pred_check_branch
      %154 = sbr.rel (%p152) target = $region24
    $region23: #{basic_block_forward.5} parent=5 // pred_region
      // Predicated region
      $region25: #{basic_block_forward.5} parent=23 // pred_check
        %p155 = pneg %p30
      $region26: #{basic_block_forward.5} parent=23 // pred_check_branch
        %157 = sbr.rel (%p155) target = $region28
      $region27: #{basic_block_forward.5} parent=23 // pred_region
        %p158 = scmp.lt.s32.totalorder %s10, 1
        %s159 = scalar_select %p158, %s10, 1
        %s160 = smul.addr %s159, 32
        %s161 = smul.addr %s160, 8
        %s162 = scalar_lea.vmem %s0, %s161
      $region28: #{basic_block_forward.5} parent=23 // pred_fallthru
        _
      // Predicated region
      $region29: #{basic_block_forward.5} parent=23 // pred_check
        %p163 = pneg %p56
      $region30: #{basic_block_forward.5} parent=23 // pred_check_branch
        %165 = sbr.rel (%p163) target = $region32
      $region31: #{basic_block_forward.5} parent=23 // pred_region
        %p166 = scmp.lt.s32.totalorder %s10, 1
        %s167 = scalar_select %p166, %s10, 1
        %s168 = smul.addr %s167, 32
        %s169 = smul.addr %s168, 8
        %s170 = scalar_lea.vmem %s1, %s169
      $region32: #{basic_block_forward.5} parent=23 // pred_fallthru
        _
    $region24: #{basic_block_forward.5} parent=5 // pred_fallthru
      _
    %p171 = scmp.le.s32.totalorder 1, %s10
    %p172 = scmp.lt.s32.totalorder %s10, 3
    %p173 = pnand %p171, %p172
    %p174 = pneg %p173
    // Predicated region
    $region33: #{basic_block_forward.5} parent=5 // pred_check
      _
    $region34: #{basic_block_forward.5} parent=5 // pred_check_branch
      %176 = sbr.rel (%p173) target = $region36
    $region35: #{basic_block_forward.5} parent=5 // pred_region
      %s177 = ssub.s32 %s10, 1
      %p178 = scmp.lt.s32.totalorder %s15, 1
      %s179 = scalar_select %p178, %s15, 1
      %s180 = smul.addr %s179, 32
      %s181 = smul.addr %s180, 8
      %s182 = scalar_lea.vmem %s0, %s181
      %p183 = pneg %p36
      %p184 = pneg %p33
      %p185 = scmp.lt.s32.totalorder %s15, 1
      %s186 = scalar_select %p185, %s15, 1
      %s187 = smul.addr %s186, 32
      %s188 = smul.addr %s187, 8
      %s189 = scalar_lea.vmem %s1, %s188
      %p190 = pneg %p62
      %p191 = pneg %p59
      %p192 = pneg %p83
      %p193 = pneg %p80
      %p194 = pneg %p104
      %p195 = pneg %p101
      %p196 = pneg %p130
      %p197 = pneg %p127
      %p198 = scmp.lt.s32.totalorder %s15, 1
      %s199 = scalar_select %p198, %s15, 1
      %s200 = smul.addr %s199, 32
      %s201 = smul.addr %s200, 8
      %s202 = scalar_lea.vmem %s4, %s201
      %p203 = scmp.lt.s32.totalorder %s15, 1
      %s204 = scalar_select %p203, %s15, 1
      %s205 = smul.addr %s204, 32
      %s206 = smul.addr %s205, 8
      %s207 = scalar_lea.vmem %s0, %s206
      %p208 = scmp.lt.s32.totalorder %s15, 1
      %s209 = scalar_select %p208, %s15, 1
      %s210 = smul.addr %s209, 32
      %s211 = smul.addr %s210, 8
      %s212 = scalar_lea.vmem %s1, %s211
      %p213 = scmp.lt.s32.totalorder %s15, 1
      %s214 = scalar_select %p213, %s15, 1
      %s215 = smul.addr %s214, 32
      %s216 = smul.addr %s215, 8
      %s217 = scalar_lea.vmem %s4, %s216
      %v218 = vld [vmem:[%s2] sm:$0x1]
      %v219 = vld [vmem:[%s3] sm:$0x1]
      %v220 = vld [vmem:[%s207] sm:$0xff]
      %v221 = vld [vmem:[%s207 + $0x8] sm:$0xff]
      %v222 = vld [vmem:[%s207 + $0x10] sm:$0xff]
      %v223 = vld [vmem:[%s207 + $0x18] sm:$0xff]
      %v224 = vld [vmem:[%s207 + $0x20] sm:$0xff]
      %v225 = vld [vmem:[%s207 + $0x28] sm:$0xff]
      %v226 = vld [vmem:[%s207 + $0x30] sm:$0xff]
      %v227 = vld [vmem:[%s207 + $0x38] sm:$0xff]
      %v228 = vld [vmem:[%s207 + $0x40] sm:$0xff]
      %v229 = vld [vmem:[%s207 + $0x48] sm:$0xff]
      %v230 = vld [vmem:[%s207 + $0x50] sm:$0xff]
      %v231 = vld [vmem:[%s207 + $0x58] sm:$0xff]
      %v232 = vld [vmem:[%s207 + $0x60] sm:$0xff]
      %v233 = vld [vmem:[%s207 + $0x68] sm:$0xff]
      %v234 = vld [vmem:[%s207 + $0x70] sm:$0xff]
      %v235 = vld [vmem:[%s207 + $0x78] sm:$0xff]
      %v236 = vld [vmem:[%s207 + $0x80] sm:$0xff]
      %v237 = vld [vmem:[%s207 + $0x88] sm:$0xff]
      %v238 = vld [vmem:[%s207 + $0x90] sm:$0xff]
      %v239 = vld [vmem:[%s207 + $0x98] sm:$0xff]
      %v240 = vld [vmem:[%s207 + $0xa0] sm:$0xff]
      %v241 = vld [vmem:[%s207 + $0xa8] sm:$0xff]
      %v242 = vld [vmem:[%s207 + $0xb0] sm:$0xff]
      %v243 = vld [vmem:[%s207 + $0xb8] sm:$0xff]
      %v244 = vld [vmem:[%s207 + $0xc0] sm:$0xff]
      %v245 = vld [vmem:[%s207 + $0xc8] sm:$0xff]
      %v246 = vld [vmem:[%s207 + $0xd0] sm:$0xff]
      %v247 = vld [vmem:[%s207 + $0xd8] sm:$0xff]
      %v248 = vld [vmem:[%s207 + $0xe0] sm:$0xff]
      %v249 = vld [vmem:[%s207 + $0xe8] sm:$0xff]
      %v250 = vld [vmem:[%s207 + $0xf0] sm:$0xff]
      %v251 = vld [vmem:[%s207 + $0xf8] sm:$0xff]
      %v253 = vperm.slane %v218, 0
      %v255 = vmul.f32 %v220, %v253
      %v256 = vmul.f32 %v221, %v253
      %v257 = vmul.f32 %v222, %v253
      %v258 = vmul.f32 %v223, %v253
      %v259 = vmul.f32 %v224, %v253
      %v260 = vmul.f32 %v225, %v253
      %v261 = vmul.f32 %v226, %v253
      %v262 = vmul.f32 %v227, %v253
      %v263 = vmul.f32 %v228, %v253
      %v264 = vmul.f32 %v229, %v253
      %v265 = vmul.f32 %v230, %v253
      %v266 = vmul.f32 %v231, %v253
      %v267 = vmul.f32 %v232, %v253
      %v268 = vmul.f32 %v233, %v253
      %v269 = vmul.f32 %v234, %v253
      %v270 = vmul.f32 %v235, %v253
      %v271 = vmul.f32 %v236, %v253
      %v272 = vmul.f32 %v237, %v253
      %v273 = vmul.f32 %v238, %v253
      %v274 = vmul.f32 %v239, %v253
      %v275 = vmul.f32 %v240, %v253
      %v276 = vmul.f32 %v241, %v253
      %v277 = vmul.f32 %v242, %v253
      %v278 = vmul.f32 %v243, %v253
      %v279 = vmul.f32 %v244, %v253
      %v280 = vmul.f32 %v245, %v253
      %v281 = vmul.f32 %v246, %v253
      %v282 = vmul.f32 %v247, %v253
      %v283 = vmul.f32 %v248, %v253
      %v284 = vmul.f32 %v249, %v253
      %v285 = vmul.f32 %v250, %v253
      %v286 = vmul.f32 %v251, %v253
      %v288 = vperm.slane %v219, 0
      %v290 = vadd.f32 %v255, %v288
      %v291 = vadd.f32 %v256, %v288
      %v292 = vadd.f32 %v257, %v288
      %v293 = vadd.f32 %v258, %v288
      %v294 = vadd.f32 %v259, %v288
      %v295 = vadd.f32 %v260, %v288
      %v296 = vadd.f32 %v261, %v288
      %v297 = vadd.f32 %v262, %v288
      %v298 = vadd.f32 %v263, %v288
      %v299 = vadd.f32 %v264, %v288
      %v300 = vadd.f32 %v265, %v288
      %v301 = vadd.f32 %v266, %v288
      %v302 = vadd.f32 %v267, %v288
      %v303 = vadd.f32 %v268, %v288
      %v304 = vadd.f32 %v269, %v288
      %v305 = vadd.f32 %v270, %v288
      %v306 = vadd.f32 %v271, %v288
      %v307 = vadd.f32 %v272, %v288
      %v308 = vadd.f32 %v273, %v288
      %v309 = vadd.f32 %v274, %v288
      %v310 = vadd.f32 %v275, %v288
      %v311 = vadd.f32 %v276, %v288
      %v312 = vadd.f32 %v277, %v288
      %v313 = vadd.f32 %v278, %v288
      %v314 = vadd.f32 %v279, %v288
      %v315 = vadd.f32 %v280, %v288
      %v316 = vadd.f32 %v281, %v288
      %v317 = vadd.f32 %v282, %v288
      %v318 = vadd.f32 %v283, %v288
      %v319 = vadd.f32 %v284, %v288
      %v320 = vadd.f32 %v285, %v288
      %v321 = vadd.f32 %v286, %v288
      %v322 = vld [vmem:[%s212] sm:$0xff]
      %v323 = vld [vmem:[%s212 + $0x8] sm:$0xff]
      %v324 = vld [vmem:[%s212 + $0x10] sm:$0xff]
      %v325 = vld [vmem:[%s212 + $0x18] sm:$0xff]
      %v326 = vld [vmem:[%s212 + $0x20] sm:$0xff]
      %v327 = vld [vmem:[%s212 + $0x28] sm:$0xff]
      %v328 = vld [vmem:[%s212 + $0x30] sm:$0xff]
      %v329 = vld [vmem:[%s212 + $0x38] sm:$0xff]
      %v330 = vld [vmem:[%s212 + $0x40] sm:$0xff]
      %v331 = vld [vmem:[%s212 + $0x48] sm:$0xff]
      %v332 = vld [vmem:[%s212 + $0x50] sm:$0xff]
      %v333 = vld [vmem:[%s212 + $0x58] sm:$0xff]
      %v334 = vld [vmem:[%s212 + $0x60] sm:$0xff]
      %v335 = vld [vmem:[%s212 + $0x68] sm:$0xff]
      %v336 = vld [vmem:[%s212 + $0x70] sm:$0xff]
      %v337 = vld [vmem:[%s212 + $0x78] sm:$0xff]
      %v338 = vld [vmem:[%s212 + $0x80] sm:$0xff]
      %v339 = vld [vmem:[%s212 + $0x88] sm:$0xff]
      %v340 = vld [vmem:[%s212 + $0x90] sm:$0xff]
      %v341 = vld [vmem:[%s212 + $0x98] sm:$0xff]
      %v342 = vld [vmem:[%s212 + $0xa0] sm:$0xff]
      %v343 = vld [vmem:[%s212 + $0xa8] sm:$0xff]
      %v344 = vld [vmem:[%s212 + $0xb0] sm:$0xff]
      %v345 = vld [vmem:[%s212 + $0xb8] sm:$0xff]
      %v346 = vld [vmem:[%s212 + $0xc0] sm:$0xff]
      %v347 = vld [vmem:[%s212 + $0xc8] sm:$0xff]
      %v348 = vld [vmem:[%s212 + $0xd0] sm:$0xff]
      %v349 = vld [vmem:[%s212 + $0xd8] sm:$0xff]
      %v350 = vld [vmem:[%s212 + $0xe0] sm:$0xff]
      %v351 = vld [vmem:[%s212 + $0xe8] sm:$0xff]
      %v352 = vld [vmem:[%s212 + $0xf0] sm:$0xff]
      %v353 = vld [vmem:[%s212 + $0xf8] sm:$0xff]
      %v354 = vadd.f32 %v290, %v322
      %v355 = vadd.f32 %v291, %v323
      %v356 = vadd.f32 %v292, %v324
      %v357 = vadd.f32 %v293, %v325
      %v358 = vadd.f32 %v294, %v326
      %v359 = vadd.f32 %v295, %v327
      %v360 = vadd.f32 %v296, %v328
      %v361 = vadd.f32 %v297, %v329
      %v362 = vadd.f32 %v298, %v330
      %v363 = vadd.f32 %v299, %v331
      %v364 = vadd.f32 %v300, %v332
      %v365 = vadd.f32 %v301, %v333
      %v366 = vadd.f32 %v302, %v334
      %v367 = vadd.f32 %v303, %v335
      %v368 = vadd.f32 %v304, %v336
      %v369 = vadd.f32 %v305, %v337
      %v370 = vadd.f32 %v306, %v338
      %v371 = vadd.f32 %v307, %v339
      %v372 = vadd.f32 %v308, %v340
      %v373 = vadd.f32 %v309, %v341
      %v374 = vadd.f32 %v310, %v342
      %v375 = vadd.f32 %v311, %v343
      %v376 = vadd.f32 %v312, %v344
      %v377 = vadd.f32 %v313, %v345
      %v378 = vadd.f32 %v314, %v346
      %v379 = vadd.f32 %v315, %v347
      %v380 = vadd.f32 %v316, %v348
      %v381 = vadd.f32 %v317, %v349
      %v382 = vadd.f32 %v318, %v350
      %v383 = vadd.f32 %v319, %v351
      %v384 = vadd.f32 %v320, %v352
      %v385 = vadd.f32 %v321, %v353
      %v386 = vmax.f32 %v354, 0.0
      %v387 = vmax.f32 %v355, 0.0
      %v388 = vmax.f32 %v356, 0.0
      %v389 = vmax.f32 %v357, 0.0
      %v390 = vmax.f32 %v358, 0.0
      %v391 = vmax.f32 %v359, 0.0
      %v392 = vmax.f32 %v360, 0.0
      %v393 = vmax.f32 %v361, 0.0
      %v394 = vmax.f32 %v362, 0.0
      %v395 = vmax.f32 %v363, 0.0
      %v396 = vmax.f32 %v364, 0.0
      %v397 = vmax.f32 %v365, 0.0
      %v398 = vmax.f32 %v366, 0.0
      %v399 = vmax.f32 %v367, 0.0
      %v400 = vmax.f32 %v368, 0.0
      %v401 = vmax.f32 %v369, 0.0
      %v402 = vmax.f32 %v370, 0.0
      %v403 = vmax.f32 %v371, 0.0
      %v404 = vmax.f32 %v372, 0.0
      %v405 = vmax.f32 %v373, 0.0
      %v406 = vmax.f32 %v374, 0.0
      %v407 = vmax.f32 %v375, 0.0
      %v408 = vmax.f32 %v376, 0.0
      %v409 = vmax.f32 %v377, 0.0
      %v410 = vmax.f32 %v378, 0.0
      %v411 = vmax.f32 %v379, 0.0
      %v412 = vmax.f32 %v380, 0.0
      %v413 = vmax.f32 %v381, 0.0
      %v414 = vmax.f32 %v382, 0.0
      %v415 = vmax.f32 %v383, 0.0
      %v416 = vmax.f32 %v384, 0.0
      %v417 = vmax.f32 %v385, 0.0
      %418 = vst [vmem:[%s217] sm:$0xff] %v386
      %419 = vst [vmem:[%s217 + $0x8] sm:$0xff] %v387
      %420 = vst [vmem:[%s217 + $0x10] sm:$0xff] %v388
      %421 = vst [vmem:[%s217 + $0x18] sm:$0xff] %v389
      %422 = vst [vmem:[%s217 + $0x20] sm:$0xff] %v390
      %423 = vst [vmem:[%s217 + $0x28] sm:$0xff] %v391
      %424 = vst [vmem:[%s217 + $0x30] sm:$0xff] %v392
      %425 = vst [vmem:[%s217 + $0x38] sm:$0xff] %v393
      %426 = vst [vmem:[%s217 + $0x40] sm:$0xff] %v394
      %427 = vst [vmem:[%s217 + $0x48] sm:$0xff] %v395
      %428 = vst [vmem:[%s217 + $0x50] sm:$0xff] %v396
      %429 = vst [vmem:[%s217 + $0x58] sm:$0xff] %v397
      %430 = vst [vmem:[%s217 + $0x60] sm:$0xff] %v398
      %431 = vst [vmem:[%s217 + $0x68] sm:$0xff] %v399
      %432 = vst [vmem:[%s217 + $0x70] sm:$0xff] %v400
      %433 = vst [vmem:[%s217 + $0x78] sm:$0xff] %v401
      %434 = vst [vmem:[%s217 + $0x80] sm:$0xff] %v402
      %435 = vst [vmem:[%s217 + $0x88] sm:$0xff] %v403
      %436 = vst [vmem:[%s217 + $0x90] sm:$0xff] %v404
      %437 = vst [vmem:[%s217 + $0x98] sm:$0xff] %v405
      %438 = vst [vmem:[%s217 + $0xa0] sm:$0xff] %v406
      %439 = vst [vmem:[%s217 + $0xa8] sm:$0xff] %v407
      %440 = vst [vmem:[%s217 + $0xb0] sm:$0xff] %v408
      %441 = vst [vmem:[%s217 + $0xb8] sm:$0xff] %v409
      %442 = vst [vmem:[%s217 + $0xc0] sm:$0xff] %v410
      %443 = vst [vmem:[%s217 + $0xc8] sm:$0xff] %v411
      %444 = vst [vmem:[%s217 + $0xd0] sm:$0xff] %v412
      %445 = vst [vmem:[%s217 + $0xd8] sm:$0xff] %v413
      %446 = vst [vmem:[%s217 + $0xe0] sm:$0xff] %v414
      %447 = vst [vmem:[%s217 + $0xe8] sm:$0xff] %v415
      %448 = vst [vmem:[%s217 + $0xf0] sm:$0xff] %v416
      %449 = vst [vmem:[%s217 + $0xf8] sm:$0xff] %v417
      %p450 = scmp.lt.s32.totalorder %s15, 1
      %s451 = scalar_select %p450, %s15, 1
      %s452 = smul.addr %s451, 32
      %s453 = smul.addr %s452, 8
      %s454 = scalar_lea.vmem %s4, %s453
      // Predicated region
      $region37: #{basic_block_forward.5} parent=35 // pred_check
        %p455 = pneg %p127
      $region38: #{basic_block_forward.5} parent=35 // pred_check_branch
        %457 = sbr.rel (%p455) target = $region40
      $region39: #{basic_block_forward.5} parent=35 // pred_region
        _
      $region40: #{basic_block_forward.5} parent=35 // pred_fallthru
        _
    $region36: #{basic_block_forward.5} parent=5 // pred_fallthru
      _
    %p458 = scmp.le.s32.totalorder 2, %s10
    // Predicated region
    $region41: #{basic_block_forward.5} parent=5 // pred_check
      %p459 = pneg %p458
    $region42: #{basic_block_forward.5} parent=5 // pred_check_branch
      %461 = sbr.rel (%p459) target = $region44
    $region43: #{basic_block_forward.5} parent=5 // pred_region
      %s462 = ssub.s32 %s10, 2
      // Predicated region
      $region45: #{basic_block_forward.5} parent=43 // pred_check
        %p463 = pneg %p133
      $region46: #{basic_block_forward.5} parent=43 // pred_check_branch
        %465 = sbr.rel (%p463) target = $region48
      $region47: #{basic_block_forward.5} parent=43 // pred_region
        %p466 = scmp.lt.s32.totalorder %s16, 1
        %s467 = scalar_select %p466, %s16, 1
        %s468 = smul.addr %s467, 32
        %s469 = smul.addr %s468, 8
        %s470 = scalar_lea.vmem %s4, %s469
      $region48: #{basic_block_forward.5} parent=43 // pred_fallthru
        _
    $region44: #{basic_block_forward.5} parent=5 // pred_fallthru
      _
  $region6: #{basic_block_forward.5} parent=0 // loop_footer
    %s14 = sadd.s32 1, %s10
  $region7: #{basic_block_forward.5} parent=0 // loop_footer_branch
    %9 = sbr.rel target = $region3
  $region8: #{basic_block_forward.5} parent=0 // loop_exit
    _

// kernel: basic_block_forward.3
$region0: #{basic_block_forward.3}
  #allocation0 [shape = 'u32[]', space=smem, size = 0x4, offset = 0x4, fixed_abs, tag = 'smem constant byte address 0x4 - core index']
  #allocation1 [shape = 'u32[72,128]{1,0:T(1,128)}', space=vmem, size = 0x9000, scoped, tag = 'internal scratch']
  #allocation2 [shape = 'bf16[18,18,128]{2,1,0:T(8,128)(2,1)}', space=vmem, size = 0x1b000, scoped, tag = 'scratch operand']
  %s0 = inlined_call_operand.vmem [shape: f32[2,16,16,128], index: 0, kind: input, shape index: {}]
  %s1 = inlined_call_operand.vmem [shape: bf16[3,384,128], index: 1, kind: input, shape index: {}]
  %s2 = inlined_call_operand.vmem [shape: f32[2,16,16,128], index: 2, kind: output, shape index: {0}]
  %s3 = inlined_call_operand.vmem [shape: f32[2,2,128], index: 3, kind: output, shape index: {1}]
  %4 = xla_tuple %s2, %s3
  %s5 = sld [smem:[#allocation0]]
  $region49: #{basic_block_forward.3} parent=0
    _
  %s7 = ssub.s32 1, %s5
  %s8 = scalar_select 0, %s7, %s5
  loop: start=0, step=1, limit=4
  $region2: #{basic_block_forward.3} parent=0 // loop_pre_header
    _
  $region3: #{basic_block_forward.3} parent=0 // loop_header
    %s10 = sphi 0, %s14
    %p11 = scmp.ge.s32.totalorder %s10, 4
    %s20 = sphi 0, %s22
    %s23 = sphi 0, %s20
    %s24 = sphi 0, %s23
    %s40 = sphi 0, %s24
    %s44 = sphi 0, %s44
    %s46 = sphi 0, %s44
    %s47 = sphi 0, %s46
    %s61 = sphi 0, %s47
    %s67 = sphi 0, %s69
    %s70 = sphi 0, %s67
    %s71 = sphi 0, %s70
    %s87 = sphi 0, %s71
    %s93 = sphi 0, %s95
    %s96 = sphi 0, %s93
    %s97 = sphi 0, %s96
    %s113 = sphi 0, %s97
  $region4: #{basic_block_forward.3} parent=0 // loop_header_branch
    %13 = sbr.rel (%p11) target = $region8
  $region5: #{basic_block_forward.3} parent=0 // loop_body
    %s15 = ssub.s32 %s10, 1
    %s16 = ssub.s32 %s10, 2
    %s17 = sadd.s32 %s10, 1
    %s18 = ssub.s32 %s10, %s17
    %p19 = scmp.eq.s32.totalorder %s18, 0
    %s21 = sadd.s32 %s20, 1
    %s22 = scalar_select %p19, %s20, %s21
    %p25 = pneg %p19
    %p26 = scmp.eq.s32.totalorder %s10, 1
    %p27 = por %p25, %p26
    %p28 = scmp.ne.s32.totalorder %s20, %s23
    %p29 = scmp.eq.s32.totalorder %s10, 0
    %p30 = por %p28, %p29
    %p31 = scmp.ne.s32.totalorder %s20, %s23
    %p32 = scmp.eq.s32.totalorder %s15, 1
    %p33 = por %p31, %p32
    %p34 = scmp.ne.s32.totalorder %s23, %s24
    %p35 = scmp.eq.s32.totalorder %s15, 0
    %p36 = por %p34, %p35
    %p37 = scmp.ne.s32.totalorder %s23, %s24
    %p38 = scmp.eq.s32.totalorder %s16, 1
    %p39 = por %p37, %p38
    %p41 = scmp.ne.s32.totalorder %s24, %s40
    %p42 = scmp.eq.s32.totalorder %s16, 0
    %p43 = por %p41, %p42
    %s45 = sadd.s32 %s44, 1
    %p48 = scmp.eq.s32.totalorder %s10, 1
    %p49 = scmp.ne.s32.totalorder %s44, %s46
    %p50 = scmp.eq.s32.totalorder %s10, 0
    %p51 = por %p49, %p50
    %p52 = scmp.ne.s32.totalorder %s44, %s46
    %p53 = scmp.eq.s32.totalorder %s15, 1
    %p54 = por %p52, %p53
    %p55 = scmp.ne.s32.totalorder %s46, %s47
    %p56 = scmp.eq.s32.totalorder %s15, 0
    %p57 = por %p55, %p56
    %p58 = scmp.ne.s32.totalorder %s46, %s47
    %p59 = scmp.eq.s32.totalorder %s16, 1
    %p60 = por %p58, %p59
    %p62 = scmp.ne.s32.totalorder %s47, %s61
    %p63 = scmp.eq.s32.totalorder %s16, 0
    %p64 = por %p62, %p63
    %s65 = ssub.s32 %s10, %s17
    %p66 = scmp.eq.s32.totalorder %s65, 0
    %s68 = sadd.s32 %s67, 1
    %s69 = scalar_select %p66, %s67, %s68
    %p72 = pneg %p66
    %p73 = scmp.eq.s32.totalorder %s10, 1
    %p74 = por %p72, %p73
    %p75 = scmp.ne.s32.totalorder %s67, %s70
    %p76 = scmp.eq.s32.totalorder %s10, 0
    %p77 = por %p75, %p76
    %p78 = scmp.ne.s32.totalorder %s67, %s70
    %p79 = scmp.eq.s32.totalorder %s15, 1
    %p80 = por %p78, %p79
    %p81 = scmp.ne.s32.totalorder %s70, %s71
    %p82 = scmp.eq.s32.totalorder %s15, 0
    %p83 = por %p81, %p82
    %p84 = scmp.ne.s32.totalorder %s70, %s71
    %p85 = scmp.eq.s32.totalorder %s16, 1
    %p86 = por %p84, %p85
    %p88 = scmp.ne.s32.totalorder %s71, %s87
    %p89 = scmp.eq.s32.totalorder %s16, 0
    %p90 = por %p88, %p89
    %s91 = ssub.s32 %s10, %s17
    %p92 = scmp.eq.s32.totalorder %s91, 0
    %s94 = sadd.s32 %s93, 1
    %s95 = scalar_select %p92, %s93, %s94
    %p98 = pneg %p92
    %p99 = scmp.eq.s32.totalorder %s10, 1
    %p100 = por %p98, %p99
    %p101 = scmp.ne.s32.totalorder %s93, %s96
    %p102 = scmp.eq.s32.totalorder %s10, 0
    %p103 = por %p101, %p102
    %p104 = scmp.ne.s32.totalorder %s93, %s96
    %p105 = scmp.eq.s32.totalorder %s15, 1
    %p106 = por %p104, %p105
    %p107 = scmp.ne.s32.totalorder %s96, %s97
    %p108 = scmp.eq.s32.totalorder %s15, 0
    %p109 = por %p107, %p108
    %p110 = scmp.ne.s32.totalorder %s96, %s97
    %p111 = scmp.eq.s32.totalorder %s16, 1
    %p112 = por %p110, %p111
    %p114 = scmp.ne.s32.totalorder %s97, %s113
    %p115 = scmp.eq.s32.totalorder %s16, 0
    %p116 = por %p114, %p115
    %p117 = scmp.le.s32.totalorder 1, %s10
    %p118 = scmp.lt.s32.totalorder %s10, 3
    %p119 = pnand %p117, %p118
    %p120 = pneg %p119
    // Predicated region
    $region9: #{basic_block_forward.3} parent=5 // pred_check
      _
    $region10: #{basic_block_forward.3} parent=5 // pred_check_branch
      %122 = sbr.rel (%p119) target = $region12
    $region11: #{basic_block_forward.3} parent=5 // pred_region
      %s123 = ssub.s32 %s10, 1
      // Predicated region
      $region13: #{basic_block_forward.3} parent=11 // pred_check
        %p124 = pneg %p57
      $region14: #{basic_block_forward.3} parent=11 // pred_check_branch
        %126 = sbr.rel (%p124) target = $region16
      $region15: #{basic_block_forward.3} parent=11 // pred_region
        _
      $region16: #{basic_block_forward.3} parent=11 // pred_fallthru
        _
    $region12: #{basic_block_forward.3} parent=5 // pred_fallthru
      _
    %p127 = scmp.lt.s32.totalorder %s10, 2
    // Predicated region
    $region17: #{basic_block_forward.3} parent=5 // pred_check
      %p128 = pneg %p127
    $region18: #{basic_block_forward.3} parent=5 // pred_check_branch
      %130 = sbr.rel (%p128) target = $region20
    $region19: #{basic_block_forward.3} parent=5 // pred_region
      // Predicated region
      $region21: #{basic_block_forward.3} parent=19 // pred_check
        %p131 = pneg %p30
      $region22: #{basic_block_forward.3} parent=19 // pred_check_branch
        %133 = sbr.rel (%p131) target = $region24
      $region23: #{basic_block_forward.3} parent=19 // pred_region
        %p134 = scmp.lt.s32.totalorder %s10, 1
        %s135 = scalar_select %p134, %s10, 1
        %s136 = smul.addr %s135, 32
        %s137 = smul.addr %s136, 8
        %s138 = scalar_lea.vmem %s0, %s137
      $region24: #{basic_block_forward.3} parent=19 // pred_fallthru
        _
    $region20: #{basic_block_forward.3} parent=5 // pred_fallthru
      _
    %p139 = scmp.le.s32.totalorder 1, %s10
    %p140 = scmp.lt.s32.totalorder %s10, 3
    %p141 = pnand %p139, %p140
    %p142 = pneg %p141
    // Predicated region
    $region25: #{basic_block_forward.3} parent=5 // pred_check
      _
    $region26: #{basic_block_forward.3} parent=5 // pred_check_branch
      %144 = sbr.rel (%p141) target = $region28
    $region27: #{basic_block_forward.3} parent=5 // pred_region
      %s145 = ssub.s32 %s10, 1
      %p146 = scmp.lt.s32.totalorder %s15, 1
      %s147 = scalar_select %p146, %s15, 1
      %s148 = smul.addr %s147, 32
      %s149 = smul.addr %s148, 8
      %s150 = scalar_lea.vmem %s0, %s149
      %p151 = pneg %p36
      %p152 = pneg %p33
      %p153 = pneg %p57
      %p154 = pneg %p54
      %p155 = pneg %p83
      %p156 = pneg %p80
      %p157 = scmp.lt.s32.totalorder %s15, 1
      %s158 = scalar_select %p157, %s15, 1
      %s159 = smul.addr %s158, 32
      %s160 = smul.addr %s159, 8
      %s161 = scalar_lea.vmem %s2, %s160
      %p162 = pneg %p109
      %p163 = pneg %p106
      %p164 = scmp.lt.s32.totalorder %s15, 1
      %s165 = scalar_select %p164, %s15, 1
      %s166 = smul.addr %s165, 2
      %s167 = scalar_lea.vmem %s3, %s166
      %p168 = scmp.lt.s32.totalorder %s15, 1
      %s169 = scalar_select %p168, %s15, 1
      %s170 = smul.addr %s169, 32
      %s171 = smul.addr %s170, 8
      %s172 = scalar_lea.vmem %s0, %s171
      %p173 = scmp.lt.s32.totalorder %s15, 1
      %s174 = scalar_select %p173, %s15, 1
      %s175 = smul.addr %s174, 32
      %s176 = smul.addr %s175, 8
      %s177 = scalar_lea.vmem %s2, %s176
      %p178 = scmp.lt.s32.totalorder %s15, 1
      %s179 = scalar_select %p178, %s15, 1
      %s180 = smul.addr %s179, 2
      %s181 = scalar_lea.vmem %s3, %s180
      %v183 = vld [vmem:[%s172] sm:$0xff]
      %v184 = vld [vmem:[%s172 + $0x8] sm:$0xff]
      %v185 = vld [vmem:[%s172 + $0x10] sm:$0xff]
      %v186 = vld [vmem:[%s172 + $0x18] sm:$0xff]
      %v187 = vld [vmem:[%s172 + $0x20] sm:$0xff]
      %v188 = vld [vmem:[%s172 + $0x28] sm:$0xff]
      %v189 = vld [vmem:[%s172 + $0x30] sm:$0xff]
      %v190 = vld [vmem:[%s172 + $0x38] sm:$0xff]
      %v191 = vld [vmem:[%s172 + $0x40] sm:$0xff]
      %v192 = vld [vmem:[%s172 + $0x48] sm:$0xff]
      %v193 = vld [vmem:[%s172 + $0x50] sm:$0xff]
      %v194 = vld [vmem:[%s172 + $0x58] sm:$0xff]
      %v195 = vld [vmem:[%s172 + $0x60] sm:$0xff]
      %v196 = vld [vmem:[%s172 + $0x68] sm:$0xff]
      %v197 = vld [vmem:[%s172 + $0x70] sm:$0xff]
      %v198 = vld [vmem:[%s172 + $0x78] sm:$0xff]
      %v199 = vld [vmem:[%s172 + $0x80] sm:$0xff]
      %v200 = vld [vmem:[%s172 + $0x88] sm:$0xff]
      %v201 = vld [vmem:[%s172 + $0x90] sm:$0xff]
      %v202 = vld [vmem:[%s172 + $0x98] sm:$0xff]
      %v203 = vld [vmem:[%s172 + $0xa0] sm:$0xff]
      %v204 = vld [vmem:[%s172 + $0xa8] sm:$0xff]
      %v205 = vld [vmem:[%s172 + $0xb0] sm:$0xff]
      %v206 = vld [vmem:[%s172 + $0xb8] sm:$0xff]
      %v207 = vld [vmem:[%s172 + $0xc0] sm:$0xff]
      %v208 = vld [vmem:[%s172 + $0xc8] sm:$0xff]
      %v209 = vld [vmem:[%s172 + $0xd0] sm:$0xff]
      %v210 = vld [vmem:[%s172 + $0xd8] sm:$0xff]
      %v211 = vld [vmem:[%s172 + $0xe0] sm:$0xff]
      %v212 = vld [vmem:[%s172 + $0xe8] sm:$0xff]
      %v213 = vld [vmem:[%s172 + $0xf0] sm:$0xff]
      %v214 = vld [vmem:[%s172 + $0xf8] sm:$0xff]
      %v215 = vpack.c.bf16 %v183, %v183
      %v216 = vpack.c.bf16 %v184, %v184
      %v217 = vpack.c.bf16 %v185, %v185
      %v218 = vpack.c.bf16 %v186, %v186
      %v219 = vpack.c.bf16 %v187, %v187
      %v220 = vpack.c.bf16 %v188, %v188
      %v221 = vpack.c.bf16 %v189, %v189
      %v222 = vpack.c.bf16 %v190, %v190
      %v223 = vpack.c.bf16 %v191, %v191
      %v224 = vpack.c.bf16 %v192, %v192
      %v225 = vpack.c.bf16 %v193, %v193
      %v226 = vpack.c.bf16 %v194, %v194
      %v227 = vpack.c.bf16 %v195, %v195
      %v228 = vpack.c.bf16 %v196, %v196
      %v229 = vpack.c.bf16 %v197, %v197
      %v230 = vpack.c.bf16 %v198, %v198
      %v231 = vpack.c.bf16 %v199, %v199
      %v232 = vpack.c.bf16 %v200, %v200
      %v233 = vpack.c.bf16 %v201, %v201
      %v234 = vpack.c.bf16 %v202, %v202
      %v235 = vpack.c.bf16 %v203, %v203
      %v236 = vpack.c.bf16 %v204, %v204
      %v237 = vpack.c.bf16 %v205, %v205
      %v238 = vpack.c.bf16 %v206, %v206
      %v239 = vpack.c.bf16 %v207, %v207
      %v240 = vpack.c.bf16 %v208, %v208
      %v241 = vpack.c.bf16 %v209, %v209
      %v242 = vpack.c.bf16 %v210, %v210
      %v243 = vpack.c.bf16 %v211, %v211
      %v244 = vpack.c.bf16 %v212, %v212
      %v245 = vpack.c.bf16 %v213, %v213
      %v246 = vpack.c.bf16 %v214, %v214
      %247 = vst [vmem:[#allocation2] sm:$0xf] 0
      %248 = vst [vmem:[#allocation2 + $0x4] sm:$0xf] 0
      %249 = vst [vmem:[#allocation2 + $0x8] sm:$0x1] 0
      %s250 = scalar_lea.vmem [#allocation2], 204
      %251 = vst [vmem:[%s250] sm:$0xf] 0
      %252 = vst [vmem:[%s250 + $0x4] sm:$0xf] 0
      %253 = vst [vmem:[%s250 + $0x8] sm:$0x1] 0
      %s254 = scalar_lea.vmem [#allocation2], 12
      %vm255 = vcmask 1040384
      %vm256 = vsmask.f32 256
      %vm257 = vmand %vm255, %vm256
      %v258 = vld [vmem:[%s254] sm:$0x1]
      %v259 = vsel %vm257, 0, %v258
      %260 = vst [vmem:[%s254] sm:$0x1] %v259
      %v261 = vld [vmem:[%s254 + $0xc] sm:$0x1]
      %v262 = vsel %vm257, 0, %v261
      %263 = vst [vmem:[%s254 + $0xc] sm:$0x1] %v262
      %v264 = vld [vmem:[%s254 + $0x18] sm:$0x1]
      %v265 = vsel %vm257, 0, %v264
      %266 = vst [vmem:[%s254 + $0x18] sm:$0x1] %v265
      %v267 = vld [vmem:[%s254 + $0x24] sm:$0x1]
      %v268 = vsel %vm257, 0, %v267
      %269 = vst [vmem:[%s254 + $0x24] sm:$0x1] %v268
      %v270 = vld [vmem:[%s254 + $0x30] sm:$0x1]
      %v271 = vsel %vm257, 0, %v270
      %272 = vst [vmem:[%s254 + $0x30] sm:$0x1] %v271
      %v273 = vld [vmem:[%s254 + $0x3c] sm:$0x1]
      %v274 = vsel %vm257, 0, %v273
      %275 = vst [vmem:[%s254 + $0x3c] sm:$0x1] %v274
      %v276 = vld [vmem:[%s254 + $0x48] sm:$0x1]
      %v277 = vsel %vm257, 0, %v276
      %278 = vst [vmem:[%s254 + $0x48] sm:$0x1] %v277
      %v279 = vld [vmem:[%s254 + $0x54] sm:$0x1]
      %v280 = vsel %vm257, 0, %v279
      %281 = vst [vmem:[%s254 + $0x54] sm:$0x1] %v280
      %v282 = vld [vmem:[%s254 + $0x60] sm:$0x1]
      %v283 = vsel %vm257, 0, %v282
      %284 = vst [vmem:[%s254 + $0x60] sm:$0x1] %v283
      %v285 = vld [vmem:[%s254 + $0x6c] sm:$0x1]
      %v286 = vsel %vm257, 0, %v285
      %287 = vst [vmem:[%s254 + $0x6c] sm:$0x1] %v286
      %v288 = vld [vmem:[%s254 + $0x78] sm:$0x1]
      %v289 = vsel %vm257, 0, %v288
      %290 = vst [vmem:[%s254 + $0x78] sm:$0x1] %v289
      %v291 = vld [vmem:[%s254 + $0x84] sm:$0x1]
      %v292 = vsel %vm257, 0, %v291
      %293 = vst [vmem:[%s254 + $0x84] sm:$0x1] %v292
      %v294 = vld [vmem:[%s254 + $0x90] sm:$0x1]
      %v295 = vsel %vm257, 0, %v294
      %296 = vst [vmem:[%s254 + $0x90] sm:$0x1] %v295
      %v297 = vld [vmem:[%s254 + $0x9c] sm:$0x1]
      %v298 = vsel %vm257, 0, %v297
      %299 = vst [vmem:[%s254 + $0x9c] sm:$0x1] %v298
      %v300 = vld [vmem:[%s254 + $0xa8] sm:$0x1]
      %v301 = vsel %vm257, 0, %v300
      %302 = vst [vmem:[%s254 + $0xa8] sm:$0x1] %v301
      %v303 = vld [vmem:[%s254 + $0xb4] sm:$0x1]
      %v304 = vsel %vm257, 0, %v303
      %305 = vst [vmem:[%s254 + $0xb4] sm:$0x1] %v304
      %vm306 = vsmask.f32 7938
      %vm307 = vmand %vm255, %vm306
      %v308 = vld [vmem:[%s254 + $0x8] sm:$0x1]
      %v309 = vsel %vm307, 0, %v308
      %310 = vst [vmem:[%s254 + $0x8] sm:$0x1] %v309
      %v311 = vld [vmem:[%s254 + $0x14] sm:$0x1]
      %v312 = vsel %vm307, 0, %v311
      %313 = vst [vmem:[%s254 + $0x14] sm:$0x1] %v312
      %v314 = vld [vmem:[%s254 + $0x20] sm:$0x1]
      %v315 = vsel %vm307, 0, %v314
      %316 = vst [vmem:[%s254 + $0x20] sm:$0x1] %v315
      %v317 = vld [vmem:[%s254 + $0x2c] sm:$0x1]
      %v318 = vsel %vm307, 0, %v317
      %319 = vst [vmem:[%s254 + $0x2c] sm:$0x1] %v318
      %v320 = vld [vmem:[%s254 + $0x38] sm:$0x1]
      %v321 = vsel %vm307, 0, %v320
      %322 = vst [vmem:[%s254 + $0x38] sm:$0x1] %v321
      %v323 = vld [vmem:[%s254 + $0x44] sm:$0x1]
      %v324 = vsel %vm307, 0, %v323
      %325 = vst [vmem:[%s254 + $0x44] sm:$0x1] %v324
      %v326 = vld [vmem:[%s254 + $0x50] sm:$0x1]
      %v327 = vsel %vm307, 0, %v326
      %328 = vst [vmem:[%s254 + $0x50] sm:$0x1] %v327
      %v329 = vld [vmem:[%s254 + $0x5c] sm:$0x1]
      %v330 = vsel %vm307, 0, %v329
      %331 = vst [vmem:[%s254 + $0x5c] sm:$0x1] %v330
      %v332 = vld [vmem:[%s254 + $0x68] sm:$0x1]
      %v333 = vsel %vm307, 0, %v332
      %334 = vst [vmem:[%s254 + $0x68] sm:$0x1] %v333
      %v335 = vld [vmem:[%s254 + $0x74] sm:$0x1]
      %v336 = vsel %vm307, 0, %v335
      %337 = vst [vmem:[%s254 + $0x74] sm:$0x1] %v336
      %v338 = vld [vmem:[%s254 + $0x80] sm:$0x1]
      %v339 = vsel %vm307, 0, %v338
      %340 = vst [vmem:[%s254 + $0x80] sm:$0x1] %v339
      %v341 = vld [vmem:[%s254 + $0x8c] sm:$0x1]
      %v342 = vsel %vm307, 0, %v341
      %343 = vst [vmem:[%s254 + $0x8c] sm:$0x1] %v342
      %v344 = vld [vmem:[%s254 + $0x98] sm:$0x1]
      %v345 = vsel %vm307, 0, %v344
      %346 = vst [vmem:[%s254 + $0x98] sm:$0x1] %v345
      %v347 = vld [vmem:[%s254 + $0xa4] sm:$0x1]
      %v348 = vsel %vm307, 0, %v347
      %349 = vst [vmem:[%s254 + $0xa4] sm:$0x1] %v348
      %v350 = vld [vmem:[%s254 + $0xb0] sm:$0x1]
      %v351 = vsel %vm307, 0, %v350
      %352 = vst [vmem:[%s254 + $0xb0] sm:$0x1] %v351
      %v353 = vld [vmem:[%s254 + $0xbc] sm:$0x1]
      %v354 = vsel %vm307, 0, %v353
      %355 = vst [vmem:[%s254 + $0xbc] sm:$0x1] %v354
      %vm356 = vsmask.f32 4368
      %vm357 = vmor %vm256, %vm356
      %v359 = vshrl.u32 %v215, 16
      %v361 = vrot.slane %v359, 7
      %v362 = vshll.u32 %v215, 16
      %v364 = vor.u32 %v361, %v362
      %v365 = vrot.slane %v361, 4
      %v367 = vshrl.u32 %v216, 16
      %v369 = vrot.slane %v367, 7
      %v370 = vshll.u32 %v216, 16
      %v372 = vor.u32 %v369, %v370
      %v373 = vsel %vm357, %v365, %v372
      %v374 = vrot.slane %v369, 4
      %v376 = vshrl.u32 %v217, 16
      %v378 = vrot.slane %v376, 7
      %v379 = vshll.u32 %v217, 16
      %v381 = vor.u32 %v378, %v379
      %v382 = vrot.slane %v378, 4
      %v384 = vshrl.u32 %v218, 16
      %v386 = vrot.slane %v384, 7
      %v387 = vshll.u32 %v218, 16
      %v389 = vor.u32 %v386, %v387
      %v390 = vsel %vm357, %v382, %v389
      %v391 = vrot.slane %v386, 4
      %v393 = vshrl.u32 %v219, 16
      %v395 = vrot.slane %v393, 7
      %v396 = vshll.u32 %v219, 16
      %v398 = vor.u32 %v395, %v396
      %v399 = vrot.slane %v395, 4
      %v401 = vshrl.u32 %v220, 16
      %v403 = vrot.slane %v401, 7
      %v404 = vshll.u32 %v220, 16
      %v406 = vor.u32 %v403, %v404
      %v407 = vsel %vm357, %v399, %v406
      %v408 = vrot.slane %v403, 4
      %v410 = vshrl.u32 %v221, 16
      %v412 = vrot.slane %v410, 7
      %v413 = vshll.u32 %v221, 16
      %v415 = vor.u32 %v412, %v413
      %v416 = vrot.slane %v412, 4
      %v418 = vshrl.u32 %v222, 16
      %v420 = vrot.slane %v418, 7
      %v421 = vshll.u32 %v222, 16
      %v423 = vor.u32 %v420, %v421
      %v424 = vsel %vm357, %v416, %v423
      %v425 = vrot.slane %v420, 4
      %v427 = vshrl.u32 %v223, 16
      %v429 = vrot.slane %v427, 7
      %v430 = vshll.u32 %v223, 16
      %v432 = vor.u32 %v429, %v430
      %v433 = vrot.slane %v429, 4
      %v435 = vshrl.u32 %v224, 16
      %v437 = vrot.slane %v435, 7
      %v438 = vshll.u32 %v224, 16
      %v440 = vor.u32 %v437, %v438
      %v441 = vsel %vm357, %v433, %v440
      %v442 = vrot.slane %v437, 4
      %v444 = vshrl.u32 %v225, 16
      %v446 = vrot.slane %v444, 7
      %v447 = vshll.u32 %v225, 16
      %v449 = vor.u32 %v446, %v447
      %v450 = vrot.slane %v446, 4
      %v452 = vshrl.u32 %v226, 16
      %v454 = vrot.slane %v452, 7
      %v455 = vshll.u32 %v226, 16
      %v457 = vor.u32 %v454, %v455
      %v458 = vsel %vm357, %v450, %v457
      %v459 = vrot.slane %v454, 4
      %v461 = vshrl.u32 %v227, 16
      %v463 = vrot.slane %v461, 7
      %v464 = vshll.u32 %v227, 16
      %v466 = vor.u32 %v463, %v464
      %v467 = vrot.slane %v463, 4
      %v469 = vshrl.u32 %v228, 16
      %v471 = vrot.slane %v469, 7
      %v472 = vshll.u32 %v228, 16
      %v474 = vor.u32 %v471, %v472
      %v475 = vsel %vm357, %v467, %v474
      %v476 = vrot.slane %v471, 4
      %v478 = vshrl.u32 %v229, 16
      %v480 = vrot.slane %v478, 7
      %v481 = vshll.u32 %v229, 16
      %v483 = vor.u32 %v480, %v481
      %v484 = vrot.slane %v480, 4
      %v486 = vshrl.u32 %v230, 16
      %v488 = vrot.slane %v486, 7
      %v489 = vshll.u32 %v230, 16
      %v491 = vor.u32 %v488, %v489
      %v492 = vsel %vm357, %v484, %v491
      %v493 = vrot.slane %v488, 4
      %v495 = vshrl.u32 %v231, 16
      %v497 = vrot.slane %v495, 7
      %v498 = vshll.u32 %v231, 16
      %v500 = vor.u32 %v497, %v498
      %v501 = vrot.slane %v497, 4
      %v503 = vshrl.u32 %v232, 16
      %v505 = vrot.slane %v503, 7
      %v506 = vshll.u32 %v232, 16
      %v508 = vor.u32 %v505, %v506
      %v509 = vsel %vm357, %v501, %v508
      %v510 = vrot.slane %v505, 4
      %v512 = vshrl.u32 %v233, 16
      %v514 = vrot.slane %v512, 7
      %v515 = vshll.u32 %v233, 16
      %v517 = vor.u32 %v514, %v515
      %v518 = vrot.slane %v514, 4
      %v520 = vshrl.u32 %v234, 16
      %v522 = vrot.slane %v520, 7
      %v523 = vshll.u32 %v234, 16
      %v525 = vor.u32 %v522, %v523
      %v526 = vsel %vm357, %v518, %v525
      %v527 = vrot.slane %v522, 4
      %v529 = vshrl.u32 %v235, 16
      %v531 = vrot.slane %v529, 7
      %v532 = vshll.u32 %v235, 16
      %v534 = vor.u32 %v531, %v532
      %v535 = vrot.slane %v531, 4
      %v537 = vshrl.u32 %v236, 16
      %v539 = vrot.slane %v537, 7
      %v540 = vshll.u32 %v236, 16
      %v542 = vor.u32 %v539, %v540
      %v543 = vsel %vm357, %v535, %v542
      %v544 = vrot.slane %v539, 4
      %v546 = vshrl.u32 %v237, 16
      %v548 = vrot.slane %v546, 7
      %v549 = vshll.u32 %v237, 16
      %v551 = vor.u32 %v548, %v549
      %v552 = vrot.slane %v548, 4
      %v554 = vshrl.u32 %v238, 16
      %v556 = vrot.slane %v554, 7
      %v557 = vshll.u32 %v238, 16
      %v559 = vor.u32 %v556, %v557
      %v560 = vsel %vm357, %v552, %v559
      %v561 = vrot.slane %v556, 4
      %v563 = vshrl.u32 %v239, 16
      %v565 = vrot.slane %v563, 7
      %v566 = vshll.u32 %v239, 16
      %v568 = vor.u32 %v565, %v566
      %v569 = vrot.slane %v565, 4
      %v571 = vshrl.u32 %v240, 16
      %v573 = vrot.slane %v571, 7
      %v574 = vshll.u32 %v240, 16
      %v576 = vor.u32 %v573, %v574
      %v577 = vsel %vm357, %v569, %v576
      %v578 = vrot.slane %v573, 4
      %v580 = vshrl.u32 %v241, 16
      %v582 = vrot.slane %v580, 7
      %v583 = vshll.u32 %v241, 16
      %v585 = vor.u32 %v582, %v583
      %v586 = vrot.slane %v582, 4
      %v588 = vshrl.u32 %v242, 16
      %v590 = vrot.slane %v588, 7
      %v591 = vshll.u32 %v242, 16
      %v593 = vor.u32 %v590, %v591
      %v594 = vsel %vm357, %v586, %v593
      %v595 = vrot.slane %v590, 4
      %v597 = vshrl.u32 %v243, 16
      %v599 = vrot.slane %v597, 7
      %v600 = vshll.u32 %v243, 16
      %v602 = vor.u32 %v599, %v600
      %v603 = vrot.slane %v599, 4
      %v605 = vshrl.u32 %v244, 16
      %v607 = vrot.slane %v605, 7
      %v608 = vshll.u32 %v244, 16
      %v610 = vor.u32 %v607, %v608
      %v611 = vsel %vm357, %v603, %v610
      %v612 = vrot.slane %v607, 4
      %v614 = vshrl.u32 %v245, 16
      %v616 = vrot.slane %v614, 7
      %v617 = vshll.u32 %v245, 16
      %v619 = vor.u32 %v616, %v617
      %v620 = vrot.slane %v616, 4
      %v622 = vshrl.u32 %v246, 16
      %v624 = vrot.slane %v622, 7
      %v625 = vshll.u32 %v246, 16
      %v627 = vor.u32 %v624, %v625
      %v628 = vsel %vm357, %v620, %v627
      %v629 = vrot.slane %v624, 4
      %vm678 = vcmask 1043456
      %vm679 = vmand %vm678, %vm306
      %v680 = vld [vmem:[%s254] sm:$0xf]
      %v681 = vsel %vm679, %v364, %v680
      %682 = vst [vmem:[%s254] sm:$0xf] %v681
      %683 = vst [vmem:[%s254 + $0x4] sm:$0xf] %v373
      %v684 = vld [vmem:[%s254 + $0x8] sm:$0x1]
      %v685 = vsel %vm257, %v374, %v684
      %686 = vst [vmem:[%s254 + $0x8] sm:$0x1] %v685
      %v687 = vld [vmem:[%s254 + $0xc] sm:$0xf]
      %v688 = vsel %vm679, %v381, %v687
      %689 = vst [vmem:[%s254 + $0xc] sm:$0xf] %v688
      %690 = vst [vmem:[%s254 + $0x10] sm:$0xf] %v390
      %v691 = vld [vmem:[%s254 + $0x14] sm:$0x1]
      %v692 = vsel %vm257, %v391, %v691
      %693 = vst [vmem:[%s254 + $0x14] sm:$0x1] %v692
      %v694 = vld [vmem:[%s254 + $0x18] sm:$0xf]
      %v695 = vsel %vm679, %v398, %v694
      %696 = vst [vmem:[%s254 + $0x18] sm:$0xf] %v695
      %697 = vst [vmem:[%s254 + $0x1c] sm:$0xf] %v407
      %v698 = vld [vmem:[%s254 + $0x20] sm:$0x1]
      %v699 = vsel %vm257, %v408, %v698
      %700 = vst [vmem:[%s254 + $0x20] sm:$0x1] %v699
      %v701 = vld [vmem:[%s254 + $0x24] sm:$0xf]
      %v702 = vsel %vm679, %v415, %v701
      %703 = vst [vmem:[%s254 + $0x24] sm:$0xf] %v702
      %704 = vst [vmem:[%s254 + $0x28] sm:$0xf] %v424
      %v705 = vld [vmem:[%s254 + $0x2c] sm:$0x1]
      %v706 = vsel %vm257, %v425, %v705
      %707 = vst [vmem:[%s254 + $0x2c] sm:$0x1] %v706
      %v708 = vld [vmem:[%s254 + $0x30] sm:$0xf]
      %v709 = vsel %vm679, %v432, %v708
      %710 = vst [vmem:[%s254 + $0x30] sm:$0xf] %v709
      %711 = vst [vmem:[%s254 + $0x34] sm:$0xf] %v441
      %v712 = vld [vmem:[%s254 + $0x38] sm:$0x1]
      %v713 = vsel %vm257, %v442, %v712
      %714 = vst [vmem:[%s254 + $0x38] sm:$0x1] %v713
      %v715 = vld [vmem:[%s254 + $0x3c] sm:$0xf]
      %v716 = vsel %vm679, %v449, %v715
      %717 = vst [vmem:[%s254 + $0x3c] sm:$0xf] %v716
      %718 = vst [vmem:[%s254 + $0x40] sm:$0xf] %v458
      %v719 = vld [vmem:[%s254 + $0x44] sm:$0x1]
      %v720 = vsel %vm257, %v459, %v719
      %721 = vst [vmem:[%s254 + $0x44] sm:$0x1] %v720
      %v722 = vld [vmem:[%s254 + $0x48] sm:$0xf]
      %v723 = vsel %vm679, %v466, %v722
      %724 = vst [vmem:[%s254 + $0x48] sm:$0xf] %v723
      %725 = vst [vmem:[%s254 + $0x4c] sm:$0xf] %v475
      %v726 = vld [vmem:[%s254 + $0x50] sm:$0x1]
      %v727 = vsel %vm257, %v476, %v726
      %728 = vst [vmem:[%s254 + $0x50] sm:$0x1] %v727
      %v729 = vld [vmem:[%s254 + $0x54] sm:$0xf]
      %v730 = vsel %vm679, %v483, %v729
      %731 = vst [vmem:[%s254 + $0x54] sm:$0xf] %v730
      %732 = vst [vmem:[%s254 + $0x58] sm:$0xf] %v492
      %v733 = vld [vmem:[%s254 + $0x5c] sm:$0x1]
      %v734 = vsel %vm257, %v493, %v733
      %735 = vst [vmem:[%s254 + $0x5c] sm:$0x1] %v734
      %v736 = vld [vmem:[%s254 + $0x60] sm:$0xf]
      %v737 = vsel %vm679, %v500, %v736
      %738 = vst [vmem:[%s254 + $0x60] sm:$0xf] %v737
      %739 = vst [vmem:[%s254 + $0x64] sm:$0xf] %v509
      %v740 = vld [vmem:[%s254 + $0x68] sm:$0x1]
      %v741 = vsel %vm257, %v510, %v740
      %742 = vst [vmem:[%s254 + $0x68] sm:$0x1] %v741
      %v743 = vld [vmem:[%s254 + $0x6c] sm:$0xf]
      %v744 = vsel %vm679, %v517, %v743
      %745 = vst [vmem:[%s254 + $0x6c] sm:$0xf] %v744
      %746 = vst [vmem:[%s254 + $0x70] sm:$0xf] %v526
      %v747 = vld [vmem:[%s254 + $0x74] sm:$0x1]
      %v748 = vsel %vm257, %v527, %v747
      %749 = vst [vmem:[%s254 + $0x74] sm:$0x1] %v748
      %v750 = vld [vmem:[%s254 + $0x78] sm:$0xf]
      %v751 = vsel %vm679, %v534, %v750
      %752 = vst [vmem:[%s254 + $0x78] sm:$0xf] %v751
      %753 = vst [vmem:[%s254 + $0x7c] sm:$0xf] %v543
      %v754 = vld [vmem:[%s254 + $0x80] sm:$0x1]
      %v755 = vsel %vm257, %v544, %v754
      %756 = vst [vmem:[%s254 + $0x80] sm:$0x1] %v755
      %v757 = vld [vmem:[%s254 + $0x84] sm:$0xf]
      %v758 = vsel %vm679, %v551, %v757
      %759 = vst [vmem:[%s254 + $0x84] sm:$0xf] %v758
      %760 = vst [vmem:[%s254 + $0x88] sm:$0xf] %v560
      %v761 = vld [vmem:[%s254 + $0x8c] sm:$0x1]
      %v762 = vsel %vm257, %v561, %v761
      %763 = vst [vmem:[%s254 + $0x8c] sm:$0x1] %v762
      %v764 = vld [vmem:[%s254 + $0x90] sm:$0xf]
      %v765 = vsel %vm679, %v568, %v764
      %766 = vst [vmem:[%s254 + $0x90] sm:$0xf] %v765
      %767 = vst [vmem:[%s254 + $0x94] sm:$0xf] %v577
      %v768 = vld [vmem:[%s254 + $0x98] sm:$0x1]
      %v769 = vsel %vm257, %v578, %v768
      %770 = vst [vmem:[%s254 + $0x98] sm:$0x1] %v769
      %v771 = vld [vmem:[%s254 + $0x9c] sm:$0xf]
      %v772 = vsel %vm679, %v585, %v771
      %773 = vst [vmem:[%s254 + $0x9c] sm:$0xf] %v772
      %774 = vst [vmem:[%s254 + $0xa0] sm:$0xf] %v594
      %v775 = vld [vmem:[%s254 + $0xa4] sm:$0x1]
      %v776 = vsel %vm257, %v595, %v775
      %777 = vst [vmem:[%s254 + $0xa4] sm:$0x1] %v776
      %v778 = vld [vmem:[%s254 + $0xa8] sm:$0xf]
      %v779 = vsel %vm679, %v602, %v778
      %780 = vst [vmem:[%s254 + $0xa8] sm:$0xf] %v779
      %781 = vst [vmem:[%s254 + $0xac] sm:$0xf] %v611
      %v782 = vld [vmem:[%s254 + $0xb0] sm:$0x1]
      %v783 = vsel %vm257, %v612, %v782
      %784 = vst [vmem:[%s254 + $0xb0] sm:$0x1] %v783
      %v785 = vld [vmem:[%s254 + $0xb4] sm:$0xf]
      %v786 = vsel %vm679, %v619, %v785
      %787 = vst [vmem:[%s254 + $0xb4] sm:$0xf] %v786
      %788 = vst [vmem:[%s254 + $0xb8] sm:$0xf] %v628
      %v789 = vld [vmem:[%s254 + $0xbc] sm:$0x1]
      %v790 = vsel %vm257, %v629, %v789
      %791 = vst [vmem:[%s254 + $0xbc] sm:$0x1] %v790
      %v792 = vld [vmem:[#allocation2] sm:$0xf]
      %v793 = vld [vmem:[#allocation2 + $0x4] sm:$0xf]
      %v794 = vld [vmem:[#allocation2 + $0xc] sm:$0xf]
      %v795 = vld [vmem:[#allocation2 + $0x10] sm:$0xf]
      %v796 = vld [vmem:[#allocation2 + $0x18] sm:$0xf]
      %v797 = vld [vmem:[#allocation2 + $0x1c] sm:$0xf]
      %v798 = vld [vmem:[#allocation2 + $0x24] sm:$0xf]
      %v799 = vld [vmem:[#allocation2 + $0x28] sm:$0xf]
      %v800 = vld [vmem:[#allocation2 + $0x30] sm:$0xf]
      %v801 = vld [vmem:[#allocation2 + $0x34] sm:$0xf]
      %v802 = vld [vmem:[#allocation2 + $0x3c] sm:$0xf]
      %v803 = vld [vmem:[#allocation2 + $0x40] sm:$0xf]
      %v804 = vld [vmem:[#allocation2 + $0x48] sm:$0xf]
      %v805 = vld [vmem:[#allocation2 + $0x4c] sm:$0xf]
      %v806 = vld [vmem:[#allocation2 + $0x54] sm:$0xf]
      %v807 = vld [vmem:[#allocation2 + $0x58] sm:$0xf]
      %v808 = vld [vmem:[#allocation2 + $0x60] sm:$0xf]
      %v809 = vld [vmem:[#allocation2 + $0x64] sm:$0xf]
      %v810 = vld [vmem:[#allocation2 + $0x6c] sm:$0xf]
      %v811 = vld [vmem:[#allocation2 + $0x70] sm:$0xf]
      %v812 = vld [vmem:[#allocation2 + $0x78] sm:$0xf]
      %v813 = vld [vmem:[#allocation2 + $0x7c] sm:$0xf]
      %v814 = vld [vmem:[#allocation2 + $0x84] sm:$0xf]
      %v815 = vld [vmem:[#allocation2 + $0x88] sm:$0xf]
      %v816 = vld [vmem:[#allocation2 + $0x90] sm:$0xf]
      %v817 = vld [vmem:[#allocation2 + $0x94] sm:$0xf]
      %v818 = vld [vmem:[#allocation2 + $0x9c] sm:$0xf]
      %v819 = vld [vmem:[#allocation2 + $0xa0] sm:$0xf]
      %v820 = vld [vmem:[#allocation2 + $0xa8] sm:$0xf]
      %v821 = vld [vmem:[#allocation2 + $0xac] sm:$0xf]
      %v822 = vld [vmem:[#allocation2 + $0xb4] sm:$0xf]
      %v823 = vld [vmem:[#allocation2 + $0xb8] sm:$0xf]
      %v824 = vld [vmem:[#allocation2 + $0x8] sm:$0x1]
      %v825 = vld [vmem:[#allocation2 + $0x14] sm:$0x1]
      %v826 = vld [vmem:[#allocation2 + $0x20] sm:$0x1]
      %v827 = vld [vmem:[#allocation2 + $0x2c] sm:$0x1]
      %v828 = vld [vmem:[#allocation2 + $0x38] sm:$0x1]
      %v829 = vld [vmem:[#allocation2 + $0x44] sm:$0x1]
      %v830 = vld [vmem:[#allocation2 + $0x50] sm:$0x1]
      %v831 = vld [vmem:[#allocation2 + $0x5c] sm:$0x1]
      %v832 = vld [vmem:[#allocation2 + $0x68] sm:$0x1]
      %v833 = vld [vmem:[#allocation2 + $0x74] sm:$0x1]
      %v834 = vld [vmem:[#allocation2 + $0x80] sm:$0x1]
      %v835 = vld [vmem:[#allocation2 + $0x8c] sm:$0x1]
      %v836 = vld [vmem:[#allocation2 + $0x98] sm:$0x1]
      %v837 = vld [vmem:[#allocation2 + $0xa4] sm:$0x1]
      %v838 = vld [vmem:[#allocation2 + $0xb0] sm:$0x1]
      %v839 = vld [vmem:[#allocation2 + $0xbc] sm:$0x1]
      %vm840 = vsmask.f32 3328
      %vm841 = vsmask.f32 7440
      %vm842 = vmor %vm840, %vm841
      %v844 = vshrl.u32 %v792, 16
      %v846 = vrot.slane %v844, 4
      %v847 = vshll.u32 %v792, 16
      %v849 = vrot.slane %v847, 5
      %v850 = vor.u32 %v846, %v849
      %v851 = vrot.slane %v850, 4
      %v853 = vshll.u32 %v793, 16
      %v855 = vrot.slane %v853, 5
      %v856 = vsel %vm842, %v851, %v855
      %v857 = vshrl.u32 %v793, 16
      %v859 = vrot.slane %v857, 4
      %v860 = vor.u32 %v859, %v855
      %v861 = vrot.slane %v860, 4
      %v863 = vshll.u32 %v824, 16
      %v865 = vrot.slane %v863, 5
      %v866 = vsel %vm842, %v861, %v865
      %v868 = vshrl.u32 %v794, 16
      %v870 = vrot.slane %v868, 4
      %v871 = vshll.u32 %v794, 16
      %v873 = vrot.slane %v871, 5
      %v874 = vor.u32 %v870, %v873
      %v875 = vrot.slane %v874, 4
      %v877 = vshll.u32 %v795, 16
      %v879 = vrot.slane %v877, 5
      %v880 = vsel %vm842, %v875, %v879
      %v881 = vshrl.u32 %v795, 16
      %v883 = vrot.slane %v881, 4
      %v884 = vor.u32 %v883, %v879
      %v885 = vrot.slane %v884, 4
      %v887 = vshll.u32 %v825, 16
      %v889 = vrot.slane %v887, 5
      %v890 = vsel %vm842, %v885, %v889
      %v892 = vshrl.u32 %v796, 16
      %v894 = vrot.slane %v892, 4
      %v895 = vshll.u32 %v796, 16
      %v897 = vrot.slane %v895, 5
      %v898 = vor.u32 %v894, %v897
      %v899 = vrot.slane %v898, 4
      %v901 = vshll.u32 %v797, 16
      %v903 = vrot.slane %v901, 5
      %v904 = vsel %vm842, %v899, %v903
      %v905 = vshrl.u32 %v797, 16
      %v907 = vrot.slane %v905, 4
      %v908 = vor.u32 %v907, %v903
      %v909 = vrot.slane %v908, 4
      %v911 = vshll.u32 %v826, 16
      %v913 = vrot.slane %v911, 5
      %v914 = vsel %vm842, %v909, %v913
      %v916 = vshrl.u32 %v798, 16
      %v918 = vrot.slane %v916, 4
      %v919 = vshll.u32 %v798, 16
      %v921 = vrot.slane %v919, 5
      %v922 = vor.u32 %v918, %v921
      %v923 = vrot.slane %v922, 4
      %v925 = vshll.u32 %v799, 16
      %v927 = vrot.slane %v925, 5
      %v928 = vsel %vm842, %v923, %v927
      %v929 = vshrl.u32 %v799, 16
      %v931 = vrot.slane %v929, 4
      %v932 = vor.u32 %v931, %v927
      %v933 = vrot.slane %v932, 4
      %v935 = vshll.u32 %v827, 16
      %v937 = vrot.slane %v935, 5
      %v938 = vsel %vm842, %v933, %v937
      %v940 = vshrl.u32 %v800, 16
      %v942 = vrot.slane %v940, 4
      %v943 = vshll.u32 %v800, 16
      %v945 = vrot.slane %v943, 5
      %v946 = vor.u32 %v942, %v945
      %v947 = vrot.slane %v946, 4
      %v949 = vshll.u32 %v801, 16
      %v951 = vrot.slane %v949, 5
      %v952 = vsel %vm842, %v947, %v951
      %v953 = vshrl.u32 %v801, 16
      %v955 = vrot.slane %v953, 4
      %v956 = vor.u32 %v955, %v951
      %v957 = vrot.slane %v956, 4
      %v959 = vshll.u32 %v828, 16
      %v961 = vrot.slane %v959, 5
      %v962 = vsel %vm842, %v957, %v961
      %v964 = vshrl.u32 %v802, 16
      %v966 = vrot.slane %v964, 4
      %v967 = vshll.u32 %v802, 16
      %v969 = vrot.slane %v967, 5
      %v970 = vor.u32 %v966, %v969
      %v971 = vrot.slane %v970, 4
      %v973 = vshll.u32 %v803, 16
      %v975 = vrot.slane %v973, 5
      %v976 = vsel %vm842, %v971, %v975
      %v977 = vshrl.u32 %v803, 16
      %v979 = vrot.slane %v977, 4
      %v980 = vor.u32 %v979, %v975
      %v981 = vrot.slane %v980, 4
      %v983 = vshll.u32 %v829, 16
      %v985 = vrot.slane %v983, 5
      %v986 = vsel %vm842, %v981, %v985
      %v988 = vshrl.u32 %v804, 16
      %v990 = vrot.slane %v988, 4
      %v991 = vshll.u32 %v804, 16
      %v993 = vrot.slane %v991, 5
      %v994 = vor.u32 %v990, %v993
      %v995 = vrot.slane %v994, 4
      %v997 = vshll.u32 %v805, 16
      %v999 = vrot.slane %v997, 5
      %v1000 = vsel %vm842, %v995, %v999
      %v1001 = vshrl.u32 %v805, 16
      %v1003 = vrot.slane %v1001, 4
      %v1004 = vor.u32 %v1003, %v999
      %v1005 = vrot.slane %v1004, 4
      %v1007 = vshll.u32 %v830, 16
      %v1009 = vrot.slane %v1007, 5
      %v1010 = vsel %vm842, %v1005, %v1009
      %v1012 = vshrl.u32 %v806, 16
      %v1014 = vrot.slane %v1012, 4
      %v1015 = vshll.u32 %v806, 16
      %v1017 = vrot.slane %v1015, 5
      %v1018 = vor.u32 %v1014, %v1017
      %v1019 = vrot.slane %v1018, 4
      %v1021 = vshll.u32 %v807, 16
      %v1023 = vrot.slane %v1021, 5
      %v1024 = vsel %vm842, %v1019, %v1023
      %v1025 = vshrl.u32 %v807, 16
      %v1027 = vrot.slane %v1025, 4
      %v1028 = vor.u32 %v1027, %v1023
      %v1029 = vrot.slane %v1028, 4
      %v1031 = vshll.u32 %v831, 16
      %v1033 = vrot.slane %v1031, 5
      %v1034 = vsel %vm842, %v1029, %v1033
      %v1036 = vshrl.u32 %v808, 16
      %v1038 = vrot.slane %v1036, 4
      %v1039 = vshll.u32 %v808, 16
      %v1041 = vrot.slane %v1039, 5
      %v1042 = vor.u32 %v1038, %v1041
      %v1043 = vrot.slane %v1042, 4
      %v1045 = vshll.u32 %v809, 16
      %v1047 = vrot.slane %v1045, 5
      %v1048 = vsel %vm842, %v1043, %v1047
      %v1049 = vshrl.u32 %v809, 16
      %v1051 = vrot.slane %v1049, 4
      %v1052 = vor.u32 %v1051, %v1047
      %v1053 = vrot.slane %v1052, 4
      %v1055 = vshll.u32 %v832, 16
      %v1057 = vrot.slane %v1055, 5
      %v1058 = vsel %vm842, %v1053, %v1057
      %v1060 = vshrl.u32 %v810, 16
      %v1062 = vrot.slane %v1060, 4
      %v1063 = vshll.u32 %v810, 16
      %v1065 = vrot.slane %v1063, 5
      %v1066 = vor.u32 %v1062, %v1065
      %v1067 = vrot.slane %v1066, 4
      %v1069 = vshll.u32 %v811, 16
      %v1071 = vrot.slane %v1069, 5
      %v1072 = vsel %vm842, %v1067, %v1071
      %v1073 = vshrl.u32 %v811, 16
      %v1075 = vrot.slane %v1073, 4
      %v1076 = vor.u32 %v1075, %v1071
      %v1077 = vrot.slane %v1076, 4
      %v1079 = vshll.u32 %v833, 16
      %v1081 = vrot.slane %v1079, 5
      %v1082 = vsel %vm842, %v1077, %v1081
      %v1084 = vshrl.u32 %v812, 16
      %v1086 = vrot.slane %v1084, 4
      %v1087 = vshll.u32 %v812, 16
      %v1089 = vrot.slane %v1087, 5
      %v1090 = vor.u32 %v1086, %v1089
      %v1091 = vrot.slane %v1090, 4
      %v1093 = vshll.u32 %v813, 16
      %v1095 = vrot.slane %v1093, 5
      %v1096 = vsel %vm842, %v1091, %v1095
      %v1097 = vshrl.u32 %v813, 16
      %v1099 = vrot.slane %v1097, 4
      %v1100 = vor.u32 %v1099, %v1095
      %v1101 = vrot.slane %v1100, 4
      %v1103 = vshll.u32 %v834, 16
      %v1105 = vrot.slane %v1103, 5
      %v1106 = vsel %vm842, %v1101, %v1105
      %v1108 = vshrl.u32 %v814, 16
      %v1110 = vrot.slane %v1108, 4
      %v1111 = vshll.u32 %v814, 16
      %v1113 = vrot.slane %v1111, 5
      %v1114 = vor.u32 %v1110, %v1113
      %v1115 = vrot.slane %v1114, 4
      %v1117 = vshll.u32 %v815, 16
      %v1119 = vrot.slane %v1117, 5
      %v1120 = vsel %vm842, %v1115, %v1119
      %v1121 = vshrl.u32 %v815, 16
      %v1123 = vrot.slane %v1121, 4
      %v1124 = vor.u32 %v1123, %v1119
      %v1125 = vrot.slane %v1124, 4
      %v1127 = vshll.u32 %v835, 16
      %v1129 = vrot.slane %v1127, 5
      %v1130 = vsel %vm842, %v1125, %v1129
      %v1132 = vshrl.u32 %v816, 16
      %v1134 = vrot.slane %v1132, 4
      %v1135 = vshll.u32 %v816, 16
      %v1137 = vrot.slane %v1135, 5
      %v1138 = vor.u32 %v1134, %v1137
      %v1139 = vrot.slane %v1138, 4
      %v1141 = vshll.u32 %v817, 16
      %v1143 = vrot.slane %v1141, 5
      %v1144 = vsel %vm842, %v1139, %v1143
      %v1145 = vshrl.u32 %v817, 16
      %v1147 = vrot.slane %v1145, 4
      %v1148 = vor.u32 %v1147, %v1143
      %v1149 = vrot.slane %v1148, 4
      %v1151 = vshll.u32 %v836, 16
      %v1153 = vrot.slane %v1151, 5
      %v1154 = vsel %vm842, %v1149, %v1153
      %v1156 = vshrl.u32 %v818, 16
      %v1158 = vrot.slane %v1156, 4
      %v1159 = vshll.u32 %v818, 16
      %v1161 = vrot.slane %v1159, 5
      %v1162 = vor.u32 %v1158, %v1161
      %v1163 = vrot.slane %v1162, 4
      %v1165 = vshll.u32 %v819, 16
      %v1167 = vrot.slane %v1165, 5
      %v1168 = vsel %vm842, %v1163, %v1167
      %v1169 = vshrl.u32 %v819, 16
      %v1171 = vrot.slane %v1169, 4
      %v1172 = vor.u32 %v1171, %v1167
      %v1173 = vrot.slane %v1172, 4
      %v1175 = vshll.u32 %v837, 16
      %v1177 = vrot.slane %v1175, 5
      %v1178 = vsel %vm842, %v1173, %v1177
      %v1180 = vshrl.u32 %v820, 16
      %v1182 = vrot.slane %v1180, 4
      %v1183 = vshll.u32 %v820, 16
      %v1185 = vrot.slane %v1183, 5
      %v1186 = vor.u32 %v1182, %v1185
      %v1187 = vrot.slane %v1186, 4
      %v1189 = vshll.u32 %v821, 16
      %v1191 = vrot.slane %v1189, 5
      %v1192 = vsel %vm842, %v1187, %v1191
      %v1193 = vshrl.u32 %v821, 16
      %v1195 = vrot.slane %v1193, 4
      %v1196 = vor.u32 %v1195, %v1191
      %v1197 = vrot.slane %v1196, 4
      %v1199 = vshll.u32 %v838, 16
      %v1201 = vrot.slane %v1199, 5
      %v1202 = vsel %vm842, %v1197, %v1201
      %v1204 = vshrl.u32 %v822, 16
      %v1206 = vrot.slane %v1204, 4
      %v1207 = vshll.u32 %v822, 16
      %v1209 = vrot.slane %v1207, 5
      %v1210 = vor.u32 %v1206, %v1209
      %v1211 = vrot.slane %v1210, 4
      %v1213 = vshll.u32 %v823, 16
      %v1215 = vrot.slane %v1213, 5
      %v1216 = vsel %vm842, %v1211, %v1215
      %v1217 = vshrl.u32 %v823, 16
      %v1219 = vrot.slane %v1217, 4
      %v1220 = vor.u32 %v1219, %v1215
      %v1221 = vrot.slane %v1220, 4
      %v1223 = vshll.u32 %v839, 16
      %v1225 = vrot.slane %v1223, 5
      %v1226 = vsel %vm842, %v1221, %v1225
      %v1227 = vld [vmem:[#allocation2] sm:$0xe]
      %v1228 = vld [vmem:[#allocation2 + $0xc] sm:$0xe]
      %v1229 = vld [vmem:[#allocation2 + $0x18] sm:$0xe]
      %v1230 = vld [vmem:[#allocation2 + $0x24] sm:$0xe]
      %v1231 = vld [vmem:[#allocation2 + $0x30] sm:$0xe]
      %v1232 = vld [vmem:[#allocation2 + $0x3c] sm:$0xe]
      %v1233 = vld [vmem:[#allocation2 + $0x48] sm:$0xe]
      %v1234 = vld [vmem:[#allocation2 + $0x54] sm:$0xe]
      %v1235 = vld [vmem:[#allocation2 + $0x60] sm:$0xe]
      %v1236 = vld [vmem:[#allocation2 + $0x6c] sm:$0xe]
      %v1237 = vld [vmem:[#allocation2 + $0x78] sm:$0xe]
      %v1238 = vld [vmem:[#allocation2 + $0x84] sm:$0xe]
      %v1239 = vld [vmem:[#allocation2 + $0x90] sm:$0xe]
      %v1240 = vld [vmem:[#allocation2 + $0x9c] sm:$0xe]
      %v1241 = vld [vmem:[#allocation2 + $0xa8] sm:$0xe]
      %v1242 = vld [vmem:[#allocation2 + $0xb4] sm:$0xe]
      %vm1291 = vcmask 1042432
      %vm1292 = vcmask 1046532
      %vm1293 = vmor %vm1291, %vm1292
      %v1294 = vrot.slane %v1227, 5
      %v1295 = vrot.slane %v1294, 4
      %v1296 = vrot.slane %v793, 5
      %v1297 = vsel %vm1293, %v1295, %v1296
      %v1298 = vrot.slane %v1296, 4
      %v1299 = vrot.slane %v824, 5
      %v1300 = vsel %vm1293, %v1298, %v1299
      %v1301 = vrot.slane %v1228, 5
      %v1302 = vrot.slane %v1301, 4
      %v1303 = vrot.slane %v795, 5
      %v1304 = vsel %vm1293, %v1302, %v1303
      %v1305 = vrot.slane %v1303, 4
      %v1306 = vrot.slane %v825, 5
      %v1307 = vsel %vm1293, %v1305, %v1306
      %v1308 = vrot.slane %v1229, 5
      %v1309 = vrot.slane %v1308, 4
      %v1310 = vrot.slane %v797, 5
      %v1311 = vsel %vm1293, %v1309, %v1310
      %v1312 = vrot.slane %v1310, 4
      %v1313 = vrot.slane %v826, 5
      %v1314 = vsel %vm1293, %v1312, %v1313
      %v1315 = vrot.slane %v1230, 5
      %v1316 = vrot.slane %v1315, 4
      %v1317 = vrot.slane %v799, 5
      %v1318 = vsel %vm1293, %v1316, %v1317
      %v1319 = vrot.slane %v1317, 4
      %v1320 = vrot.slane %v827, 5
      %v1321 = vsel %vm1293, %v1319, %v1320
      %v1322 = vrot.slane %v1231, 5
      %v1323 = vrot.slane %v1322, 4
      %v1324 = vrot.slane %v801, 5
      %v1325 = vsel %vm1293, %v1323, %v1324
      %v1326 = vrot.slane %v1324, 4
      %v1327 = vrot.slane %v828, 5
      %v1328 = vsel %vm1293, %v1326, %v1327
      %v1329 = vrot.slane %v1232, 5
      %v1330 = vrot.slane %v1329, 4
      %v1331 = vrot.slane %v803, 5
      %v1332 = vsel %vm1293, %v1330, %v1331
      %v1333 = vrot.slane %v1331, 4
      %v1334 = vrot.slane %v829, 5
      %v1335 = vsel %vm1293, %v1333, %v1334
      %v1336 = vrot.slane %v1233, 5
      %v1337 = vrot.slane %v1336, 4
      %v1338 = vrot.slane %v805, 5
      %v1339 = vsel %vm1293, %v1337, %v1338
      %v1340 = vrot.slane %v1338, 4
      %v1341 = vrot.slane %v830, 5
      %v1342 = vsel %vm1293, %v1340, %v1341
      %v1343 = vrot.slane %v1234, 5
      %v1344 = vrot.slane %v1343, 4
      %v1345 = vrot.slane %v807, 5
      %v1346 = vsel %vm1293, %v1344, %v1345
      %v1347 = vrot.slane %v1345, 4
      %v1348 = vrot.slane %v831, 5
      %v1349 = vsel %vm1293, %v1347, %v1348
      %v1350 = vrot.slane %v1235, 5
      %v1351 = vrot.slane %v1350, 4
      %v1352 = vrot.slane %v809, 5
      %v1353 = vsel %vm1293, %v1351, %v1352
      %v1354 = vrot.slane %v1352, 4
      %v1355 = vrot.slane %v832, 5
      %v1356 = vsel %vm1293, %v1354, %v1355
      %v1357 = vrot.slane %v1236, 5
      %v1358 = vrot.slane %v1357, 4
      %v1359 = vrot.slane %v811, 5
      %v1360 = vsel %vm1293, %v1358, %v1359
      %v1361 = vrot.slane %v1359, 4
      %v1362 = vrot.slane %v833, 5
      %v1363 = vsel %vm1293, %v1361, %v1362
      %v1364 = vrot.slane %v1237, 5
      %v1365 = vrot.slane %v1364, 4
      %v1366 = vrot.slane %v813, 5
      %v1367 = vsel %vm1293, %v1365, %v1366
      %v1368 = vrot.slane %v1366, 4
      %v1369 = vrot.slane %v834, 5
      %v1370 = vsel %vm1293, %v1368, %v1369
      %v1371 = vrot.slane %v1238, 5
      %v1372 = vrot.slane %v1371, 4
      %v1373 = vrot.slane %v815, 5
      %v1374 = vsel %vm1293, %v1372, %v1373
      %v1375 = vrot.slane %v1373, 4
      %v1376 = vrot.slane %v835, 5
      %v1377 = vsel %vm1293, %v1375, %v1376
      %v1378 = vrot.slane %v1239, 5
      %v1379 = vrot.slane %v1378, 4
      %v1380 = vrot.slane %v817, 5
      %v1381 = vsel %vm1293, %v1379, %v1380
      %v1382 = vrot.slane %v1380, 4
      %v1383 = vrot.slane %v836, 5
      %v1384 = vsel %vm1293, %v1382, %v1383
      %v1385 = vrot.slane %v1240, 5
      %v1386 = vrot.slane %v1385, 4
      %v1387 = vrot.slane %v819, 5
      %v1388 = vsel %vm1293, %v1386, %v1387
      %v1389 = vrot.slane %v1387, 4
      %v1390 = vrot.slane %v837, 5
      %v1391 = vsel %vm1293, %v1389, %v1390
      %v1392 = vrot.slane %v1241, 5
      %v1393 = vrot.slane %v1392, 4
      %v1394 = vrot.slane %v821, 5
      %v1395 = vsel %vm1293, %v1393, %v1394
      %v1396 = vrot.slane %v1394, 4
      %v1397 = vrot.slane %v838, 5
      %v1398 = vsel %vm1293, %v1396, %v1397
      %v1399 = vrot.slane %v1242, 5
      %v1400 = vrot.slane %v1399, 4
      %v1401 = vrot.slane %v823, 5
      %v1402 = vsel %vm1293, %v1400, %v1401
      %v1403 = vrot.slane %v1401, 4
      %v1404 = vrot.slane %v839, 5
      %v1405 = vsel %vm1293, %v1403, %v1404
      %v1422 = vunpack.c.l.b16 %v792
      %v1423 = vunpack.c.l.b16 %v793
      %v1424 = vunpack.c.l.b16 %v794
      %v1425 = vunpack.c.l.b16 %v795
      %v1426 = vunpack.c.l.b16 %v796
      %v1427 = vunpack.c.l.b16 %v797
      %v1428 = vunpack.c.l.b16 %v798
      %v1429 = vunpack.c.l.b16 %v799
      %v1430 = vunpack.c.l.b16 %v800
      %v1431 = vunpack.c.l.b16 %v801
      %v1432 = vunpack.c.l.b16 %v802
      %v1433 = vunpack.c.l.b16 %v803
      %v1434 = vunpack.c.l.b16 %v804
      %v1435 = vunpack.c.l.b16 %v805
      %v1436 = vunpack.c.l.b16 %v806
      %v1437 = vunpack.c.l.b16 %v807
      %v1438 = vunpack.c.l.b16 %v808
      %v1439 = vunpack.c.l.b16 %v809
      %v1440 = vunpack.c.l.b16 %v810
      %v1441 = vunpack.c.l.b16 %v811
      %v1442 = vunpack.c.l.b16 %v812
      %v1443 = vunpack.c.l.b16 %v813
      %v1444 = vunpack.c.l.b16 %v814
      %v1445 = vunpack.c.l.b16 %v815
      %v1446 = vunpack.c.l.b16 %v816
      %v1447 = vunpack.c.l.b16 %v817
      %v1448 = vunpack.c.l.b16 %v818
      %v1449 = vunpack.c.l.b16 %v819
      %v1450 = vunpack.c.l.b16 %v820
      %v1451 = vunpack.c.l.b16 %v821
      %v1452 = vunpack.c.l.b16 %v822
      %v1453 = vunpack.c.l.b16 %v823
      %v1454 = vpack.c.b16 %v1423, %v1422
      %v1455 = vpack.c.b16 %v1425, %v1424
      %v1456 = vpack.c.b16 %v1427, %v1426
      %v1457 = vpack.c.b16 %v1429, %v1428
      %v1458 = vpack.c.b16 %v1431, %v1430
      %v1459 = vpack.c.b16 %v1433, %v1432
      %v1460 = vpack.c.b16 %v1435, %v1434
      %v1461 = vpack.c.b16 %v1437, %v1436
      %v1462 = vpack.c.b16 %v1439, %v1438
      %v1463 = vpack.c.b16 %v1441, %v1440
      %v1464 = vpack.c.b16 %v1443, %v1442
      %v1465 = vpack.c.b16 %v1445, %v1444
      %v1466 = vpack.c.b16 %v1447, %v1446
      %v1467 = vpack.c.b16 %v1449, %v1448
      %v1468 = vpack.c.b16 %v1451, %v1450
      %v1469 = vpack.c.b16 %v1453, %v1452
      %v1486 = vunpack.c.l.b16 %v856
      %v1487 = vunpack.c.l.b16 %v866
      %v1488 = vunpack.c.l.b16 %v880
      %v1489 = vunpack.c.l.b16 %v890
      %v1490 = vunpack.c.l.b16 %v904
      %v1491 = vunpack.c.l.b16 %v914
      %v1492 = vunpack.c.l.b16 %v928
      %v1493 = vunpack.c.l.b16 %v938
      %v1494 = vunpack.c.l.b16 %v952
      %v1495 = vunpack.c.l.b16 %v962
      %v1496 = vunpack.c.l.b16 %v976
      %v1497 = vunpack.c.l.b16 %v986
      %v1498 = vunpack.c.l.b16 %v1000
      %v1499 = vunpack.c.l.b16 %v1010
      %v1500 = vunpack.c.l.b16 %v1024
      %v1501 = vunpack.c.l.b16 %v1034
      %v1502 = vunpack.c.l.b16 %v1048
      %v1503 = vunpack.c.l.b16 %v1058
      %v1504 = vunpack.c.l.b16 %v1072
      %v1505 = vunpack.c.l.b16 %v1082
      %v1506 = vunpack.c.l.b16 %v1096
      %v1507 = vunpack.c.l.b16 %v1106
      %v1508 = vunpack.c.l.b16 %v1120
      %v1509 = vunpack.c.l.b16 %v1130
      %v1510 = vunpack.c.l.b16 %v1144
      %v1511 = vunpack.c.l.b16 %v1154
      %v1512 = vunpack.c.l.b16 %v1168
      %v1513 = vunpack.c.l.b16 %v1178
      %v1514 = vunpack.c.l.b16 %v1192
      %v1515 = vunpack.c.l.b16 %v1202
      %v1516 = vunpack.c.l.b16 %v1216
      %v1517 = vunpack.c.l.b16 %v1226
      %v1518 = vpack.c.b16 %v1487, %v1486
      %v1519 = vpack.c.b16 %v1489, %v1488
      %v1520 = vpack.c.b16 %v1491, %v1490
      %v1521 = vpack.c.b16 %v1493, %v1492
      %v1522 = vpack.c.b16 %v1495, %v1494
      %v1523 = vpack.c.b16 %v1497, %v1496
      %v1524 = vpack.c.b16 %v1499, %v1498
      %v1525 = vpack.c.b16 %v1501, %v1500
      %v1526 = vpack.c.b16 %v1503, %v1502
      %v1527 = vpack.c.b16 %v1505, %v1504
      %v1528 = vpack.c.b16 %v1507, %v1506
      %v1529 = vpack.c.b16 %v1509, %v1508
      %v1530 = vpack.c.b16 %v1511, %v1510
      %v1531 = vpack.c.b16 %v1513, %v1512
      %v1532 = vpack.c.b16 %v1515, %v1514
      %v1533 = vpack.c.b16 %v1517, %v1516
      %v1550 = vunpack.c.l.b16 %v1297
      %v1551 = vunpack.c.l.b16 %v1300
      %v1552 = vunpack.c.l.b16 %v1304
      %v1553 = vunpack.c.l.b16 %v1307
      %v1554 = vunpack.c.l.b16 %v1311
      %v1555 = vunpack.c.l.b16 %v1314
      %v1556 = vunpack.c.l.b16 %v1318
      %v1557 = vunpack.c.l.b16 %v1321
      %v1558 = vunpack.c.l.b16 %v1325
      %v1559 = vunpack.c.l.b16 %v1328
      %v1560 = vunpack.c.l.b16 %v1332
      %v1561 = vunpack.c.l.b16 %v1335
      %v1562 = vunpack.c.l.b16 %v1339
      %v1563 = vunpack.c.l.b16 %v1342
      %v1564 = vunpack.c.l.b16 %v1346
      %v1565 = vunpack.c.l.b16 %v1349
      %v1566 = vunpack.c.l.b16 %v1353
      %v1567 = vunpack.c.l.b16 %v1356
      %v1568 = vunpack.c.l.b16 %v1360
      %v1569 = vunpack.c.l.b16 %v1363
      %v1570 = vunpack.c.l.b16 %v1367
      %v1571 = vunpack.c.l.b16 %v1370
      %v1572 = vunpack.c.l.b16 %v1374
      %v1573 = vunpack.c.l.b16 %v1377
      %v1574 = vunpack.c.l.b16 %v1381
      %v1575 = vunpack.c.l.b16 %v1384
      %v1576 = vunpack.c.l.b16 %v1388
      %v1577 = vunpack.c.l.b16 %v1391
      %v1578 = vunpack.c.l.b16 %v1395
      %v1579 = vunpack.c.l.b16 %v1398
      %v1580 = vunpack.c.l.b16 %v1402
      %v1581 = vunpack.c.l.b16 %v1405
      %v1582 = vpack.c.b16 %v1551, %v1550
      %v1583 = vpack.c.b16 %v1553, %v1552
      %v1584 = vpack.c.b16 %v1555, %v1554
      %v1585 = vpack.c.b16 %v1557, %v1556
      %v1586 = vpack.c.b16 %v1559, %v1558
      %v1587 = vpack.c.b16 %v1561, %v1560
      %v1588 = vpack.c.b16 %v1563, %v1562
      %v1589 = vpack.c.b16 %v1565, %v1564
      %v1590 = vpack.c.b16 %v1567, %v1566
      %v1591 = vpack.c.b16 %v1569, %v1568
      %v1592 = vpack.c.b16 %v1571, %v1570
      %v1593 = vpack.c.b16 %v1573, %v1572
      %v1594 = vpack.c.b16 %v1575, %v1574
      %v1595 = vpack.c.b16 %v1577, %v1576
      %v1596 = vpack.c.b16 %v1579, %v1578
      %v1597 = vpack.c.b16 %v1581, %v1580
      %v1614 = vld [vmem:[%s1] sm:$0xf]
      %v1615 = vld [vmem:[%s1 + $0x4] sm:$0xf]
      %v1616 = vld [vmem:[%s1 + $0x8] sm:$0xf]
      %v1617 = vld [vmem:[%s1 + $0xc] sm:$0xf]
      %v1618 = vld [vmem:[%s1 + $0x10] sm:$0xf]
      %v1619 = vld [vmem:[%s1 + $0x14] sm:$0xf]
      %v1620 = vld [vmem:[%s1 + $0x18] sm:$0xf]
      %v1621 = vld [vmem:[%s1 + $0x1c] sm:$0xf]
      %v1622 = vld [vmem:[%s1 + $0x20] sm:$0xf]
      %v1623 = vld [vmem:[%s1 + $0x24] sm:$0xf]
      %v1624 = vld [vmem:[%s1 + $0x28] sm:$0xf]
      %v1625 = vld [vmem:[%s1 + $0x2c] sm:$0xf]
      %v1626 = vld [vmem:[%s1 + $0x30] sm:$0xf]
      %v1627 = vld [vmem:[%s1 + $0x34] sm:$0xf]
      %v1628 = vld [vmem:[%s1 + $0x38] sm:$0xf]
      %v1629 = vld [vmem:[%s1 + $0x3c] sm:$0xf]
      %v1630 = vld [vmem:[%s1 + $0x40] sm:$0xf]
      %v1631 = vld [vmem:[%s1 + $0x44] sm:$0xf]
      %v1632 = vld [vmem:[%s1 + $0x48] sm:$0xf]
      %v1633 = vld [vmem:[%s1 + $0x4c] sm:$0xf]
      %v1634 = vld [vmem:[%s1 + $0x50] sm:$0xf]
      %v1635 = vld [vmem:[%s1 + $0x54] sm:$0xf]
      %v1636 = vld [vmem:[%s1 + $0x58] sm:$0xf]
      %v1637 = vld [vmem:[%s1 + $0x5c] sm:$0xf]
      %v1638 = vld [vmem:[%s1 + $0x60] sm:$0xf]
      %v1639 = vld [vmem:[%s1 + $0x64] sm:$0xf]
      %v1640 = vld [vmem:[%s1 + $0x68] sm:$0xf]
      %v1641 = vld [vmem:[%s1 + $0x6c] sm:$0xf]
      %v1642 = vld [vmem:[%s1 + $0x70] sm:$0xf]
      %v1643 = vld [vmem:[%s1 + $0x74] sm:$0xf]
      %v1644 = vld [vmem:[%s1 + $0x78] sm:$0xf]
      %v1645 = vld [vmem:[%s1 + $0x7c] sm:$0xf]
      %v1646 = vld [vmem:[%s1 + $0x80] sm:$0xf]
      %v1647 = vld [vmem:[%s1 + $0x84] sm:$0xf]
      %v1648 = vld [vmem:[%s1 + $0x88] sm:$0xf]
      %v1649 = vld [vmem:[%s1 + $0x8c] sm:$0xf]
      %v1650 = vld [vmem:[%s1 + $0x90] sm:$0xf]
      %v1651 = vld [vmem:[%s1 + $0x94] sm:$0xf]
      %v1652 = vld [vmem:[%s1 + $0x98] sm:$0xf]
      %v1653 = vld [vmem:[%s1 + $0x9c] sm:$0xf]
      %v1654 = vld [vmem:[%s1 + $0xa0] sm:$0xf]
      %v1655 = vld [vmem:[%s1 + $0xa4] sm:$0xf]
      %v1656 = vld [vmem:[%s1 + $0xa8] sm:$0xf]
      %v1657 = vld [vmem:[%s1 + $0xac] sm:$0xf]
      %v1658 = vld [vmem:[%s1 + $0xb0] sm:$0xf]
      %v1659 = vld [vmem:[%s1 + $0xb4] sm:$0xf]
      %v1660 = vld [vmem:[%s1 + $0xb8] sm:$0xf]
      %v1661 = vld [vmem:[%s1 + $0xbc] sm:$0xf]
      %v1662 = vld [vmem:[%s254] sm:$0xf]
      %v1663 = vld [vmem:[%s254 + $0x4] sm:$0xf]
      %v1664 = vld [vmem:[%s254 + $0xc] sm:$0xf]
      %v1665 = vld [vmem:[%s254 + $0x10] sm:$0xf]
      %v1666 = vld [vmem:[%s254 + $0x18] sm:$0xf]
      %v1667 = vld [vmem:[%s254 + $0x1c] sm:$0xf]
      %v1668 = vld [vmem:[%s254 + $0x24] sm:$0xf]
      %v1669 = vld [vmem:[%s254 + $0x28] sm:$0xf]
      %v1670 = vld [vmem:[%s254 + $0x30] sm:$0xf]
      %v1671 = vld [vmem:[%s254 + $0x34] sm:$0xf]
      %v1672 = vld [vmem:[%s254 + $0x3c] sm:$0xf]
      %v1673 = vld [vmem:[%s254 + $0x40] sm:$0xf]
      %v1674 = vld [vmem:[%s254 + $0x48] sm:$0xf]
      %v1675 = vld [vmem:[%s254 + $0x4c] sm:$0xf]
      %v1676 = vld [vmem:[%s254 + $0x54] sm:$0xf]
      %v1677 = vld [vmem:[%s254 + $0x58] sm:$0xf]
      %v1678 = vld [vmem:[%s254 + $0x60] sm:$0xf]
      %v1679 = vld [vmem:[%s254 + $0x64] sm:$0xf]
      %v1680 = vld [vmem:[%s254 + $0x6c] sm:$0xf]
      %v1681 = vld [vmem:[%s254 + $0x70] sm:$0xf]
      %v1682 = vld [vmem:[%s254 + $0x78] sm:$0xf]
      %v1683 = vld [vmem:[%s254 + $0x7c] sm:$0xf]
      %v1684 = vld [vmem:[%s254 + $0x84] sm:$0xf]
      %v1685 = vld [vmem:[%s254 + $0x88] sm:$0xf]
      %v1686 = vld [vmem:[%s254 + $0x90] sm:$0xf]
      %v1687 = vld [vmem:[%s254 + $0x94] sm:$0xf]
      %v1688 = vld [vmem:[%s254 + $0x9c] sm:$0xf]
      %v1689 = vld [vmem:[%s254 + $0xa0] sm:$0xf]
      %v1690 = vld [vmem:[%s254 + $0xa8] sm:$0xf]
      %v1691 = vld [vmem:[%s254 + $0xac] sm:$0xf]
      %v1692 = vld [vmem:[%s254 + $0xb4] sm:$0xf]
      %v1693 = vld [vmem:[%s254 + $0xb8] sm:$0xf]
      %v1694 = vld [vmem:[%s254 + $0x8] sm:$0x1]
      %v1695 = vld [vmem:[%s254 + $0x14] sm:$0x1]
      %v1696 = vld [vmem:[%s254 + $0x20] sm:$0x1]
      %v1697 = vld [vmem:[%s254 + $0x2c] sm:$0x1]
      %v1698 = vld [vmem:[%s254 + $0x38] sm:$0x1]
      %v1699 = vld [vmem:[%s254 + $0x44] sm:$0x1]
      %v1700 = vld [vmem:[%s254 + $0x50] sm:$0x1]
      %v1701 = vld [vmem:[%s254 + $0x5c] sm:$0x1]
      %v1702 = vld [vmem:[%s254 + $0x68] sm:$0x1]
      %v1703 = vld [vmem:[%s254 + $0x74] sm:$0x1]
      %v1704 = vld [vmem:[%s254 + $0x80] sm:$0x1]
      %v1705 = vld [vmem:[%s254 + $0x8c] sm:$0x1]
      %v1706 = vld [vmem:[%s254 + $0x98] sm:$0x1]
      %v1707 = vld [vmem:[%s254 + $0xa4] sm:$0x1]
      %v1708 = vld [vmem:[%s254 + $0xb0] sm:$0x1]
      %v1709 = vld [vmem:[%s254 + $0xbc] sm:$0x1]
      %v1711 = vshrl.u32 %v1662, 16
      %v1713 = vrot.slane %v1711, 4
      %v1714 = vshll.u32 %v1662, 16
      %v1716 = vrot.slane %v1714, 5
      %v1717 = vor.u32 %v1713, %v1716
      %v1718 = vrot.slane %v1717, 4
      %v1720 = vshll.u32 %v1663, 16
      %v1722 = vrot.slane %v1720, 5
      %v1723 = vsel %vm842, %v1718, %v1722
      %v1724 = vshrl.u32 %v1663, 16
      %v1726 = vrot.slane %v1724, 4
      %v1727 = vor.u32 %v1726, %v1722
      %v1728 = vrot.slane %v1727, 4
      %v1730 = vshll.u32 %v1694, 16
      %v1732 = vrot.slane %v1730, 5
      %v1733 = vsel %vm842, %v1728, %v1732
      %v1735 = vshrl.u32 %v1664, 16
      %v1737 = vrot.slane %v1735, 4
      %v1738 = vshll.u32 %v1664, 16
      %v1740 = vrot.slane %v1738, 5
      %v1741 = vor.u32 %v1737, %v1740
      %v1742 = vrot.slane %v1741, 4
      %v1744 = vshll.u32 %v1665, 16
      %v1746 = vrot.slane %v1744, 5
      %v1747 = vsel %vm842, %v1742, %v1746
      %v1748 = vshrl.u32 %v1665, 16
      %v1750 = vrot.slane %v1748, 4
      %v1751 = vor.u32 %v1750, %v1746
      %v1752 = vrot.slane %v1751, 4
      %v1754 = vshll.u32 %v1695, 16
      %v1756 = vrot.slane %v1754, 5
      %v1757 = vsel %vm842, %v1752, %v1756
      %v1759 = vshrl.u32 %v1666, 16
      %v1761 = vrot.slane %v1759, 4
      %v1762 = vshll.u32 %v1666, 16
      %v1764 = vrot.slane %v1762, 5
      %v1765 = vor.u32 %v1761, %v1764
      %v1766 = vrot.slane %v1765, 4
      %v1768 = vshll.u32 %v1667, 16
      %v1770 = vrot.slane %v1768, 5
      %v1771 = vsel %vm842, %v1766, %v1770
      %v1772 = vshrl.u32 %v1667, 16
      %v1774 = vrot.slane %v1772, 4
      %v1775 = vor.u32 %v1774, %v1770
      %v1776 = vrot.slane %v1775, 4
      %v1778 = vshll.u32 %v1696, 16
      %v1780 = vrot.slane %v1778, 5
      %v1781 = vsel %vm842, %v1776, %v1780
      %v1783 = vshrl.u32 %v1668, 16
      %v1785 = vrot.slane %v1783, 4
      %v1786 = vshll.u32 %v1668, 16
      %v1788 = vrot.slane %v1786, 5
      %v1789 = vor.u32 %v1785, %v1788
      %v1790 = vrot.slane %v1789, 4
      %v1792 = vshll.u32 %v1669, 16
      %v1794 = vrot.slane %v1792, 5
      %v1795 = vsel %vm842, %v1790, %v1794
      %v1796 = vshrl.u32 %v1669, 16
      %v1798 = vrot.slane %v1796, 4
      %v1799 = vor.u32 %v1798, %v1794
      %v1800 = vrot.slane %v1799, 4
      %v1802 = vshll.u32 %v1697, 16
      %v1804 = vrot.slane %v1802, 5
      %v1805 = vsel %vm842, %v1800, %v1804
      %v1807 = vshrl.u32 %v1670, 16
      %v1809 = vrot.slane %v1807, 4
      %v1810 = vshll.u32 %v1670, 16
      %v1812 = vrot.slane %v1810, 5
      %v1813 = vor.u32 %v1809, %v1812
      %v1814 = vrot.slane %v1813, 4
      %v1816 = vshll.u32 %v1671, 16
      %v1818 = vrot.slane %v1816, 5
      %v1819 = vsel %vm842, %v1814, %v1818
      %v1820 = vshrl.u32 %v1671, 16
      %v1822 = vrot.slane %v1820, 4
      %v1823 = vor.u32 %v1822, %v1818
      %v1824 = vrot.slane %v1823, 4
      %v1826 = vshll.u32 %v1698, 16
      %v1828 = vrot.slane %v1826, 5
      %v1829 = vsel %vm842, %v1824, %v1828
      %v1831 = vshrl.u32 %v1672, 16
      %v1833 = vrot.slane %v1831, 4
      %v1834 = vshll.u32 %v1672, 16
      %v1836 = vrot.slane %v1834, 5
      %v1837 = vor.u32 %v1833, %v1836
      %v1838 = vrot.slane %v1837, 4
      %v1840 = vshll.u32 %v1673, 16
      %v1842 = vrot.slane %v1840, 5
      %v1843 = vsel %vm842, %v1838, %v1842
      %v1844 = vshrl.u32 %v1673, 16
      %v1846 = vrot.slane %v1844, 4
      %v1847 = vor.u32 %v1846, %v1842
      %v1848 = vrot.slane %v1847, 4
      %v1850 = vshll.u32 %v1699, 16
      %v1852 = vrot.slane %v1850, 5
      %v1853 = vsel %vm842, %v1848, %v1852
      %v1855 = vshrl.u32 %v1674, 16
      %v1857 = vrot.slane %v1855, 4
      %v1858 = vshll.u32 %v1674, 16
      %v1860 = vrot.slane %v1858, 5
      %v1861 = vor.u32 %v1857, %v1860
      %v1862 = vrot.slane %v1861, 4
      %v1864 = vshll.u32 %v1675, 16
      %v1866 = vrot.slane %v1864, 5
      %v1867 = vsel %vm842, %v1862, %v1866
      %v1868 = vshrl.u32 %v1675, 16
      %v1870 = vrot.slane %v1868, 4
      %v1871 = vor.u32 %v1870, %v1866
      %v1872 = vrot.slane %v1871, 4
      %v1874 = vshll.u32 %v1700, 16
      %v1876 = vrot.slane %v1874, 5
      %v1877 = vsel %vm842, %v1872, %v1876
      %v1879 = vshrl.u32 %v1676, 16
      %v1881 = vrot.slane %v1879, 4
      %v1882 = vshll.u32 %v1676, 16
      %v1884 = vrot.slane %v1882, 5
      %v1885 = vor.u32 %v1881, %v1884
      %v1886 = vrot.slane %v1885, 4
      %v1888 = vshll.u32 %v1677, 16
      %v1890 = vrot.slane %v1888, 5
      %v1891 = vsel %vm842, %v1886, %v1890
      %v1892 = vshrl.u32 %v1677, 16
      %v1894 = vrot.slane %v1892, 4
      %v1895 = vor.u32 %v1894, %v1890
      %v1896 = vrot.slane %v1895, 4
      %v1898 = vshll.u32 %v1701, 16
      %v1900 = vrot.slane %v1898, 5
      %v1901 = vsel %vm842, %v1896, %v1900
      %v1903 = vshrl.u32 %v1678, 16
      %v1905 = vrot.slane %v1903, 4
      %v1906 = vshll.u32 %v1678, 16
      %v1908 = vrot.slane %v1906, 5
      %v1909 = vor.u32 %v1905, %v1908
      %v1910 = vrot.slane %v1909, 4
      %v1912 = vshll.u32 %v1679, 16
      %v1914 = vrot.slane %v1912, 5
      %v1915 = vsel %vm842, %v1910, %v1914
      %v1916 = vshrl.u32 %v1679, 16
      %v1918 = vrot.slane %v1916, 4
      %v1919 = vor.u32 %v1918, %v1914
      %v1920 = vrot.slane %v1919, 4
      %v1922 = vshll.u32 %v1702, 16
      %v1924 = vrot.slane %v1922, 5
      %v1925 = vsel %vm842, %v1920, %v1924
      %v1927 = vshrl.u32 %v1680, 16
      %v1929 = vrot.slane %v1927, 4
      %v1930 = vshll.u32 %v1680, 16
      %v1932 = vrot.slane %v1930, 5
      %v1933 = vor.u32 %v1929, %v1932
      %v1934 = vrot.slane %v1933, 4
      %v1936 = vshll.u32 %v1681, 16
      %v1938 = vrot.slane %v1936, 5
      %v1939 = vsel %vm842, %v1934, %v1938
      %v1940 = vshrl.u32 %v1681, 16
      %v1942 = vrot.slane %v1940, 4
      %v1943 = vor.u32 %v1942, %v1938
      %v1944 = vrot.slane %v1943, 4
      %v1946 = vshll.u32 %v1703, 16
      %v1948 = vrot.slane %v1946, 5
      %v1949 = vsel %vm842, %v1944, %v1948
      %v1951 = vshrl.u32 %v1682, 16
      %v1953 = vrot.slane %v1951, 4
      %v1954 = vshll.u32 %v1682, 16
      %v1956 = vrot.slane %v1954, 5
      %v1957 = vor.u32 %v1953, %v1956
      %v1958 = vrot.slane %v1957, 4
      %v1960 = vshll.u32 %v1683, 16
      %v1962 = vrot.slane %v1960, 5
      %v1963 = vsel %vm842, %v1958, %v1962
      %v1964 = vshrl.u32 %v1683, 16
      %v1966 = vrot.slane %v1964, 4
      %v1967 = vor.u32 %v1966, %v1962
      %v1968 = vrot.slane %v1967, 4
      %v1970 = vshll.u32 %v1704, 16
      %v1972 = vrot.slane %v1970, 5
      %v1973 = vsel %vm842, %v1968, %v1972
      %v1975 = vshrl.u32 %v1684, 16
      %v1977 = vrot.slane %v1975, 4
      %v1978 = vshll.u32 %v1684, 16
      %v1980 = vrot.slane %v1978, 5
      %v1981 = vor.u32 %v1977, %v1980
      %v1982 = vrot.slane %v1981, 4
      %v1984 = vshll.u32 %v1685, 16
      %v1986 = vrot.slane %v1984, 5
      %v1987 = vsel %vm842, %v1982, %v1986
      %v1988 = vshrl.u32 %v1685, 16
      %v1990 = vrot.slane %v1988, 4
      %v1991 = vor.u32 %v1990, %v1986
      %v1992 = vrot.slane %v1991, 4
      %v1994 = vshll.u32 %v1705, 16
      %v1996 = vrot.slane %v1994, 5
      %v1997 = vsel %vm842, %v1992, %v1996
      %v1999 = vshrl.u32 %v1686, 16
      %v2001 = vrot.slane %v1999, 4
      %v2002 = vshll.u32 %v1686, 16
      %v2004 = vrot.slane %v2002, 5
      %v2005 = vor.u32 %v2001, %v2004
      %v2006 = vrot.slane %v2005, 4
      %v2008 = vshll.u32 %v1687, 16
      %v2010 = vrot.slane %v2008, 5
      %v2011 = vsel %vm842, %v2006, %v2010
      %v2012 = vshrl.u32 %v1687, 16
      %v2014 = vrot.slane %v2012, 4
      %v2015 = vor.u32 %v2014, %v2010
      %v2016 = vrot.slane %v2015, 4
      %v2018 = vshll.u32 %v1706, 16
      %v2020 = vrot.slane %v2018, 5
      %v2021 = vsel %vm842, %v2016, %v2020
      %v2023 = vshrl.u32 %v1688, 16
      %v2025 = vrot.slane %v2023, 4
      %v2026 = vshll.u32 %v1688, 16
      %v2028 = vrot.slane %v2026, 5
      %v2029 = vor.u32 %v2025, %v2028
      %v2030 = vrot.slane %v2029, 4
      %v2032 = vshll.u32 %v1689, 16
      %v2034 = vrot.slane %v2032, 5
      %v2035 = vsel %vm842, %v2030, %v2034
      %v2036 = vshrl.u32 %v1689, 16
      %v2038 = vrot.slane %v2036, 4
      %v2039 = vor.u32 %v2038, %v2034
      %v2040 = vrot.slane %v2039, 4
      %v2042 = vshll.u32 %v1707, 16
      %v2044 = vrot.slane %v2042, 5
      %v2045 = vsel %vm842, %v2040, %v2044
      %v2047 = vshrl.u32 %v1690, 16
      %v2049 = vrot.slane %v2047, 4
      %v2050 = vshll.u32 %v1690, 16
      %v2052 = vrot.slane %v2050, 5
      %v2053 = vor.u32 %v2049, %v2052
      %v2054 = vrot.slane %v2053, 4
      %v2056 = vshll.u32 %v1691, 16
      %v2058 = vrot.slane %v2056, 5
      %v2059 = vsel %vm842, %v2054, %v2058
      %v2060 = vshrl.u32 %v1691, 16
      %v2062 = vrot.slane %v2060, 4
      %v2063 = vor.u32 %v2062, %v2058
      %v2064 = vrot.slane %v2063, 4
      %v2066 = vshll.u32 %v1708, 16
      %v2068 = vrot.slane %v2066, 5
      %v2069 = vsel %vm842, %v2064, %v2068
      %v2071 = vshrl.u32 %v1692, 16
      %v2073 = vrot.slane %v2071, 4
      %v2074 = vshll.u32 %v1692, 16
      %v2076 = vrot.slane %v2074, 5
      %v2077 = vor.u32 %v2073, %v2076
      %v2078 = vrot.slane %v2077, 4
      %v2080 = vshll.u32 %v1693, 16
      %v2082 = vrot.slane %v2080, 5
      %v2083 = vsel %vm842, %v2078, %v2082
      %v2084 = vshrl.u32 %v1693, 16
      %v2086 = vrot.slane %v2084, 4
      %v2087 = vor.u32 %v2086, %v2082
      %v2088 = vrot.slane %v2087, 4
      %v2090 = vshll.u32 %v1709, 16
      %v2092 = vrot.slane %v2090, 5
      %v2093 = vsel %vm842, %v2088, %v2092
      %v2094 = vld [vmem:[%s254] sm:$0xe]
      %v2095 = vld [vmem:[%s254 + $0xc] sm:$0xe]
      %v2096 = vld [vmem:[%s254 + $0x18] sm:$0xe]
      %v2097 = vld [vmem:[%s254 + $0x24] sm:$0xe]
      %v2098 = vld [vmem:[%s254 + $0x30] sm:$0xe]
      %v2099 = vld [vmem:[%s254 + $0x3c] sm:$0xe]
      %v2100 = vld [vmem:[%s254 + $0x48] sm:$0xe]
      %v2101 = vld [vmem:[%s254 + $0x54] sm:$0xe]
      %v2102 = vld [vmem:[%s254 + $0x60] sm:$0xe]
      %v2103 = vld [vmem:[%s254 + $0x6c] sm:$0xe]
      %v2104 = vld [vmem:[%s254 + $0x78] sm:$0xe]
      %v2105 = vld [vmem:[%s254 + $0x84] sm:$0xe]
      %v2106 = vld [vmem:[%s254 + $0x90] sm:$0xe]
      %v2107 = vld [vmem:[%s254 + $0x9c] sm:$0xe]
      %v2108 = vld [vmem:[%s254 + $0xa8] sm:$0xe]
      %v2109 = vld [vmem:[%s254 + $0xb4] sm:$0xe]
      %v2158 = vrot.slane %v2094, 5
      %v2159 = vrot.slane %v2158, 4
      %v2160 = vrot.slane %v1663, 5
      %v2161 = vsel %vm1293, %v2159, %v2160
      %v2162 = vrot.slane %v2160, 4
      %v2163 = vrot.slane %v1694, 5
      %v2164 = vsel %vm1293, %v2162, %v2163
      %v2165 = vrot.slane %v2095, 5
      %v2166 = vrot.slane %v2165, 4
      %v2167 = vrot.slane %v1665, 5
      %v2168 = vsel %vm1293, %v2166, %v2167
      %v2169 = vrot.slane %v2167, 4
      %v2170 = vrot.slane %v1695, 5
      %v2171 = vsel %vm1293, %v2169, %v2170
      %v2172 = vrot.slane %v2096, 5
      %v2173 = vrot.slane %v2172, 4
      %v2174 = vrot.slane %v1667, 5
      %v2175 = vsel %vm1293, %v2173, %v2174
      %v2176 = vrot.slane %v2174, 4
      %v2177 = vrot.slane %v1696, 5
      %v2178 = vsel %vm1293, %v2176, %v2177
      %v2179 = vrot.slane %v2097, 5
      %v2180 = vrot.slane %v2179, 4
      %v2181 = vrot.slane %v1669, 5
      %v2182 = vsel %vm1293, %v2180, %v2181
      %v2183 = vrot.slane %v2181, 4
      %v2184 = vrot.slane %v1697, 5
      %v2185 = vsel %vm1293, %v2183, %v2184
      %v2186 = vrot.slane %v2098, 5
      %v2187 = vrot.slane %v2186, 4
      %v2188 = vrot.slane %v1671, 5
      %v2189 = vsel %vm1293, %v2187, %v2188
      %v2190 = vrot.slane %v2188, 4
      %v2191 = vrot.slane %v1698, 5
      %v2192 = vsel %vm1293, %v2190, %v2191
      %v2193 = vrot.slane %v2099, 5
      %v2194 = vrot.slane %v2193, 4
      %v2195 = vrot.slane %v1673, 5
      %v2196 = vsel %vm1293, %v2194, %v2195
      %v2197 = vrot.slane %v2195, 4
      %v2198 = vrot.slane %v1699, 5
      %v2199 = vsel %vm1293, %v2197, %v2198
      %v2200 = vrot.slane %v2100, 5
      %v2201 = vrot.slane %v2200, 4
      %v2202 = vrot.slane %v1675, 5
      %v2203 = vsel %vm1293, %v2201, %v2202
      %v2204 = vrot.slane %v2202, 4
      %v2205 = vrot.slane %v1700, 5
      %v2206 = vsel %vm1293, %v2204, %v2205
      %v2207 = vrot.slane %v2101, 5
      %v2208 = vrot.slane %v2207, 4
      %v2209 = vrot.slane %v1677, 5
      %v2210 = vsel %vm1293, %v2208, %v2209
      %v2211 = vrot.slane %v2209, 4
      %v2212 = vrot.slane %v1701, 5
      %v2213 = vsel %vm1293, %v2211, %v2212
      %v2214 = vrot.slane %v2102, 5
      %v2215 = vrot.slane %v2214, 4
      %v2216 = vrot.slane %v1679, 5
      %v2217 = vsel %vm1293, %v2215, %v2216
      %v2218 = vrot.slane %v2216, 4
      %v2219 = vrot.slane %v1702, 5
      %v2220 = vsel %vm1293, %v2218, %v2219
      %v2221 = vrot.slane %v2103, 5
      %v2222 = vrot.slane %v2221, 4
      %v2223 = vrot.slane %v1681, 5
      %v2224 = vsel %vm1293, %v2222, %v2223
      %v2225 = vrot.slane %v2223, 4
      %v2226 = vrot.slane %v1703, 5
      %v2227 = vsel %vm1293, %v2225, %v2226
      %v2228 = vrot.slane %v2104, 5
      %v2229 = vrot.slane %v2228, 4
      %v2230 = vrot.slane %v1683, 5
      %v2231 = vsel %vm1293, %v2229, %v2230
      %v2232 = vrot.slane %v2230, 4
      %v2233 = vrot.slane %v1704, 5
      %v2234 = vsel %vm1293, %v2232, %v2233
      %v2235 = vrot.slane %v2105, 5
      %v2236 = vrot.slane %v2235, 4
      %v2237 = vrot.slane %v1685, 5
      %v2238 = vsel %vm1293, %v2236, %v2237
      %v2239 = vrot.slane %v2237, 4
      %v2240 = vrot.slane %v1705, 5
      %v2241 = vsel %vm1293, %v2239, %v2240
      %v2242 = vrot.slane %v2106, 5
      %v2243 = vrot.slane %v2242, 4
      %v2244 = vrot.slane %v1687, 5
      %v2245 = vsel %vm1293, %v2243, %v2244
      %v2246 = vrot.slane %v2244, 4
      %v2247 = vrot.slane %v1706, 5
      %v2248 = vsel %vm1293, %v2246, %v2247
      %v2249 = vrot.slane %v2107, 5
      %v2250 = vrot.slane %v2249, 4
      %v2251 = vrot.slane %v1689, 5
      %v2252 = vsel %vm1293, %v2250, %v2251
      %v2253 = vrot.slane %v2251, 4
      %v2254 = vrot.slane %v1707, 5
      %v2255 = vsel %vm1293, %v2253, %v2254
      %v2256 = vrot.slane %v2108, 5
      %v2257 = vrot.slane %v2256, 4
      %v2258 = vrot.slane %v1691, 5
      %v2259 = vsel %vm1293, %v2257, %v2258
      %v2260 = vrot.slane %v2258, 4
      %v2261 = vrot.slane %v1708, 5
      %v2262 = vsel %vm1293, %v2260, %v2261
      %v2263 = vrot.slane %v2109, 5
      %v2264 = vrot.slane %v2263, 4
      %v2265 = vrot.slane %v1693, 5
      %v2266 = vsel %vm1293, %v2264, %v2265
      %v2267 = vrot.slane %v2265, 4
      %v2268 = vrot.slane %v1709, 5
      %v2269 = vsel %vm1293, %v2267, %v2268
      %v2286 = vunpack.c.l.b16 %v1662
      %v2287 = vunpack.c.l.b16 %v1663
      %v2288 = vunpack.c.l.b16 %v1664
      %v2289 = vunpack.c.l.b16 %v1665
      %v2290 = vunpack.c.l.b16 %v1666
      %v2291 = vunpack.c.l.b16 %v1667
      %v2292 = vunpack.c.l.b16 %v1668
      %v2293 = vunpack.c.l.b16 %v1669
      %v2294 = vunpack.c.l.b16 %v1670
      %v2295 = vunpack.c.l.b16 %v1671
      %v2296 = vunpack.c.l.b16 %v1672
      %v2297 = vunpack.c.l.b16 %v1673
      %v2298 = vunpack.c.l.b16 %v1674
      %v2299 = vunpack.c.l.b16 %v1675
      %v2300 = vunpack.c.l.b16 %v1676
      %v2301 = vunpack.c.l.b16 %v1677
      %v2302 = vunpack.c.l.b16 %v1678
      %v2303 = vunpack.c.l.b16 %v1679
      %v2304 = vunpack.c.l.b16 %v1680
      %v2305 = vunpack.c.l.b16 %v1681
      %v2306 = vunpack.c.l.b16 %v1682
      %v2307 = vunpack.c.l.b16 %v1683
      %v2308 = vunpack.c.l.b16 %v1684
      %v2309 = vunpack.c.l.b16 %v1685
      %v2310 = vunpack.c.l.b16 %v1686
      %v2311 = vunpack.c.l.b16 %v1687
      %v2312 = vunpack.c.l.b16 %v1688
      %v2313 = vunpack.c.l.b16 %v1689
      %v2314 = vunpack.c.l.b16 %v1690
      %v2315 = vunpack.c.l.b16 %v1691
      %v2316 = vunpack.c.l.b16 %v1692
      %v2317 = vunpack.c.l.b16 %v1693
      %v2318 = vpack.c.b16 %v2287, %v2286
      %v2319 = vpack.c.b16 %v2289, %v2288
      %v2320 = vpack.c.b16 %v2291, %v2290
      %v2321 = vpack.c.b16 %v2293, %v2292
      %v2322 = vpack.c.b16 %v2295, %v2294
      %v2323 = vpack.c.b16 %v2297, %v2296
      %v2324 = vpack.c.b16 %v2299, %v2298
      %v2325 = vpack.c.b16 %v2301, %v2300
      %v2326 = vpack.c.b16 %v2303, %v2302
      %v2327 = vpack.c.b16 %v2305, %v2304
      %v2328 = vpack.c.b16 %v2307, %v2306
      %v2329 = vpack.c.b16 %v2309, %v2308
      %v2330 = vpack.c.b16 %v2311, %v2310
      %v2331 = vpack.c.b16 %v2313, %v2312
      %v2332 = vpack.c.b16 %v2315, %v2314
      %v2333 = vpack.c.b16 %v2317, %v2316
      %v2350 = vunpack.c.l.b16 %v1723
      %v2351 = vunpack.c.l.b16 %v1733
      %v2352 = vunpack.c.l.b16 %v1747
      %v2353 = vunpack.c.l.b16 %v1757
      %v2354 = vunpack.c.l.b16 %v1771
      %v2355 = vunpack.c.l.b16 %v1781
      %v2356 = vunpack.c.l.b16 %v1795
      %v2357 = vunpack.c.l.b16 %v1805
      %v2358 = vunpack.c.l.b16 %v1819
      %v2359 = vunpack.c.l.b16 %v1829
      %v2360 = vunpack.c.l.b16 %v1843
      %v2361 = vunpack.c.l.b16 %v1853
      %v2362 = vunpack.c.l.b16 %v1867
      %v2363 = vunpack.c.l.b16 %v1877
      %v2364 = vunpack.c.l.b16 %v1891
      %v2365 = vunpack.c.l.b16 %v1901
      %v2366 = vunpack.c.l.b16 %v1915
      %v2367 = vunpack.c.l.b16 %v1925
      %v2368 = vunpack.c.l.b16 %v1939
      %v2369 = vunpack.c.l.b16 %v1949
      %v2370 = vunpack.c.l.b16 %v1963
      %v2371 = vunpack.c.l.b16 %v1973
      %v2372 = vunpack.c.l.b16 %v1987
      %v2373 = vunpack.c.l.b16 %v1997
      %v2374 = vunpack.c.l.b16 %v2011
      %v2375 = vunpack.c.l.b16 %v2021
      %v2376 = vunpack.c.l.b16 %v2035
      %v2377 = vunpack.c.l.b16 %v2045
      %v2378 = vunpack.c.l.b16 %v2059
      %v2379 = vunpack.c.l.b16 %v2069
      %v2380 = vunpack.c.l.b16 %v2083
      %v2381 = vunpack.c.l.b16 %v2093
      %v2382 = vpack.c.b16 %v2351, %v2350
      %v2383 = vpack.c.b16 %v2353, %v2352
      %v2384 = vpack.c.b16 %v2355, %v2354
      %v2385 = vpack.c.b16 %v2357, %v2356
      %v2386 = vpack.c.b16 %v2359, %v2358
      %v2387 = vpack.c.b16 %v2361, %v2360
      %v2388 = vpack.c.b16 %v2363, %v2362
      %v2389 = vpack.c.b16 %v2365, %v2364
      %v2390 = vpack.c.b16 %v2367, %v2366
      %v2391 = vpack.c.b16 %v2369, %v2368
      %v2392 = vpack.c.b16 %v2371, %v2370
      %v2393 = vpack.c.b16 %v2373, %v2372
      %v2394 = vpack.c.b16 %v2375, %v2374
      %v2395 = vpack.c.b16 %v2377, %v2376
      %v2396 = vpack.c.b16 %v2379, %v2378
      %v2397 = vpack.c.b16 %v2381, %v2380
      %v2414 = vunpack.c.l.b16 %v2161
      %v2415 = vunpack.c.l.b16 %v2164
      %v2416 = vunpack.c.l.b16 %v2168
      %v2417 = vunpack.c.l.b16 %v2171
      %v2418 = vunpack.c.l.b16 %v2175
      %v2419 = vunpack.c.l.b16 %v2178
      %v2420 = vunpack.c.l.b16 %v2182
      %v2421 = vunpack.c.l.b16 %v2185
      %v2422 = vunpack.c.l.b16 %v2189
      %v2423 = vunpack.c.l.b16 %v2192
      %v2424 = vunpack.c.l.b16 %v2196
      %v2425 = vunpack.c.l.b16 %v2199
      %v2426 = vunpack.c.l.b16 %v2203
      %v2427 = vunpack.c.l.b16 %v2206
      %v2428 = vunpack.c.l.b16 %v2210
      %v2429 = vunpack.c.l.b16 %v2213
      %v2430 = vunpack.c.l.b16 %v2217
      %v2431 = vunpack.c.l.b16 %v2220
      %v2432 = vunpack.c.l.b16 %v2224
      %v2433 = vunpack.c.l.b16 %v2227
      %v2434 = vunpack.c.l.b16 %v2231
      %v2435 = vunpack.c.l.b16 %v2234
      %v2436 = vunpack.c.l.b16 %v2238
      %v2437 = vunpack.c.l.b16 %v2241
      %v2438 = vunpack.c.l.b16 %v2245
      %v2439 = vunpack.c.l.b16 %v2248
      %v2440 = vunpack.c.l.b16 %v2252
      %v2441 = vunpack.c.l.b16 %v2255
      %v2442 = vunpack.c.l.b16 %v2259
      %v2443 = vunpack.c.l.b16 %v2262
      %v2444 = vunpack.c.l.b16 %v2266
      %v2445 = vunpack.c.l.b16 %v2269
      %v2446 = vpack.c.b16 %v2415, %v2414
      %v2447 = vpack.c.b16 %v2417, %v2416
      %v2448 = vpack.c.b16 %v2419, %v2418
      %v2449 = vpack.c.b16 %v2421, %v2420
      %v2450 = vpack.c.b16 %v2423, %v2422
      %v2451 = vpack.c.b16 %v2425, %v2424
      %v2452 = vpack.c.b16 %v2427, %v2426
      %v2453 = vpack.c.b16 %v2429, %v2428
      %v2454 = vpack.c.b16 %v2431, %v2430
      %v2455 = vpack.c.b16 %v2433, %v2432
      %v2456 = vpack.c.b16 %v2435, %v2434
      %v2457 = vpack.c.b16 %v2437, %v2436
      %v2458 = vpack.c.b16 %v2439, %v2438
      %v2459 = vpack.c.b16 %v2441, %v2440
      %v2460 = vpack.c.b16 %v2443, %v2442
      %v2461 = vpack.c.b16 %v2445, %v2444
      %s2478 = scalar_lea.vmem %s1, 192
      %v2479 = vld [vmem:[%s2478] sm:$0xf]
      %v2480 = vld [vmem:[%s2478 + $0x4] sm:$0xf]
      %v2481 = vld [vmem:[%s2478 + $0x8] sm:$0xf]
      %v2482 = vld [vmem:[%s2478 + $0xc] sm:$0xf]
      %v2483 = vld [vmem:[%s2478 + $0x10] sm:$0xf]
      %v2484 = vld [vmem:[%s2478 + $0x14] sm:$0xf]
      %v2485 = vld [vmem:[%s2478 + $0x18] sm:$0xf]
      %v2486 = vld [vmem:[%s2478 + $0x1c] sm:$0xf]
      %v2487 = vld [vmem:[%s2478 + $0x20] sm:$0xf]
      %v2488 = vld [vmem:[%s2478 + $0x24] sm:$0xf]
      %v2489 = vld [vmem:[%s2478 + $0x28] sm:$0xf]
      %v2490 = vld [vmem:[%s2478 + $0x2c] sm:$0xf]
      %v2491 = vld [vmem:[%s2478 + $0x30] sm:$0xf]
      %v2492 = vld [vmem:[%s2478 + $0x34] sm:$0xf]
      %v2493 = vld [vmem:[%s2478 + $0x38] sm:$0xf]
      %v2494 = vld [vmem:[%s2478 + $0x3c] sm:$0xf]
      %v2495 = vld [vmem:[%s2478 + $0x40] sm:$0xf]
      %v2496 = vld [vmem:[%s2478 + $0x44] sm:$0xf]
      %v2497 = vld [vmem:[%s2478 + $0x48] sm:$0xf]
      %v2498 = vld [vmem:[%s2478 + $0x4c] sm:$0xf]
      %v2499 = vld [vmem:[%s2478 + $0x50] sm:$0xf]
      %v2500 = vld [vmem:[%s2478 + $0x54] sm:$0xf]
      %v2501 = vld [vmem:[%s2478 + $0x58] sm:$0xf]
      %v2502 = vld [vmem:[%s2478 + $0x5c] sm:$0xf]
      %v2503 = vld [vmem:[%s2478 + $0x60] sm:$0xf]
      %v2504 = vld [vmem:[%s2478 + $0x64] sm:$0xf]
      %v2505 = vld [vmem:[%s2478 + $0x68] sm:$0xf]
      %v2506 = vld [vmem:[%s2478 + $0x6c] sm:$0xf]
      %v2507 = vld [vmem:[%s2478 + $0x70] sm:$0xf]
      %v2508 = vld [vmem:[%s2478 + $0x74] sm:$0xf]
      %v2509 = vld [vmem:[%s2478 + $0x78] sm:$0xf]
      %v2510 = vld [vmem:[%s2478 + $0x7c] sm:$0xf]
      %v2511 = vld [vmem:[%s2478 + $0x80] sm:$0xf]
      %v2512 = vld [vmem:[%s2478 + $0x84] sm:$0xf]
      %v2513 = vld [vmem:[%s2478 + $0x88] sm:$0xf]
      %v2514 = vld [vmem:[%s2478 + $0x8c] sm:$0xf]
      %v2515 = vld [vmem:[%s2478 + $0x90] sm:$0xf]
      %v2516 = vld [vmem:[%s2478 + $0x94] sm:$0xf]
      %v2517 = vld [vmem:[%s2478 + $0x98] sm:$0xf]
      %v2518 = vld [vmem:[%s2478 + $0x9c] sm:$0xf]
      %v2519 = vld [vmem:[%s2478 + $0xa0] sm:$0xf]
      %v2520 = vld [vmem:[%s2478 + $0xa4] sm:$0xf]
      %v2521 = vld [vmem:[%s2478 + $0xa8] sm:$0xf]
      %v2522 = vld [vmem:[%s2478 + $0xac] sm:$0xf]
      %v2523 = vld [vmem:[%s2478 + $0xb0] sm:$0xf]
      %v2524 = vld [vmem:[%s2478 + $0xb4] sm:$0xf]
      %v2525 = vld [vmem:[%s2478 + $0xb8] sm:$0xf]
      %v2526 = vld [vmem:[%s2478 + $0xbc] sm:$0xf]
      %v2575 = vunpack.c.l.b16 %v2479
      %v2576 = vunpack.c.l.b16 %v2480
      %v2577 = vunpack.c.l.b16 %v2481
      %v2578 = vunpack.c.l.b16 %v2482
      %v2579 = vunpack.c.l.b16 %v2483
      %v2580 = vunpack.c.l.b16 %v2484
      %v2581 = vunpack.c.l.b16 %v2485
      %v2582 = vunpack.c.l.b16 %v2486
      %v2583 = vunpack.c.l.b16 %v2487
      %v2584 = vunpack.c.l.b16 %v2488
      %v2585 = vunpack.c.l.b16 %v2489
      %v2586 = vunpack.c.l.b16 %v2490
      %v2587 = vunpack.c.l.b16 %v2491
      %v2588 = vunpack.c.l.b16 %v2492
      %v2589 = vunpack.c.l.b16 %v2493
      %v2590 = vunpack.c.l.b16 %v2494
      %v2591 = vunpack.c.l.b16 %v2495
      %v2592 = vunpack.c.l.b16 %v2496
      %v2593 = vunpack.c.l.b16 %v2497
      %v2594 = vunpack.c.l.b16 %v2498
      %v2595 = vunpack.c.l.b16 %v2499
      %v2596 = vunpack.c.l.b16 %v2500
      %v2597 = vunpack.c.l.b16 %v2501
      %v2598 = vunpack.c.l.b16 %v2502
      %v2599 = vunpack.c.l.b16 %v2503
      %v2600 = vunpack.c.l.b16 %v2504
      %v2601 = vunpack.c.l.b16 %v2505
      %v2602 = vunpack.c.l.b16 %v2506
      %v2603 = vunpack.c.l.b16 %v2507
      %v2604 = vunpack.c.l.b16 %v2508
      %v2605 = vunpack.c.l.b16 %v2509
      %v2606 = vunpack.c.l.b16 %v2510
      %v2607 = vunpack.c.l.b16 %v2511
      %v2608 = vunpack.c.l.b16 %v2512
      %v2609 = vunpack.c.l.b16 %v2513
      %v2610 = vunpack.c.l.b16 %v2514
      %v2611 = vunpack.c.l.b16 %v2515
      %v2612 = vunpack.c.l.b16 %v2516
      %v2613 = vunpack.c.l.b16 %v2517
      %v2614 = vunpack.c.l.b16 %v2518
      %v2615 = vunpack.c.l.b16 %v2519
      %v2616 = vunpack.c.l.b16 %v2520
      %v2617 = vunpack.c.l.b16 %v2521
      %v2618 = vunpack.c.l.b16 %v2522
      %v2619 = vunpack.c.l.b16 %v2523
      %v2620 = vunpack.c.l.b16 %v2524
      %v2621 = vunpack.c.l.b16 %v2525
      %v2622 = vunpack.c.l.b16 %v2526
      %v2623 = vpack.c.b16 %v2576, %v2575
      %v2624 = vpack.c.b16 %v2578, %v2577
      %v2625 = vpack.c.b16 %v2580, %v2579
      %v2626 = vpack.c.b16 %v2582, %v2581
      %v2627 = vpack.c.b16 %v2584, %v2583
      %v2628 = vpack.c.b16 %v2586, %v2585
      %v2629 = vpack.c.b16 %v2588, %v2587
      %v2630 = vpack.c.b16 %v2590, %v2589
      %v2631 = vpack.c.b16 %v2592, %v2591
      %v2632 = vpack.c.b16 %v2594, %v2593
      %v2633 = vpack.c.b16 %v2596, %v2595
      %v2634 = vpack.c.b16 %v2598, %v2597
      %v2635 = vpack.c.b16 %v2600, %v2599
      %v2636 = vpack.c.b16 %v2602, %v2601
      %v2637 = vpack.c.b16 %v2604, %v2603
      %v2638 = vpack.c.b16 %v2606, %v2605
      %v2639 = vpack.c.b16 %v2608, %v2607
      %v2640 = vpack.c.b16 %v2610, %v2609
      %v2641 = vpack.c.b16 %v2612, %v2611
      %v2642 = vpack.c.b16 %v2614, %v2613
      %v2643 = vpack.c.b16 %v2616, %v2615
      %v2644 = vpack.c.b16 %v2618, %v2617
      %v2645 = vpack.c.b16 %v2620, %v2619
      %v2646 = vpack.c.b16 %v2622, %v2621
      %2671 = vmatpush.bf16.msra.mxu0 %v2630
      %2672 = vmatpush.bf16.msra.mxu0 %v2629
      %2673 = vmatpush.bf16.msra.mxu0 %v2628
      %2674 = vmatpush.bf16.msra.mxu0 %v2627
      %2675 = vmatpush.bf16.msra.mxu0 %v2626
      %2676 = vmatpush.bf16.msra.mxu0 %v2625
      %2677 = vmatpush.bf16.msra.mxu0 %v2624
      %2678 = vmatpush.bf16.msra.mxu0 %v2623
      %2679 = vmatmul.bf16.gmra.mxu0 %v2318
      %v2680 = vpop.f32.mrf.mxu0
      %v2681 = vadd.f32 0.0, %v2680
      %v2682 = vpop.f32.mrf.mxu0
      %v2683 = vadd.f32 0.0, %v2682
      %2684 = vmatmul.bf16.gmra.mxu0 %v2319
      %v2685 = vpop.f32.mrf.mxu0
      %v2686 = vadd.f32 0.0, %v2685
      %v2687 = vpop.f32.mrf.mxu0
      %v2688 = vadd.f32 0.0, %v2687
      %2689 = vmatmul.bf16.gmra.mxu0 %v2320
      %v2690 = vpop.f32.mrf.mxu0
      %v2691 = vadd.f32 0.0, %v2690
      %v2692 = vpop.f32.mrf.mxu0
      %v2693 = vadd.f32 0.0, %v2692
      %2694 = vmatmul.bf16.gmra.mxu0 %v2321
      %v2695 = vpop.f32.mrf.mxu0
      %v2696 = vadd.f32 0.0, %v2695
      %v2697 = vpop.f32.mrf.mxu0
      %v2698 = vadd.f32 0.0, %v2697
      %2699 = vmatmul.bf16.gmra.mxu0 %v2322
      %v2700 = vpop.f32.mrf.mxu0
      %v2701 = vadd.f32 0.0, %v2700
      %v2702 = vpop.f32.mrf.mxu0
      %v2703 = vadd.f32 0.0, %v2702
      %2704 = vmatmul.bf16.gmra.mxu0 %v2323
      %v2705 = vpop.f32.mrf.mxu0
      %v2706 = vadd.f32 0.0, %v2705
      %v2707 = vpop.f32.mrf.mxu0
      %v2708 = vadd.f32 0.0, %v2707
      %2709 = vmatmul.bf16.gmra.mxu0 %v2324
      %v2710 = vpop.f32.mrf.mxu0
      %v2711 = vadd.f32 0.0, %v2710
      %v2712 = vpop.f32.mrf.mxu0
      %v2713 = vadd.f32 0.0, %v2712
      %2714 = vmatmul.bf16.gmra.mxu0 %v2325
      %v2715 = vpop.f32.mrf.mxu0
      %v2716 = vadd.f32 0.0, %v2715
      %v2717 = vpop.f32.mrf.mxu0
      %v2718 = vadd.f32 0.0, %v2717
      %2719 = vmatmul.bf16.gmra.mxu0 %v2326
      %v2720 = vpop.f32.mrf.mxu0
      %v2721 = vadd.f32 0.0, %v2720
      %v2722 = vpop.f32.mrf.mxu0
      %v2723 = vadd.f32 0.0, %v2722
      %2724 = vmatmul.bf16.gmra.mxu0 %v2327
      %v2725 = vpop.f32.mrf.mxu0
      %v2726 = vadd.f32 0.0, %v2725
      %v2727 = vpop.f32.mrf.mxu0
      %v2728 = vadd.f32 0.0, %v2727
      %2729 = vmatmul.bf16.gmra.mxu0 %v2328
      %v2730 = vpop.f32.mrf.mxu0
      %v2731 = vadd.f32 0.0, %v2730
      %v2732 = vpop.f32.mrf.mxu0
      %v2733 = vadd.f32 0.0, %v2732
      %2734 = vmatmul.bf16.gmra.mxu0 %v2329
      %v2735 = vpop.f32.mrf.mxu0
      %v2736 = vadd.f32 0.0, %v2735
      %v2737 = vpop.f32.mrf.mxu0
      %v2738 = vadd.f32 0.0, %v2737
      %2739 = vmatmul.bf16.gmra.mxu0 %v2330
      %v2740 = vpop.f32.mrf.mxu0
      %v2741 = vadd.f32 0.0, %v2740
      %v2742 = vpop.f32.mrf.mxu0
      %v2743 = vadd.f32 0.0, %v2742
      %2744 = vmatmul.bf16.gmra.mxu0 %v2331
      %v2745 = vpop.f32.mrf.mxu0
      %v2746 = vadd.f32 0.0, %v2745
      %v2747 = vpop.f32.mrf.mxu0
      %v2748 = vadd.f32 0.0, %v2747
      %2749 = vmatmul.bf16.gmra.mxu0 %v2332
      %v2750 = vpop.f32.mrf.mxu0
      %v2751 = vadd.f32 0.0, %v2750
      %v2752 = vpop.f32.mrf.mxu0
      %v2753 = vadd.f32 0.0, %v2752
      %2754 = vmatmul.bf16.gmra.mxu0 %v2333
      %v2755 = vpop.f32.mrf.mxu0
      %v2756 = vadd.f32 0.0, %v2755
      %v2757 = vpop.f32.mrf.mxu0
      %v2758 = vadd.f32 0.0, %v2757
      %2759 = vdwg.mxu0
      %2760 = vmatpush.bf16.msra.mxu0 %v2638
      %2761 = vmatpush.bf16.msra.mxu0 %v2637
      %2762 = vmatpush.bf16.msra.mxu0 %v2636
      %2763 = vmatpush.bf16.msra.mxu0 %v2635
      %2764 = vmatpush.bf16.msra.mxu0 %v2634
      %2765 = vmatpush.bf16.msra.mxu0 %v2633
      %2766 = vmatpush.bf16.msra.mxu0 %v2632
      %2767 = vmatpush.bf16.msra.mxu0 %v2631
      %2768 = vmatmul.bf16.gmra.mxu0 %v2382
      %v2769 = vpop.f32.mrf.mxu0
      %v2770 = vadd.f32 %v2681, %v2769
      %v2771 = vpop.f32.mrf.mxu0
      %v2772 = vadd.f32 %v2683, %v2771
      %2773 = vmatmul.bf16.gmra.mxu0 %v2383
      %v2774 = vpop.f32.mrf.mxu0
      %v2775 = vadd.f32 %v2686, %v2774
      %v2776 = vpop.f32.mrf.mxu0
      %v2777 = vadd.f32 %v2688, %v2776
      %2778 = vmatmul.bf16.gmra.mxu0 %v2384
      %v2779 = vpop.f32.mrf.mxu0
      %v2780 = vadd.f32 %v2691, %v2779
      %v2781 = vpop.f32.mrf.mxu0
      %v2782 = vadd.f32 %v2693, %v2781
      %2783 = vmatmul.bf16.gmra.mxu0 %v2385
      %v2784 = vpop.f32.mrf.mxu0
      %v2785 = vadd.f32 %v2696, %v2784
      %v2786 = vpop.f32.mrf.mxu0
      %v2787 = vadd.f32 %v2698, %v2786
      %2788 = vmatmul.bf16.gmra.mxu0 %v2386
      %v2789 = vpop.f32.mrf.mxu0
      %v2790 = vadd.f32 %v2701, %v2789
      %v2791 = vpop.f32.mrf.mxu0
      %v2792 = vadd.f32 %v2703, %v2791
      %2793 = vmatmul.bf16.gmra.mxu0 %v2387
      %v2794 = vpop.f32.mrf.mxu0
      %v2795 = vadd.f32 %v2706, %v2794
      %v2796 = vpop.f32.mrf.mxu0
      %v2797 = vadd.f32 %v2708, %v2796
      %2798 = vmatmul.bf16.gmra.mxu0 %v2388
      %v2799 = vpop.f32.mrf.mxu0
      %v2800 = vadd.f32 %v2711, %v2799
      %v2801 = vpop.f32.mrf.mxu0
      %v2802 = vadd.f32 %v2713, %v2801
      %2803 = vmatmul.bf16.gmra.mxu0 %v2389
      %v2804 = vpop.f32.mrf.mxu0
      %v2805 = vadd.f32 %v2716, %v2804
      %v2806 = vpop.f32.mrf.mxu0
      %v2807 = vadd.f32 %v2718, %v2806
      %2808 = vmatmul.bf16.gmra.mxu0 %v2390
      %v2809 = vpop.f32.mrf.mxu0
      %v2810 = vadd.f32 %v2721, %v2809
      %v2811 = vpop.f32.mrf.mxu0
      %v2812 = vadd.f32 %v2723, %v2811
      %2813 = vmatmul.bf16.gmra.mxu0 %v2391
      %v2814 = vpop.f32.mrf.mxu0
      %v2815 = vadd.f32 %v2726, %v2814
      %v2816 = vpop.f32.mrf.mxu0
      %v2817 = vadd.f32 %v2728, %v2816
      %2818 = vmatmul.bf16.gmra.mxu0 %v2392
      %v2819 = vpop.f32.mrf.mxu0
      %v2820 = vadd.f32 %v2731, %v2819
      %v2821 = vpop.f32.mrf.mxu0
      %v2822 = vadd.f32 %v2733, %v2821
      %2823 = vmatmul.bf16.gmra.mxu0 %v2393
      %v2824 = vpop.f32.mrf.mxu0
      %v2825 = vadd.f32 %v2736, %v2824
      %v2826 = vpop.f32.mrf.mxu0
      %v2827 = vadd.f32 %v2738, %v2826
      %2828 = vmatmul.bf16.gmra.mxu0 %v2394
      %v2829 = vpop.f32.mrf.mxu0
      %v2830 = vadd.f32 %v2741, %v2829
      %v2831 = vpop.f32.mrf.mxu0
      %v2832 = vadd.f32 %v2743, %v2831
      %2833 = vmatmul.bf16.gmra.mxu0 %v2395
      %v2834 = vpop.f32.mrf.mxu0
      %v2835 = vadd.f32 %v2746, %v2834
      %v2836 = vpop.f32.mrf.mxu0
      %v2837 = vadd.f32 %v2748, %v2836
      %2838 = vmatmul.bf16.gmra.mxu0 %v2396
      %v2839 = vpop.f32.mrf.mxu0
      %v2840 = vadd.f32 %v2751, %v2839
      %v2841 = vpop.f32.mrf.mxu0
      %v2842 = vadd.f32 %v2753, %v2841
      %2843 = vmatmul.bf16.gmra.mxu0 %v2397
      %v2844 = vpop.f32.mrf.mxu0
      %v2845 = vadd.f32 %v2756, %v2844
      %v2846 = vpop.f32.mrf.mxu0
      %v2847 = vadd.f32 %v2758, %v2846
      %2848 = vdwg.mxu0
      %2849 = vmatpush.bf16.msra.mxu0 %v2646
      %2850 = vmatpush.bf16.msra.mxu0 %v2645
      %2851 = vmatpush.bf16.msra.mxu0 %v2644
      %2852 = vmatpush.bf16.msra.mxu0 %v2643
      %2853 = vmatpush.bf16.msra.mxu0 %v2642
      %2854 = vmatpush.bf16.msra.mxu0 %v2641
      %2855 = vmatpush.bf16.msra.mxu0 %v2640
      %2856 = vmatpush.bf16.msra.mxu0 %v2639
      %2857 = vmatmul.bf16.gmra.mxu0 %v2446
      %v2858 = vpop.f32.mrf.mxu0
      %v2859 = vadd.f32 %v2770, %v2858
      %v2860 = vpop.f32.mrf.mxu0
      %v2861 = vadd.f32 %v2772, %v2860
      %2862 = vmatmul.bf16.gmra.mxu0 %v2447
      %v2863 = vpop.f32.mrf.mxu0
      %v2864 = vadd.f32 %v2775, %v2863
      %v2865 = vpop.f32.mrf.mxu0
      %v2866 = vadd.f32 %v2777, %v2865
      %2867 = vmatmul.bf16.gmra.mxu0 %v2448
      %v2868 = vpop.f32.mrf.mxu0
      %v2869 = vadd.f32 %v2780, %v2868
      %v2870 = vpop.f32.mrf.mxu0
      %v2871 = vadd.f32 %v2782, %v2870
      %2872 = vmatmul.bf16.gmra.mxu0 %v2449
      %v2873 = vpop.f32.mrf.mxu0
      %v2874 = vadd.f32 %v2785, %v2873
      %v2875 = vpop.f32.mrf.mxu0
      %v2876 = vadd.f32 %v2787, %v2875
      %2877 = vmatmul.bf16.gmra.mxu0 %v2450
      %v2878 = vpop.f32.mrf.mxu0
      %v2879 = vadd.f32 %v2790, %v2878
      %v2880 = vpop.f32.mrf.mxu0
      %v2881 = vadd.f32 %v2792, %v2880
      %2882 = vmatmul.bf16.gmra.mxu0 %v2451
      %v2883 = vpop.f32.mrf.mxu0
      %v2884 = vadd.f32 %v2795, %v2883
      %v2885 = vpop.f32.mrf.mxu0
      %v2886 = vadd.f32 %v2797, %v2885
      %2887 = vmatmul.bf16.gmra.mxu0 %v2452
      %v2888 = vpop.f32.mrf.mxu0
      %v2889 = vadd.f32 %v2800, %v2888
      %v2890 = vpop.f32.mrf.mxu0
      %v2891 = vadd.f32 %v2802, %v2890
      %2892 = vmatmul.bf16.gmra.mxu0 %v2453
      %v2893 = vpop.f32.mrf.mxu0
      %v2894 = vadd.f32 %v2805, %v2893
      %v2895 = vpop.f32.mrf.mxu0
      %v2896 = vadd.f32 %v2807, %v2895
      %2897 = vmatmul.bf16.gmra.mxu0 %v2454
      %v2898 = vpop.f32.mrf.mxu0
      %v2899 = vadd.f32 %v2810, %v2898
      %v2900 = vpop.f32.mrf.mxu0
      %v2901 = vadd.f32 %v2812, %v2900
      %2902 = vmatmul.bf16.gmra.mxu0 %v2455
      %v2903 = vpop.f32.mrf.mxu0
      %v2904 = vadd.f32 %v2815, %v2903
      %v2905 = vpop.f32.mrf.mxu0
      %v2906 = vadd.f32 %v2817, %v2905
      %2907 = vmatmul.bf16.gmra.mxu0 %v2456
      %v2908 = vpop.f32.mrf.mxu0
      %v2909 = vadd.f32 %v2820, %v2908
      %v2910 = vpop.f32.mrf.mxu0
      %v2911 = vadd.f32 %v2822, %v2910
      %2912 = vmatmul.bf16.gmra.mxu0 %v2457
      %v2913 = vpop.f32.mrf.mxu0
      %v2914 = vadd.f32 %v2825, %v2913
      %v2915 = vpop.f32.mrf.mxu0
      %v2916 = vadd.f32 %v2827, %v2915
      %2917 = vmatmul.bf16.gmra.mxu0 %v2458
      %v2918 = vpop.f32.mrf.mxu0
      %v2919 = vadd.f32 %v2830, %v2918
      %v2920 = vpop.f32.mrf.mxu0
      %v2921 = vadd.f32 %v2832, %v2920
      %2922 = vmatmul.bf16.gmra.mxu0 %v2459
      %v2923 = vpop.f32.mrf.mxu0
      %v2924 = vadd.f32 %v2835, %v2923
      %v2925 = vpop.f32.mrf.mxu0
      %v2926 = vadd.f32 %v2837, %v2925
      %2927 = vmatmul.bf16.gmra.mxu0 %v2460
      %v2928 = vpop.f32.mrf.mxu0
      %v2929 = vadd.f32 %v2840, %v2928
      %v2930 = vpop.f32.mrf.mxu0
      %v2931 = vadd.f32 %v2842, %v2930
      %2932 = vmatmul.bf16.gmra.mxu0 %v2461
      %v2933 = vpop.f32.mrf.mxu0
      %v2934 = vadd.f32 %v2845, %v2933
      %v2935 = vpop.f32.mrf.mxu0
      %v2936 = vadd.f32 %v2847, %v2935
      %2937 = vdwg.mxu0
      %v2986 = vunpack.c.l.b16 %v1614
      %v2987 = vunpack.c.l.b16 %v1615
      %v2988 = vunpack.c.l.b16 %v1616
      %v2989 = vunpack.c.l.b16 %v1617
      %v2990 = vunpack.c.l.b16 %v1618
      %v2991 = vunpack.c.l.b16 %v1619
      %v2992 = vunpack.c.l.b16 %v1620
      %v2993 = vunpack.c.l.b16 %v1621
      %v2994 = vunpack.c.l.b16 %v1622
      %v2995 = vunpack.c.l.b16 %v1623
      %v2996 = vunpack.c.l.b16 %v1624
      %v2997 = vunpack.c.l.b16 %v1625
      %v2998 = vunpack.c.l.b16 %v1626
      %v2999 = vunpack.c.l.b16 %v1627
      %v3000 = vunpack.c.l.b16 %v1628
      %v3001 = vunpack.c.l.b16 %v1629
      %v3002 = vunpack.c.l.b16 %v1630
      %v3003 = vunpack.c.l.b16 %v1631
      %v3004 = vunpack.c.l.b16 %v1632
      %v3005 = vunpack.c.l.b16 %v1633
      %v3006 = vunpack.c.l.b16 %v1634
      %v3007 = vunpack.c.l.b16 %v1635
      %v3008 = vunpack.c.l.b16 %v1636
      %v3009 = vunpack.c.l.b16 %v1637
      %v3010 = vunpack.c.l.b16 %v1638
      %v3011 = vunpack.c.l.b16 %v1639
      %v3012 = vunpack.c.l.b16 %v1640
      %v3013 = vunpack.c.l.b16 %v1641
      %v3014 = vunpack.c.l.b16 %v1642
      %v3015 = vunpack.c.l.b16 %v1643
      %v3016 = vunpack.c.l.b16 %v1644
      %v3017 = vunpack.c.l.b16 %v1645
      %v3018 = vunpack.c.l.b16 %v1646
      %v3019 = vunpack.c.l.b16 %v1647
      %v3020 = vunpack.c.l.b16 %v1648
      %v3021 = vunpack.c.l.b16 %v1649
      %v3022 = vunpack.c.l.b16 %v1650
      %v3023 = vunpack.c.l.b16 %v1651
      %v3024 = vunpack.c.l.b16 %v1652
      %v3025 = vunpack.c.l.b16 %v1653
      %v3026 = vunpack.c.l.b16 %v1654
      %v3027 = vunpack.c.l.b16 %v1655
      %v3028 = vunpack.c.l.b16 %v1656
      %v3029 = vunpack.c.l.b16 %v1657
      %v3030 = vunpack.c.l.b16 %v1658
      %v3031 = vunpack.c.l.b16 %v1659
      %v3032 = vunpack.c.l.b16 %v1660
      %v3033 = vunpack.c.l.b16 %v1661
      %v3034 = vpack.c.b16 %v2987, %v2986
      %v3035 = vpack.c.b16 %v2989, %v2988
      %v3036 = vpack.c.b16 %v2991, %v2990
      %v3037 = vpack.c.b16 %v2993, %v2992
      %v3038 = vpack.c.b16 %v2995, %v2994
      %v3039 = vpack.c.b16 %v2997, %v2996
      %v3040 = vpack.c.b16 %v2999, %v2998
      %v3041 = vpack.c.b16 %v3001, %v3000
      %v3042 = vpack.c.b16 %v3003, %v3002
      %v3043 = vpack.c.b16 %v3005, %v3004
      %v3044 = vpack.c.b16 %v3007, %v3006
      %v3045 = vpack.c.b16 %v3009, %v3008
      %v3046 = vpack.c.b16 %v3011, %v3010
      %v3047 = vpack.c.b16 %v3013, %v3012
      %v3048 = vpack.c.b16 %v3015, %v3014
      %v3049 = vpack.c.b16 %v3017, %v3016
      %v3050 = vpack.c.b16 %v3019, %v3018
      %v3051 = vpack.c.b16 %v3021, %v3020
      %v3052 = vpack.c.b16 %v3023, %v3022
      %v3053 = vpack.c.b16 %v3025, %v3024
      %v3054 = vpack.c.b16 %v3027, %v3026
      %v3055 = vpack.c.b16 %v3029, %v3028
      %v3056 = vpack.c.b16 %v3031, %v3030
      %v3057 = vpack.c.b16 %v3033, %v3032
      %3082 = vmatpush.bf16.msra.mxu0 %v3041
      %3083 = vmatpush.bf16.msra.mxu0 %v3040
      %3084 = vmatpush.bf16.msra.mxu0 %v3039
      %3085 = vmatpush.bf16.msra.mxu0 %v3038
      %3086 = vmatpush.bf16.msra.mxu0 %v3037
      %3087 = vmatpush.bf16.msra.mxu0 %v3036
      %3088 = vmatpush.bf16.msra.mxu0 %v3035
      %3089 = vmatpush.bf16.msra.mxu0 %v3034
      %3090 = vmatmul.bf16.gmra.mxu0 %v1454
      %v3091 = vpop.f32.mrf.mxu0
      %v3092 = vadd.f32 %v2859, %v3091
      %v3093 = vpop.f32.mrf.mxu0
      %v3094 = vadd.f32 %v2861, %v3093
      %3095 = vmatmul.bf16.gmra.mxu0 %v1455
      %v3096 = vpop.f32.mrf.mxu0
      %v3097 = vadd.f32 %v2864, %v3096
      %v3098 = vpop.f32.mrf.mxu0
      %v3099 = vadd.f32 %v2866, %v3098
      %3100 = vmatmul.bf16.gmra.mxu0 %v1456
      %v3101 = vpop.f32.mrf.mxu0
      %v3102 = vadd.f32 %v2869, %v3101
      %v3103 = vpop.f32.mrf.mxu0
      %v3104 = vadd.f32 %v2871, %v3103
      %3105 = vmatmul.bf16.gmra.mxu0 %v1457
      %v3106 = vpop.f32.mrf.mxu0
      %v3107 = vadd.f32 %v2874, %v3106
      %v3108 = vpop.f32.mrf.mxu0
      %v3109 = vadd.f32 %v2876, %v3108
      %3110 = vmatmul.bf16.gmra.mxu0 %v1458
      %v3111 = vpop.f32.mrf.mxu0
      %v3112 = vadd.f32 %v2879, %v3111
      %v3113 = vpop.f32.mrf.mxu0
      %v3114 = vadd.f32 %v2881, %v3113
      %3115 = vmatmul.bf16.gmra.mxu0 %v1459
      %v3116 = vpop.f32.mrf.mxu0
      %v3117 = vadd.f32 %v2884, %v3116
      %v3118 = vpop.f32.mrf.mxu0
      %v3119 = vadd.f32 %v2886, %v3118
      %3120 = vmatmul.bf16.gmra.mxu0 %v1460
      %v3121 = vpop.f32.mrf.mxu0
      %v3122 = vadd.f32 %v2889, %v3121
      %v3123 = vpop.f32.mrf.mxu0
      %v3124 = vadd.f32 %v2891, %v3123
      %3125 = vmatmul.bf16.gmra.mxu0 %v1461
      %v3126 = vpop.f32.mrf.mxu0
      %v3127 = vadd.f32 %v2894, %v3126
      %v3128 = vpop.f32.mrf.mxu0
      %v3129 = vadd.f32 %v2896, %v3128
      %3130 = vmatmul.bf16.gmra.mxu0 %v1462
      %v3131 = vpop.f32.mrf.mxu0
      %v3132 = vadd.f32 %v2899, %v3131
      %v3133 = vpop.f32.mrf.mxu0
      %v3134 = vadd.f32 %v2901, %v3133
      %3135 = vmatmul.bf16.gmra.mxu0 %v1463
      %v3136 = vpop.f32.mrf.mxu0
      %v3137 = vadd.f32 %v2904, %v3136
      %v3138 = vpop.f32.mrf.mxu0
      %v3139 = vadd.f32 %v2906, %v3138
      %3140 = vmatmul.bf16.gmra.mxu0 %v1464
      %v3141 = vpop.f32.mrf.mxu0
      %v3142 = vadd.f32 %v2909, %v3141
      %v3143 = vpop.f32.mrf.mxu0
      %v3144 = vadd.f32 %v2911, %v3143
      %3145 = vmatmul.bf16.gmra.mxu0 %v1465
      %v3146 = vpop.f32.mrf.mxu0
      %v3147 = vadd.f32 %v2914, %v3146
      %v3148 = vpop.f32.mrf.mxu0
      %v3149 = vadd.f32 %v2916, %v3148
      %3150 = vmatmul.bf16.gmra.mxu0 %v1466
      %v3151 = vpop.f32.mrf.mxu0
      %v3152 = vadd.f32 %v2919, %v3151
      %v3153 = vpop.f32.mrf.mxu0
      %v3154 = vadd.f32 %v2921, %v3153
      %3155 = vmatmul.bf16.gmra.mxu0 %v1467
      %v3156 = vpop.f32.mrf.mxu0
      %v3157 = vadd.f32 %v2924, %v3156
      %v3158 = vpop.f32.mrf.mxu0
      %v3159 = vadd.f32 %v2926, %v3158
      %3160 = vmatmul.bf16.gmra.mxu0 %v1468
      %v3161 = vpop.f32.mrf.mxu0
      %v3162 = vadd.f32 %v2929, %v3161
      %v3163 = vpop.f32.mrf.mxu0
      %v3164 = vadd.f32 %v2931, %v3163
      %3165 = vmatmul.bf16.gmra.mxu0 %v1469
      %v3166 = vpop.f32.mrf.mxu0
      %v3167 = vadd.f32 %v2934, %v3166
      %v3168 = vpop.f32.mrf.mxu0
      %v3169 = vadd.f32 %v2936, %v3168
      %3170 = vdwg.mxu0
      %3171 = vmatpush.bf16.msra.mxu0 %v3049
      %3172 = vmatpush.bf16.msra.mxu0 %v3048
      %3173 = vmatpush.bf16.msra.mxu0 %v3047
      %3174 = vmatpush.bf16.msra.mxu0 %v3046
      %3175 = vmatpush.bf16.msra.mxu0 %v3045
      %3176 = vmatpush.bf16.msra.mxu0 %v3044
      %3177 = vmatpush.bf16.msra.mxu0 %v3043
      %3178 = vmatpush.bf16.msra.mxu0 %v3042
      %3179 = vmatmul.bf16.gmra.mxu0 %v1518
      %v3180 = vpop.f32.mrf.mxu0
      %v3181 = vadd.f32 %v3092, %v3180
      %v3182 = vpop.f32.mrf.mxu0
      %v3183 = vadd.f32 %v3094, %v3182
      %3184 = vmatmul.bf16.gmra.mxu0 %v1519
      %v3185 = vpop.f32.mrf.mxu0
      %v3186 = vadd.f32 %v3097, %v3185
      %v3187 = vpop.f32.mrf.mxu0
      %v3188 = vadd.f32 %v3099, %v3187
      %3189 = vmatmul.bf16.gmra.mxu0 %v1520
      %v3190 = vpop.f32.mrf.mxu0
      %v3191 = vadd.f32 %v3102, %v3190
      %v3192 = vpop.f32.mrf.mxu0
      %v3193 = vadd.f32 %v3104, %v3192
      %3194 = vmatmul.bf16.gmra.mxu0 %v1521
      %v3195 = vpop.f32.mrf.mxu0
      %v3196 = vadd.f32 %v3107, %v3195
      %v3197 = vpop.f32.mrf.mxu0
      %v3198 = vadd.f32 %v3109, %v3197
      %3199 = vmatmul.bf16.gmra.mxu0 %v1522
      %v3200 = vpop.f32.mrf.mxu0
      %v3201 = vadd.f32 %v3112, %v3200
      %v3202 = vpop.f32.mrf.mxu0
      %v3203 = vadd.f32 %v3114, %v3202
      %3204 = vmatmul.bf16.gmra.mxu0 %v1523
      %v3205 = vpop.f32.mrf.mxu0
      %v3206 = vadd.f32 %v3117, %v3205
      %v3207 = vpop.f32.mrf.mxu0
      %v3208 = vadd.f32 %v3119, %v3207
      %3209 = vmatmul.bf16.gmra.mxu0 %v1524
      %v3210 = vpop.f32.mrf.mxu0
      %v3211 = vadd.f32 %v3122, %v3210
      %v3212 = vpop.f32.mrf.mxu0
      %v3213 = vadd.f32 %v3124, %v3212
      %3214 = vmatmul.bf16.gmra.mxu0 %v1525
      %v3215 = vpop.f32.mrf.mxu0
      %v3216 = vadd.f32 %v3127, %v3215
      %v3217 = vpop.f32.mrf.mxu0
      %v3218 = vadd.f32 %v3129, %v3217
      %3219 = vmatmul.bf16.gmra.mxu0 %v1526
      %v3220 = vpop.f32.mrf.mxu0
      %v3221 = vadd.f32 %v3132, %v3220
      %v3222 = vpop.f32.mrf.mxu0
      %v3223 = vadd.f32 %v3134, %v3222
      %3224 = vmatmul.bf16.gmra.mxu0 %v1527
      %v3225 = vpop.f32.mrf.mxu0
      %v3226 = vadd.f32 %v3137, %v3225
      %v3227 = vpop.f32.mrf.mxu0
      %v3228 = vadd.f32 %v3139, %v3227
      %3229 = vmatmul.bf16.gmra.mxu0 %v1528
      %v3230 = vpop.f32.mrf.mxu0
      %v3231 = vadd.f32 %v3142, %v3230
      %v3232 = vpop.f32.mrf.mxu0
      %v3233 = vadd.f32 %v3144, %v3232
      %3234 = vmatmul.bf16.gmra.mxu0 %v1529
      %v3235 = vpop.f32.mrf.mxu0
      %v3236 = vadd.f32 %v3147, %v3235
      %v3237 = vpop.f32.mrf.mxu0
      %v3238 = vadd.f32 %v3149, %v3237
      %3239 = vmatmul.bf16.gmra.mxu0 %v1530
      %v3240 = vpop.f32.mrf.mxu0
      %v3241 = vadd.f32 %v3152, %v3240
      %v3242 = vpop.f32.mrf.mxu0
      %v3243 = vadd.f32 %v3154, %v3242
      %3244 = vmatmul.bf16.gmra.mxu0 %v1531
      %v3245 = vpop.f32.mrf.mxu0
      %v3246 = vadd.f32 %v3157, %v3245
      %v3247 = vpop.f32.mrf.mxu0
      %v3248 = vadd.f32 %v3159, %v3247
      %3249 = vmatmul.bf16.gmra.mxu0 %v1532
      %v3250 = vpop.f32.mrf.mxu0
      %v3251 = vadd.f32 %v3162, %v3250
      %v3252 = vpop.f32.mrf.mxu0
      %v3253 = vadd.f32 %v3164, %v3252
      %3254 = vmatmul.bf16.gmra.mxu0 %v1533
      %v3255 = vpop.f32.mrf.mxu0
      %v3256 = vadd.f32 %v3167, %v3255
      %v3257 = vpop.f32.mrf.mxu0
      %v3258 = vadd.f32 %v3169, %v3257
      %3259 = vdwg.mxu0
      %3260 = vmatpush.bf16.msra.mxu0 %v3057
      %3261 = vmatpush.bf16.msra.mxu0 %v3056
      %3262 = vmatpush.bf16.msra.mxu0 %v3055
      %3263 = vmatpush.bf16.msra.mxu0 %v3054
      %3264 = vmatpush.bf16.msra.mxu0 %v3053
      %3265 = vmatpush.bf16.msra.mxu0 %v3052
      %3266 = vmatpush.bf16.msra.mxu0 %v3051
      %3267 = vmatpush.bf16.msra.mxu0 %v3050
      %3268 = vmatmul.bf16.gmra.mxu0 %v1582
      %v3269 = vpop.f32.mrf.mxu0
      %v3270 = vadd.f32 %v3181, %v3269
      %v3271 = vpop.f32.mrf.mxu0
      %v3272 = vadd.f32 %v3183, %v3271
      %3273 = vmatmul.bf16.gmra.mxu0 %v1583
      %v3274 = vpop.f32.mrf.mxu0
      %v3275 = vadd.f32 %v3186, %v3274
      %v3276 = vpop.f32.mrf.mxu0
      %v3277 = vadd.f32 %v3188, %v3276
      %3278 = vmatmul.bf16.gmra.mxu0 %v1584
      %v3279 = vpop.f32.mrf.mxu0
      %v3280 = vadd.f32 %v3191, %v3279
      %v3281 = vpop.f32.mrf.mxu0
      %v3282 = vadd.f32 %v3193, %v3281
      %3283 = vmatmul.bf16.gmra.mxu0 %v1585
      %v3284 = vpop.f32.mrf.mxu0
      %v3285 = vadd.f32 %v3196, %v3284
      %v3286 = vpop.f32.mrf.mxu0
      %v3287 = vadd.f32 %v3198, %v3286
      %3288 = vmatmul.bf16.gmra.mxu0 %v1586
      %v3289 = vpop.f32.mrf.mxu0
      %v3290 = vadd.f32 %v3201, %v3289
      %v3291 = vpop.f32.mrf.mxu0
      %v3292 = vadd.f32 %v3203, %v3291
      %3293 = vmatmul.bf16.gmra.mxu0 %v1587
      %v3294 = vpop.f32.mrf.mxu0
      %v3295 = vadd.f32 %v3206, %v3294
      %v3296 = vpop.f32.mrf.mxu0
      %v3297 = vadd.f32 %v3208, %v3296
      %3298 = vmatmul.bf16.gmra.mxu0 %v1588
      %v3299 = vpop.f32.mrf.mxu0
      %v3300 = vadd.f32 %v3211, %v3299
      %v3301 = vpop.f32.mrf.mxu0
      %v3302 = vadd.f32 %v3213, %v3301
      %3303 = vmatmul.bf16.gmra.mxu0 %v1589
      %v3304 = vpop.f32.mrf.mxu0
      %v3305 = vadd.f32 %v3216, %v3304
      %v3306 = vpop.f32.mrf.mxu0
      %v3307 = vadd.f32 %v3218, %v3306
      %3308 = vmatmul.bf16.gmra.mxu0 %v1590
      %v3309 = vpop.f32.mrf.mxu0
      %v3310 = vadd.f32 %v3221, %v3309
      %v3311 = vpop.f32.mrf.mxu0
      %v3312 = vadd.f32 %v3223, %v3311
      %3313 = vmatmul.bf16.gmra.mxu0 %v1591
      %v3314 = vpop.f32.mrf.mxu0
      %v3315 = vadd.f32 %v3226, %v3314
      %v3316 = vpop.f32.mrf.mxu0
      %v3317 = vadd.f32 %v3228, %v3316
      %3318 = vmatmul.bf16.gmra.mxu0 %v1592
      %v3319 = vpop.f32.mrf.mxu0
      %v3320 = vadd.f32 %v3231, %v3319
      %v3321 = vpop.f32.mrf.mxu0
      %v3322 = vadd.f32 %v3233, %v3321
      %3323 = vmatmul.bf16.gmra.mxu0 %v1593
      %v3324 = vpop.f32.mrf.mxu0
      %v3325 = vadd.f32 %v3236, %v3324
      %v3326 = vpop.f32.mrf.mxu0
      %v3327 = vadd.f32 %v3238, %v3326
      %3328 = vmatmul.bf16.gmra.mxu0 %v1594
      %v3329 = vpop.f32.mrf.mxu0
      %v3330 = vadd.f32 %v3241, %v3329
      %v3331 = vpop.f32.mrf.mxu0
      %v3332 = vadd.f32 %v3243, %v3331
      %3333 = vmatmul.bf16.gmra.mxu0 %v1595
      %v3334 = vpop.f32.mrf.mxu0
      %v3335 = vadd.f32 %v3246, %v3334
      %v3336 = vpop.f32.mrf.mxu0
      %v3337 = vadd.f32 %v3248, %v3336
      %3338 = vmatmul.bf16.gmra.mxu0 %v1596
      %v3339 = vpop.f32.mrf.mxu0
      %v3340 = vadd.f32 %v3251, %v3339
      %v3341 = vpop.f32.mrf.mxu0
      %v3342 = vadd.f32 %v3253, %v3341
      %3343 = vmatmul.bf16.gmra.mxu0 %v1597
      %v3344 = vpop.f32.mrf.mxu0
      %v3345 = vadd.f32 %v3256, %v3344
      %v3346 = vpop.f32.mrf.mxu0
      %v3347 = vadd.f32 %v3258, %v3346
      %3348 = vdwg.mxu0
      %s3349 = scalar_lea.vmem [#allocation2], 24
      %v3350 = vld [vmem:[%s3349] sm:$0xf]
      %v3351 = vld [vmem:[%s3349 + $0x4] sm:$0xf]
      %v3352 = vld [vmem:[%s3349 + $0xc] sm:$0xf]
      %v3353 = vld [vmem:[%s3349 + $0x10] sm:$0xf]
      %v3354 = vld [vmem:[%s3349 + $0x18] sm:$0xf]
      %v3355 = vld [vmem:[%s3349 + $0x1c] sm:$0xf]
      %v3356 = vld [vmem:[%s3349 + $0x24] sm:$0xf]
      %v3357 = vld [vmem:[%s3349 + $0x28] sm:$0xf]
      %v3358 = vld [vmem:[%s3349 + $0x30] sm:$0xf]
      %v3359 = vld [vmem:[%s3349 + $0x34] sm:$0xf]
      %v3360 = vld [vmem:[%s3349 + $0x3c] sm:$0xf]
      %v3361 = vld [vmem:[%s3349 + $0x40] sm:$0xf]
      %v3362 = vld [vmem:[%s3349 + $0x48] sm:$0xf]
      %v3363 = vld [vmem:[%s3349 + $0x4c] sm:$0xf]
      %v3364 = vld [vmem:[%s3349 + $0x54] sm:$0xf]
      %v3365 = vld [vmem:[%s3349 + $0x58] sm:$0xf]
      %v3366 = vld [vmem:[%s3349 + $0x60] sm:$0xf]
      %v3367 = vld [vmem:[%s3349 + $0x64] sm:$0xf]
      %v3368 = vld [vmem:[%s3349 + $0x6c] sm:$0xf]
      %v3369 = vld [vmem:[%s3349 + $0x70] sm:$0xf]
      %v3370 = vld [vmem:[%s3349 + $0x78] sm:$0xf]
      %v3371 = vld [vmem:[%s3349 + $0x7c] sm:$0xf]
      %v3372 = vld [vmem:[%s3349 + $0x84] sm:$0xf]
      %v3373 = vld [vmem:[%s3349 + $0x88] sm:$0xf]
      %v3374 = vld [vmem:[%s3349 + $0x90] sm:$0xf]
      %v3375 = vld [vmem:[%s3349 + $0x94] sm:$0xf]
      %v3376 = vld [vmem:[%s3349 + $0x9c] sm:$0xf]
      %v3377 = vld [vmem:[%s3349 + $0xa0] sm:$0xf]
      %v3378 = vld [vmem:[%s3349 + $0xa8] sm:$0xf]
      %v3379 = vld [vmem:[%s3349 + $0xac] sm:$0xf]
      %v3380 = vld [vmem:[%s3349 + $0xb4] sm:$0xf]
      %v3381 = vld [vmem:[%s3349 + $0xb8] sm:$0xf]
      %v3382 = vld [vmem:[%s3349 + $0x8] sm:$0x1]
      %v3383 = vld [vmem:[%s3349 + $0x14] sm:$0x1]
      %v3384 = vld [vmem:[%s3349 + $0x20] sm:$0x1]
      %v3385 = vld [vmem:[%s3349 + $0x2c] sm:$0x1]
      %v3386 = vld [vmem:[%s3349 + $0x38] sm:$0x1]
      %v3387 = vld [vmem:[%s3349 + $0x44] sm:$0x1]
      %v3388 = vld [vmem:[%s3349 + $0x50] sm:$0x1]
      %v3389 = vld [vmem:[%s3349 + $0x5c] sm:$0x1]
      %v3390 = vld [vmem:[%s3349 + $0x68] sm:$0x1]
      %v3391 = vld [vmem:[%s3349 + $0x74] sm:$0x1]
      %v3392 = vld [vmem:[%s3349 + $0x80] sm:$0x1]
      %v3393 = vld [vmem:[%s3349 + $0x8c] sm:$0x1]
      %v3394 = vld [vmem:[%s3349 + $0x98] sm:$0x1]
      %v3395 = vld [vmem:[%s3349 + $0xa4] sm:$0x1]
      %v3396 = vld [vmem:[%s3349 + $0xb0] sm:$0x1]
      %v3397 = vld [vmem:[%s3349 + $0xbc] sm:$0x1]
      %v3399 = vshrl.u32 %v3350, 16
      %v3401 = vrot.slane %v3399, 4
      %v3402 = vshll.u32 %v3350, 16
      %v3404 = vrot.slane %v3402, 5
      %v3405 = vor.u32 %v3401, %v3404
      %v3406 = vrot.slane %v3405, 4
      %v3408 = vshll.u32 %v3351, 16
      %v3410 = vrot.slane %v3408, 5
      %v3411 = vsel %vm842, %v3406, %v3410
      %v3412 = vshrl.u32 %v3351, 16
      %v3414 = vrot.slane %v3412, 4
      %v3415 = vor.u32 %v3414, %v3410
      %v3416 = vrot.slane %v3415, 4
      %v3418 = vshll.u32 %v3382, 16
      %v3420 = vrot.slane %v3418, 5
      %v3421 = vsel %vm842, %v3416, %v3420
      %v3423 = vshrl.u32 %v3352, 16
      %v3425 = vrot.slane %v3423, 4
      %v3426 = vshll.u32 %v3352, 16
      %v3428 = vrot.slane %v3426, 5
      %v3429 = vor.u32 %v3425, %v3428
      %v3430 = vrot.slane %v3429, 4
      %v3432 = vshll.u32 %v3353, 16
      %v3434 = vrot.slane %v3432, 5
      %v3435 = vsel %vm842, %v3430, %v3434
      %v3436 = vshrl.u32 %v3353, 16
      %v3438 = vrot.slane %v3436, 4
      %v3439 = vor.u32 %v3438, %v3434
      %v3440 = vrot.slane %v3439, 4
      %v3442 = vshll.u32 %v3383, 16
      %v3444 = vrot.slane %v3442, 5
      %v3445 = vsel %vm842, %v3440, %v3444
      %v3447 = vshrl.u32 %v3354, 16
      %v3449 = vrot.slane %v3447, 4
      %v3450 = vshll.u32 %v3354, 16
      %v3452 = vrot.slane %v3450, 5
      %v3453 = vor.u32 %v3449, %v3452
      %v3454 = vrot.slane %v3453, 4
      %v3456 = vshll.u32 %v3355, 16
      %v3458 = vrot.slane %v3456, 5
      %v3459 = vsel %vm842, %v3454, %v3458
      %v3460 = vshrl.u32 %v3355, 16
      %v3462 = vrot.slane %v3460, 4
      %v3463 = vor.u32 %v3462, %v3458
      %v3464 = vrot.slane %v3463, 4
      %v3466 = vshll.u32 %v3384, 16
      %v3468 = vrot.slane %v3466, 5
      %v3469 = vsel %vm842, %v3464, %v3468
      %v3471 = vshrl.u32 %v3356, 16
      %v3473 = vrot.slane %v3471, 4
      %v3474 = vshll.u32 %v3356, 16
      %v3476 = vrot.slane %v3474, 5
      %v3477 = vor.u32 %v3473, %v3476
      %v3478 = vrot.slane %v3477, 4
      %v3480 = vshll.u32 %v3357, 16
      %v3482 = vrot.slane %v3480, 5
      %v3483 = vsel %vm842, %v3478, %v3482
      %v3484 = vshrl.u32 %v3357, 16
      %v3486 = vrot.slane %v3484, 4
      %v3487 = vor.u32 %v3486, %v3482
      %v3488 = vrot.slane %v3487, 4
      %v3490 = vshll.u32 %v3385, 16
      %v3492 = vrot.slane %v3490, 5
      %v3493 = vsel %vm842, %v3488, %v3492
      %v3495 = vshrl.u32 %v3358, 16
      %v3497 = vrot.slane %v3495, 4
      %v3498 = vshll.u32 %v3358, 16
      %v3500 = vrot.slane %v3498, 5
      %v3501 = vor.u32 %v3497, %v3500
      %v3502 = vrot.slane %v3501, 4
      %v3504 = vshll.u32 %v3359, 16
      %v3506 = vrot.slane %v3504, 5
      %v3507 = vsel %vm842, %v3502, %v3506
      %v3508 = vshrl.u32 %v3359, 16
      %v3510 = vrot.slane %v3508, 4
      %v3511 = vor.u32 %v3510, %v3506
      %v3512 = vrot.slane %v3511, 4
      %v3514 = vshll.u32 %v3386, 16
      %v3516 = vrot.slane %v3514, 5
      %v3517 = vsel %vm842, %v3512, %v3516
      %v3519 = vshrl.u32 %v3360, 16
      %v3521 = vrot.slane %v3519, 4
      %v3522 = vshll.u32 %v3360, 16
      %v3524 = vrot.slane %v3522, 5
      %v3525 = vor.u32 %v3521, %v3524
      %v3526 = vrot.slane %v3525, 4
      %v3528 = vshll.u32 %v3361, 16
      %v3530 = vrot.slane %v3528, 5
      %v3531 = vsel %vm842, %v3526, %v3530
      %v3532 = vshrl.u32 %v3361, 16
      %v3534 = vrot.slane %v3532, 4
      %v3535 = vor.u32 %v3534, %v3530
      %v3536 = vrot.slane %v3535, 4
      %v3538 = vshll.u32 %v3387, 16
      %v3540 = vrot.slane %v3538, 5
      %v3541 = vsel %vm842, %v3536, %v3540
      %v3543 = vshrl.u32 %v3362, 16
      %v3545 = vrot.slane %v3543, 4
      %v3546 = vshll.u32 %v3362, 16
      %v3548 = vrot.slane %v3546, 5
      %v3549 = vor.u32 %v3545, %v3548
      %v3550 = vrot.slane %v3549, 4
      %v3552 = vshll.u32 %v3363, 16
      %v3554 = vrot.slane %v3552, 5
      %v3555 = vsel %vm842, %v3550, %v3554
      %v3556 = vshrl.u32 %v3363, 16
      %v3558 = vrot.slane %v3556, 4
      %v3559 = vor.u32 %v3558, %v3554
      %v3560 = vrot.slane %v3559, 4
      %v3562 = vshll.u32 %v3388, 16
      %v3564 = vrot.slane %v3562, 5
      %v3565 = vsel %vm842, %v3560, %v3564
      %v3567 = vshrl.u32 %v3364, 16
      %v3569 = vrot.slane %v3567, 4
      %v3570 = vshll.u32 %v3364, 16
      %v3572 = vrot.slane %v3570, 5
      %v3573 = vor.u32 %v3569, %v3572
      %v3574 = vrot.slane %v3573, 4
      %v3576 = vshll.u32 %v3365, 16
      %v3578 = vrot.slane %v3576, 5
      %v3579 = vsel %vm842, %v3574, %v3578
      %v3580 = vshrl.u32 %v3365, 16
      %v3582 = vrot.slane %v3580, 4
      %v3583 = vor.u32 %v3582, %v3578
      %v3584 = vrot.slane %v3583, 4
      %v3586 = vshll.u32 %v3389, 16
      %v3588 = vrot.slane %v3586, 5
      %v3589 = vsel %vm842, %v3584, %v3588
      %v3591 = vshrl.u32 %v3366, 16
      %v3593 = vrot.slane %v3591, 4
      %v3594 = vshll.u32 %v3366, 16
      %v3596 = vrot.slane %v3594, 5
      %v3597 = vor.u32 %v3593, %v3596
      %v3598 = vrot.slane %v3597, 4
      %v3600 = vshll.u32 %v3367, 16
      %v3602 = vrot.slane %v3600, 5
      %v3603 = vsel %vm842, %v3598, %v3602
      %v3604 = vshrl.u32 %v3367, 16
      %v3606 = vrot.slane %v3604, 4
      %v3607 = vor.u32 %v3606, %v3602
      %v3608 = vrot.slane %v3607, 4
      %v3610 = vshll.u32 %v3390, 16
      %v3612 = vrot.slane %v3610, 5
      %v3613 = vsel %vm842, %v3608, %v3612
      %v3615 = vshrl.u32 %v3368, 16
      %v3617 = vrot.slane %v3615, 4
      %v3618 = vshll.u32 %v3368, 16
      %v3620 = vrot.slane %v3618, 5
      %v3621 = vor.u32 %v3617, %v3620
      %v3622 = vrot.slane %v3621, 4
      %v3624 = vshll.u32 %v3369, 16
      %v3626 = vrot.slane %v3624, 5
      %v3627 = vsel %vm842, %v3622, %v3626
      %v3628 = vshrl.u32 %v3369, 16
      %v3630 = vrot.slane %v3628, 4
      %v3631 = vor.u32 %v3630, %v3626
      %v3632 = vrot.slane %v3631, 4
      %v3634 = vshll.u32 %v3391, 16
      %v3636 = vrot.slane %v3634, 5
      %v3637 = vsel %vm842, %v3632, %v3636
      %v3639 = vshrl.u32 %v3370, 16
      %v3641 = vrot.slane %v3639, 4
      %v3642 = vshll.u32 %v3370, 16
      %v3644 = vrot.slane %v3642, 5
      %v3645 = vor.u32 %v3641, %v3644
      %v3646 = vrot.slane %v3645, 4
      %v3648 = vshll.u32 %v3371, 16
      %v3650 = vrot.slane %v3648, 5
      %v3651 = vsel %vm842, %v3646, %v3650
      %v3652 = vshrl.u32 %v3371, 16
      %v3654 = vrot.slane %v3652, 4
      %v3655 = vor.u32 %v3654, %v3650
      %v3656 = vrot.slane %v3655, 4
      %v3658 = vshll.u32 %v3392, 16
      %v3660 = vrot.slane %v3658, 5
      %v3661 = vsel %vm842, %v3656, %v3660
      %v3663 = vshrl.u32 %v3372, 16
      %v3665 = vrot.slane %v3663, 4
      %v3666 = vshll.u32 %v3372, 16
      %v3668 = vrot.slane %v3666, 5
      %v3669 = vor.u32 %v3665, %v3668
      %v3670 = vrot.slane %v3669, 4
      %v3672 = vshll.u32 %v3373, 16
      %v3674 = vrot.slane %v3672, 5
      %v3675 = vsel %vm842, %v3670, %v3674
      %v3676 = vshrl.u32 %v3373, 16
      %v3678 = vrot.slane %v3676, 4
      %v3679 = vor.u32 %v3678, %v3674
      %v3680 = vrot.slane %v3679, 4
      %v3682 = vshll.u32 %v3393, 16
      %v3684 = vrot.slane %v3682, 5
      %v3685 = vsel %vm842, %v3680, %v3684
      %v3687 = vshrl.u32 %v3374, 16
      %v3689 = vrot.slane %v3687, 4
      %v3690 = vshll.u32 %v3374, 16
      %v3692 = vrot.slane %v3690, 5
      %v3693 = vor.u32 %v3689, %v3692
      %v3694 = vrot.slane %v3693, 4
      %v3696 = vshll.u32 %v3375, 16
      %v3698 = vrot.slane %v3696, 5
      %v3699 = vsel %vm842, %v3694, %v3698
      %v3700 = vshrl.u32 %v3375, 16
      %v3702 = vrot.slane %v3700, 4
      %v3703 = vor.u32 %v3702, %v3698
      %v3704 = vrot.slane %v3703, 4
      %v3706 = vshll.u32 %v3394, 16
      %v3708 = vrot.slane %v3706, 5
      %v3709 = vsel %vm842, %v3704, %v3708
      %v3711 = vshrl.u32 %v3376, 16
      %v3713 = vrot.slane %v3711, 4
      %v3714 = vshll.u32 %v3376, 16
      %v3716 = vrot.slane %v3714, 5
      %v3717 = vor.u32 %v3713, %v3716
      %v3718 = vrot.slane %v3717, 4
      %v3720 = vshll.u32 %v3377, 16
      %v3722 = vrot.slane %v3720, 5
      %v3723 = vsel %vm842, %v3718, %v3722
      %v3724 = vshrl.u32 %v3377, 16
      %v3726 = vrot.slane %v3724, 4
      %v3727 = vor.u32 %v3726, %v3722
      %v3728 = vrot.slane %v3727, 4
      %v3730 = vshll.u32 %v3395, 16
      %v3732 = vrot.slane %v3730, 5
      %v3733 = vsel %vm842, %v3728, %v3732
      %v3735 = vshrl.u32 %v3378, 16
      %v3737 = vrot.slane %v3735, 4
      %v3738 = vshll.u32 %v3378, 16
      %v3740 = vrot.slane %v3738, 5
      %v3741 = vor.u32 %v3737, %v3740
      %v3742 = vrot.slane %v3741, 4
      %v3744 = vshll.u32 %v3379, 16
      %v3746 = vrot.slane %v3744, 5
      %v3747 = vsel %vm842, %v3742, %v3746
      %v3748 = vshrl.u32 %v3379, 16
      %v3750 = vrot.slane %v3748, 4
      %v3751 = vor.u32 %v3750, %v3746
      %v3752 = vrot.slane %v3751, 4
      %v3754 = vshll.u32 %v3396, 16
      %v3756 = vrot.slane %v3754, 5
      %v3757 = vsel %vm842, %v3752, %v3756
      %v3759 = vshrl.u32 %v3380, 16
      %v3761 = vrot.slane %v3759, 4
      %v3762 = vshll.u32 %v3380, 16
      %v3764 = vrot.slane %v3762, 5
      %v3765 = vor.u32 %v3761, %v3764
      %v3766 = vrot.slane %v3765, 4
      %v3768 = vshll.u32 %v3381, 16
      %v3770 = vrot.slane %v3768, 5
      %v3771 = vsel %vm842, %v3766, %v3770
      %v3772 = vshrl.u32 %v3381, 16
      %v3774 = vrot.slane %v3772, 4
      %v3775 = vor.u32 %v3774, %v3770
      %v3776 = vrot.slane %v3775, 4
      %v3778 = vshll.u32 %v3397, 16
      %v3780 = vrot.slane %v3778, 5
      %v3781 = vsel %vm842, %v3776, %v3780
      %v3782 = vld [vmem:[%s3349] sm:$0xe]
      %v3783 = vld [vmem:[%s3349 + $0xc] sm:$0xe]
      %v3784 = vld [vmem:[%s3349 + $0x18] sm:$0xe]
      %v3785 = vld [vmem:[%s3349 + $0x24] sm:$0xe]
      %v3786 = vld [vmem:[%s3349 + $0x30] sm:$0xe]
      %v3787 = vld [vmem:[%s3349 + $0x3c] sm:$0xe]
      %v3788 = vld [vmem:[%s3349 + $0x48] sm:$0xe]
      %v3789 = vld [vmem:[%s3349 + $0x54] sm:$0xe]
      %v3790 = vld [vmem:[%s3349 + $0x60] sm:$0xe]
      %v3791 = vld [vmem:[%s3349 + $0x6c] sm:$0xe]
      %v3792 = vld [vmem:[%s3349 + $0x78] sm:$0xe]
      %v3793 = vld [vmem:[%s3349 + $0x84] sm:$0xe]
      %v3794 = vld [vmem:[%s3349 + $0x90] sm:$0xe]
      %v3795 = vld [vmem:[%s3349 + $0x9c] sm:$0xe]
      %v3796 = vld [vmem:[%s3349 + $0xa8] sm:$0xe]
      %v3797 = vld [vmem:[%s3349 + $0xb4] sm:$0xe]
      %v3846 = vrot.slane %v3782, 5
      %v3847 = vrot.slane %v3846, 4
      %v3848 = vrot.slane %v3351, 5
      %v3849 = vsel %vm1293, %v3847, %v3848
      %v3850 = vrot.slane %v3848, 4
      %v3851 = vrot.slane %v3382, 5
      %v3852 = vsel %vm1293, %v3850, %v3851
      %v3853 = vrot.slane %v3783, 5
      %v3854 = vrot.slane %v3853, 4
      %v3855 = vrot.slane %v3353, 5
      %v3856 = vsel %vm1293, %v3854, %v3855
      %v3857 = vrot.slane %v3855, 4
      %v3858 = vrot.slane %v3383, 5
      %v3859 = vsel %vm1293, %v3857, %v3858
      %v3860 = vrot.slane %v3784, 5
      %v3861 = vrot.slane %v3860, 4
      %v3862 = vrot.slane %v3355, 5
      %v3863 = vsel %vm1293, %v3861, %v3862
      %v3864 = vrot.slane %v3862, 4
      %v3865 = vrot.slane %v3384, 5
      %v3866 = vsel %vm1293, %v3864, %v3865
      %v3867 = vrot.slane %v3785, 5
      %v3868 = vrot.slane %v3867, 4
      %v3869 = vrot.slane %v3357, 5
      %v3870 = vsel %vm1293, %v3868, %v3869
      %v3871 = vrot.slane %v3869, 4
      %v3872 = vrot.slane %v3385, 5
      %v3873 = vsel %vm1293, %v3871, %v3872
      %v3874 = vrot.slane %v3786, 5
      %v3875 = vrot.slane %v3874, 4
      %v3876 = vrot.slane %v3359, 5
      %v3877 = vsel %vm1293, %v3875, %v3876
      %v3878 = vrot.slane %v3876, 4
      %v3879 = vrot.slane %v3386, 5
      %v3880 = vsel %vm1293, %v3878, %v3879
      %v3881 = vrot.slane %v3787, 5
      %v3882 = vrot.slane %v3881, 4
      %v3883 = vrot.slane %v3361, 5
      %v3884 = vsel %vm1293, %v3882, %v3883
      %v3885 = vrot.slane %v3883, 4
      %v3886 = vrot.slane %v3387, 5
      %v3887 = vsel %vm1293, %v3885, %v3886
      %v3888 = vrot.slane %v3788, 5
      %v3889 = vrot.slane %v3888, 4
      %v3890 = vrot.slane %v3363, 5
      %v3891 = vsel %vm1293, %v3889, %v3890
      %v3892 = vrot.slane %v3890, 4
      %v3893 = vrot.slane %v3388, 5
      %v3894 = vsel %vm1293, %v3892, %v3893
      %v3895 = vrot.slane %v3789, 5
      %v3896 = vrot.slane %v3895, 4
      %v3897 = vrot.slane %v3365, 5
      %v3898 = vsel %vm1293, %v3896, %v3897
      %v3899 = vrot.slane %v3897, 4
      %v3900 = vrot.slane %v3389, 5
      %v3901 = vsel %vm1293, %v3899, %v3900
      %v3902 = vrot.slane %v3790, 5
      %v3903 = vrot.slane %v3902, 4
      %v3904 = vrot.slane %v3367, 5
      %v3905 = vsel %vm1293, %v3903, %v3904
      %v3906 = vrot.slane %v3904, 4
      %v3907 = vrot.slane %v3390, 5
      %v3908 = vsel %vm1293, %v3906, %v3907
      %v3909 = vrot.slane %v3791, 5
      %v3910 = vrot.slane %v3909, 4
      %v3911 = vrot.slane %v3369, 5
      %v3912 = vsel %vm1293, %v3910, %v3911
      %v3913 = vrot.slane %v3911, 4
      %v3914 = vrot.slane %v3391, 5
      %v3915 = vsel %vm1293, %v3913, %v3914
      %v3916 = vrot.slane %v3792, 5
      %v3917 = vrot.slane %v3916, 4
      %v3918 = vrot.slane %v3371, 5
      %v3919 = vsel %vm1293, %v3917, %v3918
      %v3920 = vrot.slane %v3918, 4
      %v3921 = vrot.slane %v3392, 5
      %v3922 = vsel %vm1293, %v3920, %v3921
      %v3923 = vrot.slane %v3793, 5
      %v3924 = vrot.slane %v3923, 4
      %v3925 = vrot.slane %v3373, 5
      %v3926 = vsel %vm1293, %v3924, %v3925
      %v3927 = vrot.slane %v3925, 4
      %v3928 = vrot.slane %v3393, 5
      %v3929 = vsel %vm1293, %v3927, %v3928
      %v3930 = vrot.slane %v3794, 5
      %v3931 = vrot.slane %v3930, 4
      %v3932 = vrot.slane %v3375, 5
      %v3933 = vsel %vm1293, %v3931, %v3932
      %v3934 = vrot.slane %v3932, 4
      %v3935 = vrot.slane %v3394, 5
      %v3936 = vsel %vm1293, %v3934, %v3935
      %v3937 = vrot.slane %v3795, 5
      %v3938 = vrot.slane %v3937, 4
      %v3939 = vrot.slane %v3377, 5
      %v3940 = vsel %vm1293, %v3938, %v3939
      %v3941 = vrot.slane %v3939, 4
      %v3942 = vrot.slane %v3395, 5
      %v3943 = vsel %vm1293, %v3941, %v3942
      %v3944 = vrot.slane %v3796, 5
      %v3945 = vrot.slane %v3944, 4
      %v3946 = vrot.slane %v3379, 5
      %v3947 = vsel %vm1293, %v3945, %v3946
      %v3948 = vrot.slane %v3946, 4
      %v3949 = vrot.slane %v3396, 5
      %v3950 = vsel %vm1293, %v3948, %v3949
      %v3951 = vrot.slane %v3797, 5
      %v3952 = vrot.slane %v3951, 4
      %v3953 = vrot.slane %v3381, 5
      %v3954 = vsel %vm1293, %v3952, %v3953
      %v3955 = vrot.slane %v3953, 4
      %v3956 = vrot.slane %v3397, 5
      %v3957 = vsel %vm1293, %v3955, %v3956
      %v3974 = vunpack.c.l.b16 %v3350
      %v3975 = vunpack.c.l.b16 %v3351
      %v3976 = vunpack.c.l.b16 %v3352
      %v3977 = vunpack.c.l.b16 %v3353
      %v3978 = vunpack.c.l.b16 %v3354
      %v3979 = vunpack.c.l.b16 %v3355
      %v3980 = vunpack.c.l.b16 %v3356
      %v3981 = vunpack.c.l.b16 %v3357
      %v3982 = vunpack.c.l.b16 %v3358
      %v3983 = vunpack.c.l.b16 %v3359
      %v3984 = vunpack.c.l.b16 %v3360
      %v3985 = vunpack.c.l.b16 %v3361
      %v3986 = vunpack.c.l.b16 %v3362
      %v3987 = vunpack.c.l.b16 %v3363
      %v3988 = vunpack.c.l.b16 %v3364
      %v3989 = vunpack.c.l.b16 %v3365
      %v3990 = vunpack.c.l.b16 %v3366
      %v3991 = vunpack.c.l.b16 %v3367
      %v3992 = vunpack.c.l.b16 %v3368
      %v3993 = vunpack.c.l.b16 %v3369
      %v3994 = vunpack.c.l.b16 %v3370
      %v3995 = vunpack.c.l.b16 %v3371
      %v3996 = vunpack.c.l.b16 %v3372
      %v3997 = vunpack.c.l.b16 %v3373
      %v3998 = vunpack.c.l.b16 %v3374
      %v3999 = vunpack.c.l.b16 %v3375
      %v4000 = vunpack.c.l.b16 %v3376
      %v4001 = vunpack.c.l.b16 %v3377
      %v4002 = vunpack.c.l.b16 %v3378
      %v4003 = vunpack.c.l.b16 %v3379
      %v4004 = vunpack.c.l.b16 %v3380
      %v4005 = vunpack.c.l.b16 %v3381
      %v4006 = vpack.c.b16 %v3975, %v3974
      %v4007 = vpack.c.b16 %v3977, %v3976
      %v4008 = vpack.c.b16 %v3979, %v3978
      %v4009 = vpack.c.b16 %v3981, %v3980
      %v4010 = vpack.c.b16 %v3983, %v3982
      %v4011 = vpack.c.b16 %v3985, %v3984
      %v4012 = vpack.c.b16 %v3987, %v3986
      %v4013 = vpack.c.b16 %v3989, %v3988
      %v4014 = vpack.c.b16 %v3991, %v3990
      %v4015 = vpack.c.b16 %v3993, %v3992
      %v4016 = vpack.c.b16 %v3995, %v3994
      %v4017 = vpack.c.b16 %v3997, %v3996
      %v4018 = vpack.c.b16 %v3999, %v3998
      %v4019 = vpack.c.b16 %v4001, %v4000
      %v4020 = vpack.c.b16 %v4003, %v4002
      %v4021 = vpack.c.b16 %v4005, %v4004
      %v4038 = vunpack.c.l.b16 %v3411
      %v4039 = vunpack.c.l.b16 %v3421
      %v4040 = vunpack.c.l.b16 %v3435
      %v4041 = vunpack.c.l.b16 %v3445
      %v4042 = vunpack.c.l.b16 %v3459
      %v4043 = vunpack.c.l.b16 %v3469
      %v4044 = vunpack.c.l.b16 %v3483
      %v4045 = vunpack.c.l.b16 %v3493
      %v4046 = vunpack.c.l.b16 %v3507
      %v4047 = vunpack.c.l.b16 %v3517
      %v4048 = vunpack.c.l.b16 %v3531
      %v4049 = vunpack.c.l.b16 %v3541
      %v4050 = vunpack.c.l.b16 %v3555
      %v4051 = vunpack.c.l.b16 %v3565
      %v4052 = vunpack.c.l.b16 %v3579
      %v4053 = vunpack.c.l.b16 %v3589
      %v4054 = vunpack.c.l.b16 %v3603
      %v4055 = vunpack.c.l.b16 %v3613
      %v4056 = vunpack.c.l.b16 %v3627
      %v4057 = vunpack.c.l.b16 %v3637
      %v4058 = vunpack.c.l.b16 %v3651
      %v4059 = vunpack.c.l.b16 %v3661
      %v4060 = vunpack.c.l.b16 %v3675
      %v4061 = vunpack.c.l.b16 %v3685
      %v4062 = vunpack.c.l.b16 %v3699
      %v4063 = vunpack.c.l.b16 %v3709
      %v4064 = vunpack.c.l.b16 %v3723
      %v4065 = vunpack.c.l.b16 %v3733
      %v4066 = vunpack.c.l.b16 %v3747
      %v4067 = vunpack.c.l.b16 %v3757
      %v4068 = vunpack.c.l.b16 %v3771
      %v4069 = vunpack.c.l.b16 %v3781
      %v4070 = vpack.c.b16 %v4039, %v4038
      %v4071 = vpack.c.b16 %v4041, %v4040
      %v4072 = vpack.c.b16 %v4043, %v4042
      %v4073 = vpack.c.b16 %v4045, %v4044
      %v4074 = vpack.c.b16 %v4047, %v4046
      %v4075 = vpack.c.b16 %v4049, %v4048
      %v4076 = vpack.c.b16 %v4051, %v4050
      %v4077 = vpack.c.b16 %v4053, %v4052
      %v4078 = vpack.c.b16 %v4055, %v4054
      %v4079 = vpack.c.b16 %v4057, %v4056
      %v4080 = vpack.c.b16 %v4059, %v4058
      %v4081 = vpack.c.b16 %v4061, %v4060
      %v4082 = vpack.c.b16 %v4063, %v4062
      %v4083 = vpack.c.b16 %v4065, %v4064
      %v4084 = vpack.c.b16 %v4067, %v4066
      %v4085 = vpack.c.b16 %v4069, %v4068
      %v4102 = vunpack.c.l.b16 %v3849
      %v4103 = vunpack.c.l.b16 %v3852
      %v4104 = vunpack.c.l.b16 %v3856
      %v4105 = vunpack.c.l.b16 %v3859
      %v4106 = vunpack.c.l.b16 %v3863
      %v4107 = vunpack.c.l.b16 %v3866
      %v4108 = vunpack.c.l.b16 %v3870
      %v4109 = vunpack.c.l.b16 %v3873
      %v4110 = vunpack.c.l.b16 %v3877
      %v4111 = vunpack.c.l.b16 %v3880
      %v4112 = vunpack.c.l.b16 %v3884
      %v4113 = vunpack.c.l.b16 %v3887
      %v4114 = vunpack.c.l.b16 %v3891
      %v4115 = vunpack.c.l.b16 %v3894
      %v4116 = vunpack.c.l.b16 %v3898
      %v4117 = vunpack.c.l.b16 %v3901
      %v4118 = vunpack.c.l.b16 %v3905
      %v4119 = vunpack.c.l.b16 %v3908
      %v4120 = vunpack.c.l.b16 %v3912
      %v4121 = vunpack.c.l.b16 %v3915
      %v4122 = vunpack.c.l.b16 %v3919
      %v4123 = vunpack.c.l.b16 %v3922
      %v4124 = vunpack.c.l.b16 %v3926
      %v4125 = vunpack.c.l.b16 %v3929
      %v4126 = vunpack.c.l.b16 %v3933
      %v4127 = vunpack.c.l.b16 %v3936
      %v4128 = vunpack.c.l.b16 %v3940
      %v4129 = vunpack.c.l.b16 %v3943
      %v4130 = vunpack.c.l.b16 %v3947
      %v4131 = vunpack.c.l.b16 %v3950
      %v4132 = vunpack.c.l.b16 %v3954
      %v4133 = vunpack.c.l.b16 %v3957
      %v4134 = vpack.c.b16 %v4103, %v4102
      %v4135 = vpack.c.b16 %v4105, %v4104
      %v4136 = vpack.c.b16 %v4107, %v4106
      %v4137 = vpack.c.b16 %v4109, %v4108
      %v4138 = vpack.c.b16 %v4111, %v4110
      %v4139 = vpack.c.b16 %v4113, %v4112
      %v4140 = vpack.c.b16 %v4115, %v4114
      %v4141 = vpack.c.b16 %v4117, %v4116
      %v4142 = vpack.c.b16 %v4119, %v4118
      %v4143 = vpack.c.b16 %v4121, %v4120
      %v4144 = vpack.c.b16 %v4123, %v4122
      %v4145 = vpack.c.b16 %v4125, %v4124
      %v4146 = vpack.c.b16 %v4127, %v4126
      %v4147 = vpack.c.b16 %v4129, %v4128
      %v4148 = vpack.c.b16 %v4131, %v4130
      %v4149 = vpack.c.b16 %v4133, %v4132
      %s4166 = scalar_lea.vmem %s1, 384
      %v4167 = vld [vmem:[%s4166] sm:$0xf]
      %v4168 = vld [vmem:[%s4166 + $0x4] sm:$0xf]
      %v4169 = vld [vmem:[%s4166 + $0x8] sm:$0xf]
      %v4170 = vld [vmem:[%s4166 + $0xc] sm:$0xf]
      %v4171 = vld [vmem:[%s4166 + $0x10] sm:$0xf]
      %v4172 = vld [vmem:[%s4166 + $0x14] sm:$0xf]
      %v4173 = vld [vmem:[%s4166 + $0x18] sm:$0xf]
      %v4174 = vld [vmem:[%s4166 + $0x1c] sm:$0xf]
      %v4175 = vld [vmem:[%s4166 + $0x20] sm:$0xf]
      %v4176 = vld [vmem:[%s4166 + $0x24] sm:$0xf]
      %v4177 = vld [vmem:[%s4166 + $0x28] sm:$0xf]
      %v4178 = vld [vmem:[%s4166 + $0x2c] sm:$0xf]
      %v4179 = vld [vmem:[%s4166 + $0x30] sm:$0xf]
      %v4180 = vld [vmem:[%s4166 + $0x34] sm:$0xf]
      %v4181 = vld [vmem:[%s4166 + $0x38] sm:$0xf]
      %v4182 = vld [vmem:[%s4166 + $0x3c] sm:$0xf]
      %v4183 = vld [vmem:[%s4166 + $0x40] sm:$0xf]
      %v4184 = vld [vmem:[%s4166 + $0x44] sm:$0xf]
      %v4185 = vld [vmem:[%s4166 + $0x48] sm:$0xf]
      %v4186 = vld [vmem:[%s4166 + $0x4c] sm:$0xf]
      %v4187 = vld [vmem:[%s4166 + $0x50] sm:$0xf]
      %v4188 = vld [vmem:[%s4166 + $0x54] sm:$0xf]
      %v4189 = vld [vmem:[%s4166 + $0x58] sm:$0xf]
      %v4190 = vld [vmem:[%s4166 + $0x5c] sm:$0xf]
      %v4191 = vld [vmem:[%s4166 + $0x60] sm:$0xf]
      %v4192 = vld [vmem:[%s4166 + $0x64] sm:$0xf]
      %v4193 = vld [vmem:[%s4166 + $0x68] sm:$0xf]
      %v4194 = vld [vmem:[%s4166 + $0x6c] sm:$0xf]
      %v4195 = vld [vmem:[%s4166 + $0x70] sm:$0xf]
      %v4196 = vld [vmem:[%s4166 + $0x74] sm:$0xf]
      %v4197 = vld [vmem:[%s4166 + $0x78] sm:$0xf]
      %v4198 = vld [vmem:[%s4166 + $0x7c] sm:$0xf]
      %v4199 = vld [vmem:[%s4166 + $0x80] sm:$0xf]
      %v4200 = vld [vmem:[%s4166 + $0x84] sm:$0xf]
      %v4201 = vld [vmem:[%s4166 + $0x88] sm:$0xf]
      %v4202 = vld [vmem:[%s4166 + $0x8c] sm:$0xf]
      %v4203 = vld [vmem:[%s4166 + $0x90] sm:$0xf]
      %v4204 = vld [vmem:[%s4166 + $0x94] sm:$0xf]
      %v4205 = vld [vmem:[%s4166 + $0x98] sm:$0xf]
      %v4206 = vld [vmem:[%s4166 + $0x9c] sm:$0xf]
      %v4207 = vld [vmem:[%s4166 + $0xa0] sm:$0xf]
      %v4208 = vld [vmem:[%s4166 + $0xa4] sm:$0xf]
      %v4209 = vld [vmem:[%s4166 + $0xa8] sm:$0xf]
      %v4210 = vld [vmem:[%s4166 + $0xac] sm:$0xf]
      %v4211 = vld [vmem:[%s4166 + $0xb0] sm:$0xf]
      %v4212 = vld [vmem:[%s4166 + $0xb4] sm:$0xf]
      %v4213 = vld [vmem:[%s4166 + $0xb8] sm:$0xf]
      %v4214 = vld [vmem:[%s4166 + $0xbc] sm:$0xf]
      %v4263 = vunpack.c.l.b16 %v4167
      %v4264 = vunpack.c.l.b16 %v4168
      %v4265 = vunpack.c.l.b16 %v4169
      %v4266 = vunpack.c.l.b16 %v4170
      %v4267 = vunpack.c.l.b16 %v4171
      %v4268 = vunpack.c.l.b16 %v4172
      %v4269 = vunpack.c.l.b16 %v4173
      %v4270 = vunpack.c.l.b16 %v4174
      %v4271 = vunpack.c.l.b16 %v4175
      %v4272 = vunpack.c.l.b16 %v4176
      %v4273 = vunpack.c.l.b16 %v4177
      %v4274 = vunpack.c.l.b16 %v4178
      %v4275 = vunpack.c.l.b16 %v4179
      %v4276 = vunpack.c.l.b16 %v4180
      %v4277 = vunpack.c.l.b16 %v4181
      %v4278 = vunpack.c.l.b16 %v4182
      %v4279 = vunpack.c.l.b16 %v4183
      %v4280 = vunpack.c.l.b16 %v4184
      %v4281 = vunpack.c.l.b16 %v4185
      %v4282 = vunpack.c.l.b16 %v4186
      %v4283 = vunpack.c.l.b16 %v4187
      %v4284 = vunpack.c.l.b16 %v4188
      %v4285 = vunpack.c.l.b16 %v4189
      %v4286 = vunpack.c.l.b16 %v4190
      %v4287 = vunpack.c.l.b16 %v4191
      %v4288 = vunpack.c.l.b16 %v4192
      %v4289 = vunpack.c.l.b16 %v4193
      %v4290 = vunpack.c.l.b16 %v4194
      %v4291 = vunpack.c.l.b16 %v4195
      %v4292 = vunpack.c.l.b16 %v4196
      %v4293 = vunpack.c.l.b16 %v4197
      %v4294 = vunpack.c.l.b16 %v4198
      %v4295 = vunpack.c.l.b16 %v4199
      %v4296 = vunpack.c.l.b16 %v4200
      %v4297 = vunpack.c.l.b16 %v4201
      %v4298 = vunpack.c.l.b16 %v4202
      %v4299 = vunpack.c.l.b16 %v4203
      %v4300 = vunpack.c.l.b16 %v4204
      %v4301 = vunpack.c.l.b16 %v4205
      %v4302 = vunpack.c.l.b16 %v4206
      %v4303 = vunpack.c.l.b16 %v4207
      %v4304 = vunpack.c.l.b16 %v4208
      %v4305 = vunpack.c.l.b16 %v4209
      %v4306 = vunpack.c.l.b16 %v4210
      %v4307 = vunpack.c.l.b16 %v4211
      %v4308 = vunpack.c.l.b16 %v4212
      %v4309 = vunpack.c.l.b16 %v4213
      %v4310 = vunpack.c.l.b16 %v4214
      %v4311 = vpack.c.b16 %v4264, %v4263
      %v4312 = vpack.c.b16 %v4266, %v4265
      %v4313 = vpack.c.b16 %v4268, %v4267
      %v4314 = vpack.c.b16 %v4270, %v4269
      %v4315 = vpack.c.b16 %v4272, %v4271
      %v4316 = vpack.c.b16 %v4274, %v4273
      %v4317 = vpack.c.b16 %v4276, %v4275
      %v4318 = vpack.c.b16 %v4278, %v4277
      %v4319 = vpack.c.b16 %v4280, %v4279
      %v4320 = vpack.c.b16 %v4282, %v4281
      %v4321 = vpack.c.b16 %v4284, %v4283
      %v4322 = vpack.c.b16 %v4286, %v4285
      %v4323 = vpack.c.b16 %v4288, %v4287
      %v4324 = vpack.c.b16 %v4290, %v4289
      %v4325 = vpack.c.b16 %v4292, %v4291
      %v4326 = vpack.c.b16 %v4294, %v4293
      %v4327 = vpack.c.b16 %v4296, %v4295
      %v4328 = vpack.c.b16 %v4298, %v4297
      %v4329 = vpack.c.b16 %v4300, %v4299
      %v4330 = vpack.c.b16 %v4302, %v4301
      %v4331 = vpack.c.b16 %v4304, %v4303
      %v4332 = vpack.c.b16 %v4306, %v4305
      %v4333 = vpack.c.b16 %v4308, %v4307
      %v4334 = vpack.c.b16 %v4310, %v4309
      %4359 = vmatpush.bf16.msra.mxu0 %v4318
      %4360 = vmatpush.bf16.msra.mxu0 %v4317
      %4361 = vmatpush.bf16.msra.mxu0 %v4316
      %4362 = vmatpush.bf16.msra.mxu0 %v4315
      %4363 = vmatpush.bf16.msra.mxu0 %v4314
      %4364 = vmatpush.bf16.msra.mxu0 %v4313
      %4365 = vmatpush.bf16.msra.mxu0 %v4312
      %4366 = vmatpush.bf16.msra.mxu0 %v4311
      %4367 = vmatmul.bf16.gmra.mxu0 %v4006
      %v4368 = vpop.f32.mrf.mxu0
      %v4369 = vadd.f32 0.0, %v4368
      %v4370 = vpop.f32.mrf.mxu0
      %v4371 = vadd.f32 0.0, %v4370
      %4372 = vmatmul.bf16.gmra.mxu0 %v4007
      %v4373 = vpop.f32.mrf.mxu0
      %v4374 = vadd.f32 0.0, %v4373
      %v4375 = vpop.f32.mrf.mxu0
      %v4376 = vadd.f32 0.0, %v4375
      %4377 = vmatmul.bf16.gmra.mxu0 %v4008
      %v4378 = vpop.f32.mrf.mxu0
      %v4379 = vadd.f32 0.0, %v4378
      %v4380 = vpop.f32.mrf.mxu0
      %v4381 = vadd.f32 0.0, %v4380
      %4382 = vmatmul.bf16.gmra.mxu0 %v4009
      %v4383 = vpop.f32.mrf.mxu0
      %v4384 = vadd.f32 0.0, %v4383
      %v4385 = vpop.f32.mrf.mxu0
      %v4386 = vadd.f32 0.0, %v4385
      %4387 = vmatmul.bf16.gmra.mxu0 %v4010
      %v4388 = vpop.f32.mrf.mxu0
      %v4389 = vadd.f32 0.0, %v4388
      %v4390 = vpop.f32.mrf.mxu0
      %v4391 = vadd.f32 0.0, %v4390
      %4392 = vmatmul.bf16.gmra.mxu0 %v4011
      %v4393 = vpop.f32.mrf.mxu0
      %v4394 = vadd.f32 0.0, %v4393
      %v4395 = vpop.f32.mrf.mxu0
      %v4396 = vadd.f32 0.0, %v4395
      %4397 = vmatmul.bf16.gmra.mxu0 %v4012
      %v4398 = vpop.f32.mrf.mxu0
      %v4399 = vadd.f32 0.0, %v4398
      %v4400 = vpop.f32.mrf.mxu0
      %v4401 = vadd.f32 0.0, %v4400
      %4402 = vmatmul.bf16.gmra.mxu0 %v4013
      %v4403 = vpop.f32.mrf.mxu0
      %v4404 = vadd.f32 0.0, %v4403
      %v4405 = vpop.f32.mrf.mxu0
      %v4406 = vadd.f32 0.0, %v4405
      %4407 = vmatmul.bf16.gmra.mxu0 %v4014
      %v4408 = vpop.f32.mrf.mxu0
      %v4409 = vadd.f32 0.0, %v4408
      %v4410 = vpop.f32.mrf.mxu0
      %v4411 = vadd.f32 0.0, %v4410
      %4412 = vmatmul.bf16.gmra.mxu0 %v4015
      %v4413 = vpop.f32.mrf.mxu0
      %v4414 = vadd.f32 0.0, %v4413
      %v4415 = vpop.f32.mrf.mxu0
      %v4416 = vadd.f32 0.0, %v4415
      %4417 = vmatmul.bf16.gmra.mxu0 %v4016
      %v4418 = vpop.f32.mrf.mxu0
      %v4419 = vadd.f32 0.0, %v4418
      %v4420 = vpop.f32.mrf.mxu0
      %v4421 = vadd.f32 0.0, %v4420
      %4422 = vmatmul.bf16.gmra.mxu0 %v4017
      %v4423 = vpop.f32.mrf.mxu0
      %v4424 = vadd.f32 0.0, %v4423
      %v4425 = vpop.f32.mrf.mxu0
      %v4426 = vadd.f32 0.0, %v4425
      %4427 = vmatmul.bf16.gmra.mxu0 %v4018
      %v4428 = vpop.f32.mrf.mxu0
      %v4429 = vadd.f32 0.0, %v4428
      %v4430 = vpop.f32.mrf.mxu0
      %v4431 = vadd.f32 0.0, %v4430
      %4432 = vmatmul.bf16.gmra.mxu0 %v4019
      %v4433 = vpop.f32.mrf.mxu0
      %v4434 = vadd.f32 0.0, %v4433
      %v4435 = vpop.f32.mrf.mxu0
      %v4436 = vadd.f32 0.0, %v4435
      %4437 = vmatmul.bf16.gmra.mxu0 %v4020
      %v4438 = vpop.f32.mrf.mxu0
      %v4439 = vadd.f32 0.0, %v4438
      %v4440 = vpop.f32.mrf.mxu0
      %v4441 = vadd.f32 0.0, %v4440
      %4442 = vmatmul.bf16.gmra.mxu0 %v4021
      %v4443 = vpop.f32.mrf.mxu0
      %v4444 = vadd.f32 0.0, %v4443
      %v4445 = vpop.f32.mrf.mxu0
      %v4446 = vadd.f32 0.0, %v4445
      %4447 = vdwg.mxu0
      %4448 = vmatpush.bf16.msra.mxu0 %v4326
      %4449 = vmatpush.bf16.msra.mxu0 %v4325
      %4450 = vmatpush.bf16.msra.mxu0 %v4324
      %4451 = vmatpush.bf16.msra.mxu0 %v4323
      %4452 = vmatpush.bf16.msra.mxu0 %v4322
      %4453 = vmatpush.bf16.msra.mxu0 %v4321
      %4454 = vmatpush.bf16.msra.mxu0 %v4320
      %4455 = vmatpush.bf16.msra.mxu0 %v4319
      %4456 = vmatmul.bf16.gmra.mxu0 %v4070
      %v4457 = vpop.f32.mrf.mxu0
      %v4458 = vadd.f32 %v4369, %v4457
      %v4459 = vpop.f32.mrf.mxu0
      %v4460 = vadd.f32 %v4371, %v4459
      %4461 = vmatmul.bf16.gmra.mxu0 %v4071
      %v4462 = vpop.f32.mrf.mxu0
      %v4463 = vadd.f32 %v4374, %v4462
      %v4464 = vpop.f32.mrf.mxu0
      %v4465 = vadd.f32 %v4376, %v4464
      %4466 = vmatmul.bf16.gmra.mxu0 %v4072
      %v4467 = vpop.f32.mrf.mxu0
      %v4468 = vadd.f32 %v4379, %v4467
      %v4469 = vpop.f32.mrf.mxu0
      %v4470 = vadd.f32 %v4381, %v4469
      %4471 = vmatmul.bf16.gmra.mxu0 %v4073
      %v4472 = vpop.f32.mrf.mxu0
      %v4473 = vadd.f32 %v4384, %v4472
      %v4474 = vpop.f32.mrf.mxu0
      %v4475 = vadd.f32 %v4386, %v4474
      %4476 = vmatmul.bf16.gmra.mxu0 %v4074
      %v4477 = vpop.f32.mrf.mxu0
      %v4478 = vadd.f32 %v4389, %v4477
      %v4479 = vpop.f32.mrf.mxu0
      %v4480 = vadd.f32 %v4391, %v4479
      %4481 = vmatmul.bf16.gmra.mxu0 %v4075
      %v4482 = vpop.f32.mrf.mxu0
      %v4483 = vadd.f32 %v4394, %v4482
      %v4484 = vpop.f32.mrf.mxu0
      %v4485 = vadd.f32 %v4396, %v4484
      %4486 = vmatmul.bf16.gmra.mxu0 %v4076
      %v4487 = vpop.f32.mrf.mxu0
      %v4488 = vadd.f32 %v4399, %v4487
      %v4489 = vpop.f32.mrf.mxu0
      %v4490 = vadd.f32 %v4401, %v4489
      %4491 = vmatmul.bf16.gmra.mxu0 %v4077
      %v4492 = vpop.f32.mrf.mxu0
      %v4493 = vadd.f32 %v4404, %v4492
      %v4494 = vpop.f32.mrf.mxu0
      %v4495 = vadd.f32 %v4406, %v4494
      %4496 = vmatmul.bf16.gmra.mxu0 %v4078
      %v4497 = vpop.f32.mrf.mxu0
      %v4498 = vadd.f32 %v4409, %v4497
      %v4499 = vpop.f32.mrf.mxu0
      %v4500 = vadd.f32 %v4411, %v4499
      %4501 = vmatmul.bf16.gmra.mxu0 %v4079
      %v4502 = vpop.f32.mrf.mxu0
      %v4503 = vadd.f32 %v4414, %v4502
      %v4504 = vpop.f32.mrf.mxu0
      %v4505 = vadd.f32 %v4416, %v4504
      %4506 = vmatmul.bf16.gmra.mxu0 %v4080
      %v4507 = vpop.f32.mrf.mxu0
      %v4508 = vadd.f32 %v4419, %v4507
      %v4509 = vpop.f32.mrf.mxu0
      %v4510 = vadd.f32 %v4421, %v4509
      %4511 = vmatmul.bf16.gmra.mxu0 %v4081
      %v4512 = vpop.f32.mrf.mxu0
      %v4513 = vadd.f32 %v4424, %v4512
      %v4514 = vpop.f32.mrf.mxu0
      %v4515 = vadd.f32 %v4426, %v4514
      %4516 = vmatmul.bf16.gmra.mxu0 %v4082
      %v4517 = vpop.f32.mrf.mxu0
      %v4518 = vadd.f32 %v4429, %v4517
      %v4519 = vpop.f32.mrf.mxu0
      %v4520 = vadd.f32 %v4431, %v4519
      %4521 = vmatmul.bf16.gmra.mxu0 %v4083
      %v4522 = vpop.f32.mrf.mxu0
      %v4523 = vadd.f32 %v4434, %v4522
      %v4524 = vpop.f32.mrf.mxu0
      %v4525 = vadd.f32 %v4436, %v4524
      %4526 = vmatmul.bf16.gmra.mxu0 %v4084
      %v4527 = vpop.f32.mrf.mxu0
      %v4528 = vadd.f32 %v4439, %v4527
      %v4529 = vpop.f32.mrf.mxu0
      %v4530 = vadd.f32 %v4441, %v4529
      %4531 = vmatmul.bf16.gmra.mxu0 %v4085
      %v4532 = vpop.f32.mrf.mxu0
      %v4533 = vadd.f32 %v4444, %v4532
      %v4534 = vpop.f32.mrf.mxu0
      %v4535 = vadd.f32 %v4446, %v4534
      %4536 = vdwg.mxu0
      %4537 = vmatpush.bf16.msra.mxu0 %v4334
      %4538 = vmatpush.bf16.msra.mxu0 %v4333
      %4539 = vmatpush.bf16.msra.mxu0 %v4332
      %4540 = vmatpush.bf16.msra.mxu0 %v4331
      %4541 = vmatpush.bf16.msra.mxu0 %v4330
      %4542 = vmatpush.bf16.msra.mxu0 %v4329
      %4543 = vmatpush.bf16.msra.mxu0 %v4328
      %4544 = vmatpush.bf16.msra.mxu0 %v4327
      %4545 = vmatmul.bf16.gmra.mxu0 %v4134
      %v4546 = vpop.f32.mrf.mxu0
      %v4547 = vadd.f32 %v4458, %v4546
      %v4548 = vpop.f32.mrf.mxu0
      %v4549 = vadd.f32 %v4460, %v4548
      %4550 = vmatmul.bf16.gmra.mxu0 %v4135
      %v4551 = vpop.f32.mrf.mxu0
      %v4552 = vadd.f32 %v4463, %v4551
      %v4553 = vpop.f32.mrf.mxu0
      %v4554 = vadd.f32 %v4465, %v4553
      %4555 = vmatmul.bf16.gmra.mxu0 %v4136
      %v4556 = vpop.f32.mrf.mxu0
      %v4557 = vadd.f32 %v4468, %v4556
      %v4558 = vpop.f32.mrf.mxu0
      %v4559 = vadd.f32 %v4470, %v4558
      %4560 = vmatmul.bf16.gmra.mxu0 %v4137
      %v4561 = vpop.f32.mrf.mxu0
      %v4562 = vadd.f32 %v4473, %v4561
      %v4563 = vpop.f32.mrf.mxu0
      %v4564 = vadd.f32 %v4475, %v4563
      %4565 = vmatmul.bf16.gmra.mxu0 %v4138
      %v4566 = vpop.f32.mrf.mxu0
      %v4567 = vadd.f32 %v4478, %v4566
      %v4568 = vpop.f32.mrf.mxu0
      %v4569 = vadd.f32 %v4480, %v4568
      %4570 = vmatmul.bf16.gmra.mxu0 %v4139
      %v4571 = vpop.f32.mrf.mxu0
      %v4572 = vadd.f32 %v4483, %v4571
      %v4573 = vpop.f32.mrf.mxu0
      %v4574 = vadd.f32 %v4485, %v4573
      %4575 = vmatmul.bf16.gmra.mxu0 %v4140
      %v4576 = vpop.f32.mrf.mxu0
      %v4577 = vadd.f32 %v4488, %v4576
      %v4578 = vpop.f32.mrf.mxu0
      %v4579 = vadd.f32 %v4490, %v4578
      %4580 = vmatmul.bf16.gmra.mxu0 %v4141
      %v4581 = vpop.f32.mrf.mxu0
      %v4582 = vadd.f32 %v4493, %v4581
      %v4583 = vpop.f32.mrf.mxu0
      %v4584 = vadd.f32 %v4495, %v4583
      %4585 = vmatmul.bf16.gmra.mxu0 %v4142
      %v4586 = vpop.f32.mrf.mxu0
      %v4587 = vadd.f32 %v4498, %v4586
      %v4588 = vpop.f32.mrf.mxu0
      %v4589 = vadd.f32 %v4500, %v4588
      %4590 = vmatmul.bf16.gmra.mxu0 %v4143
      %v4591 = vpop.f32.mrf.mxu0
      %v4592 = vadd.f32 %v4503, %v4591
      %v4593 = vpop.f32.mrf.mxu0
      %v4594 = vadd.f32 %v4505, %v4593
      %4595 = vmatmul.bf16.gmra.mxu0 %v4144
      %v4596 = vpop.f32.mrf.mxu0
      %v4597 = vadd.f32 %v4508, %v4596
      %v4598 = vpop.f32.mrf.mxu0
      %v4599 = vadd.f32 %v4510, %v4598
      %4600 = vmatmul.bf16.gmra.mxu0 %v4145
      %v4601 = vpop.f32.mrf.mxu0
      %v4602 = vadd.f32 %v4513, %v4601
      %v4603 = vpop.f32.mrf.mxu0
      %v4604 = vadd.f32 %v4515, %v4603
      %4605 = vmatmul.bf16.gmra.mxu0 %v4146
      %v4606 = vpop.f32.mrf.mxu0
      %v4607 = vadd.f32 %v4518, %v4606
      %v4608 = vpop.f32.mrf.mxu0
      %v4609 = vadd.f32 %v4520, %v4608
      %4610 = vmatmul.bf16.gmra.mxu0 %v4147
      %v4611 = vpop.f32.mrf.mxu0
      %v4612 = vadd.f32 %v4523, %v4611
      %v4613 = vpop.f32.mrf.mxu0
      %v4614 = vadd.f32 %v4525, %v4613
      %4615 = vmatmul.bf16.gmra.mxu0 %v4148
      %v4616 = vpop.f32.mrf.mxu0
      %v4617 = vadd.f32 %v4528, %v4616
      %v4618 = vpop.f32.mrf.mxu0
      %v4619 = vadd.f32 %v4530, %v4618
      %4620 = vmatmul.bf16.gmra.mxu0 %v4149
      %v4621 = vpop.f32.mrf.mxu0
      %v4622 = vadd.f32 %v4533, %v4621
      %v4623 = vpop.f32.mrf.mxu0
      %v4624 = vadd.f32 %v4535, %v4623
      %4625 = vdwg.mxu0
      %v4626 = vadd.f32 %v3270, %v4547
      %v4627 = vadd.f32 %v3272, %v4549
      %v4628 = vadd.f32 %v3275, %v4552
      %v4629 = vadd.f32 %v3277, %v4554
      %v4630 = vadd.f32 %v3280, %v4557
      %v4631 = vadd.f32 %v3282, %v4559
      %v4632 = vadd.f32 %v3285, %v4562
      %v4633 = vadd.f32 %v3287, %v4564
      %v4634 = vadd.f32 %v3290, %v4567
      %v4635 = vadd.f32 %v3292, %v4569
      %v4636 = vadd.f32 %v3295, %v4572
      %v4637 = vadd.f32 %v3297, %v4574
      %v4638 = vadd.f32 %v3300, %v4577
      %v4639 = vadd.f32 %v3302, %v4579
      %v4640 = vadd.f32 %v3305, %v4582
      %v4641 = vadd.f32 %v3307, %v4584
      %v4642 = vadd.f32 %v3310, %v4587
      %v4643 = vadd.f32 %v3312, %v4589
      %v4644 = vadd.f32 %v3315, %v4592
      %v4645 = vadd.f32 %v3317, %v4594
      %v4646 = vadd.f32 %v3320, %v4597
      %v4647 = vadd.f32 %v3322, %v4599
      %v4648 = vadd.f32 %v3325, %v4602
      %v4649 = vadd.f32 %v3327, %v4604
      %v4650 = vadd.f32 %v3330, %v4607
      %v4651 = vadd.f32 %v3332, %v4609
      %v4652 = vadd.f32 %v3335, %v4612
      %v4653 = vadd.f32 %v3337, %v4614
      %v4654 = vadd.f32 %v3340, %v4617
      %v4655 = vadd.f32 %v3342, %v4619
      %v4656 = vadd.f32 %v3345, %v4622
      %v4657 = vadd.f32 %v3347, %v4624
      %v4658 = vadd.f32 %v4626, %v4627
      %v4659 = vadd.f32 %v4658, %v4628
      %v4660 = vadd.f32 %v4659, %v4629
      %v4661 = vadd.f32 %v4660, %v4630
      %v4662 = vadd.f32 %v4661, %v4631
      %v4663 = vadd.f32 %v4662, %v4632
      %v4664 = vadd.f32 %v4663, %v4633
      %v4665 = vadd.f32 %v4664, %v4634
      %v4666 = vadd.f32 %v4665, %v4635
      %v4667 = vadd.f32 %v4666, %v4636
      %v4668 = vadd.f32 %v4667, %v4637
      %v4669 = vadd.f32 %v4668, %v4638
      %v4670 = vadd.f32 %v4669, %v4639
      %v4671 = vadd.f32 %v4670, %v4640
      %v4672 = vadd.f32 %v4671, %v4641
      %v4673 = vadd.f32 %v4672, %v4642
      %v4674 = vadd.f32 %v4673, %v4643
      %v4675 = vadd.f32 %v4674, %v4644
      %v4676 = vadd.f32 %v4675, %v4645
      %v4677 = vadd.f32 %v4676, %v4646
      %v4678 = vadd.f32 %v4677, %v4647
      %v4679 = vadd.f32 %v4678, %v4648
      %v4680 = vadd.f32 %v4679, %v4649
      %v4681 = vadd.f32 %v4680, %v4650
      %v4682 = vadd.f32 %v4681, %v4651
      %v4683 = vadd.f32 %v4682, %v4652
      %v4684 = vadd.f32 %v4683, %v4653
      %v4685 = vadd.f32 %v4684, %v4654
      %v4686 = vadd.f32 %v4685, %v4655
      %v4687 = vadd.f32 %v4686, %v4656
      %v4688 = vadd.f32 %v4687, %v4657
      %v4689 = vrot.slane %v4688, 4
      %v4690 = vadd.f32 %v4688, %v4689
      %v4691 = vrot.slane %v4690, 2
      %v4692 = vadd.f32 %v4690, %v4691
      %v4693 = vrot.slane %v4692, 1
      %v4694 = vadd.f32 %v4692, %v4693
      %v4695 = vmul.f32 %v4626, %v4626
      %v4696 = vmul.f32 %v4627, %v4627
      %v4697 = vmul.f32 %v4628, %v4628
      %v4698 = vmul.f32 %v4629, %v4629
      %v4699 = vmul.f32 %v4630, %v4630
      %v4700 = vmul.f32 %v4631, %v4631
      %v4701 = vmul.f32 %v4632, %v4632
      %v4702 = vmul.f32 %v4633, %v4633
      %v4703 = vmul.f32 %v4634, %v4634
      %v4704 = vmul.f32 %v4635, %v4635
      %v4705 = vmul.f32 %v4636, %v4636
      %v4706 = vmul.f32 %v4637, %v4637
      %v4707 = vmul.f32 %v4638, %v4638
      %v4708 = vmul.f32 %v4639, %v4639
      %v4709 = vmul.f32 %v4640, %v4640
      %v4710 = vmul.f32 %v4641, %v4641
      %v4711 = vmul.f32 %v4642, %v4642
      %v4712 = vmul.f32 %v4643, %v4643
      %v4713 = vmul.f32 %v4644, %v4644
      %v4714 = vmul.f32 %v4645, %v4645
      %v4715 = vmul.f32 %v4646, %v4646
      %v4716 = vmul.f32 %v4647, %v4647
      %v4717 = vmul.f32 %v4648, %v4648
      %v4718 = vmul.f32 %v4649, %v4649
      %v4719 = vmul.f32 %v4650, %v4650
      %v4720 = vmul.f32 %v4651, %v4651
      %v4721 = vmul.f32 %v4652, %v4652
      %v4722 = vmul.f32 %v4653, %v4653
      %v4723 = vmul.f32 %v4654, %v4654
      %v4724 = vmul.f32 %v4655, %v4655
      %v4725 = vmul.f32 %v4656, %v4656
      %v4726 = vmul.f32 %v4657, %v4657
      %v4727 = vadd.f32 %v4695, %v4696
      %v4728 = vadd.f32 %v4727, %v4697
      %v4729 = vadd.f32 %v4728, %v4698
      %v4730 = vadd.f32 %v4729, %v4699
      %v4731 = vadd.f32 %v4730, %v4700
      %v4732 = vadd.f32 %v4731, %v4701
      %v4733 = vadd.f32 %v4732, %v4702
      %v4734 = vadd.f32 %v4733, %v4703
      %v4735 = vadd.f32 %v4734, %v4704
      %v4736 = vadd.f32 %v4735, %v4705
      %v4737 = vadd.f32 %v4736, %v4706
      %v4738 = vadd.f32 %v4737, %v4707
      %v4739 = vadd.f32 %v4738, %v4708
      %v4740 = vadd.f32 %v4739, %v4709
      %v4741 = vadd.f32 %v4740, %v4710
      %v4742 = vadd.f32 %v4741, %v4711
      %v4743 = vadd.f32 %v4742, %v4712
      %v4744 = vadd.f32 %v4743, %v4713
      %v4745 = vadd.f32 %v4744, %v4714
      %v4746 = vadd.f32 %v4745, %v4715
      %v4747 = vadd.f32 %v4746, %v4716
      %v4748 = vadd.f32 %v4747, %v4717
      %v4749 = vadd.f32 %v4748, %v4718
      %v4750 = vadd.f32 %v4749, %v4719
      %v4751 = vadd.f32 %v4750, %v4720
      %v4752 = vadd.f32 %v4751, %v4721
      %v4753 = vadd.f32 %v4752, %v4722
      %v4754 = vadd.f32 %v4753, %v4723
      %v4755 = vadd.f32 %v4754, %v4724
      %v4756 = vadd.f32 %v4755, %v4725
      %v4757 = vadd.f32 %v4756, %v4726
      %v4758 = vrot.slane %v4757, 4
      %v4759 = vadd.f32 %v4757, %v4758
      %v4760 = vrot.slane %v4759, 2
      %v4761 = vadd.f32 %v4759, %v4760
      %v4762 = vrot.slane %v4761, 1
      %v4763 = vadd.f32 %v4761, %v4762
      %vm4764 = vcmask 1040384
      %v4765 = vsel %vm4764, %v4694, %v4763
      %4766 = vst [vmem:[%s181] sm:$0x3] %v4765
      %4767 = vst [vmem:[%s177] sm:$0xff] %v4626
      %4768 = vst [vmem:[%s177 + $0x8] sm:$0xff] %v4627
      %4769 = vst [vmem:[%s177 + $0x10] sm:$0xff] %v4628
      %4770 = vst [vmem:[%s177 + $0x18] sm:$0xff] %v4629
      %4771 = vst [vmem:[%s177 + $0x20] sm:$0xff] %v4630
      %4772 = vst [vmem:[%s177 + $0x28] sm:$0xff] %v4631
      %4773 = vst [vmem:[%s177 + $0x30] sm:$0xff] %v4632
      %4774 = vst [vmem:[%s177 + $0x38] sm:$0xff] %v4633
      %4775 = vst [vmem:[%s177 + $0x40] sm:$0xff] %v4634
      %4776 = vst [vmem:[%s177 + $0x48] sm:$0xff] %v4635
      %4777 = vst [vmem:[%s177 + $0x50] sm:$0xff] %v4636
      %4778 = vst [vmem:[%s177 + $0x58] sm:$0xff] %v4637
      %4779 = vst [vmem:[%s177 + $0x60] sm:$0xff] %v4638
      %4780 = vst [vmem:[%s177 + $0x68] sm:$0xff] %v4639
      %4781 = vst [vmem:[%s177 + $0x70] sm:$0xff] %v4640
      %4782 = vst [vmem:[%s177 + $0x78] sm:$0xff] %v4641
      %4783 = vst [vmem:[%s177 + $0x80] sm:$0xff] %v4642
      %4784 = vst [vmem:[%s177 + $0x88] sm:$0xff] %v4643
      %4785 = vst [vmem:[%s177 + $0x90] sm:$0xff] %v4644
      %4786 = vst [vmem:[%s177 + $0x98] sm:$0xff] %v4645
      %4787 = vst [vmem:[%s177 + $0xa0] sm:$0xff] %v4646
      %4788 = vst [vmem:[%s177 + $0xa8] sm:$0xff] %v4647
      %4789 = vst [vmem:[%s177 + $0xb0] sm:$0xff] %v4648
      %4790 = vst [vmem:[%s177 + $0xb8] sm:$0xff] %v4649
      %4791 = vst [vmem:[%s177 + $0xc0] sm:$0xff] %v4650
      %4792 = vst [vmem:[%s177 + $0xc8] sm:$0xff] %v4651
      %4793 = vst [vmem:[%s177 + $0xd0] sm:$0xff] %v4652
      %4794 = vst [vmem:[%s177 + $0xd8] sm:$0xff] %v4653
      %4795 = vst [vmem:[%s177 + $0xe0] sm:$0xff] %v4654
      %4796 = vst [vmem:[%s177 + $0xe8] sm:$0xff] %v4655
      %4797 = vst [vmem:[%s177 + $0xf0] sm:$0xff] %v4656
      %4798 = vst [vmem:[%s177 + $0xf8] sm:$0xff] %v4657
      %p4799 = scmp.lt.s32.totalorder %s15, 1
      %s4800 = scalar_select %p4799, %s15, 1
      %s4801 = smul.addr %s4800, 32
      %s4802 = smul.addr %s4801, 8
      %s4803 = scalar_lea.vmem %s2, %s4802
      %p4804 = scmp.lt.s32.totalorder %s15, 1
      %s4805 = scalar_select %p4804, %s15, 1
      %s4806 = smul.addr %s4805, 2
      %s4807 = scalar_lea.vmem %s3, %s4806
      // Predicated region
      $region29: #{basic_block_forward.3} parent=27 // pred_check
        %p4808 = pneg %p80
      $region30: #{basic_block_forward.3} parent=27 // pred_check_branch
        %4810 = sbr.rel (%p4808) target = $region32
      $region31: #{basic_block_forward.3} parent=27 // pred_region
        _
      $region32: #{basic_block_forward.3} parent=27 // pred_fallthru
        _
      // Predicated region
      $region33: #{basic_block_forward.3} parent=27 // pred_check
        %p4811 = pneg %p106
      $region34: #{basic_block_forward.3} parent=27 // pred_check_branch
        %4813 = sbr.rel (%p4811) target = $region36
      $region35: #{basic_block_forward.3} parent=27 // pred_region
        _
      $region36: #{basic_block_forward.3} parent=27 // pred_fallthru
        _
    $region28: #{basic_block_forward.3} parent=5 // pred_fallthru
      _
    %p4814 = scmp.le.s32.totalorder 2, %s10
    // Predicated region
    $region37: #{basic_block_forward.3} parent=5 // pred_check
      %p4815 = pneg %p4814
    $region38: #{basic_block_forward.3} parent=5 // pred_check_branch
      %4817 = sbr.rel (%p4815) target = $region40
    $region39: #{basic_block_forward.3} parent=5 // pred_region
      %s4818 = ssub.s32 %s10, 2
      // Predicated region
      $region41: #{basic_block_forward.3} parent=39 // pred_check
        %p4819 = pneg %p86
      $region42: #{basic_block_forward.3} parent=39 // pred_check_branch
        %4821 = sbr.rel (%p4819) target = $region44
      $region43: #{basic_block_forward.3} parent=39 // pred_region
        %p4822 = scmp.lt.s32.totalorder %s16, 1
        %s4823 = scalar_select %p4822, %s16, 1
        %s4824 = smul.addr %s4823, 32
        %s4825 = smul.addr %s4824, 8
        %s4826 = scalar_lea.vmem %s2, %s4825
      $region44: #{basic_block_forward.3} parent=39 // pred_fallthru
        _
      // Predicated region
      $region45: #{basic_block_forward.3} parent=39 // pred_check
        %p4827 = pneg %p112
      $region46: #{basic_block_forward.3} parent=39 // pred_check_branch
        %4829 = sbr.rel (%p4827) target = $region48
      $region47: #{basic_block_forward.3} parent=39 // pred_region
        %p4830 = scmp.lt.s32.totalorder %s16, 1
        %s4831 = scalar_select %p4830, %s16, 1
        %s4832 = smul.addr %s4831, 2
        %s4833 = scalar_lea.vmem %s3, %s4832
      $region48: #{basic_block_forward.3} parent=39 // pred_fallthru
        _
    $region40: #{basic_block_forward.3} parent=5 // pred_fallthru
      _
  $region6: #{basic_block_forward.3} parent=0 // loop_footer
    %s14 = sadd.s32 1, %s10
  $region7: #{basic_block_forward.3} parent=0 // loop_footer_branch
    %9 = sbr.rel target = $region3
  $region8: #{basic_block_forward.3} parent=0 // loop_exit
    _

// kernel: basic_block_forward.4
$region0: #{basic_block_forward.4}
  #allocation0 [shape = 'u32[]', space=smem, size = 0x4, offset = 0x4, fixed_abs, tag = 'smem constant byte address 0x4 - core index']
  #allocation1 [shape = 'u32[72,128]{1,0:T(1,128)}', space=vmem, size = 0x9000, scoped, tag = 'internal scratch']
  #allocation2 [shape = 'bf16[18,18,128]{2,1,0:T(8,128)(2,1)}', space=vmem, size = 0x1b000, scoped, tag = 'scratch operand']
  %s0 = inlined_call_operand.vmem [shape: f32[2,16,16,128], index: 0, kind: input, shape index: {}]
  %s1 = inlined_call_operand.vmem [shape: f32[1,128], index: 1, kind: input, shape index: {}]
  %s2 = inlined_call_operand.vmem [shape: f32[1,128], index: 2, kind: input, shape index: {}]
  %s3 = inlined_call_operand.vmem [shape: bf16[3,384,128], index: 3, kind: input, shape index: {}]
  %s4 = inlined_call_operand.vmem [shape: f32[2,16,16,128], index: 4, kind: output, shape index: {0}]
  %s5 = inlined_call_operand.vmem [shape: f32[2,2,128], index: 5, kind: output, shape index: {1}]
  %6 = xla_tuple %s4, %s5
  %s7 = sld [smem:[#allocation0]]
  $region57: #{basic_block_forward.4} parent=0
    _
  %s9 = ssub.s32 1, %s7
  %s10 = scalar_select 0, %s9, %s7
  loop: start=0, step=1, limit=4
  $region2: #{basic_block_forward.4} parent=0 // loop_pre_header
    _
  $region3: #{basic_block_forward.4} parent=0 // loop_header
    %s12 = sphi 0, %s16
    %p13 = scmp.ge.s32.totalorder %s12, 4
    %s22 = sphi 0, %s24
    %s25 = sphi 0, %s22
    %s26 = sphi 0, %s25
    %s42 = sphi 0, %s26
    %s46 = sphi 0, %s46
    %s48 = sphi 0, %s46
    %s49 = sphi 0, %s48
    %s63 = sphi 0, %s49
    %s67 = sphi 0, %s67
    %s69 = sphi 0, %s67
    %s70 = sphi 0, %s69
    %s84 = sphi 0, %s70
    %s88 = sphi 0, %s88
    %s90 = sphi 0, %s88
    %s91 = sphi 0, %s90
    %s105 = sphi 0, %s91
    %s111 = sphi 0, %s113
    %s114 = sphi 0, %s111
    %s115 = sphi 0, %s114
    %s131 = sphi 0, %s115
    %s137 = sphi 0, %s139
    %s140 = sphi 0, %s137
    %s141 = sphi 0, %s140
    %s157 = sphi 0, %s141
  $region4: #{basic_block_forward.4} parent=0 // loop_header_branch
    %15 = sbr.rel (%p13) target = $region8
  $region5: #{basic_block_forward.4} parent=0 // loop_body
    %s17 = ssub.s32 %s12, 1
    %s18 = ssub.s32 %s12, 2
    %s19 = sadd.s32 %s12, 1
    %s20 = ssub.s32 %s12, %s19
    %p21 = scmp.eq.s32.totalorder %s20, 0
    %s23 = sadd.s32 %s22, 1
    %s24 = scalar_select %p21, %s22, %s23
    %p27 = pneg %p21
    %p28 = scmp.eq.s32.totalorder %s12, 1
    %p29 = por %p27, %p28
    %p30 = scmp.ne.s32.totalorder %s22, %s25
    %p31 = scmp.eq.s32.totalorder %s12, 0
    %p32 = por %p30, %p31
    %p33 = scmp.ne.s32.totalorder %s22, %s25
    %p34 = scmp.eq.s32.totalorder %s17, 1
    %p35 = por %p33, %p34
    %p36 = scmp.ne.s32.totalorder %s25, %s26
    %p37 = scmp.eq.s32.totalorder %s17, 0
    %p38 = por %p36, %p37
    %p39 = scmp.ne.s32.totalorder %s25, %s26
    %p40 = scmp.eq.s32.totalorder %s18, 1
    %p41 = por %p39, %p40
    %p43 = scmp.ne.s32.totalorder %s26, %s42
    %p44 = scmp.eq.s32.totalorder %s18, 0
    %p45 = por %p43, %p44
    %s47 = sadd.s32 %s46, 1
    %p50 = scmp.eq.s32.totalorder %s12, 1
    %p51 = scmp.ne.s32.totalorder %s46, %s48
    %p52 = scmp.eq.s32.totalorder %s12, 0
    %p53 = por %p51, %p52
    %p54 = scmp.ne.s32.totalorder %s46, %s48
    %p55 = scmp.eq.s32.totalorder %s17, 1
    %p56 = por %p54, %p55
    %p57 = scmp.ne.s32.totalorder %s48, %s49
    %p58 = scmp.eq.s32.totalorder %s17, 0
    %p59 = por %p57, %p58
    %p60 = scmp.ne.s32.totalorder %s48, %s49
    %p61 = scmp.eq.s32.totalorder %s18, 1
    %p62 = por %p60, %p61
    %p64 = scmp.ne.s32.totalorder %s49, %s63
    %p65 = scmp.eq.s32.totalorder %s18, 0
    %p66 = por %p64, %p65
    %s68 = sadd.s32 %s67, 1
    %p71 = scmp.eq.s32.totalorder %s12, 1
    %p72 = scmp.ne.s32.totalorder %s67, %s69
    %p73 = scmp.eq.s32.totalorder %s12, 0
    %p74 = por %p72, %p73
    %p75 = scmp.ne.s32.totalorder %s67, %s69
    %p76 = scmp.eq.s32.totalorder %s17, 1
    %p77 = por %p75, %p76
    %p78 = scmp.ne.s32.totalorder %s69, %s70
    %p79 = scmp.eq.s32.totalorder %s17, 0
    %p80 = por %p78, %p79
    %p81 = scmp.ne.s32.totalorder %s69, %s70
    %p82 = scmp.eq.s32.totalorder %s18, 1
    %p83 = por %p81, %p82
    %p85 = scmp.ne.s32.totalorder %s70, %s84
    %p86 = scmp.eq.s32.totalorder %s18, 0
    %p87 = por %p85, %p86
    %s89 = sadd.s32 %s88, 1
    %p92 = scmp.eq.s32.totalorder %s12, 1
    %p93 = scmp.ne.s32.totalorder %s88, %s90
    %p94 = scmp.eq.s32.totalorder %s12, 0
    %p95 = por %p93, %p94
    %p96 = scmp.ne.s32.totalorder %s88, %s90
    %p97 = scmp.eq.s32.totalorder %s17, 1
    %p98 = por %p96, %p97
    %p99 = scmp.ne.s32.totalorder %s90, %s91
    %p100 = scmp.eq.s32.totalorder %s17, 0
    %p101 = por %p99, %p100
    %p102 = scmp.ne.s32.totalorder %s90, %s91
    %p103 = scmp.eq.s32.totalorder %s18, 1
    %p104 = por %p102, %p103
    %p106 = scmp.ne.s32.totalorder %s91, %s105
    %p107 = scmp.eq.s32.totalorder %s18, 0
    %p108 = por %p106, %p107
    %s109 = ssub.s32 %s12, %s19
    %p110 = scmp.eq.s32.totalorder %s109, 0
    %s112 = sadd.s32 %s111, 1
    %s113 = scalar_select %p110, %s111, %s112
    %p116 = pneg %p110
    %p117 = scmp.eq.s32.totalorder %s12, 1
    %p118 = por %p116, %p117
    %p119 = scmp.ne.s32.totalorder %s111, %s114
    %p120 = scmp.eq.s32.totalorder %s12, 0
    %p121 = por %p119, %p120
    %p122 = scmp.ne.s32.totalorder %s111, %s114
    %p123 = scmp.eq.s32.totalorder %s17, 1
    %p124 = por %p122, %p123
    %p125 = scmp.ne.s32.totalorder %s114, %s115
    %p126 = scmp.eq.s32.totalorder %s17, 0
    %p127 = por %p125, %p126
    %p128 = scmp.ne.s32.totalorder %s114, %s115
    %p129 = scmp.eq.s32.totalorder %s18, 1
    %p130 = por %p128, %p129
    %p132 = scmp.ne.s32.totalorder %s115, %s131
    %p133 = scmp.eq.s32.totalorder %s18, 0
    %p134 = por %p132, %p133
    %s135 = ssub.s32 %s12, %s19
    %p136 = scmp.eq.s32.totalorder %s135, 0
    %s138 = sadd.s32 %s137, 1
    %s139 = scalar_select %p136, %s137, %s138
    %p142 = pneg %p136
    %p143 = scmp.eq.s32.totalorder %s12, 1
    %p144 = por %p142, %p143
    %p145 = scmp.ne.s32.totalorder %s137, %s140
    %p146 = scmp.eq.s32.totalorder %s12, 0
    %p147 = por %p145, %p146
    %p148 = scmp.ne.s32.totalorder %s137, %s140
    %p149 = scmp.eq.s32.totalorder %s17, 1
    %p150 = por %p148, %p149
    %p151 = scmp.ne.s32.totalorder %s140, %s141
    %p152 = scmp.eq.s32.totalorder %s17, 0
    %p153 = por %p151, %p152
    %p154 = scmp.ne.s32.totalorder %s140, %s141
    %p155 = scmp.eq.s32.totalorder %s18, 1
    %p156 = por %p154, %p155
    %p158 = scmp.ne.s32.totalorder %s141, %s157
    %p159 = scmp.eq.s32.totalorder %s18, 0
    %p160 = por %p158, %p159
    %p161 = scmp.le.s32.totalorder 1, %s12
    %p162 = scmp.lt.s32.totalorder %s12, 3
    %p163 = pnand %p161, %p162
    %p164 = pneg %p163
    // Predicated region
    $region9: #{basic_block_forward.4} parent=5 // pred_check
      _
    $region10: #{basic_block_forward.4} parent=5 // pred_check_branch
      %166 = sbr.rel (%p163) target = $region12
    $region11: #{basic_block_forward.4} parent=5 // pred_region
      %s167 = ssub.s32 %s12, 1
      // Predicated region
      $region13: #{basic_block_forward.4} parent=11 // pred_check
        %p168 = pneg %p59
      $region14: #{basic_block_forward.4} parent=11 // pred_check_branch
        %170 = sbr.rel (%p168) target = $region16
      $region15: #{basic_block_forward.4} parent=11 // pred_region
        _
      $region16: #{basic_block_forward.4} parent=11 // pred_fallthru
        _
      // Predicated region
      $region17: #{basic_block_forward.4} parent=11 // pred_check
        %p171 = pneg %p80
      $region18: #{basic_block_forward.4} parent=11 // pred_check_branch
        %173 = sbr.rel (%p171) target = $region20
      $region19: #{basic_block_forward.4} parent=11 // pred_region
        _
      $region20: #{basic_block_forward.4} parent=11 // pred_fallthru
        _
      // Predicated region
      $region21: #{basic_block_forward.4} parent=11 // pred_check
        %p174 = pneg %p101
      $region22: #{basic_block_forward.4} parent=11 // pred_check_branch
        %176 = sbr.rel (%p174) target = $region24
      $region23: #{basic_block_forward.4} parent=11 // pred_region
        _
      $region24: #{basic_block_forward.4} parent=11 // pred_fallthru
        _
    $region12: #{basic_block_forward.4} parent=5 // pred_fallthru
      _
    %p177 = scmp.lt.s32.totalorder %s12, 2
    // Predicated region
    $region25: #{basic_block_forward.4} parent=5 // pred_check
      %p178 = pneg %p177
    $region26: #{basic_block_forward.4} parent=5 // pred_check_branch
      %180 = sbr.rel (%p178) target = $region28
    $region27: #{basic_block_forward.4} parent=5 // pred_region
      // Predicated region
      $region29: #{basic_block_forward.4} parent=27 // pred_check
        %p181 = pneg %p32
      $region30: #{basic_block_forward.4} parent=27 // pred_check_branch
        %183 = sbr.rel (%p181) target = $region32
      $region31: #{basic_block_forward.4} parent=27 // pred_region
        %p184 = scmp.lt.s32.totalorder %s12, 1
        %s185 = scalar_select %p184, %s12, 1
        %s186 = smul.addr %s185, 32
        %s187 = smul.addr %s186, 8
        %s188 = scalar_lea.vmem %s0, %s187
      $region32: #{basic_block_forward.4} parent=27 // pred_fallthru
        _
    $region28: #{basic_block_forward.4} parent=5 // pred_fallthru
      _
    %p189 = scmp.le.s32.totalorder 1, %s12
    %p190 = scmp.lt.s32.totalorder %s12, 3
    %p191 = pnand %p189, %p190
    %p192 = pneg %p191
    // Predicated region
    $region33: #{basic_block_forward.4} parent=5 // pred_check
      _
    $region34: #{basic_block_forward.4} parent=5 // pred_check_branch
      %194 = sbr.rel (%p191) target = $region36
    $region35: #{basic_block_forward.4} parent=5 // pred_region
      %s195 = ssub.s32 %s12, 1
      %p196 = scmp.lt.s32.totalorder %s17, 1
      %s197 = scalar_select %p196, %s17, 1
      %s198 = smul.addr %s197, 32
      %s199 = smul.addr %s198, 8
      %s200 = scalar_lea.vmem %s0, %s199
      %p201 = pneg %p38
      %p202 = pneg %p35
      %p203 = pneg %p59
      %p204 = pneg %p56
      %p205 = pneg %p80
      %p206 = pneg %p77
      %p207 = pneg %p101
      %p208 = pneg %p98
      %p209 = pneg %p127
      %p210 = pneg %p124
      %p211 = scmp.lt.s32.totalorder %s17, 1
      %s212 = scalar_select %p211, %s17, 1
      %s213 = smul.addr %s212, 32
      %s214 = smul.addr %s213, 8
      %s215 = scalar_lea.vmem %s4, %s214
      %p216 = pneg %p153
      %p217 = pneg %p150
      %p218 = scmp.lt.s32.totalorder %s17, 1
      %s219 = scalar_select %p218, %s17, 1
      %s220 = smul.addr %s219, 2
      %s221 = scalar_lea.vmem %s5, %s220
      %p222 = scmp.lt.s32.totalorder %s17, 1
      %s223 = scalar_select %p222, %s17, 1
      %s224 = smul.addr %s223, 32
      %s225 = smul.addr %s224, 8
      %s226 = scalar_lea.vmem %s0, %s225
      %p227 = scmp.lt.s32.totalorder %s17, 1
      %s228 = scalar_select %p227, %s17, 1
      %s229 = smul.addr %s228, 32
      %s230 = smul.addr %s229, 8
      %s231 = scalar_lea.vmem %s4, %s230
      %p232 = scmp.lt.s32.totalorder %s17, 1
      %s233 = scalar_select %p232, %s17, 1
      %s234 = smul.addr %s233, 2
      %s235 = scalar_lea.vmem %s5, %s234
      %v237 = vld [vmem:[%s226] sm:$0xff]
      %v238 = vld [vmem:[%s226 + $0x8] sm:$0xff]
      %v239 = vld [vmem:[%s226 + $0x10] sm:$0xff]
      %v240 = vld [vmem:[%s226 + $0x18] sm:$0xff]
      %v241 = vld [vmem:[%s226 + $0x20] sm:$0xff]
      %v242 = vld [vmem:[%s226 + $0x28] sm:$0xff]
      %v243 = vld [vmem:[%s226 + $0x30] sm:$0xff]
      %v244 = vld [vmem:[%s226 + $0x38] sm:$0xff]
      %v245 = vld [vmem:[%s226 + $0x40] sm:$0xff]
      %v246 = vld [vmem:[%s226 + $0x48] sm:$0xff]
      %v247 = vld [vmem:[%s226 + $0x50] sm:$0xff]
      %v248 = vld [vmem:[%s226 + $0x58] sm:$0xff]
      %v249 = vld [vmem:[%s226 + $0x60] sm:$0xff]
      %v250 = vld [vmem:[%s226 + $0x68] sm:$0xff]
      %v251 = vld [vmem:[%s226 + $0x70] sm:$0xff]
      %v252 = vld [vmem:[%s226 + $0x78] sm:$0xff]
      %v253 = vld [vmem:[%s226 + $0x80] sm:$0xff]
      %v254 = vld [vmem:[%s226 + $0x88] sm:$0xff]
      %v255 = vld [vmem:[%s226 + $0x90] sm:$0xff]
      %v256 = vld [vmem:[%s226 + $0x98] sm:$0xff]
      %v257 = vld [vmem:[%s226 + $0xa0] sm:$0xff]
      %v258 = vld [vmem:[%s226 + $0xa8] sm:$0xff]
      %v259 = vld [vmem:[%s226 + $0xb0] sm:$0xff]
      %v260 = vld [vmem:[%s226 + $0xb8] sm:$0xff]
      %v261 = vld [vmem:[%s226 + $0xc0] sm:$0xff]
      %v262 = vld [vmem:[%s226 + $0xc8] sm:$0xff]
      %v263 = vld [vmem:[%s226 + $0xd0] sm:$0xff]
      %v264 = vld [vmem:[%s226 + $0xd8] sm:$0xff]
      %v265 = vld [vmem:[%s226 + $0xe0] sm:$0xff]
      %v266 = vld [vmem:[%s226 + $0xe8] sm:$0xff]
      %v267 = vld [vmem:[%s226 + $0xf0] sm:$0xff]
      %v268 = vld [vmem:[%s226 + $0xf8] sm:$0xff]
      %v269 = vld [vmem:[%s1] sm:$0x1]
      %v271 = vperm.slane %v269, 0
      %v273 = vmul.f32 %v237, %v271
      %v274 = vmul.f32 %v238, %v271
      %v275 = vmul.f32 %v239, %v271
      %v276 = vmul.f32 %v240, %v271
      %v277 = vmul.f32 %v241, %v271
      %v278 = vmul.f32 %v242, %v271
      %v279 = vmul.f32 %v243, %v271
      %v280 = vmul.f32 %v244, %v271
      %v281 = vmul.f32 %v245, %v271
      %v282 = vmul.f32 %v246, %v271
      %v283 = vmul.f32 %v247, %v271
      %v284 = vmul.f32 %v248, %v271
      %v285 = vmul.f32 %v249, %v271
      %v286 = vmul.f32 %v250, %v271
      %v287 = vmul.f32 %v251, %v271
      %v288 = vmul.f32 %v252, %v271
      %v289 = vmul.f32 %v253, %v271
      %v290 = vmul.f32 %v254, %v271
      %v291 = vmul.f32 %v255, %v271
      %v292 = vmul.f32 %v256, %v271
      %v293 = vmul.f32 %v257, %v271
      %v294 = vmul.f32 %v258, %v271
      %v295 = vmul.f32 %v259, %v271
      %v296 = vmul.f32 %v260, %v271
      %v297 = vmul.f32 %v261, %v271
      %v298 = vmul.f32 %v262, %v271
      %v299 = vmul.f32 %v263, %v271
      %v300 = vmul.f32 %v264, %v271
      %v301 = vmul.f32 %v265, %v271
      %v302 = vmul.f32 %v266, %v271
      %v303 = vmul.f32 %v267, %v271
      %v304 = vmul.f32 %v268, %v271
      %v305 = vld [vmem:[%s2] sm:$0x1]
      %v307 = vperm.slane %v305, 0
      %v309 = vadd.f32 %v273, %v307
      %v310 = vadd.f32 %v274, %v307
      %v311 = vadd.f32 %v275, %v307
      %v312 = vadd.f32 %v276, %v307
      %v313 = vadd.f32 %v277, %v307
      %v314 = vadd.f32 %v278, %v307
      %v315 = vadd.f32 %v279, %v307
      %v316 = vadd.f32 %v280, %v307
      %v317 = vadd.f32 %v281, %v307
      %v318 = vadd.f32 %v282, %v307
      %v319 = vadd.f32 %v283, %v307
      %v320 = vadd.f32 %v284, %v307
      %v321 = vadd.f32 %v285, %v307
      %v322 = vadd.f32 %v286, %v307
      %v323 = vadd.f32 %v287, %v307
      %v324 = vadd.f32 %v288, %v307
      %v325 = vadd.f32 %v289, %v307
      %v326 = vadd.f32 %v290, %v307
      %v327 = vadd.f32 %v291, %v307
      %v328 = vadd.f32 %v292, %v307
      %v329 = vadd.f32 %v293, %v307
      %v330 = vadd.f32 %v294, %v307
      %v331 = vadd.f32 %v295, %v307
      %v332 = vadd.f32 %v296, %v307
      %v333 = vadd.f32 %v297, %v307
      %v334 = vadd.f32 %v298, %v307
      %v335 = vadd.f32 %v299, %v307
      %v336 = vadd.f32 %v300, %v307
      %v337 = vadd.f32 %v301, %v307
      %v338 = vadd.f32 %v302, %v307
      %v339 = vadd.f32 %v303, %v307
      %v340 = vadd.f32 %v304, %v307
      %v341 = vmax.f32 %v309, 0.0
      %v342 = vmax.f32 %v310, 0.0
      %v343 = vmax.f32 %v311, 0.0
      %v344 = vmax.f32 %v312, 0.0
      %v345 = vmax.f32 %v313, 0.0
      %v346 = vmax.f32 %v314, 0.0
      %v347 = vmax.f32 %v315, 0.0
      %v348 = vmax.f32 %v316, 0.0
      %v349 = vmax.f32 %v317, 0.0
      %v350 = vmax.f32 %v318, 0.0
      %v351 = vmax.f32 %v319, 0.0
      %v352 = vmax.f32 %v320, 0.0
      %v353 = vmax.f32 %v321, 0.0
      %v354 = vmax.f32 %v322, 0.0
      %v355 = vmax.f32 %v323, 0.0
      %v356 = vmax.f32 %v324, 0.0
      %v357 = vmax.f32 %v325, 0.0
      %v358 = vmax.f32 %v326, 0.0
      %v359 = vmax.f32 %v327, 0.0
      %v360 = vmax.f32 %v328, 0.0
      %v361 = vmax.f32 %v329, 0.0
      %v362 = vmax.f32 %v330, 0.0
      %v363 = vmax.f32 %v331, 0.0
      %v364 = vmax.f32 %v332, 0.0
      %v365 = vmax.f32 %v333, 0.0
      %v366 = vmax.f32 %v334, 0.0
      %v367 = vmax.f32 %v335, 0.0
      %v368 = vmax.f32 %v336, 0.0
      %v369 = vmax.f32 %v337, 0.0
      %v370 = vmax.f32 %v338, 0.0
      %v371 = vmax.f32 %v339, 0.0
      %v372 = vmax.f32 %v340, 0.0
      %v373 = vpack.c.bf16 %v341, %v341
      %v374 = vpack.c.bf16 %v342, %v342
      %v375 = vpack.c.bf16 %v343, %v343
      %v376 = vpack.c.bf16 %v344, %v344
      %v377 = vpack.c.bf16 %v345, %v345
      %v378 = vpack.c.bf16 %v346, %v346
      %v379 = vpack.c.bf16 %v347, %v347
      %v380 = vpack.c.bf16 %v348, %v348
      %v381 = vpack.c.bf16 %v349, %v349
      %v382 = vpack.c.bf16 %v350, %v350
      %v383 = vpack.c.bf16 %v351, %v351
      %v384 = vpack.c.bf16 %v352, %v352
      %v385 = vpack.c.bf16 %v353, %v353
      %v386 = vpack.c.bf16 %v354, %v354
      %v387 = vpack.c.bf16 %v355, %v355
      %v388 = vpack.c.bf16 %v356, %v356
      %v389 = vpack.c.bf16 %v357, %v357
      %v390 = vpack.c.bf16 %v358, %v358
      %v391 = vpack.c.bf16 %v359, %v359
      %v392 = vpack.c.bf16 %v360, %v360
      %v393 = vpack.c.bf16 %v361, %v361
      %v394 = vpack.c.bf16 %v362, %v362
      %v395 = vpack.c.bf16 %v363, %v363
      %v396 = vpack.c.bf16 %v364, %v364
      %v397 = vpack.c.bf16 %v365, %v365
      %v398 = vpack.c.bf16 %v366, %v366
      %v399 = vpack.c.bf16 %v367, %v367
      %v400 = vpack.c.bf16 %v368, %v368
      %v401 = vpack.c.bf16 %v369, %v369
      %v402 = vpack.c.bf16 %v370, %v370
      %v403 = vpack.c.bf16 %v371, %v371
      %v404 = vpack.c.bf16 %v372, %v372
      %405 = vst [vmem:[#allocation2] sm:$0xf] 0
      %406 = vst [vmem:[#allocation2 + $0x4] sm:$0xf] 0
      %407 = vst [vmem:[#allocation2 + $0x8] sm:$0x1] 0
      %s408 = scalar_lea.vmem [#allocation2], 204
      %409 = vst [vmem:[%s408] sm:$0xf] 0
      %410 = vst [vmem:[%s408 + $0x4] sm:$0xf] 0
      %411 = vst [vmem:[%s408 + $0x8] sm:$0x1] 0
      %s412 = scalar_lea.vmem [#allocation2], 12
      %vm413 = vcmask 1040384
      %vm414 = vsmask.f32 256
      %vm415 = vmand %vm413, %vm414
      %v416 = vld [vmem:[%s412] sm:$0x1]
      %v417 = vsel %vm415, 0, %v416
      %418 = vst [vmem:[%s412] sm:$0x1] %v417
      %v419 = vld [vmem:[%s412 + $0xc] sm:$0x1]
      %v420 = vsel %vm415, 0, %v419
      %421 = vst [vmem:[%s412 + $0xc] sm:$0x1] %v420
      %v422 = vld [vmem:[%s412 + $0x18] sm:$0x1]
      %v423 = vsel %vm415, 0, %v422
      %424 = vst [vmem:[%s412 + $0x18] sm:$0x1] %v423
      %v425 = vld [vmem:[%s412 + $0x24] sm:$0x1]
      %v426 = vsel %vm415, 0, %v425
      %427 = vst [vmem:[%s412 + $0x24] sm:$0x1] %v426
      %v428 = vld [vmem:[%s412 + $0x30] sm:$0x1]
      %v429 = vsel %vm415, 0, %v428
      %430 = vst [vmem:[%s412 + $0x30] sm:$0x1] %v429
      %v431 = vld [vmem:[%s412 + $0x3c] sm:$0x1]
      %v432 = vsel %vm415, 0, %v431
      %433 = vst [vmem:[%s412 + $0x3c] sm:$0x1] %v432
      %v434 = vld [vmem:[%s412 + $0x48] sm:$0x1]
      %v435 = vsel %vm415, 0, %v434
      %436 = vst [vmem:[%s412 + $0x48] sm:$0x1] %v435
      %v437 = vld [vmem:[%s412 + $0x54] sm:$0x1]
      %v438 = vsel %vm415, 0, %v437
      %439 = vst [vmem:[%s412 + $0x54] sm:$0x1] %v438
      %v440 = vld [vmem:[%s412 + $0x60] sm:$0x1]
      %v441 = vsel %vm415, 0, %v440
      %442 = vst [vmem:[%s412 + $0x60] sm:$0x1] %v441
      %v443 = vld [vmem:[%s412 + $0x6c] sm:$0x1]
      %v444 = vsel %vm415, 0, %v443
      %445 = vst [vmem:[%s412 + $0x6c] sm:$0x1] %v444
      %v446 = vld [vmem:[%s412 + $0x78] sm:$0x1]
      %v447 = vsel %vm415, 0, %v446
      %448 = vst [vmem:[%s412 + $0x78] sm:$0x1] %v447
      %v449 = vld [vmem:[%s412 + $0x84] sm:$0x1]
      %v450 = vsel %vm415, 0, %v449
      %451 = vst [vmem:[%s412 + $0x84] sm:$0x1] %v450
      %v452 = vld [vmem:[%s412 + $0x90] sm:$0x1]
      %v453 = vsel %vm415, 0, %v452
      %454 = vst [vmem:[%s412 + $0x90] sm:$0x1] %v453
      %v455 = vld [vmem:[%s412 + $0x9c] sm:$0x1]
      %v456 = vsel %vm415, 0, %v455
      %457 = vst [vmem:[%s412 + $0x9c] sm:$0x1] %v456
      %v458 = vld [vmem:[%s412 + $0xa8] sm:$0x1]
      %v459 = vsel %vm415, 0, %v458
      %460 = vst [vmem:[%s412 + $0xa8] sm:$0x1] %v459
      %v461 = vld [vmem:[%s412 + $0xb4] sm:$0x1]
      %v462 = vsel %vm415, 0, %v461
      %463 = vst [vmem:[%s412 + $0xb4] sm:$0x1] %v462
      %vm464 = vsmask.f32 7938
      %vm465 = vmand %vm413, %vm464
      %v466 = vld [vmem:[%s412 + $0x8] sm:$0x1]
      %v467 = vsel %vm465, 0, %v466
      %468 = vst [vmem:[%s412 + $0x8] sm:$0x1] %v467
      %v469 = vld [vmem:[%s412 + $0x14] sm:$0x1]
      %v470 = vsel %vm465, 0, %v469
      %471 = vst [vmem:[%s412 + $0x14] sm:$0x1] %v470
      %v472 = vld [vmem:[%s412 + $0x20] sm:$0x1]
      %v473 = vsel %vm465, 0, %v472
      %474 = vst [vmem:[%s412 + $0x20] sm:$0x1] %v473
      %v475 = vld [vmem:[%s412 + $0x2c] sm:$0x1]
      %v476 = vsel %vm465, 0, %v475
      %477 = vst [vmem:[%s412 + $0x2c] sm:$0x1] %v476
      %v478 = vld [vmem:[%s412 + $0x38] sm:$0x1]
      %v479 = vsel %vm465, 0, %v478
      %480 = vst [vmem:[%s412 + $0x38] sm:$0x1] %v479
      %v481 = vld [vmem:[%s412 + $0x44] sm:$0x1]
      %v482 = vsel %vm465, 0, %v481
      %483 = vst [vmem:[%s412 + $0x44] sm:$0x1] %v482
      %v484 = vld [vmem:[%s412 + $0x50] sm:$0x1]
      %v485 = vsel %vm465, 0, %v484
      %486 = vst [vmem:[%s412 + $0x50] sm:$0x1] %v485
      %v487 = vld [vmem:[%s412 + $0x5c] sm:$0x1]
      %v488 = vsel %vm465, 0, %v487
      %489 = vst [vmem:[%s412 + $0x5c] sm:$0x1] %v488
      %v490 = vld [vmem:[%s412 + $0x68] sm:$0x1]
      %v491 = vsel %vm465, 0, %v490
      %492 = vst [vmem:[%s412 + $0x68] sm:$0x1] %v491
      %v493 = vld [vmem:[%s412 + $0x74] sm:$0x1]
      %v494 = vsel %vm465, 0, %v493
      %495 = vst [vmem:[%s412 + $0x74] sm:$0x1] %v494
      %v496 = vld [vmem:[%s412 + $0x80] sm:$0x1]
      %v497 = vsel %vm465, 0, %v496
      %498 = vst [vmem:[%s412 + $0x80] sm:$0x1] %v497
      %v499 = vld [vmem:[%s412 + $0x8c] sm:$0x1]
      %v500 = vsel %vm465, 0, %v499
      %501 = vst [vmem:[%s412 + $0x8c] sm:$0x1] %v500
      %v502 = vld [vmem:[%s412 + $0x98] sm:$0x1]
      %v503 = vsel %vm465, 0, %v502
      %504 = vst [vmem:[%s412 + $0x98] sm:$0x1] %v503
      %v505 = vld [vmem:[%s412 + $0xa4] sm:$0x1]
      %v506 = vsel %vm465, 0, %v505
      %507 = vst [vmem:[%s412 + $0xa4] sm:$0x1] %v506
      %v508 = vld [vmem:[%s412 + $0xb0] sm:$0x1]
      %v509 = vsel %vm465, 0, %v508
      %510 = vst [vmem:[%s412 + $0xb0] sm:$0x1] %v509
      %v511 = vld [vmem:[%s412 + $0xbc] sm:$0x1]
      %v512 = vsel %vm465, 0, %v511
      %513 = vst [vmem:[%s412 + $0xbc] sm:$0x1] %v512
      %vm514 = vsmask.f32 4368
      %vm515 = vmor %vm414, %vm514
      %v517 = vshrl.u32 %v373, 16
      %v519 = vrot.slane %v517, 7
      %v520 = vshll.u32 %v373, 16
      %v522 = vor.u32 %v519, %v520
      %v523 = vrot.slane %v519, 4
      %v525 = vshrl.u32 %v374, 16
      %v527 = vrot.slane %v525, 7
      %v528 = vshll.u32 %v374, 16
      %v530 = vor.u32 %v527, %v528
      %v531 = vsel %vm515, %v523, %v530
      %v532 = vrot.slane %v527, 4
      %v534 = vshrl.u32 %v375, 16
      %v536 = vrot.slane %v534, 7
      %v537 = vshll.u32 %v375, 16
      %v539 = vor.u32 %v536, %v537
      %v540 = vrot.slane %v536, 4
      %v542 = vshrl.u32 %v376, 16
      %v544 = vrot.slane %v542, 7
      %v545 = vshll.u32 %v376, 16
      %v547 = vor.u32 %v544, %v545
      %v548 = vsel %vm515, %v540, %v547
      %v549 = vrot.slane %v544, 4
      %v551 = vshrl.u32 %v377, 16
      %v553 = vrot.slane %v551, 7
      %v554 = vshll.u32 %v377, 16
      %v556 = vor.u32 %v553, %v554
      %v557 = vrot.slane %v553, 4
      %v559 = vshrl.u32 %v378, 16
      %v561 = vrot.slane %v559, 7
      %v562 = vshll.u32 %v378, 16
      %v564 = vor.u32 %v561, %v562
      %v565 = vsel %vm515, %v557, %v564
      %v566 = vrot.slane %v561, 4
      %v568 = vshrl.u32 %v379, 16
      %v570 = vrot.slane %v568, 7
      %v571 = vshll.u32 %v379, 16
      %v573 = vor.u32 %v570, %v571
      %v574 = vrot.slane %v570, 4
      %v576 = vshrl.u32 %v380, 16
      %v578 = vrot.slane %v576, 7
      %v579 = vshll.u32 %v380, 16
      %v581 = vor.u32 %v578, %v579
      %v582 = vsel %vm515, %v574, %v581
      %v583 = vrot.slane %v578, 4
      %v585 = vshrl.u32 %v381, 16
      %v587 = vrot.slane %v585, 7
      %v588 = vshll.u32 %v381, 16
      %v590 = vor.u32 %v587, %v588
      %v591 = vrot.slane %v587, 4
      %v593 = vshrl.u32 %v382, 16
      %v595 = vrot.slane %v593, 7
      %v596 = vshll.u32 %v382, 16
      %v598 = vor.u32 %v595, %v596
      %v599 = vsel %vm515, %v591, %v598
      %v600 = vrot.slane %v595, 4
      %v602 = vshrl.u32 %v383, 16
      %v604 = vrot.slane %v602, 7
      %v605 = vshll.u32 %v383, 16
      %v607 = vor.u32 %v604, %v605
      %v608 = vrot.slane %v604, 4
      %v610 = vshrl.u32 %v384, 16
      %v612 = vrot.slane %v610, 7
      %v613 = vshll.u32 %v384, 16
      %v615 = vor.u32 %v612, %v613
      %v616 = vsel %vm515, %v608, %v615
      %v617 = vrot.slane %v612, 4
      %v619 = vshrl.u32 %v385, 16
      %v621 = vrot.slane %v619, 7
      %v622 = vshll.u32 %v385, 16
      %v624 = vor.u32 %v621, %v622
      %v625 = vrot.slane %v621, 4
      %v627 = vshrl.u32 %v386, 16
      %v629 = vrot.slane %v627, 7
      %v630 = vshll.u32 %v386, 16
      %v632 = vor.u32 %v629, %v630
      %v633 = vsel %vm515, %v625, %v632
      %v634 = vrot.slane %v629, 4
      %v636 = vshrl.u32 %v387, 16
      %v638 = vrot.slane %v636, 7
      %v639 = vshll.u32 %v387, 16
      %v641 = vor.u32 %v638, %v639
      %v642 = vrot.slane %v638, 4
      %v644 = vshrl.u32 %v388, 16
      %v646 = vrot.slane %v644, 7
      %v647 = vshll.u32 %v388, 16
      %v649 = vor.u32 %v646, %v647
      %v650 = vsel %vm515, %v642, %v649
      %v651 = vrot.slane %v646, 4
      %v653 = vshrl.u32 %v389, 16
      %v655 = vrot.slane %v653, 7
      %v656 = vshll.u32 %v389, 16
      %v658 = vor.u32 %v655, %v656
      %v659 = vrot.slane %v655, 4
      %v661 = vshrl.u32 %v390, 16
      %v663 = vrot.slane %v661, 7
      %v664 = vshll.u32 %v390, 16
      %v666 = vor.u32 %v663, %v664
      %v667 = vsel %vm515, %v659, %v666
      %v668 = vrot.slane %v663, 4
      %v670 = vshrl.u32 %v391, 16
      %v672 = vrot.slane %v670, 7
      %v673 = vshll.u32 %v391, 16
      %v675 = vor.u32 %v672, %v673
      %v676 = vrot.slane %v672, 4
      %v678 = vshrl.u32 %v392, 16
      %v680 = vrot.slane %v678, 7
      %v681 = vshll.u32 %v392, 16
      %v683 = vor.u32 %v680, %v681
      %v684 = vsel %vm515, %v676, %v683
      %v685 = vrot.slane %v680, 4
      %v687 = vshrl.u32 %v393, 16
      %v689 = vrot.slane %v687, 7
      %v690 = vshll.u32 %v393, 16
      %v692 = vor.u32 %v689, %v690
      %v693 = vrot.slane %v689, 4
      %v695 = vshrl.u32 %v394, 16
      %v697 = vrot.slane %v695, 7
      %v698 = vshll.u32 %v394, 16
      %v700 = vor.u32 %v697, %v698
      %v701 = vsel %vm515, %v693, %v700
      %v702 = vrot.slane %v697, 4
      %v704 = vshrl.u32 %v395, 16
      %v706 = vrot.slane %v704, 7
      %v707 = vshll.u32 %v395, 16
      %v709 = vor.u32 %v706, %v707
      %v710 = vrot.slane %v706, 4
      %v712 = vshrl.u32 %v396, 16
      %v714 = vrot.slane %v712, 7
      %v715 = vshll.u32 %v396, 16
      %v717 = vor.u32 %v714, %v715
      %v718 = vsel %vm515, %v710, %v717
      %v719 = vrot.slane %v714, 4
      %v721 = vshrl.u32 %v397, 16
      %v723 = vrot.slane %v721, 7
      %v724 = vshll.u32 %v397, 16
      %v726 = vor.u32 %v723, %v724
      %v727 = vrot.slane %v723, 4
      %v729 = vshrl.u32 %v398, 16
      %v731 = vrot.slane %v729, 7
      %v732 = vshll.u32 %v398, 16
      %v734 = vor.u32 %v731, %v732
      %v735 = vsel %vm515, %v727, %v734
      %v736 = vrot.slane %v731, 4
      %v738 = vshrl.u32 %v399, 16
      %v740 = vrot.slane %v738, 7
      %v741 = vshll.u32 %v399, 16
      %v743 = vor.u32 %v740, %v741
      %v744 = vrot.slane %v740, 4
      %v746 = vshrl.u32 %v400, 16
      %v748 = vrot.slane %v746, 7
      %v749 = vshll.u32 %v400, 16
      %v751 = vor.u32 %v748, %v749
      %v752 = vsel %vm515, %v744, %v751
      %v753 = vrot.slane %v748, 4
      %v755 = vshrl.u32 %v401, 16
      %v757 = vrot.slane %v755, 7
      %v758 = vshll.u32 %v401, 16
      %v760 = vor.u32 %v757, %v758
      %v761 = vrot.slane %v757, 4
      %v763 = vshrl.u32 %v402, 16
      %v765 = vrot.slane %v763, 7
      %v766 = vshll.u32 %v402, 16
      %v768 = vor.u32 %v765, %v766
      %v769 = vsel %vm515, %v761, %v768
      %v770 = vrot.slane %v765, 4
      %v772 = vshrl.u32 %v403, 16
      %v774 = vrot.slane %v772, 7
      %v775 = vshll.u32 %v403, 16
      %v777 = vor.u32 %v774, %v775
      %v778 = vrot.slane %v774, 4
      %v780 = vshrl.u32 %v404, 16
      %v782 = vrot.slane %v780, 7
      %v783 = vshll.u32 %v404, 16
      %v785 = vor.u32 %v782, %v783
      %v786 = vsel %vm515, %v778, %v785
      %v787 = vrot.slane %v782, 4
      %vm836 = vcmask 1043456
      %vm837 = vmand %vm836, %vm464
      %v838 = vld [vmem:[%s412] sm:$0xf]
      %v839 = vsel %vm837, %v522, %v838
      %840 = vst [vmem:[%s412] sm:$0xf] %v839
      %841 = vst [vmem:[%s412 + $0x4] sm:$0xf] %v531
      %v842 = vld [vmem:[%s412 + $0x8] sm:$0x1]
      %v843 = vsel %vm415, %v532, %v842
      %844 = vst [vmem:[%s412 + $0x8] sm:$0x1] %v843
      %v845 = vld [vmem:[%s412 + $0xc] sm:$0xf]
      %v846 = vsel %vm837, %v539, %v845
      %847 = vst [vmem:[%s412 + $0xc] sm:$0xf] %v846
      %848 = vst [vmem:[%s412 + $0x10] sm:$0xf] %v548
      %v849 = vld [vmem:[%s412 + $0x14] sm:$0x1]
      %v850 = vsel %vm415, %v549, %v849
      %851 = vst [vmem:[%s412 + $0x14] sm:$0x1] %v850
      %v852 = vld [vmem:[%s412 + $0x18] sm:$0xf]
      %v853 = vsel %vm837, %v556, %v852
      %854 = vst [vmem:[%s412 + $0x18] sm:$0xf] %v853
      %855 = vst [vmem:[%s412 + $0x1c] sm:$0xf] %v565
      %v856 = vld [vmem:[%s412 + $0x20] sm:$0x1]
      %v857 = vsel %vm415, %v566, %v856
      %858 = vst [vmem:[%s412 + $0x20] sm:$0x1] %v857
      %v859 = vld [vmem:[%s412 + $0x24] sm:$0xf]
      %v860 = vsel %vm837, %v573, %v859
      %861 = vst [vmem:[%s412 + $0x24] sm:$0xf] %v860
      %862 = vst [vmem:[%s412 + $0x28] sm:$0xf] %v582
      %v863 = vld [vmem:[%s412 + $0x2c] sm:$0x1]
      %v864 = vsel %vm415, %v583, %v863
      %865 = vst [vmem:[%s412 + $0x2c] sm:$0x1] %v864
      %v866 = vld [vmem:[%s412 + $0x30] sm:$0xf]
      %v867 = vsel %vm837, %v590, %v866
      %868 = vst [vmem:[%s412 + $0x30] sm:$0xf] %v867
      %869 = vst [vmem:[%s412 + $0x34] sm:$0xf] %v599
      %v870 = vld [vmem:[%s412 + $0x38] sm:$0x1]
      %v871 = vsel %vm415, %v600, %v870
      %872 = vst [vmem:[%s412 + $0x38] sm:$0x1] %v871
      %v873 = vld [vmem:[%s412 + $0x3c] sm:$0xf]
      %v874 = vsel %vm837, %v607, %v873
      %875 = vst [vmem:[%s412 + $0x3c] sm:$0xf] %v874
      %876 = vst [vmem:[%s412 + $0x40] sm:$0xf] %v616
      %v877 = vld [vmem:[%s412 + $0x44] sm:$0x1]
      %v878 = vsel %vm415, %v617, %v877
      %879 = vst [vmem:[%s412 + $0x44] sm:$0x1] %v878
      %v880 = vld [vmem:[%s412 + $0x48] sm:$0xf]
      %v881 = vsel %vm837, %v624, %v880
      %882 = vst [vmem:[%s412 + $0x48] sm:$0xf] %v881
      %883 = vst [vmem:[%s412 + $0x4c] sm:$0xf] %v633
      %v884 = vld [vmem:[%s412 + $0x50] sm:$0x1]
      %v885 = vsel %vm415, %v634, %v884
      %886 = vst [vmem:[%s412 + $0x50] sm:$0x1] %v885
      %v887 = vld [vmem:[%s412 + $0x54] sm:$0xf]
      %v888 = vsel %vm837, %v641, %v887
      %889 = vst [vmem:[%s412 + $0x54] sm:$0xf] %v888
      %890 = vst [vmem:[%s412 + $0x58] sm:$0xf] %v650
      %v891 = vld [vmem:[%s412 + $0x5c] sm:$0x1]
      %v892 = vsel %vm415, %v651, %v891
      %893 = vst [vmem:[%s412 + $0x5c] sm:$0x1] %v892
      %v894 = vld [vmem:[%s412 + $0x60] sm:$0xf]
      %v895 = vsel %vm837, %v658, %v894
      %896 = vst [vmem:[%s412 + $0x60] sm:$0xf] %v895
      %897 = vst [vmem:[%s412 + $0x64] sm:$0xf] %v667
      %v898 = vld [vmem:[%s412 + $0x68] sm:$0x1]
      %v899 = vsel %vm415, %v668, %v898
      %900 = vst [vmem:[%s412 + $0x68] sm:$0x1] %v899
      %v901 = vld [vmem:[%s412 + $0x6c] sm:$0xf]
      %v902 = vsel %vm837, %v675, %v901
      %903 = vst [vmem:[%s412 + $0x6c] sm:$0xf] %v902
      %904 = vst [vmem:[%s412 + $0x70] sm:$0xf] %v684
      %v905 = vld [vmem:[%s412 + $0x74] sm:$0x1]
      %v906 = vsel %vm415, %v685, %v905
      %907 = vst [vmem:[%s412 + $0x74] sm:$0x1] %v906
      %v908 = vld [vmem:[%s412 + $0x78] sm:$0xf]
      %v909 = vsel %vm837, %v692, %v908
      %910 = vst [vmem:[%s412 + $0x78] sm:$0xf] %v909
      %911 = vst [vmem:[%s412 + $0x7c] sm:$0xf] %v701
      %v912 = vld [vmem:[%s412 + $0x80] sm:$0x1]
      %v913 = vsel %vm415, %v702, %v912
      %914 = vst [vmem:[%s412 + $0x80] sm:$0x1] %v913
      %v915 = vld [vmem:[%s412 + $0x84] sm:$0xf]
      %v916 = vsel %vm837, %v709, %v915
      %917 = vst [vmem:[%s412 + $0x84] sm:$0xf] %v916
      %918 = vst [vmem:[%s412 + $0x88] sm:$0xf] %v718
      %v919 = vld [vmem:[%s412 + $0x8c] sm:$0x1]
      %v920 = vsel %vm415, %v719, %v919
      %921 = vst [vmem:[%s412 + $0x8c] sm:$0x1] %v920
      %v922 = vld [vmem:[%s412 + $0x90] sm:$0xf]
      %v923 = vsel %vm837, %v726, %v922
      %924 = vst [vmem:[%s412 + $0x90] sm:$0xf] %v923
      %925 = vst [vmem:[%s412 + $0x94] sm:$0xf] %v735
      %v926 = vld [vmem:[%s412 + $0x98] sm:$0x1]
      %v927 = vsel %vm415, %v736, %v926
      %928 = vst [vmem:[%s412 + $0x98] sm:$0x1] %v927
      %v929 = vld [vmem:[%s412 + $0x9c] sm:$0xf]
      %v930 = vsel %vm837, %v743, %v929
      %931 = vst [vmem:[%s412 + $0x9c] sm:$0xf] %v930
      %932 = vst [vmem:[%s412 + $0xa0] sm:$0xf] %v752
      %v933 = vld [vmem:[%s412 + $0xa4] sm:$0x1]
      %v934 = vsel %vm415, %v753, %v933
      %935 = vst [vmem:[%s412 + $0xa4] sm:$0x1] %v934
      %v936 = vld [vmem:[%s412 + $0xa8] sm:$0xf]
      %v937 = vsel %vm837, %v760, %v936
      %938 = vst [vmem:[%s412 + $0xa8] sm:$0xf] %v937
      %939 = vst [vmem:[%s412 + $0xac] sm:$0xf] %v769
      %v940 = vld [vmem:[%s412 + $0xb0] sm:$0x1]
      %v941 = vsel %vm415, %v770, %v940
      %942 = vst [vmem:[%s412 + $0xb0] sm:$0x1] %v941
      %v943 = vld [vmem:[%s412 + $0xb4] sm:$0xf]
      %v944 = vsel %vm837, %v777, %v943
      %945 = vst [vmem:[%s412 + $0xb4] sm:$0xf] %v944
      %946 = vst [vmem:[%s412 + $0xb8] sm:$0xf] %v786
      %v947 = vld [vmem:[%s412 + $0xbc] sm:$0x1]
      %v948 = vsel %vm415, %v787, %v947
      %949 = vst [vmem:[%s412 + $0xbc] sm:$0x1] %v948
      %v950 = vld [vmem:[#allocation2] sm:$0xf]
      %v951 = vld [vmem:[#allocation2 + $0x4] sm:$0xf]
      %v952 = vld [vmem:[#allocation2 + $0xc] sm:$0xf]
      %v953 = vld [vmem:[#allocation2 + $0x10] sm:$0xf]
      %v954 = vld [vmem:[#allocation2 + $0x18] sm:$0xf]
      %v955 = vld [vmem:[#allocation2 + $0x1c] sm:$0xf]
      %v956 = vld [vmem:[#allocation2 + $0x24] sm:$0xf]
      %v957 = vld [vmem:[#allocation2 + $0x28] sm:$0xf]
      %v958 = vld [vmem:[#allocation2 + $0x30] sm:$0xf]
      %v959 = vld [vmem:[#allocation2 + $0x34] sm:$0xf]
      %v960 = vld [vmem:[#allocation2 + $0x3c] sm:$0xf]
      %v961 = vld [vmem:[#allocation2 + $0x40] sm:$0xf]
      %v962 = vld [vmem:[#allocation2 + $0x48] sm:$0xf]
      %v963 = vld [vmem:[#allocation2 + $0x4c] sm:$0xf]
      %v964 = vld [vmem:[#allocation2 + $0x54] sm:$0xf]
      %v965 = vld [vmem:[#allocation2 + $0x58] sm:$0xf]
      %v966 = vld [vmem:[#allocation2 + $0x60] sm:$0xf]
      %v967 = vld [vmem:[#allocation2 + $0x64] sm:$0xf]
      %v968 = vld [vmem:[#allocation2 + $0x6c] sm:$0xf]
      %v969 = vld [vmem:[#allocation2 + $0x70] sm:$0xf]
      %v970 = vld [vmem:[#allocation2 + $0x78] sm:$0xf]
      %v971 = vld [vmem:[#allocation2 + $0x7c] sm:$0xf]
      %v972 = vld [vmem:[#allocation2 + $0x84] sm:$0xf]
      %v973 = vld [vmem:[#allocation2 + $0x88] sm:$0xf]
      %v974 = vld [vmem:[#allocation2 + $0x90] sm:$0xf]
      %v975 = vld [vmem:[#allocation2 + $0x94] sm:$0xf]
      %v976 = vld [vmem:[#allocation2 + $0x9c] sm:$0xf]
      %v977 = vld [vmem:[#allocation2 + $0xa0] sm:$0xf]
      %v978 = vld [vmem:[#allocation2 + $0xa8] sm:$0xf]
      %v979 = vld [vmem:[#allocation2 + $0xac] sm:$0xf]
      %v980 = vld [vmem:[#allocation2 + $0xb4] sm:$0xf]
      %v981 = vld [vmem:[#allocation2 + $0xb8] sm:$0xf]
      %v982 = vld [vmem:[#allocation2 + $0x8] sm:$0x1]
      %v983 = vld [vmem:[#allocation2 + $0x14] sm:$0x1]
      %v984 = vld [vmem:[#allocation2 + $0x20] sm:$0x1]
      %v985 = vld [vmem:[#allocation2 + $0x2c] sm:$0x1]
      %v986 = vld [vmem:[#allocation2 + $0x38] sm:$0x1]
      %v987 = vld [vmem:[#allocation2 + $0x44] sm:$0x1]
      %v988 = vld [vmem:[#allocation2 + $0x50] sm:$0x1]
      %v989 = vld [vmem:[#allocation2 + $0x5c] sm:$0x1]
      %v990 = vld [vmem:[#allocation2 + $0x68] sm:$0x1]
      %v991 = vld [vmem:[#allocation2 + $0x74] sm:$0x1]
      %v992 = vld [vmem:[#allocation2 + $0x80] sm:$0x1]
      %v993 = vld [vmem:[#allocation2 + $0x8c] sm:$0x1]
      %v994 = vld [vmem:[#allocation2 + $0x98] sm:$0x1]
      %v995 = vld [vmem:[#allocation2 + $0xa4] sm:$0x1]
      %v996 = vld [vmem:[#allocation2 + $0xb0] sm:$0x1]
      %v997 = vld [vmem:[#allocation2 + $0xbc] sm:$0x1]
      %vm998 = vsmask.f32 3328
      %vm999 = vsmask.f32 7440
      %vm1000 = vmor %vm998, %vm999
      %v1002 = vshrl.u32 %v950, 16
      %v1004 = vrot.slane %v1002, 4
      %v1005 = vshll.u32 %v950, 16
      %v1007 = vrot.slane %v1005, 5
      %v1008 = vor.u32 %v1004, %v1007
      %v1009 = vrot.slane %v1008, 4
      %v1011 = vshll.u32 %v951, 16
      %v1013 = vrot.slane %v1011, 5
      %v1014 = vsel %vm1000, %v1009, %v1013
      %v1015 = vshrl.u32 %v951, 16
      %v1017 = vrot.slane %v1015, 4
      %v1018 = vor.u32 %v1017, %v1013
      %v1019 = vrot.slane %v1018, 4
      %v1021 = vshll.u32 %v982, 16
      %v1023 = vrot.slane %v1021, 5
      %v1024 = vsel %vm1000, %v1019, %v1023
      %v1026 = vshrl.u32 %v952, 16
      %v1028 = vrot.slane %v1026, 4
      %v1029 = vshll.u32 %v952, 16
      %v1031 = vrot.slane %v1029, 5
      %v1032 = vor.u32 %v1028, %v1031
      %v1033 = vrot.slane %v1032, 4
      %v1035 = vshll.u32 %v953, 16
      %v1037 = vrot.slane %v1035, 5
      %v1038 = vsel %vm1000, %v1033, %v1037
      %v1039 = vshrl.u32 %v953, 16
      %v1041 = vrot.slane %v1039, 4
      %v1042 = vor.u32 %v1041, %v1037
      %v1043 = vrot.slane %v1042, 4
      %v1045 = vshll.u32 %v983, 16
      %v1047 = vrot.slane %v1045, 5
      %v1048 = vsel %vm1000, %v1043, %v1047
      %v1050 = vshrl.u32 %v954, 16
      %v1052 = vrot.slane %v1050, 4
      %v1053 = vshll.u32 %v954, 16
      %v1055 = vrot.slane %v1053, 5
      %v1056 = vor.u32 %v1052, %v1055
      %v1057 = vrot.slane %v1056, 4
      %v1059 = vshll.u32 %v955, 16
      %v1061 = vrot.slane %v1059, 5
      %v1062 = vsel %vm1000, %v1057, %v1061
      %v1063 = vshrl.u32 %v955, 16
      %v1065 = vrot.slane %v1063, 4
      %v1066 = vor.u32 %v1065, %v1061
      %v1067 = vrot.slane %v1066, 4
      %v1069 = vshll.u32 %v984, 16
      %v1071 = vrot.slane %v1069, 5
      %v1072 = vsel %vm1000, %v1067, %v1071
      %v1074 = vshrl.u32 %v956, 16
      %v1076 = vrot.slane %v1074, 4
      %v1077 = vshll.u32 %v956, 16
      %v1079 = vrot.slane %v1077, 5
      %v1080 = vor.u32 %v1076, %v1079
      %v1081 = vrot.slane %v1080, 4
      %v1083 = vshll.u32 %v957, 16
      %v1085 = vrot.slane %v1083, 5
      %v1086 = vsel %vm1000, %v1081, %v1085
      %v1087 = vshrl.u32 %v957, 16
      %v1089 = vrot.slane %v1087, 4
      %v1090 = vor.u32 %v1089, %v1085
      %v1091 = vrot.slane %v1090, 4
      %v1093 = vshll.u32 %v985, 16
      %v1095 = vrot.slane %v1093, 5
      %v1096 = vsel %vm1000, %v1091, %v1095
      %v1098 = vshrl.u32 %v958, 16
      %v1100 = vrot.slane %v1098, 4
      %v1101 = vshll.u32 %v958, 16
      %v1103 = vrot.slane %v1101, 5
      %v1104 = vor.u32 %v1100, %v1103
      %v1105 = vrot.slane %v1104, 4
      %v1107 = vshll.u32 %v959, 16
      %v1109 = vrot.slane %v1107, 5
      %v1110 = vsel %vm1000, %v1105, %v1109
      %v1111 = vshrl.u32 %v959, 16
      %v1113 = vrot.slane %v1111, 4
      %v1114 = vor.u32 %v1113, %v1109
      %v1115 = vrot.slane %v1114, 4
      %v1117 = vshll.u32 %v986, 16
      %v1119 = vrot.slane %v1117, 5
      %v1120 = vsel %vm1000, %v1115, %v1119
      %v1122 = vshrl.u32 %v960, 16
      %v1124 = vrot.slane %v1122, 4
      %v1125 = vshll.u32 %v960, 16
      %v1127 = vrot.slane %v1125, 5
      %v1128 = vor.u32 %v1124, %v1127
      %v1129 = vrot.slane %v1128, 4
      %v1131 = vshll.u32 %v961, 16
      %v1133 = vrot.slane %v1131, 5
      %v1134 = vsel %vm1000, %v1129, %v1133
      %v1135 = vshrl.u32 %v961, 16
      %v1137 = vrot.slane %v1135, 4
      %v1138 = vor.u32 %v1137, %v1133
      %v1139 = vrot.slane %v1138, 4
      %v1141 = vshll.u32 %v987, 16
      %v1143 = vrot.slane %v1141, 5
      %v1144 = vsel %vm1000, %v1139, %v1143
      %v1146 = vshrl.u32 %v962, 16
      %v1148 = vrot.slane %v1146, 4
      %v1149 = vshll.u32 %v962, 16
      %v1151 = vrot.slane %v1149, 5
      %v1152 = vor.u32 %v1148, %v1151
      %v1153 = vrot.slane %v1152, 4
      %v1155 = vshll.u32 %v963, 16
      %v1157 = vrot.slane %v1155, 5
      %v1158 = vsel %vm1000, %v1153, %v1157
      %v1159 = vshrl.u32 %v963, 16
      %v1161 = vrot.slane %v1159, 4
      %v1162 = vor.u32 %v1161, %v1157
      %v1163 = vrot.slane %v1162, 4
      %v1165 = vshll.u32 %v988, 16
      %v1167 = vrot.slane %v1165, 5
      %v1168 = vsel %vm1000, %v1163, %v1167
      %v1170 = vshrl.u32 %v964, 16
      %v1172 = vrot.slane %v1170, 4
      %v1173 = vshll.u32 %v964, 16
      %v1175 = vrot.slane %v1173, 5
      %v1176 = vor.u32 %v1172, %v1175
      %v1177 = vrot.slane %v1176, 4
      %v1179 = vshll.u32 %v965, 16
      %v1181 = vrot.slane %v1179, 5
      %v1182 = vsel %vm1000, %v1177, %v1181
      %v1183 = vshrl.u32 %v965, 16
      %v1185 = vrot.slane %v1183, 4
      %v1186 = vor.u32 %v1185, %v1181
      %v1187 = vrot.slane %v1186, 4
      %v1189 = vshll.u32 %v989, 16
      %v1191 = vrot.slane %v1189, 5
      %v1192 = vsel %vm1000, %v1187, %v1191
      %v1194 = vshrl.u32 %v966, 16
      %v1196 = vrot.slane %v1194, 4
      %v1197 = vshll.u32 %v966, 16
      %v1199 = vrot.slane %v1197, 5
      %v1200 = vor.u32 %v1196, %v1199
      %v1201 = vrot.slane %v1200, 4
      %v1203 = vshll.u32 %v967, 16
      %v1205 = vrot.slane %v1203, 5
      %v1206 = vsel %vm1000, %v1201, %v1205
      %v1207 = vshrl.u32 %v967, 16
      %v1209 = vrot.slane %v1207, 4
      %v1210 = vor.u32 %v1209, %v1205
      %v1211 = vrot.slane %v1210, 4
      %v1213 = vshll.u32 %v990, 16
      %v1215 = vrot.slane %v1213, 5
      %v1216 = vsel %vm1000, %v1211, %v1215
      %v1218 = vshrl.u32 %v968, 16
      %v1220 = vrot.slane %v1218, 4
      %v1221 = vshll.u32 %v968, 16
      %v1223 = vrot.slane %v1221, 5
      %v1224 = vor.u32 %v1220, %v1223
      %v1225 = vrot.slane %v1224, 4
      %v1227 = vshll.u32 %v969, 16
      %v1229 = vrot.slane %v1227, 5
      %v1230 = vsel %vm1000, %v1225, %v1229
      %v1231 = vshrl.u32 %v969, 16
      %v1233 = vrot.slane %v1231, 4
      %v1234 = vor.u32 %v1233, %v1229
      %v1235 = vrot.slane %v1234, 4
      %v1237 = vshll.u32 %v991, 16
      %v1239 = vrot.slane %v1237, 5
      %v1240 = vsel %vm1000, %v1235, %v1239
      %v1242 = vshrl.u32 %v970, 16
      %v1244 = vrot.slane %v1242, 4
      %v1245 = vshll.u32 %v970, 16
      %v1247 = vrot.slane %v1245, 5
      %v1248 = vor.u32 %v1244, %v1247
      %v1249 = vrot.slane %v1248, 4
      %v1251 = vshll.u32 %v971, 16
      %v1253 = vrot.slane %v1251, 5
      %v1254 = vsel %vm1000, %v1249, %v1253
      %v1255 = vshrl.u32 %v971, 16
      %v1257 = vrot.slane %v1255, 4
      %v1258 = vor.u32 %v1257, %v1253
      %v1259 = vrot.slane %v1258, 4
      %v1261 = vshll.u32 %v992, 16
      %v1263 = vrot.slane %v1261, 5
      %v1264 = vsel %vm1000, %v1259, %v1263
      %v1266 = vshrl.u32 %v972, 16
      %v1268 = vrot.slane %v1266, 4
      %v1269 = vshll.u32 %v972, 16
      %v1271 = vrot.slane %v1269, 5
      %v1272 = vor.u32 %v1268, %v1271
      %v1273 = vrot.slane %v1272, 4
      %v1275 = vshll.u32 %v973, 16
      %v1277 = vrot.slane %v1275, 5
      %v1278 = vsel %vm1000, %v1273, %v1277
      %v1279 = vshrl.u32 %v973, 16
      %v1281 = vrot.slane %v1279, 4
      %v1282 = vor.u32 %v1281, %v1277
      %v1283 = vrot.slane %v1282, 4
      %v1285 = vshll.u32 %v993, 16
      %v1287 = vrot.slane %v1285, 5
      %v1288 = vsel %vm1000, %v1283, %v1287
      %v1290 = vshrl.u32 %v974, 16
      %v1292 = vrot.slane %v1290, 4
      %v1293 = vshll.u32 %v974, 16
      %v1295 = vrot.slane %v1293, 5
      %v1296 = vor.u32 %v1292, %v1295
      %v1297 = vrot.slane %v1296, 4
      %v1299 = vshll.u32 %v975, 16
      %v1301 = vrot.slane %v1299, 5
      %v1302 = vsel %vm1000, %v1297, %v1301
      %v1303 = vshrl.u32 %v975, 16
      %v1305 = vrot.slane %v1303, 4
      %v1306 = vor.u32 %v1305, %v1301
      %v1307 = vrot.slane %v1306, 4
      %v1309 = vshll.u32 %v994, 16
      %v1311 = vrot.slane %v1309, 5
      %v1312 = vsel %vm1000, %v1307, %v1311
      %v1314 = vshrl.u32 %v976, 16
      %v1316 = vrot.slane %v1314, 4
      %v1317 = vshll.u32 %v976, 16
      %v1319 = vrot.slane %v1317, 5
      %v1320 = vor.u32 %v1316, %v1319
      %v1321 = vrot.slane %v1320, 4
      %v1323 = vshll.u32 %v977, 16
      %v1325 = vrot.slane %v1323, 5
      %v1326 = vsel %vm1000, %v1321, %v1325
      %v1327 = vshrl.u32 %v977, 16
      %v1329 = vrot.slane %v1327, 4
      %v1330 = vor.u32 %v1329, %v1325
      %v1331 = vrot.slane %v1330, 4
      %v1333 = vshll.u32 %v995, 16
      %v1335 = vrot.slane %v1333, 5
      %v1336 = vsel %vm1000, %v1331, %v1335
      %v1338 = vshrl.u32 %v978, 16
      %v1340 = vrot.slane %v1338, 4
      %v1341 = vshll.u32 %v978, 16
      %v1343 = vrot.slane %v1341, 5
      %v1344 = vor.u32 %v1340, %v1343
      %v1345 = vrot.slane %v1344, 4
      %v1347 = vshll.u32 %v979, 16
      %v1349 = vrot.slane %v1347, 5
      %v1350 = vsel %vm1000, %v1345, %v1349
      %v1351 = vshrl.u32 %v979, 16
      %v1353 = vrot.slane %v1351, 4
      %v1354 = vor.u32 %v1353, %v1349
      %v1355 = vrot.slane %v1354, 4
      %v1357 = vshll.u32 %v996, 16
      %v1359 = vrot.slane %v1357, 5
      %v1360 = vsel %vm1000, %v1355, %v1359
      %v1362 = vshrl.u32 %v980, 16
      %v1364 = vrot.slane %v1362, 4
      %v1365 = vshll.u32 %v980, 16
      %v1367 = vrot.slane %v1365, 5
      %v1368 = vor.u32 %v1364, %v1367
      %v1369 = vrot.slane %v1368, 4
      %v1371 = vshll.u32 %v981, 16
      %v1373 = vrot.slane %v1371, 5
      %v1374 = vsel %vm1000, %v1369, %v1373
      %v1375 = vshrl.u32 %v981, 16
      %v1377 = vrot.slane %v1375, 4
      %v1378 = vor.u32 %v1377, %v1373
      %v1379 = vrot.slane %v1378, 4
      %v1381 = vshll.u32 %v997, 16
      %v1383 = vrot.slane %v1381, 5
      %v1384 = vsel %vm1000, %v1379, %v1383
      %v1385 = vld [vmem:[#allocation2] sm:$0xe]
      %v1386 = vld [vmem:[#allocation2 + $0xc] sm:$0xe]
      %v1387 = vld [vmem:[#allocation2 + $0x18] sm:$0xe]
      %v1388 = vld [vmem:[#allocation2 + $0x24] sm:$0xe]
      %v1389 = vld [vmem:[#allocation2 + $0x30] sm:$0xe]
      %v1390 = vld [vmem:[#allocation2 + $0x3c] sm:$0xe]
      %v1391 = vld [vmem:[#allocation2 + $0x48] sm:$0xe]
      %v1392 = vld [vmem:[#allocation2 + $0x54] sm:$0xe]
      %v1393 = vld [vmem:[#allocation2 + $0x60] sm:$0xe]
      %v1394 = vld [vmem:[#allocation2 + $0x6c] sm:$0xe]
      %v1395 = vld [vmem:[#allocation2 + $0x78] sm:$0xe]
      %v1396 = vld [vmem:[#allocation2 + $0x84] sm:$0xe]
      %v1397 = vld [vmem:[#allocation2 + $0x90] sm:$0xe]
      %v1398 = vld [vmem:[#allocation2 + $0x9c] sm:$0xe]
      %v1399 = vld [vmem:[#allocation2 + $0xa8] sm:$0xe]
      %v1400 = vld [vmem:[#allocation2 + $0xb4] sm:$0xe]
      %vm1449 = vcmask 1042432
      %vm1450 = vcmask 1046532
      %vm1451 = vmor %vm1449, %vm1450
      %v1452 = vrot.slane %v1385, 5
      %v1453 = vrot.slane %v1452, 4
      %v1454 = vrot.slane %v951, 5
      %v1455 = vsel %vm1451, %v1453, %v1454
      %v1456 = vrot.slane %v1454, 4
      %v1457 = vrot.slane %v982, 5
      %v1458 = vsel %vm1451, %v1456, %v1457
      %v1459 = vrot.slane %v1386, 5
      %v1460 = vrot.slane %v1459, 4
      %v1461 = vrot.slane %v953, 5
      %v1462 = vsel %vm1451, %v1460, %v1461
      %v1463 = vrot.slane %v1461, 4
      %v1464 = vrot.slane %v983, 5
      %v1465 = vsel %vm1451, %v1463, %v1464
      %v1466 = vrot.slane %v1387, 5
      %v1467 = vrot.slane %v1466, 4
      %v1468 = vrot.slane %v955, 5
      %v1469 = vsel %vm1451, %v1467, %v1468
      %v1470 = vrot.slane %v1468, 4
      %v1471 = vrot.slane %v984, 5
      %v1472 = vsel %vm1451, %v1470, %v1471
      %v1473 = vrot.slane %v1388, 5
      %v1474 = vrot.slane %v1473, 4
      %v1475 = vrot.slane %v957, 5
      %v1476 = vsel %vm1451, %v1474, %v1475
      %v1477 = vrot.slane %v1475, 4
      %v1478 = vrot.slane %v985, 5
      %v1479 = vsel %vm1451, %v1477, %v1478
      %v1480 = vrot.slane %v1389, 5
      %v1481 = vrot.slane %v1480, 4
      %v1482 = vrot.slane %v959, 5
      %v1483 = vsel %vm1451, %v1481, %v1482
      %v1484 = vrot.slane %v1482, 4
      %v1485 = vrot.slane %v986, 5
      %v1486 = vsel %vm1451, %v1484, %v1485
      %v1487 = vrot.slane %v1390, 5
      %v1488 = vrot.slane %v1487, 4
      %v1489 = vrot.slane %v961, 5
      %v1490 = vsel %vm1451, %v1488, %v1489
      %v1491 = vrot.slane %v1489, 4
      %v1492 = vrot.slane %v987, 5
      %v1493 = vsel %vm1451, %v1491, %v1492
      %v1494 = vrot.slane %v1391, 5
      %v1495 = vrot.slane %v1494, 4
      %v1496 = vrot.slane %v963, 5
      %v1497 = vsel %vm1451, %v1495, %v1496
      %v1498 = vrot.slane %v1496, 4
      %v1499 = vrot.slane %v988, 5
      %v1500 = vsel %vm1451, %v1498, %v1499
      %v1501 = vrot.slane %v1392, 5
      %v1502 = vrot.slane %v1501, 4
      %v1503 = vrot.slane %v965, 5
      %v1504 = vsel %vm1451, %v1502, %v1503
      %v1505 = vrot.slane %v1503, 4
      %v1506 = vrot.slane %v989, 5
      %v1507 = vsel %vm1451, %v1505, %v1506
      %v1508 = vrot.slane %v1393, 5
      %v1509 = vrot.slane %v1508, 4
      %v1510 = vrot.slane %v967, 5
      %v1511 = vsel %vm1451, %v1509, %v1510
      %v1512 = vrot.slane %v1510, 4
      %v1513 = vrot.slane %v990, 5
      %v1514 = vsel %vm1451, %v1512, %v1513
      %v1515 = vrot.slane %v1394, 5
      %v1516 = vrot.slane %v1515, 4
      %v1517 = vrot.slane %v969, 5
      %v1518 = vsel %vm1451, %v1516, %v1517
      %v1519 = vrot.slane %v1517, 4
      %v1520 = vrot.slane %v991, 5
      %v1521 = vsel %vm1451, %v1519, %v1520
      %v1522 = vrot.slane %v1395, 5
      %v1523 = vrot.slane %v1522, 4
      %v1524 = vrot.slane %v971, 5
      %v1525 = vsel %vm1451, %v1523, %v1524
      %v1526 = vrot.slane %v1524, 4
      %v1527 = vrot.slane %v992, 5
      %v1528 = vsel %vm1451, %v1526, %v1527
      %v1529 = vrot.slane %v1396, 5
      %v1530 = vrot.slane %v1529, 4
      %v1531 = vrot.slane %v973, 5
      %v1532 = vsel %vm1451, %v1530, %v1531
      %v1533 = vrot.slane %v1531, 4
      %v1534 = vrot.slane %v993, 5
      %v1535 = vsel %vm1451, %v1533, %v1534
      %v1536 = vrot.slane %v1397, 5
      %v1537 = vrot.slane %v1536, 4
      %v1538 = vrot.slane %v975, 5
      %v1539 = vsel %vm1451, %v1537, %v1538
      %v1540 = vrot.slane %v1538, 4
      %v1541 = vrot.slane %v994, 5
      %v1542 = vsel %vm1451, %v1540, %v1541
      %v1543 = vrot.slane %v1398, 5
      %v1544 = vrot.slane %v1543, 4
      %v1545 = vrot.slane %v977, 5
      %v1546 = vsel %vm1451, %v1544, %v1545
      %v1547 = vrot.slane %v1545, 4
      %v1548 = vrot.slane %v995, 5
      %v1549 = vsel %vm1451, %v1547, %v1548
      %v1550 = vrot.slane %v1399, 5
      %v1551 = vrot.slane %v1550, 4
      %v1552 = vrot.slane %v979, 5
      %v1553 = vsel %vm1451, %v1551, %v1552
      %v1554 = vrot.slane %v1552, 4
      %v1555 = vrot.slane %v996, 5
      %v1556 = vsel %vm1451, %v1554, %v1555
      %v1557 = vrot.slane %v1400, 5
      %v1558 = vrot.slane %v1557, 4
      %v1559 = vrot.slane %v981, 5
      %v1560 = vsel %vm1451, %v1558, %v1559
      %v1561 = vrot.slane %v1559, 4
      %v1562 = vrot.slane %v997, 5
      %v1563 = vsel %vm1451, %v1561, %v1562
      %v1580 = vunpack.c.l.b16 %v950
      %v1581 = vunpack.c.l.b16 %v951
      %v1582 = vunpack.c.l.b16 %v952
      %v1583 = vunpack.c.l.b16 %v953
      %v1584 = vunpack.c.l.b16 %v954
      %v1585 = vunpack.c.l.b16 %v955
      %v1586 = vunpack.c.l.b16 %v956
      %v1587 = vunpack.c.l.b16 %v957
      %v1588 = vunpack.c.l.b16 %v958
      %v1589 = vunpack.c.l.b16 %v959
      %v1590 = vunpack.c.l.b16 %v960
      %v1591 = vunpack.c.l.b16 %v961
      %v1592 = vunpack.c.l.b16 %v962
      %v1593 = vunpack.c.l.b16 %v963
      %v1594 = vunpack.c.l.b16 %v964
      %v1595 = vunpack.c.l.b16 %v965
      %v1596 = vunpack.c.l.b16 %v966
      %v1597 = vunpack.c.l.b16 %v967
      %v1598 = vunpack.c.l.b16 %v968
      %v1599 = vunpack.c.l.b16 %v969
      %v1600 = vunpack.c.l.b16 %v970
      %v1601 = vunpack.c.l.b16 %v971
      %v1602 = vunpack.c.l.b16 %v972
      %v1603 = vunpack.c.l.b16 %v973
      %v1604 = vunpack.c.l.b16 %v974
      %v1605 = vunpack.c.l.b16 %v975
      %v1606 = vunpack.c.l.b16 %v976
      %v1607 = vunpack.c.l.b16 %v977
      %v1608 = vunpack.c.l.b16 %v978
      %v1609 = vunpack.c.l.b16 %v979
      %v1610 = vunpack.c.l.b16 %v980
      %v1611 = vunpack.c.l.b16 %v981
      %v1612 = vpack.c.b16 %v1581, %v1580
      %v1613 = vpack.c.b16 %v1583, %v1582
      %v1614 = vpack.c.b16 %v1585, %v1584
      %v1615 = vpack.c.b16 %v1587, %v1586
      %v1616 = vpack.c.b16 %v1589, %v1588
      %v1617 = vpack.c.b16 %v1591, %v1590
      %v1618 = vpack.c.b16 %v1593, %v1592
      %v1619 = vpack.c.b16 %v1595, %v1594
      %v1620 = vpack.c.b16 %v1597, %v1596
      %v1621 = vpack.c.b16 %v1599, %v1598
      %v1622 = vpack.c.b16 %v1601, %v1600
      %v1623 = vpack.c.b16 %v1603, %v1602
      %v1624 = vpack.c.b16 %v1605, %v1604
      %v1625 = vpack.c.b16 %v1607, %v1606
      %v1626 = vpack.c.b16 %v1609, %v1608
      %v1627 = vpack.c.b16 %v1611, %v1610
      %v1644 = vunpack.c.l.b16 %v1014
      %v1645 = vunpack.c.l.b16 %v1024
      %v1646 = vunpack.c.l.b16 %v1038
      %v1647 = vunpack.c.l.b16 %v1048
      %v1648 = vunpack.c.l.b16 %v1062
      %v1649 = vunpack.c.l.b16 %v1072
      %v1650 = vunpack.c.l.b16 %v1086
      %v1651 = vunpack.c.l.b16 %v1096
      %v1652 = vunpack.c.l.b16 %v1110
      %v1653 = vunpack.c.l.b16 %v1120
      %v1654 = vunpack.c.l.b16 %v1134
      %v1655 = vunpack.c.l.b16 %v1144
      %v1656 = vunpack.c.l.b16 %v1158
      %v1657 = vunpack.c.l.b16 %v1168
      %v1658 = vunpack.c.l.b16 %v1182
      %v1659 = vunpack.c.l.b16 %v1192
      %v1660 = vunpack.c.l.b16 %v1206
      %v1661 = vunpack.c.l.b16 %v1216
      %v1662 = vunpack.c.l.b16 %v1230
      %v1663 = vunpack.c.l.b16 %v1240
      %v1664 = vunpack.c.l.b16 %v1254
      %v1665 = vunpack.c.l.b16 %v1264
      %v1666 = vunpack.c.l.b16 %v1278
      %v1667 = vunpack.c.l.b16 %v1288
      %v1668 = vunpack.c.l.b16 %v1302
      %v1669 = vunpack.c.l.b16 %v1312
      %v1670 = vunpack.c.l.b16 %v1326
      %v1671 = vunpack.c.l.b16 %v1336
      %v1672 = vunpack.c.l.b16 %v1350
      %v1673 = vunpack.c.l.b16 %v1360
      %v1674 = vunpack.c.l.b16 %v1374
      %v1675 = vunpack.c.l.b16 %v1384
      %v1676 = vpack.c.b16 %v1645, %v1644
      %v1677 = vpack.c.b16 %v1647, %v1646
      %v1678 = vpack.c.b16 %v1649, %v1648
      %v1679 = vpack.c.b16 %v1651, %v1650
      %v1680 = vpack.c.b16 %v1653, %v1652
      %v1681 = vpack.c.b16 %v1655, %v1654
      %v1682 = vpack.c.b16 %v1657, %v1656
      %v1683 = vpack.c.b16 %v1659, %v1658
      %v1684 = vpack.c.b16 %v1661, %v1660
      %v1685 = vpack.c.b16 %v1663, %v1662
      %v1686 = vpack.c.b16 %v1665, %v1664
      %v1687 = vpack.c.b16 %v1667, %v1666
      %v1688 = vpack.c.b16 %v1669, %v1668
      %v1689 = vpack.c.b16 %v1671, %v1670
      %v1690 = vpack.c.b16 %v1673, %v1672
      %v1691 = vpack.c.b16 %v1675, %v1674
      %v1708 = vunpack.c.l.b16 %v1455
      %v1709 = vunpack.c.l.b16 %v1458
      %v1710 = vunpack.c.l.b16 %v1462
      %v1711 = vunpack.c.l.b16 %v1465
      %v1712 = vunpack.c.l.b16 %v1469
      %v1713 = vunpack.c.l.b16 %v1472
      %v1714 = vunpack.c.l.b16 %v1476
      %v1715 = vunpack.c.l.b16 %v1479
      %v1716 = vunpack.c.l.b16 %v1483
      %v1717 = vunpack.c.l.b16 %v1486
      %v1718 = vunpack.c.l.b16 %v1490
      %v1719 = vunpack.c.l.b16 %v1493
      %v1720 = vunpack.c.l.b16 %v1497
      %v1721 = vunpack.c.l.b16 %v1500
      %v1722 = vunpack.c.l.b16 %v1504
      %v1723 = vunpack.c.l.b16 %v1507
      %v1724 = vunpack.c.l.b16 %v1511
      %v1725 = vunpack.c.l.b16 %v1514
      %v1726 = vunpack.c.l.b16 %v1518
      %v1727 = vunpack.c.l.b16 %v1521
      %v1728 = vunpack.c.l.b16 %v1525
      %v1729 = vunpack.c.l.b16 %v1528
      %v1730 = vunpack.c.l.b16 %v1532
      %v1731 = vunpack.c.l.b16 %v1535
      %v1732 = vunpack.c.l.b16 %v1539
      %v1733 = vunpack.c.l.b16 %v1542
      %v1734 = vunpack.c.l.b16 %v1546
      %v1735 = vunpack.c.l.b16 %v1549
      %v1736 = vunpack.c.l.b16 %v1553
      %v1737 = vunpack.c.l.b16 %v1556
      %v1738 = vunpack.c.l.b16 %v1560
      %v1739 = vunpack.c.l.b16 %v1563
      %v1740 = vpack.c.b16 %v1709, %v1708
      %v1741 = vpack.c.b16 %v1711, %v1710
      %v1742 = vpack.c.b16 %v1713, %v1712
      %v1743 = vpack.c.b16 %v1715, %v1714
      %v1744 = vpack.c.b16 %v1717, %v1716
      %v1745 = vpack.c.b16 %v1719, %v1718
      %v1746 = vpack.c.b16 %v1721, %v1720
      %v1747 = vpack.c.b16 %v1723, %v1722
      %v1748 = vpack.c.b16 %v1725, %v1724
      %v1749 = vpack.c.b16 %v1727, %v1726
      %v1750 = vpack.c.b16 %v1729, %v1728
      %v1751 = vpack.c.b16 %v1731, %v1730
      %v1752 = vpack.c.b16 %v1733, %v1732
      %v1753 = vpack.c.b16 %v1735, %v1734
      %v1754 = vpack.c.b16 %v1737, %v1736
      %v1755 = vpack.c.b16 %v1739, %v1738
      %v1772 = vld [vmem:[%s3] sm:$0xf]
      %v1773 = vld [vmem:[%s3 + $0x4] sm:$0xf]
      %v1774 = vld [vmem:[%s3 + $0x8] sm:$0xf]
      %v1775 = vld [vmem:[%s3 + $0xc] sm:$0xf]
      %v1776 = vld [vmem:[%s3 + $0x10] sm:$0xf]
      %v1777 = vld [vmem:[%s3 + $0x14] sm:$0xf]
      %v1778 = vld [vmem:[%s3 + $0x18] sm:$0xf]
      %v1779 = vld [vmem:[%s3 + $0x1c] sm:$0xf]
      %v1780 = vld [vmem:[%s3 + $0x20] sm:$0xf]
      %v1781 = vld [vmem:[%s3 + $0x24] sm:$0xf]
      %v1782 = vld [vmem:[%s3 + $0x28] sm:$0xf]
      %v1783 = vld [vmem:[%s3 + $0x2c] sm:$0xf]
      %v1784 = vld [vmem:[%s3 + $0x30] sm:$0xf]
      %v1785 = vld [vmem:[%s3 + $0x34] sm:$0xf]
      %v1786 = vld [vmem:[%s3 + $0x38] sm:$0xf]
      %v1787 = vld [vmem:[%s3 + $0x3c] sm:$0xf]
      %v1788 = vld [vmem:[%s3 + $0x40] sm:$0xf]
      %v1789 = vld [vmem:[%s3 + $0x44] sm:$0xf]
      %v1790 = vld [vmem:[%s3 + $0x48] sm:$0xf]
      %v1791 = vld [vmem:[%s3 + $0x4c] sm:$0xf]
      %v1792 = vld [vmem:[%s3 + $0x50] sm:$0xf]
      %v1793 = vld [vmem:[%s3 + $0x54] sm:$0xf]
      %v1794 = vld [vmem:[%s3 + $0x58] sm:$0xf]
      %v1795 = vld [vmem:[%s3 + $0x5c] sm:$0xf]
      %v1796 = vld [vmem:[%s3 + $0x60] sm:$0xf]
      %v1797 = vld [vmem:[%s3 + $0x64] sm:$0xf]
      %v1798 = vld [vmem:[%s3 + $0x68] sm:$0xf]
      %v1799 = vld [vmem:[%s3 + $0x6c] sm:$0xf]
      %v1800 = vld [vmem:[%s3 + $0x70] sm:$0xf]
      %v1801 = vld [vmem:[%s3 + $0x74] sm:$0xf]
      %v1802 = vld [vmem:[%s3 + $0x78] sm:$0xf]
      %v1803 = vld [vmem:[%s3 + $0x7c] sm:$0xf]
      %v1804 = vld [vmem:[%s3 + $0x80] sm:$0xf]
      %v1805 = vld [vmem:[%s3 + $0x84] sm:$0xf]
      %v1806 = vld [vmem:[%s3 + $0x88] sm:$0xf]
      %v1807 = vld [vmem:[%s3 + $0x8c] sm:$0xf]
      %v1808 = vld [vmem:[%s3 + $0x90] sm:$0xf]
      %v1809 = vld [vmem:[%s3 + $0x94] sm:$0xf]
      %v1810 = vld [vmem:[%s3 + $0x98] sm:$0xf]
      %v1811 = vld [vmem:[%s3 + $0x9c] sm:$0xf]
      %v1812 = vld [vmem:[%s3 + $0xa0] sm:$0xf]
      %v1813 = vld [vmem:[%s3 + $0xa4] sm:$0xf]
      %v1814 = vld [vmem:[%s3 + $0xa8] sm:$0xf]
      %v1815 = vld [vmem:[%s3 + $0xac] sm:$0xf]
      %v1816 = vld [vmem:[%s3 + $0xb0] sm:$0xf]
      %v1817 = vld [vmem:[%s3 + $0xb4] sm:$0xf]
      %v1818 = vld [vmem:[%s3 + $0xb8] sm:$0xf]
      %v1819 = vld [vmem:[%s3 + $0xbc] sm:$0xf]
      %v1820 = vld [vmem:[%s412] sm:$0xf]
      %v1821 = vld [vmem:[%s412 + $0x4] sm:$0xf]
      %v1822 = vld [vmem:[%s412 + $0xc] sm:$0xf]
      %v1823 = vld [vmem:[%s412 + $0x10] sm:$0xf]
      %v1824 = vld [vmem:[%s412 + $0x18] sm:$0xf]
      %v1825 = vld [vmem:[%s412 + $0x1c] sm:$0xf]
      %v1826 = vld [vmem:[%s412 + $0x24] sm:$0xf]
      %v1827 = vld [vmem:[%s412 + $0x28] sm:$0xf]
      %v1828 = vld [vmem:[%s412 + $0x30] sm:$0xf]
      %v1829 = vld [vmem:[%s412 + $0x34] sm:$0xf]
      %v1830 = vld [vmem:[%s412 + $0x3c] sm:$0xf]
      %v1831 = vld [vmem:[%s412 + $0x40] sm:$0xf]
      %v1832 = vld [vmem:[%s412 + $0x48] sm:$0xf]
      %v1833 = vld [vmem:[%s412 + $0x4c] sm:$0xf]
      %v1834 = vld [vmem:[%s412 + $0x54] sm:$0xf]
      %v1835 = vld [vmem:[%s412 + $0x58] sm:$0xf]
      %v1836 = vld [vmem:[%s412 + $0x60] sm:$0xf]
      %v1837 = vld [vmem:[%s412 + $0x64] sm:$0xf]
      %v1838 = vld [vmem:[%s412 + $0x6c] sm:$0xf]
      %v1839 = vld [vmem:[%s412 + $0x70] sm:$0xf]
      %v1840 = vld [vmem:[%s412 + $0x78] sm:$0xf]
      %v1841 = vld [vmem:[%s412 + $0x7c] sm:$0xf]
      %v1842 = vld [vmem:[%s412 + $0x84] sm:$0xf]
      %v1843 = vld [vmem:[%s412 + $0x88] sm:$0xf]
      %v1844 = vld [vmem:[%s412 + $0x90] sm:$0xf]
      %v1845 = vld [vmem:[%s412 + $0x94] sm:$0xf]
      %v1846 = vld [vmem:[%s412 + $0x9c] sm:$0xf]
      %v1847 = vld [vmem:[%s412 + $0xa0] sm:$0xf]
      %v1848 = vld [vmem:[%s412 + $0xa8] sm:$0xf]
      %v1849 = vld [vmem:[%s412 + $0xac] sm:$0xf]
      %v1850 = vld [vmem:[%s412 + $0xb4] sm:$0xf]
      %v1851 = vld [vmem:[%s412 + $0xb8] sm:$0xf]
      %v1852 = vld [vmem:[%s412 + $0x8] sm:$0x1]
      %v1853 = vld [vmem:[%s412 + $0x14] sm:$0x1]
      %v1854 = vld [vmem:[%s412 + $0x20] sm:$0x1]
      %v1855 = vld [vmem:[%s412 + $0x2c] sm:$0x1]
      %v1856 = vld [vmem:[%s412 + $0x38] sm:$0x1]
      %v1857 = vld [vmem:[%s412 + $0x44] sm:$0x1]
      %v1858 = vld [vmem:[%s412 + $0x50] sm:$0x1]
      %v1859 = vld [vmem:[%s412 + $0x5c] sm:$0x1]
      %v1860 = vld [vmem:[%s412 + $0x68] sm:$0x1]
      %v1861 = vld [vmem:[%s412 + $0x74] sm:$0x1]
      %v1862 = vld [vmem:[%s412 + $0x80] sm:$0x1]
      %v1863 = vld [vmem:[%s412 + $0x8c] sm:$0x1]
      %v1864 = vld [vmem:[%s412 + $0x98] sm:$0x1]
      %v1865 = vld [vmem:[%s412 + $0xa4] sm:$0x1]
      %v1866 = vld [vmem:[%s412 + $0xb0] sm:$0x1]
      %v1867 = vld [vmem:[%s412 + $0xbc] sm:$0x1]
      %v1869 = vshrl.u32 %v1820, 16
      %v1871 = vrot.slane %v1869, 4
      %v1872 = vshll.u32 %v1820, 16
      %v1874 = vrot.slane %v1872, 5
      %v1875 = vor.u32 %v1871, %v1874
      %v1876 = vrot.slane %v1875, 4
      %v1878 = vshll.u32 %v1821, 16
      %v1880 = vrot.slane %v1878, 5
      %v1881 = vsel %vm1000, %v1876, %v1880
      %v1882 = vshrl.u32 %v1821, 16
      %v1884 = vrot.slane %v1882, 4
      %v1885 = vor.u32 %v1884, %v1880
      %v1886 = vrot.slane %v1885, 4
      %v1888 = vshll.u32 %v1852, 16
      %v1890 = vrot.slane %v1888, 5
      %v1891 = vsel %vm1000, %v1886, %v1890
      %v1893 = vshrl.u32 %v1822, 16
      %v1895 = vrot.slane %v1893, 4
      %v1896 = vshll.u32 %v1822, 16
      %v1898 = vrot.slane %v1896, 5
      %v1899 = vor.u32 %v1895, %v1898
      %v1900 = vrot.slane %v1899, 4
      %v1902 = vshll.u32 %v1823, 16
      %v1904 = vrot.slane %v1902, 5
      %v1905 = vsel %vm1000, %v1900, %v1904
      %v1906 = vshrl.u32 %v1823, 16
      %v1908 = vrot.slane %v1906, 4
      %v1909 = vor.u32 %v1908, %v1904
      %v1910 = vrot.slane %v1909, 4
      %v1912 = vshll.u32 %v1853, 16
      %v1914 = vrot.slane %v1912, 5
      %v1915 = vsel %vm1000, %v1910, %v1914
      %v1917 = vshrl.u32 %v1824, 16
      %v1919 = vrot.slane %v1917, 4
      %v1920 = vshll.u32 %v1824, 16
      %v1922 = vrot.slane %v1920, 5
      %v1923 = vor.u32 %v1919, %v1922
      %v1924 = vrot.slane %v1923, 4
      %v1926 = vshll.u32 %v1825, 16
      %v1928 = vrot.slane %v1926, 5
      %v1929 = vsel %vm1000, %v1924, %v1928
      %v1930 = vshrl.u32 %v1825, 16
      %v1932 = vrot.slane %v1930, 4
      %v1933 = vor.u32 %v1932, %v1928
      %v1934 = vrot.slane %v1933, 4
      %v1936 = vshll.u32 %v1854, 16
      %v1938 = vrot.slane %v1936, 5
      %v1939 = vsel %vm1000, %v1934, %v1938
      %v1941 = vshrl.u32 %v1826, 16
      %v1943 = vrot.slane %v1941, 4
      %v1944 = vshll.u32 %v1826, 16
      %v1946 = vrot.slane %v1944, 5
      %v1947 = vor.u32 %v1943, %v1946
      %v1948 = vrot.slane %v1947, 4
      %v1950 = vshll.u32 %v1827, 16
      %v1952 = vrot.slane %v1950, 5
      %v1953 = vsel %vm1000, %v1948, %v1952
      %v1954 = vshrl.u32 %v1827, 16
      %v1956 = vrot.slane %v1954, 4
      %v1957 = vor.u32 %v1956, %v1952
      %v1958 = vrot.slane %v1957, 4
      %v1960 = vshll.u32 %v1855, 16
      %v1962 = vrot.slane %v1960, 5
      %v1963 = vsel %vm1000, %v1958, %v1962
      %v1965 = vshrl.u32 %v1828, 16
      %v1967 = vrot.slane %v1965, 4
      %v1968 = vshll.u32 %v1828, 16
      %v1970 = vrot.slane %v1968, 5
      %v1971 = vor.u32 %v1967, %v1970
      %v1972 = vrot.slane %v1971, 4
      %v1974 = vshll.u32 %v1829, 16
      %v1976 = vrot.slane %v1974, 5
      %v1977 = vsel %vm1000, %v1972, %v1976
      %v1978 = vshrl.u32 %v1829, 16
      %v1980 = vrot.slane %v1978, 4
      %v1981 = vor.u32 %v1980, %v1976
      %v1982 = vrot.slane %v1981, 4
      %v1984 = vshll.u32 %v1856, 16
      %v1986 = vrot.slane %v1984, 5
      %v1987 = vsel %vm1000, %v1982, %v1986
      %v1989 = vshrl.u32 %v1830, 16
      %v1991 = vrot.slane %v1989, 4
      %v1992 = vshll.u32 %v1830, 16
      %v1994 = vrot.slane %v1992, 5
      %v1995 = vor.u32 %v1991, %v1994
      %v1996 = vrot.slane %v1995, 4
      %v1998 = vshll.u32 %v1831, 16
      %v2000 = vrot.slane %v1998, 5
      %v2001 = vsel %vm1000, %v1996, %v2000
      %v2002 = vshrl.u32 %v1831, 16
      %v2004 = vrot.slane %v2002, 4
      %v2005 = vor.u32 %v2004, %v2000
      %v2006 = vrot.slane %v2005, 4
      %v2008 = vshll.u32 %v1857, 16
      %v2010 = vrot.slane %v2008, 5
      %v2011 = vsel %vm1000, %v2006, %v2010
      %v2013 = vshrl.u32 %v1832, 16
      %v2015 = vrot.slane %v2013, 4
      %v2016 = vshll.u32 %v1832, 16
      %v2018 = vrot.slane %v2016, 5
      %v2019 = vor.u32 %v2015, %v2018
      %v2020 = vrot.slane %v2019, 4
      %v2022 = vshll.u32 %v1833, 16
      %v2024 = vrot.slane %v2022, 5
      %v2025 = vsel %vm1000, %v2020, %v2024
      %v2026 = vshrl.u32 %v1833, 16
      %v2028 = vrot.slane %v2026, 4
      %v2029 = vor.u32 %v2028, %v2024
      %v2030 = vrot.slane %v2029, 4
      %v2032 = vshll.u32 %v1858, 16
      %v2034 = vrot.slane %v2032, 5
      %v2035 = vsel %vm1000, %v2030, %v2034
      %v2037 = vshrl.u32 %v1834, 16
      %v2039 = vrot.slane %v2037, 4
      %v2040 = vshll.u32 %v1834, 16
      %v2042 = vrot.slane %v2040, 5
      %v2043 = vor.u32 %v2039, %v2042
      %v2044 = vrot.slane %v2043, 4
      %v2046 = vshll.u32 %v1835, 16
      %v2048 = vrot.slane %v2046, 5
      %v2049 = vsel %vm1000, %v2044, %v2048
      %v2050 = vshrl.u32 %v1835, 16
      %v2052 = vrot.slane %v2050, 4
      %v2053 = vor.u32 %v2052, %v2048
      %v2054 = vrot.slane %v2053, 4
      %v2056 = vshll.u32 %v1859, 16
      %v2058 = vrot.slane %v2056, 5
      %v2059 = vsel %vm1000, %v2054, %v2058
      %v2061 = vshrl.u32 %v1836, 16
      %v2063 = vrot.slane %v2061, 4
      %v2064 = vshll.u32 %v1836, 16
      %v2066 = vrot.slane %v2064, 5
      %v2067 = vor.u32 %v2063, %v2066
      %v2068 = vrot.slane %v2067, 4
      %v2070 = vshll.u32 %v1837, 16
      %v2072 = vrot.slane %v2070, 5
      %v2073 = vsel %vm1000, %v2068, %v2072
      %v2074 = vshrl.u32 %v1837, 16
      %v2076 = vrot.slane %v2074, 4
      %v2077 = vor.u32 %v2076, %v2072
      %v2078 = vrot.slane %v2077, 4
      %v2080 = vshll.u32 %v1860, 16
      %v2082 = vrot.slane %v2080, 5
      %v2083 = vsel %vm1000, %v2078, %v2082
      %v2085 = vshrl.u32 %v1838, 16
      %v2087 = vrot.slane %v2085, 4
      %v2088 = vshll.u32 %v1838, 16
      %v2090 = vrot.slane %v2088, 5
      %v2091 = vor.u32 %v2087, %v2090
      %v2092 = vrot.slane %v2091, 4
      %v2094 = vshll.u32 %v1839, 16
      %v2096 = vrot.slane %v2094, 5
      %v2097 = vsel %vm1000, %v2092, %v2096
      %v2098 = vshrl.u32 %v1839, 16
      %v2100 = vrot.slane %v2098, 4
      %v2101 = vor.u32 %v2100, %v2096
      %v2102 = vrot.slane %v2101, 4
      %v2104 = vshll.u32 %v1861, 16
      %v2106 = vrot.slane %v2104, 5
      %v2107 = vsel %vm1000, %v2102, %v2106
      %v2109 = vshrl.u32 %v1840, 16
      %v2111 = vrot.slane %v2109, 4
      %v2112 = vshll.u32 %v1840, 16
      %v2114 = vrot.slane %v2112, 5
      %v2115 = vor.u32 %v2111, %v2114
      %v2116 = vrot.slane %v2115, 4
      %v2118 = vshll.u32 %v1841, 16
      %v2120 = vrot.slane %v2118, 5
      %v2121 = vsel %vm1000, %v2116, %v2120
      %v2122 = vshrl.u32 %v1841, 16
      %v2124 = vrot.slane %v2122, 4
      %v2125 = vor.u32 %v2124, %v2120
      %v2126 = vrot.slane %v2125, 4
      %v2128 = vshll.u32 %v1862, 16
      %v2130 = vrot.slane %v2128, 5
      %v2131 = vsel %vm1000, %v2126, %v2130
      %v2133 = vshrl.u32 %v1842, 16
      %v2135 = vrot.slane %v2133, 4
      %v2136 = vshll.u32 %v1842, 16
      %v2138 = vrot.slane %v2136, 5
      %v2139 = vor.u32 %v2135, %v2138
      %v2140 = vrot.slane %v2139, 4
      %v2142 = vshll.u32 %v1843, 16
      %v2144 = vrot.slane %v2142, 5
      %v2145 = vsel %vm1000, %v2140, %v2144
      %v2146 = vshrl.u32 %v1843, 16
      %v2148 = vrot.slane %v2146, 4
      %v2149 = vor.u32 %v2148, %v2144
      %v2150 = vrot.slane %v2149, 4
      %v2152 = vshll.u32 %v1863, 16
      %v2154 = vrot.slane %v2152, 5
      %v2155 = vsel %vm1000, %v2150, %v2154
      %v2157 = vshrl.u32 %v1844, 16
      %v2159 = vrot.slane %v2157, 4
      %v2160 = vshll.u32 %v1844, 16
      %v2162 = vrot.slane %v2160, 5
      %v2163 = vor.u32 %v2159, %v2162
      %v2164 = vrot.slane %v2163, 4
      %v2166 = vshll.u32 %v1845, 16
      %v2168 = vrot.slane %v2166, 5
      %v2169 = vsel %vm1000, %v2164, %v2168
      %v2170 = vshrl.u32 %v1845, 16
      %v2172 = vrot.slane %v2170, 4
      %v2173 = vor.u32 %v2172, %v2168
      %v2174 = vrot.slane %v2173, 4
      %v2176 = vshll.u32 %v1864, 16
      %v2178 = vrot.slane %v2176, 5
      %v2179 = vsel %vm1000, %v2174, %v2178
      %v2181 = vshrl.u32 %v1846, 16
      %v2183 = vrot.slane %v2181, 4
      %v2184 = vshll.u32 %v1846, 16
      %v2186 = vrot.slane %v2184, 5
      %v2187 = vor.u32 %v2183, %v2186
      %v2188 = vrot.slane %v2187, 4
      %v2190 = vshll.u32 %v1847, 16
      %v2192 = vrot.slane %v2190, 5
      %v2193 = vsel %vm1000, %v2188, %v2192
      %v2194 = vshrl.u32 %v1847, 16
      %v2196 = vrot.slane %v2194, 4
      %v2197 = vor.u32 %v2196, %v2192
      %v2198 = vrot.slane %v2197, 4
      %v2200 = vshll.u32 %v1865, 16
      %v2202 = vrot.slane %v2200, 5
      %v2203 = vsel %vm1000, %v2198, %v2202
      %v2205 = vshrl.u32 %v1848, 16
      %v2207 = vrot.slane %v2205, 4
      %v2208 = vshll.u32 %v1848, 16
      %v2210 = vrot.slane %v2208, 5
      %v2211 = vor.u32 %v2207, %v2210
      %v2212 = vrot.slane %v2211, 4
      %v2214 = vshll.u32 %v1849, 16
      %v2216 = vrot.slane %v2214, 5
      %v2217 = vsel %vm1000, %v2212, %v2216
      %v2218 = vshrl.u32 %v1849, 16
      %v2220 = vrot.slane %v2218, 4
      %v2221 = vor.u32 %v2220, %v2216
      %v2222 = vrot.slane %v2221, 4
      %v2224 = vshll.u32 %v1866, 16
      %v2226 = vrot.slane %v2224, 5
      %v2227 = vsel %vm1000, %v2222, %v2226
      %v2229 = vshrl.u32 %v1850, 16
      %v2231 = vrot.slane %v2229, 4
      %v2232 = vshll.u32 %v1850, 16
      %v2234 = vrot.slane %v2232, 5
      %v2235 = vor.u32 %v2231, %v2234
      %v2236 = vrot.slane %v2235, 4
      %v2238 = vshll.u32 %v1851, 16
      %v2240 = vrot.slane %v2238, 5
      %v2241 = vsel %vm1000, %v2236, %v2240
      %v2242 = vshrl.u32 %v1851, 16
      %v2244 = vrot.slane %v2242, 4
      %v2245 = vor.u32 %v2244, %v2240
      %v2246 = vrot.slane %v2245, 4
      %v2248 = vshll.u32 %v1867, 16
      %v2250 = vrot.slane %v2248, 5
      %v2251 = vsel %vm1000, %v2246, %v2250
      %v2252 = vld [vmem:[%s412] sm:$0xe]
      %v2253 = vld [vmem:[%s412 + $0xc] sm:$0xe]
      %v2254 = vld [vmem:[%s412 + $0x18] sm:$0xe]
      %v2255 = vld [vmem:[%s412 + $0x24] sm:$0xe]
      %v2256 = vld [vmem:[%s412 + $0x30] sm:$0xe]
      %v2257 = vld [vmem:[%s412 + $0x3c] sm:$0xe]
      %v2258 = vld [vmem:[%s412 + $0x48] sm:$0xe]
      %v2259 = vld [vmem:[%s412 + $0x54] sm:$0xe]
      %v2260 = vld [vmem:[%s412 + $0x60] sm:$0xe]
      %v2261 = vld [vmem:[%s412 + $0x6c] sm:$0xe]
      %v2262 = vld [vmem:[%s412 + $0x78] sm:$0xe]
      %v2263 = vld [vmem:[%s412 + $0x84] sm:$0xe]
      %v2264 = vld [vmem:[%s412 + $0x90] sm:$0xe]
      %v2265 = vld [vmem:[%s412 + $0x9c] sm:$0xe]
      %v2266 = vld [vmem:[%s412 + $0xa8] sm:$0xe]
      %v2267 = vld [vmem:[%s412 + $0xb4] sm:$0xe]
      %v2316 = vrot.slane %v2252, 5
      %v2317 = vrot.slane %v2316, 4
      %v2318 = vrot.slane %v1821, 5
      %v2319 = vsel %vm1451, %v2317, %v2318
      %v2320 = vrot.slane %v2318, 4
      %v2321 = vrot.slane %v1852, 5
      %v2322 = vsel %vm1451, %v2320, %v2321
      %v2323 = vrot.slane %v2253, 5
      %v2324 = vrot.slane %v2323, 4
      %v2325 = vrot.slane %v1823, 5
      %v2326 = vsel %vm1451, %v2324, %v2325
      %v2327 = vrot.slane %v2325, 4
      %v2328 = vrot.slane %v1853, 5
      %v2329 = vsel %vm1451, %v2327, %v2328
      %v2330 = vrot.slane %v2254, 5
      %v2331 = vrot.slane %v2330, 4
      %v2332 = vrot.slane %v1825, 5
      %v2333 = vsel %vm1451, %v2331, %v2332
      %v2334 = vrot.slane %v2332, 4
      %v2335 = vrot.slane %v1854, 5
      %v2336 = vsel %vm1451, %v2334, %v2335
      %v2337 = vrot.slane %v2255, 5
      %v2338 = vrot.slane %v2337, 4
      %v2339 = vrot.slane %v1827, 5
      %v2340 = vsel %vm1451, %v2338, %v2339
      %v2341 = vrot.slane %v2339, 4
      %v2342 = vrot.slane %v1855, 5
      %v2343 = vsel %vm1451, %v2341, %v2342
      %v2344 = vrot.slane %v2256, 5
      %v2345 = vrot.slane %v2344, 4
      %v2346 = vrot.slane %v1829, 5
      %v2347 = vsel %vm1451, %v2345, %v2346
      %v2348 = vrot.slane %v2346, 4
      %v2349 = vrot.slane %v1856, 5
      %v2350 = vsel %vm1451, %v2348, %v2349
      %v2351 = vrot.slane %v2257, 5
      %v2352 = vrot.slane %v2351, 4
      %v2353 = vrot.slane %v1831, 5
      %v2354 = vsel %vm1451, %v2352, %v2353
      %v2355 = vrot.slane %v2353, 4
      %v2356 = vrot.slane %v1857, 5
      %v2357 = vsel %vm1451, %v2355, %v2356
      %v2358 = vrot.slane %v2258, 5
      %v2359 = vrot.slane %v2358, 4
      %v2360 = vrot.slane %v1833, 5
      %v2361 = vsel %vm1451, %v2359, %v2360
      %v2362 = vrot.slane %v2360, 4
      %v2363 = vrot.slane %v1858, 5
      %v2364 = vsel %vm1451, %v2362, %v2363
      %v2365 = vrot.slane %v2259, 5
      %v2366 = vrot.slane %v2365, 4
      %v2367 = vrot.slane %v1835, 5
      %v2368 = vsel %vm1451, %v2366, %v2367
      %v2369 = vrot.slane %v2367, 4
      %v2370 = vrot.slane %v1859, 5
      %v2371 = vsel %vm1451, %v2369, %v2370
      %v2372 = vrot.slane %v2260, 5
      %v2373 = vrot.slane %v2372, 4
      %v2374 = vrot.slane %v1837, 5
      %v2375 = vsel %vm1451, %v2373, %v2374
      %v2376 = vrot.slane %v2374, 4
      %v2377 = vrot.slane %v1860, 5
      %v2378 = vsel %vm1451, %v2376, %v2377
      %v2379 = vrot.slane %v2261, 5
      %v2380 = vrot.slane %v2379, 4
      %v2381 = vrot.slane %v1839, 5
      %v2382 = vsel %vm1451, %v2380, %v2381
      %v2383 = vrot.slane %v2381, 4
      %v2384 = vrot.slane %v1861, 5
      %v2385 = vsel %vm1451, %v2383, %v2384
      %v2386 = vrot.slane %v2262, 5
      %v2387 = vrot.slane %v2386, 4
      %v2388 = vrot.slane %v1841, 5
      %v2389 = vsel %vm1451, %v2387, %v2388
      %v2390 = vrot.slane %v2388, 4
      %v2391 = vrot.slane %v1862, 5
      %v2392 = vsel %vm1451, %v2390, %v2391
      %v2393 = vrot.slane %v2263, 5
      %v2394 = vrot.slane %v2393, 4
      %v2395 = vrot.slane %v1843, 5
      %v2396 = vsel %vm1451, %v2394, %v2395
      %v2397 = vrot.slane %v2395, 4
      %v2398 = vrot.slane %v1863, 5
      %v2399 = vsel %vm1451, %v2397, %v2398
      %v2400 = vrot.slane %v2264, 5
      %v2401 = vrot.slane %v2400, 4
      %v2402 = vrot.slane %v1845, 5
      %v2403 = vsel %vm1451, %v2401, %v2402
      %v2404 = vrot.slane %v2402, 4
      %v2405 = vrot.slane %v1864, 5
      %v2406 = vsel %vm1451, %v2404, %v2405
      %v2407 = vrot.slane %v2265, 5
      %v2408 = vrot.slane %v2407, 4
      %v2409 = vrot.slane %v1847, 5
      %v2410 = vsel %vm1451, %v2408, %v2409
      %v2411 = vrot.slane %v2409, 4
      %v2412 = vrot.slane %v1865, 5
      %v2413 = vsel %vm1451, %v2411, %v2412
      %v2414 = vrot.slane %v2266, 5
      %v2415 = vrot.slane %v2414, 4
      %v2416 = vrot.slane %v1849, 5
      %v2417 = vsel %vm1451, %v2415, %v2416
      %v2418 = vrot.slane %v2416, 4
      %v2419 = vrot.slane %v1866, 5
      %v2420 = vsel %vm1451, %v2418, %v2419
      %v2421 = vrot.slane %v2267, 5
      %v2422 = vrot.slane %v2421, 4
      %v2423 = vrot.slane %v1851, 5
      %v2424 = vsel %vm1451, %v2422, %v2423
      %v2425 = vrot.slane %v2423, 4
      %v2426 = vrot.slane %v1867, 5
      %v2427 = vsel %vm1451, %v2425, %v2426
      %v2444 = vunpack.c.l.b16 %v1820
      %v2445 = vunpack.c.l.b16 %v1821
      %v2446 = vunpack.c.l.b16 %v1822
      %v2447 = vunpack.c.l.b16 %v1823
      %v2448 = vunpack.c.l.b16 %v1824
      %v2449 = vunpack.c.l.b16 %v1825
      %v2450 = vunpack.c.l.b16 %v1826
      %v2451 = vunpack.c.l.b16 %v1827
      %v2452 = vunpack.c.l.b16 %v1828
      %v2453 = vunpack.c.l.b16 %v1829
      %v2454 = vunpack.c.l.b16 %v1830
      %v2455 = vunpack.c.l.b16 %v1831
      %v2456 = vunpack.c.l.b16 %v1832
      %v2457 = vunpack.c.l.b16 %v1833
      %v2458 = vunpack.c.l.b16 %v1834
      %v2459 = vunpack.c.l.b16 %v1835
      %v2460 = vunpack.c.l.b16 %v1836
      %v2461 = vunpack.c.l.b16 %v1837
      %v2462 = vunpack.c.l.b16 %v1838
      %v2463 = vunpack.c.l.b16 %v1839
      %v2464 = vunpack.c.l.b16 %v1840
      %v2465 = vunpack.c.l.b16 %v1841
      %v2466 = vunpack.c.l.b16 %v1842
      %v2467 = vunpack.c.l.b16 %v1843
      %v2468 = vunpack.c.l.b16 %v1844
      %v2469 = vunpack.c.l.b16 %v1845
      %v2470 = vunpack.c.l.b16 %v1846
      %v2471 = vunpack.c.l.b16 %v1847
      %v2472 = vunpack.c.l.b16 %v1848
      %v2473 = vunpack.c.l.b16 %v1849
      %v2474 = vunpack.c.l.b16 %v1850
      %v2475 = vunpack.c.l.b16 %v1851
      %v2476 = vpack.c.b16 %v2445, %v2444
      %v2477 = vpack.c.b16 %v2447, %v2446
      %v2478 = vpack.c.b16 %v2449, %v2448
      %v2479 = vpack.c.b16 %v2451, %v2450
      %v2480 = vpack.c.b16 %v2453, %v2452
      %v2481 = vpack.c.b16 %v2455, %v2454
      %v2482 = vpack.c.b16 %v2457, %v2456
      %v2483 = vpack.c.b16 %v2459, %v2458
      %v2484 = vpack.c.b16 %v2461, %v2460
      %v2485 = vpack.c.b16 %v2463, %v2462
      %v2486 = vpack.c.b16 %v2465, %v2464
      %v2487 = vpack.c.b16 %v2467, %v2466
      %v2488 = vpack.c.b16 %v2469, %v2468
      %v2489 = vpack.c.b16 %v2471, %v2470
      %v2490 = vpack.c.b16 %v2473, %v2472
      %v2491 = vpack.c.b16 %v2475, %v2474
      %v2508 = vunpack.c.l.b16 %v1881
      %v2509 = vunpack.c.l.b16 %v1891
      %v2510 = vunpack.c.l.b16 %v1905
      %v2511 = vunpack.c.l.b16 %v1915
      %v2512 = vunpack.c.l.b16 %v1929
      %v2513 = vunpack.c.l.b16 %v1939
      %v2514 = vunpack.c.l.b16 %v1953
      %v2515 = vunpack.c.l.b16 %v1963
      %v2516 = vunpack.c.l.b16 %v1977
      %v2517 = vunpack.c.l.b16 %v1987
      %v2518 = vunpack.c.l.b16 %v2001
      %v2519 = vunpack.c.l.b16 %v2011
      %v2520 = vunpack.c.l.b16 %v2025
      %v2521 = vunpack.c.l.b16 %v2035
      %v2522 = vunpack.c.l.b16 %v2049
      %v2523 = vunpack.c.l.b16 %v2059
      %v2524 = vunpack.c.l.b16 %v2073
      %v2525 = vunpack.c.l.b16 %v2083
      %v2526 = vunpack.c.l.b16 %v2097
      %v2527 = vunpack.c.l.b16 %v2107
      %v2528 = vunpack.c.l.b16 %v2121
      %v2529 = vunpack.c.l.b16 %v2131
      %v2530 = vunpack.c.l.b16 %v2145
      %v2531 = vunpack.c.l.b16 %v2155
      %v2532 = vunpack.c.l.b16 %v2169
      %v2533 = vunpack.c.l.b16 %v2179
      %v2534 = vunpack.c.l.b16 %v2193
      %v2535 = vunpack.c.l.b16 %v2203
      %v2536 = vunpack.c.l.b16 %v2217
      %v2537 = vunpack.c.l.b16 %v2227
      %v2538 = vunpack.c.l.b16 %v2241
      %v2539 = vunpack.c.l.b16 %v2251
      %v2540 = vpack.c.b16 %v2509, %v2508
      %v2541 = vpack.c.b16 %v2511, %v2510
      %v2542 = vpack.c.b16 %v2513, %v2512
      %v2543 = vpack.c.b16 %v2515, %v2514
      %v2544 = vpack.c.b16 %v2517, %v2516
      %v2545 = vpack.c.b16 %v2519, %v2518
      %v2546 = vpack.c.b16 %v2521, %v2520
      %v2547 = vpack.c.b16 %v2523, %v2522
      %v2548 = vpack.c.b16 %v2525, %v2524
      %v2549 = vpack.c.b16 %v2527, %v2526
      %v2550 = vpack.c.b16 %v2529, %v2528
      %v2551 = vpack.c.b16 %v2531, %v2530
      %v2552 = vpack.c.b16 %v2533, %v2532
      %v2553 = vpack.c.b16 %v2535, %v2534
      %v2554 = vpack.c.b16 %v2537, %v2536
      %v2555 = vpack.c.b16 %v2539, %v2538
      %v2572 = vunpack.c.l.b16 %v2319
      %v2573 = vunpack.c.l.b16 %v2322
      %v2574 = vunpack.c.l.b16 %v2326
      %v2575 = vunpack.c.l.b16 %v2329
      %v2576 = vunpack.c.l.b16 %v2333
      %v2577 = vunpack.c.l.b16 %v2336
      %v2578 = vunpack.c.l.b16 %v2340
      %v2579 = vunpack.c.l.b16 %v2343
      %v2580 = vunpack.c.l.b16 %v2347
      %v2581 = vunpack.c.l.b16 %v2350
      %v2582 = vunpack.c.l.b16 %v2354
      %v2583 = vunpack.c.l.b16 %v2357
      %v2584 = vunpack.c.l.b16 %v2361
      %v2585 = vunpack.c.l.b16 %v2364
      %v2586 = vunpack.c.l.b16 %v2368
      %v2587 = vunpack.c.l.b16 %v2371
      %v2588 = vunpack.c.l.b16 %v2375
      %v2589 = vunpack.c.l.b16 %v2378
      %v2590 = vunpack.c.l.b16 %v2382
      %v2591 = vunpack.c.l.b16 %v2385
      %v2592 = vunpack.c.l.b16 %v2389
      %v2593 = vunpack.c.l.b16 %v2392
      %v2594 = vunpack.c.l.b16 %v2396
      %v2595 = vunpack.c.l.b16 %v2399
      %v2596 = vunpack.c.l.b16 %v2403
      %v2597 = vunpack.c.l.b16 %v2406
      %v2598 = vunpack.c.l.b16 %v2410
      %v2599 = vunpack.c.l.b16 %v2413
      %v2600 = vunpack.c.l.b16 %v2417
      %v2601 = vunpack.c.l.b16 %v2420
      %v2602 = vunpack.c.l.b16 %v2424
      %v2603 = vunpack.c.l.b16 %v2427
      %v2604 = vpack.c.b16 %v2573, %v2572
      %v2605 = vpack.c.b16 %v2575, %v2574
      %v2606 = vpack.c.b16 %v2577, %v2576
      %v2607 = vpack.c.b16 %v2579, %v2578
      %v2608 = vpack.c.b16 %v2581, %v2580
      %v2609 = vpack.c.b16 %v2583, %v2582
      %v2610 = vpack.c.b16 %v2585, %v2584
      %v2611 = vpack.c.b16 %v2587, %v2586
      %v2612 = vpack.c.b16 %v2589, %v2588
      %v2613 = vpack.c.b16 %v2591, %v2590
      %v2614 = vpack.c.b16 %v2593, %v2592
      %v2615 = vpack.c.b16 %v2595, %v2594
      %v2616 = vpack.c.b16 %v2597, %v2596
      %v2617 = vpack.c.b16 %v2599, %v2598
      %v2618 = vpack.c.b16 %v2601, %v2600
      %v2619 = vpack.c.b16 %v2603, %v2602
      %s2636 = scalar_lea.vmem %s3, 192
      %v2637 = vld [vmem:[%s2636] sm:$0xf]
      %v2638 = vld [vmem:[%s2636 + $0x4] sm:$0xf]
      %v2639 = vld [vmem:[%s2636 + $0x8] sm:$0xf]
      %v2640 = vld [vmem:[%s2636 + $0xc] sm:$0xf]
      %v2641 = vld [vmem:[%s2636 + $0x10] sm:$0xf]
      %v2642 = vld [vmem:[%s2636 + $0x14] sm:$0xf]
      %v2643 = vld [vmem:[%s2636 + $0x18] sm:$0xf]
      %v2644 = vld [vmem:[%s2636 + $0x1c] sm:$0xf]
      %v2645 = vld [vmem:[%s2636 + $0x20] sm:$0xf]
      %v2646 = vld [vmem:[%s2636 + $0x24] sm:$0xf]
      %v2647 = vld [vmem:[%s2636 + $0x28] sm:$0xf]
      %v2648 = vld [vmem:[%s2636 + $0x2c] sm:$0xf]
      %v2649 = vld [vmem:[%s2636 + $0x30] sm:$0xf]
      %v2650 = vld [vmem:[%s2636 + $0x34] sm:$0xf]
      %v2651 = vld [vmem:[%s2636 + $0x38] sm:$0xf]
      %v2652 = vld [vmem:[%s2636 + $0x3c] sm:$0xf]
      %v2653 = vld [vmem:[%s2636 + $0x40] sm:$0xf]
      %v2654 = vld [vmem:[%s2636 + $0x44] sm:$0xf]
      %v2655 = vld [vmem:[%s2636 + $0x48] sm:$0xf]
      %v2656 = vld [vmem:[%s2636 + $0x4c] sm:$0xf]
      %v2657 = vld [vmem:[%s2636 + $0x50] sm:$0xf]
      %v2658 = vld [vmem:[%s2636 + $0x54] sm:$0xf]
      %v2659 = vld [vmem:[%s2636 + $0x58] sm:$0xf]
      %v2660 = vld [vmem:[%s2636 + $0x5c] sm:$0xf]
      %v2661 = vld [vmem:[%s2636 + $0x60] sm:$0xf]
      %v2662 = vld [vmem:[%s2636 + $0x64] sm:$0xf]
      %v2663 = vld [vmem:[%s2636 + $0x68] sm:$0xf]
      %v2664 = vld [vmem:[%s2636 + $0x6c] sm:$0xf]
      %v2665 = vld [vmem:[%s2636 + $0x70] sm:$0xf]
      %v2666 = vld [vmem:[%s2636 + $0x74] sm:$0xf]
      %v2667 = vld [vmem:[%s2636 + $0x78] sm:$0xf]
      %v2668 = vld [vmem:[%s2636 + $0x7c] sm:$0xf]
      %v2669 = vld [vmem:[%s2636 + $0x80] sm:$0xf]
      %v2670 = vld [vmem:[%s2636 + $0x84] sm:$0xf]
      %v2671 = vld [vmem:[%s2636 + $0x88] sm:$0xf]
      %v2672 = vld [vmem:[%s2636 + $0x8c] sm:$0xf]
      %v2673 = vld [vmem:[%s2636 + $0x90] sm:$0xf]
      %v2674 = vld [vmem:[%s2636 + $0x94] sm:$0xf]
      %v2675 = vld [vmem:[%s2636 + $0x98] sm:$0xf]
      %v2676 = vld [vmem:[%s2636 + $0x9c] sm:$0xf]
      %v2677 = vld [vmem:[%s2636 + $0xa0] sm:$0xf]
      %v2678 = vld [vmem:[%s2636 + $0xa4] sm:$0xf]
      %v2679 = vld [vmem:[%s2636 + $0xa8] sm:$0xf]
      %v2680 = vld [vmem:[%s2636 + $0xac] sm:$0xf]
      %v2681 = vld [vmem:[%s2636 + $0xb0] sm:$0xf]
      %v2682 = vld [vmem:[%s2636 + $0xb4] sm:$0xf]
      %v2683 = vld [vmem:[%s2636 + $0xb8] sm:$0xf]
      %v2684 = vld [vmem:[%s2636 + $0xbc] sm:$0xf]
      %v2733 = vunpack.c.l.b16 %v2637
      %v2734 = vunpack.c.l.b16 %v2638
      %v2735 = vunpack.c.l.b16 %v2639
      %v2736 = vunpack.c.l.b16 %v2640
      %v2737 = vunpack.c.l.b16 %v2641
      %v2738 = vunpack.c.l.b16 %v2642
      %v2739 = vunpack.c.l.b16 %v2643
      %v2740 = vunpack.c.l.b16 %v2644
      %v2741 = vunpack.c.l.b16 %v2645
      %v2742 = vunpack.c.l.b16 %v2646
      %v2743 = vunpack.c.l.b16 %v2647
      %v2744 = vunpack.c.l.b16 %v2648
      %v2745 = vunpack.c.l.b16 %v2649
      %v2746 = vunpack.c.l.b16 %v2650
      %v2747 = vunpack.c.l.b16 %v2651
      %v2748 = vunpack.c.l.b16 %v2652
      %v2749 = vunpack.c.l.b16 %v2653
      %v2750 = vunpack.c.l.b16 %v2654
      %v2751 = vunpack.c.l.b16 %v2655
      %v2752 = vunpack.c.l.b16 %v2656
      %v2753 = vunpack.c.l.b16 %v2657
      %v2754 = vunpack.c.l.b16 %v2658
      %v2755 = vunpack.c.l.b16 %v2659
      %v2756 = vunpack.c.l.b16 %v2660
      %v2757 = vunpack.c.l.b16 %v2661
      %v2758 = vunpack.c.l.b16 %v2662
      %v2759 = vunpack.c.l.b16 %v2663
      %v2760 = vunpack.c.l.b16 %v2664
      %v2761 = vunpack.c.l.b16 %v2665
      %v2762 = vunpack.c.l.b16 %v2666
      %v2763 = vunpack.c.l.b16 %v2667
      %v2764 = vunpack.c.l.b16 %v2668
      %v2765 = vunpack.c.l.b16 %v2669
      %v2766 = vunpack.c.l.b16 %v2670
      %v2767 = vunpack.c.l.b16 %v2671
      %v2768 = vunpack.c.l.b16 %v2672
      %v2769 = vunpack.c.l.b16 %v2673
      %v2770 = vunpack.c.l.b16 %v2674
      %v2771 = vunpack.c.l.b16 %v2675
      %v2772 = vunpack.c.l.b16 %v2676
      %v2773 = vunpack.c.l.b16 %v2677
      %v2774 = vunpack.c.l.b16 %v2678
      %v2775 = vunpack.c.l.b16 %v2679
      %v2776 = vunpack.c.l.b16 %v2680
      %v2777 = vunpack.c.l.b16 %v2681
      %v2778 = vunpack.c.l.b16 %v2682
      %v2779 = vunpack.c.l.b16 %v2683
      %v2780 = vunpack.c.l.b16 %v2684
      %v2781 = vpack.c.b16 %v2734, %v2733
      %v2782 = vpack.c.b16 %v2736, %v2735
      %v2783 = vpack.c.b16 %v2738, %v2737
      %v2784 = vpack.c.b16 %v2740, %v2739
      %v2785 = vpack.c.b16 %v2742, %v2741
      %v2786 = vpack.c.b16 %v2744, %v2743
      %v2787 = vpack.c.b16 %v2746, %v2745
      %v2788 = vpack.c.b16 %v2748, %v2747
      %v2789 = vpack.c.b16 %v2750, %v2749
      %v2790 = vpack.c.b16 %v2752, %v2751
      %v2791 = vpack.c.b16 %v2754, %v2753
      %v2792 = vpack.c.b16 %v2756, %v2755
      %v2793 = vpack.c.b16 %v2758, %v2757
      %v2794 = vpack.c.b16 %v2760, %v2759
      %v2795 = vpack.c.b16 %v2762, %v2761
      %v2796 = vpack.c.b16 %v2764, %v2763
      %v2797 = vpack.c.b16 %v2766, %v2765
      %v2798 = vpack.c.b16 %v2768, %v2767
      %v2799 = vpack.c.b16 %v2770, %v2769
      %v2800 = vpack.c.b16 %v2772, %v2771
      %v2801 = vpack.c.b16 %v2774, %v2773
      %v2802 = vpack.c.b16 %v2776, %v2775
      %v2803 = vpack.c.b16 %v2778, %v2777
      %v2804 = vpack.c.b16 %v2780, %v2779
      %2829 = vmatpush.bf16.msra.mxu0 %v2788
      %2830 = vmatpush.bf16.msra.mxu0 %v2787
      %2831 = vmatpush.bf16.msra.mxu0 %v2786
      %2832 = vmatpush.bf16.msra.mxu0 %v2785
      %2833 = vmatpush.bf16.msra.mxu0 %v2784
      %2834 = vmatpush.bf16.msra.mxu0 %v2783
      %2835 = vmatpush.bf16.msra.mxu0 %v2782
      %2836 = vmatpush.bf16.msra.mxu0 %v2781
      %2837 = vmatmul.bf16.gmra.mxu0 %v2476
      %v2838 = vpop.f32.mrf.mxu0
      %v2839 = vadd.f32 0.0, %v2838
      %v2840 = vpop.f32.mrf.mxu0
      %v2841 = vadd.f32 0.0, %v2840
      %2842 = vmatmul.bf16.gmra.mxu0 %v2477
      %v2843 = vpop.f32.mrf.mxu0
      %v2844 = vadd.f32 0.0, %v2843
      %v2845 = vpop.f32.mrf.mxu0
      %v2846 = vadd.f32 0.0, %v2845
      %2847 = vmatmul.bf16.gmra.mxu0 %v2478
      %v2848 = vpop.f32.mrf.mxu0
      %v2849 = vadd.f32 0.0, %v2848
      %v2850 = vpop.f32.mrf.mxu0
      %v2851 = vadd.f32 0.0, %v2850
      %2852 = vmatmul.bf16.gmra.mxu0 %v2479
      %v2853 = vpop.f32.mrf.mxu0
      %v2854 = vadd.f32 0.0, %v2853
      %v2855 = vpop.f32.mrf.mxu0
      %v2856 = vadd.f32 0.0, %v2855
      %2857 = vmatmul.bf16.gmra.mxu0 %v2480
      %v2858 = vpop.f32.mrf.mxu0
      %v2859 = vadd.f32 0.0, %v2858
      %v2860 = vpop.f32.mrf.mxu0
      %v2861 = vadd.f32 0.0, %v2860
      %2862 = vmatmul.bf16.gmra.mxu0 %v2481
      %v2863 = vpop.f32.mrf.mxu0
      %v2864 = vadd.f32 0.0, %v2863
      %v2865 = vpop.f32.mrf.mxu0
      %v2866 = vadd.f32 0.0, %v2865
      %2867 = vmatmul.bf16.gmra.mxu0 %v2482
      %v2868 = vpop.f32.mrf.mxu0
      %v2869 = vadd.f32 0.0, %v2868
      %v2870 = vpop.f32.mrf.mxu0
      %v2871 = vadd.f32 0.0, %v2870
      %2872 = vmatmul.bf16.gmra.mxu0 %v2483
      %v2873 = vpop.f32.mrf.mxu0
      %v2874 = vadd.f32 0.0, %v2873
      %v2875 = vpop.f32.mrf.mxu0
      %v2876 = vadd.f32 0.0, %v2875
      %2877 = vmatmul.bf16.gmra.mxu0 %v2484
      %v2878 = vpop.f32.mrf.mxu0
      %v2879 = vadd.f32 0.0, %v2878
      %v2880 = vpop.f32.mrf.mxu0
      %v2881 = vadd.f32 0.0, %v2880
      %2882 = vmatmul.bf16.gmra.mxu0 %v2485
      %v2883 = vpop.f32.mrf.mxu0
      %v2884 = vadd.f32 0.0, %v2883
      %v2885 = vpop.f32.mrf.mxu0
      %v2886 = vadd.f32 0.0, %v2885
      %2887 = vmatmul.bf16.gmra.mxu0 %v2486
      %v2888 = vpop.f32.mrf.mxu0
      %v2889 = vadd.f32 0.0, %v2888
      %v2890 = vpop.f32.mrf.mxu0
      %v2891 = vadd.f32 0.0, %v2890
      %2892 = vmatmul.bf16.gmra.mxu0 %v2487
      %v2893 = vpop.f32.mrf.mxu0
      %v2894 = vadd.f32 0.0, %v2893
      %v2895 = vpop.f32.mrf.mxu0
      %v2896 = vadd.f32 0.0, %v2895
      %2897 = vmatmul.bf16.gmra.mxu0 %v2488
      %v2898 = vpop.f32.mrf.mxu0
      %v2899 = vadd.f32 0.0, %v2898
      %v2900 = vpop.f32.mrf.mxu0
      %v2901 = vadd.f32 0.0, %v2900
      %2902 = vmatmul.bf16.gmra.mxu0 %v2489
      %v2903 = vpop.f32.mrf.mxu0
      %v2904 = vadd.f32 0.0, %v2903
      %v2905 = vpop.f32.mrf.mxu0
      %v2906 = vadd.f32 0.0, %v2905
      %2907 = vmatmul.bf16.gmra.mxu0 %v2490
      %v2908 = vpop.f32.mrf.mxu0
      %v2909 = vadd.f32 0.0, %v2908
      %v2910 = vpop.f32.mrf.mxu0
      %v2911 = vadd.f32 0.0, %v2910
      %2912 = vmatmul.bf16.gmra.mxu0 %v2491
      %v2913 = vpop.f32.mrf.mxu0
      %v2914 = vadd.f32 0.0, %v2913
      %v2915 = vpop.f32.mrf.mxu0
      %v2916 = vadd.f32 0.0, %v2915
      %2917 = vdwg.mxu0
      %2918 = vmatpush.bf16.msra.mxu0 %v2796
      %2919 = vmatpush.bf16.msra.mxu0 %v2795
      %2920 = vmatpush.bf16.msra.mxu0 %v2794
      %2921 = vmatpush.bf16.msra.mxu0 %v2793
      %2922 = vmatpush.bf16.msra.mxu0 %v2792
      %2923 = vmatpush.bf16.msra.mxu0 %v2791
      %2924 = vmatpush.bf16.msra.mxu0 %v2790
      %2925 = vmatpush.bf16.msra.mxu0 %v2789
      %2926 = vmatmul.bf16.gmra.mxu0 %v2540
      %v2927 = vpop.f32.mrf.mxu0
      %v2928 = vadd.f32 %v2839, %v2927
      %v2929 = vpop.f32.mrf.mxu0
      %v2930 = vadd.f32 %v2841, %v2929
      %2931 = vmatmul.bf16.gmra.mxu0 %v2541
      %v2932 = vpop.f32.mrf.mxu0
      %v2933 = vadd.f32 %v2844, %v2932
      %v2934 = vpop.f32.mrf.mxu0
      %v2935 = vadd.f32 %v2846, %v2934
      %2936 = vmatmul.bf16.gmra.mxu0 %v2542
      %v2937 = vpop.f32.mrf.mxu0
      %v2938 = vadd.f32 %v2849, %v2937
      %v2939 = vpop.f32.mrf.mxu0
      %v2940 = vadd.f32 %v2851, %v2939
      %2941 = vmatmul.bf16.gmra.mxu0 %v2543
      %v2942 = vpop.f32.mrf.mxu0
      %v2943 = vadd.f32 %v2854, %v2942
      %v2944 = vpop.f32.mrf.mxu0
      %v2945 = vadd.f32 %v2856, %v2944
      %2946 = vmatmul.bf16.gmra.mxu0 %v2544
      %v2947 = vpop.f32.mrf.mxu0
      %v2948 = vadd.f32 %v2859, %v2947
      %v2949 = vpop.f32.mrf.mxu0
      %v2950 = vadd.f32 %v2861, %v2949
      %2951 = vmatmul.bf16.gmra.mxu0 %v2545
      %v2952 = vpop.f32.mrf.mxu0
      %v2953 = vadd.f32 %v2864, %v2952
      %v2954 = vpop.f32.mrf.mxu0
      %v2955 = vadd.f32 %v2866, %v2954
      %2956 = vmatmul.bf16.gmra.mxu0 %v2546
      %v2957 = vpop.f32.mrf.mxu0
      %v2958 = vadd.f32 %v2869, %v2957
      %v2959 = vpop.f32.mrf.mxu0
      %v2960 = vadd.f32 %v2871, %v2959
      %2961 = vmatmul.bf16.gmra.mxu0 %v2547
      %v2962 = vpop.f32.mrf.mxu0
      %v2963 = vadd.f32 %v2874, %v2962
      %v2964 = vpop.f32.mrf.mxu0
      %v2965 = vadd.f32 %v2876, %v2964
      %2966 = vmatmul.bf16.gmra.mxu0 %v2548
      %v2967 = vpop.f32.mrf.mxu0
      %v2968 = vadd.f32 %v2879, %v2967
      %v2969 = vpop.f32.mrf.mxu0
      %v2970 = vadd.f32 %v2881, %v2969
      %2971 = vmatmul.bf16.gmra.mxu0 %v2549
      %v2972 = vpop.f32.mrf.mxu0
      %v2973 = vadd.f32 %v2884, %v2972
      %v2974 = vpop.f32.mrf.mxu0
      %v2975 = vadd.f32 %v2886, %v2974
      %2976 = vmatmul.bf16.gmra.mxu0 %v2550
      %v2977 = vpop.f32.mrf.mxu0
      %v2978 = vadd.f32 %v2889, %v2977
      %v2979 = vpop.f32.mrf.mxu0
      %v2980 = vadd.f32 %v2891, %v2979
      %2981 = vmatmul.bf16.gmra.mxu0 %v2551
      %v2982 = vpop.f32.mrf.mxu0
      %v2983 = vadd.f32 %v2894, %v2982
      %v2984 = vpop.f32.mrf.mxu0
      %v2985 = vadd.f32 %v2896, %v2984
      %2986 = vmatmul.bf16.gmra.mxu0 %v2552
      %v2987 = vpop.f32.mrf.mxu0
      %v2988 = vadd.f32 %v2899, %v2987
      %v2989 = vpop.f32.mrf.mxu0
      %v2990 = vadd.f32 %v2901, %v2989
      %2991 = vmatmul.bf16.gmra.mxu0 %v2553
      %v2992 = vpop.f32.mrf.mxu0
      %v2993 = vadd.f32 %v2904, %v2992
      %v2994 = vpop.f32.mrf.mxu0
      %v2995 = vadd.f32 %v2906, %v2994
      %2996 = vmatmul.bf16.gmra.mxu0 %v2554
      %v2997 = vpop.f32.mrf.mxu0
      %v2998 = vadd.f32 %v2909, %v2997
      %v2999 = vpop.f32.mrf.mxu0
      %v3000 = vadd.f32 %v2911, %v2999
      %3001 = vmatmul.bf16.gmra.mxu0 %v2555
      %v3002 = vpop.f32.mrf.mxu0
      %v3003 = vadd.f32 %v2914, %v3002
      %v3004 = vpop.f32.mrf.mxu0
      %v3005 = vadd.f32 %v2916, %v3004
      %3006 = vdwg.mxu0
      %3007 = vmatpush.bf16.msra.mxu0 %v2804
      %3008 = vmatpush.bf16.msra.mxu0 %v2803
      %3009 = vmatpush.bf16.msra.mxu0 %v2802
      %3010 = vmatpush.bf16.msra.mxu0 %v2801
      %3011 = vmatpush.bf16.msra.mxu0 %v2800
      %3012 = vmatpush.bf16.msra.mxu0 %v2799
      %3013 = vmatpush.bf16.msra.mxu0 %v2798
      %3014 = vmatpush.bf16.msra.mxu0 %v2797
      %3015 = vmatmul.bf16.gmra.mxu0 %v2604
      %v3016 = vpop.f32.mrf.mxu0
      %v3017 = vadd.f32 %v2928, %v3016
      %v3018 = vpop.f32.mrf.mxu0
      %v3019 = vadd.f32 %v2930, %v3018
      %3020 = vmatmul.bf16.gmra.mxu0 %v2605
      %v3021 = vpop.f32.mrf.mxu0
      %v3022 = vadd.f32 %v2933, %v3021
      %v3023 = vpop.f32.mrf.mxu0
      %v3024 = vadd.f32 %v2935, %v3023
      %3025 = vmatmul.bf16.gmra.mxu0 %v2606
      %v3026 = vpop.f32.mrf.mxu0
      %v3027 = vadd.f32 %v2938, %v3026
      %v3028 = vpop.f32.mrf.mxu0
      %v3029 = vadd.f32 %v2940, %v3028
      %3030 = vmatmul.bf16.gmra.mxu0 %v2607
      %v3031 = vpop.f32.mrf.mxu0
      %v3032 = vadd.f32 %v2943, %v3031
      %v3033 = vpop.f32.mrf.mxu0
      %v3034 = vadd.f32 %v2945, %v3033
      %3035 = vmatmul.bf16.gmra.mxu0 %v2608
      %v3036 = vpop.f32.mrf.mxu0
      %v3037 = vadd.f32 %v2948, %v3036
      %v3038 = vpop.f32.mrf.mxu0
      %v3039 = vadd.f32 %v2950, %v3038
      %3040 = vmatmul.bf16.gmra.mxu0 %v2609
      %v3041 = vpop.f32.mrf.mxu0
      %v3042 = vadd.f32 %v2953, %v3041
      %v3043 = vpop.f32.mrf.mxu0
      %v3044 = vadd.f32 %v2955, %v3043
      %3045 = vmatmul.bf16.gmra.mxu0 %v2610
      %v3046 = vpop.f32.mrf.mxu0
      %v3047 = vadd.f32 %v2958, %v3046
      %v3048 = vpop.f32.mrf.mxu0
      %v3049 = vadd.f32 %v2960, %v3048
      %3050 = vmatmul.bf16.gmra.mxu0 %v2611
      %v3051 = vpop.f32.mrf.mxu0
      %v3052 = vadd.f32 %v2963, %v3051
      %v3053 = vpop.f32.mrf.mxu0
      %v3054 = vadd.f32 %v2965, %v3053
      %3055 = vmatmul.bf16.gmra.mxu0 %v2612
      %v3056 = vpop.f32.mrf.mxu0
      %v3057 = vadd.f32 %v2968, %v3056
      %v3058 = vpop.f32.mrf.mxu0
      %v3059 = vadd.f32 %v2970, %v3058
      %3060 = vmatmul.bf16.gmra.mxu0 %v2613
      %v3061 = vpop.f32.mrf.mxu0
      %v3062 = vadd.f32 %v2973, %v3061
      %v3063 = vpop.f32.mrf.mxu0
      %v3064 = vadd.f32 %v2975, %v3063
      %3065 = vmatmul.bf16.gmra.mxu0 %v2614
      %v3066 = vpop.f32.mrf.mxu0
      %v3067 = vadd.f32 %v2978, %v3066
      %v3068 = vpop.f32.mrf.mxu0
      %v3069 = vadd.f32 %v2980, %v3068
      %3070 = vmatmul.bf16.gmra.mxu0 %v2615
      %v3071 = vpop.f32.mrf.mxu0
      %v3072 = vadd.f32 %v2983, %v3071
      %v3073 = vpop.f32.mrf.mxu0
      %v3074 = vadd.f32 %v2985, %v3073
      %3075 = vmatmul.bf16.gmra.mxu0 %v2616
      %v3076 = vpop.f32.mrf.mxu0
      %v3077 = vadd.f32 %v2988, %v3076
      %v3078 = vpop.f32.mrf.mxu0
      %v3079 = vadd.f32 %v2990, %v3078
      %3080 = vmatmul.bf16.gmra.mxu0 %v2617
      %v3081 = vpop.f32.mrf.mxu0
      %v3082 = vadd.f32 %v2993, %v3081
      %v3083 = vpop.f32.mrf.mxu0
      %v3084 = vadd.f32 %v2995, %v3083
      %3085 = vmatmul.bf16.gmra.mxu0 %v2618
      %v3086 = vpop.f32.mrf.mxu0
      %v3087 = vadd.f32 %v2998, %v3086
      %v3088 = vpop.f32.mrf.mxu0
      %v3089 = vadd.f32 %v3000, %v3088
      %3090 = vmatmul.bf16.gmra.mxu0 %v2619
      %v3091 = vpop.f32.mrf.mxu0
      %v3092 = vadd.f32 %v3003, %v3091
      %v3093 = vpop.f32.mrf.mxu0
      %v3094 = vadd.f32 %v3005, %v3093
      %3095 = vdwg.mxu0
      %v3144 = vunpack.c.l.b16 %v1772
      %v3145 = vunpack.c.l.b16 %v1773
      %v3146 = vunpack.c.l.b16 %v1774
      %v3147 = vunpack.c.l.b16 %v1775
      %v3148 = vunpack.c.l.b16 %v1776
      %v3149 = vunpack.c.l.b16 %v1777
      %v3150 = vunpack.c.l.b16 %v1778
      %v3151 = vunpack.c.l.b16 %v1779
      %v3152 = vunpack.c.l.b16 %v1780
      %v3153 = vunpack.c.l.b16 %v1781
      %v3154 = vunpack.c.l.b16 %v1782
      %v3155 = vunpack.c.l.b16 %v1783
      %v3156 = vunpack.c.l.b16 %v1784
      %v3157 = vunpack.c.l.b16 %v1785
      %v3158 = vunpack.c.l.b16 %v1786
      %v3159 = vunpack.c.l.b16 %v1787
      %v3160 = vunpack.c.l.b16 %v1788
      %v3161 = vunpack.c.l.b16 %v1789
      %v3162 = vunpack.c.l.b16 %v1790
      %v3163 = vunpack.c.l.b16 %v1791
      %v3164 = vunpack.c.l.b16 %v1792
      %v3165 = vunpack.c.l.b16 %v1793
      %v3166 = vunpack.c.l.b16 %v1794
      %v3167 = vunpack.c.l.b16 %v1795
      %v3168 = vunpack.c.l.b16 %v1796
      %v3169 = vunpack.c.l.b16 %v1797
      %v3170 = vunpack.c.l.b16 %v1798
      %v3171 = vunpack.c.l.b16 %v1799
      %v3172 = vunpack.c.l.b16 %v1800
      %v3173 = vunpack.c.l.b16 %v1801
      %v3174 = vunpack.c.l.b16 %v1802
      %v3175 = vunpack.c.l.b16 %v1803
      %v3176 = vunpack.c.l.b16 %v1804
      %v3177 = vunpack.c.l.b16 %v1805
      %v3178 = vunpack.c.l.b16 %v1806
      %v3179 = vunpack.c.l.b16 %v1807
      %v3180 = vunpack.c.l.b16 %v1808
      %v3181 = vunpack.c.l.b16 %v1809
      %v3182 = vunpack.c.l.b16 %v1810
      %v3183 = vunpack.c.l.b16 %v1811
      %v3184 = vunpack.c.l.b16 %v1812
      %v3185 = vunpack.c.l.b16 %v1813
      %v3186 = vunpack.c.l.b16 %v1814
      %v3187 = vunpack.c.l.b16 %v1815
      %v3188 = vunpack.c.l.b16 %v1816
      %v3189 = vunpack.c.l.b16 %v1817
      %v3190 = vunpack.c.l.b16 %v1818
      %v3191 = vunpack.c.l.b16 %v1819
      %v3192 = vpack.c.b16 %v3145, %v3144
      %v3193 = vpack.c.b16 %v3147, %v3146
      %v3194 = vpack.c.b16 %v3149, %v3148
      %v3195 = vpack.c.b16 %v3151, %v3150
      %v3196 = vpack.c.b16 %v3153, %v3152
      %v3197 = vpack.c.b16 %v3155, %v3154
      %v3198 = vpack.c.b16 %v3157, %v3156
      %v3199 = vpack.c.b16 %v3159, %v3158
      %v3200 = vpack.c.b16 %v3161, %v3160
      %v3201 = vpack.c.b16 %v3163, %v3162
      %v3202 = vpack.c.b16 %v3165, %v3164
      %v3203 = vpack.c.b16 %v3167, %v3166
      %v3204 = vpack.c.b16 %v3169, %v3168
      %v3205 = vpack.c.b16 %v3171, %v3170
      %v3206 = vpack.c.b16 %v3173, %v3172
      %v3207 = vpack.c.b16 %v3175, %v3174
      %v3208 = vpack.c.b16 %v3177, %v3176
      %v3209 = vpack.c.b16 %v3179, %v3178
      %v3210 = vpack.c.b16 %v3181, %v3180
      %v3211 = vpack.c.b16 %v3183, %v3182
      %v3212 = vpack.c.b16 %v3185, %v3184
      %v3213 = vpack.c.b16 %v3187, %v3186
      %v3214 = vpack.c.b16 %v3189, %v3188
      %v3215 = vpack.c.b16 %v3191, %v3190
      %3240 = vmatpush.bf16.msra.mxu0 %v3199
      %3241 = vmatpush.bf16.msra.mxu0 %v3198
      %3242 = vmatpush.bf16.msra.mxu0 %v3197
      %3243 = vmatpush.bf16.msra.mxu0 %v3196
      %3244 = vmatpush.bf16.msra.mxu0 %v3195
      %3245 = vmatpush.bf16.msra.mxu0 %v3194
      %3246 = vmatpush.bf16.msra.mxu0 %v3193
      %3247 = vmatpush.bf16.msra.mxu0 %v3192
      %3248 = vmatmul.bf16.gmra.mxu0 %v1612
      %v3249 = vpop.f32.mrf.mxu0
      %v3250 = vadd.f32 %v3017, %v3249
      %v3251 = vpop.f32.mrf.mxu0
      %v3252 = vadd.f32 %v3019, %v3251
      %3253 = vmatmul.bf16.gmra.mxu0 %v1613
      %v3254 = vpop.f32.mrf.mxu0
      %v3255 = vadd.f32 %v3022, %v3254
      %v3256 = vpop.f32.mrf.mxu0
      %v3257 = vadd.f32 %v3024, %v3256
      %3258 = vmatmul.bf16.gmra.mxu0 %v1614
      %v3259 = vpop.f32.mrf.mxu0
      %v3260 = vadd.f32 %v3027, %v3259
      %v3261 = vpop.f32.mrf.mxu0
      %v3262 = vadd.f32 %v3029, %v3261
      %3263 = vmatmul.bf16.gmra.mxu0 %v1615
      %v3264 = vpop.f32.mrf.mxu0
      %v3265 = vadd.f32 %v3032, %v3264
      %v3266 = vpop.f32.mrf.mxu0
      %v3267 = vadd.f32 %v3034, %v3266
      %3268 = vmatmul.bf16.gmra.mxu0 %v1616
      %v3269 = vpop.f32.mrf.mxu0
      %v3270 = vadd.f32 %v3037, %v3269
      %v3271 = vpop.f32.mrf.mxu0
      %v3272 = vadd.f32 %v3039, %v3271
      %3273 = vmatmul.bf16.gmra.mxu0 %v1617
      %v3274 = vpop.f32.mrf.mxu0
      %v3275 = vadd.f32 %v3042, %v3274
      %v3276 = vpop.f32.mrf.mxu0
      %v3277 = vadd.f32 %v3044, %v3276
      %3278 = vmatmul.bf16.gmra.mxu0 %v1618
      %v3279 = vpop.f32.mrf.mxu0
      %v3280 = vadd.f32 %v3047, %v3279
      %v3281 = vpop.f32.mrf.mxu0
      %v3282 = vadd.f32 %v3049, %v3281
      %3283 = vmatmul.bf16.gmra.mxu0 %v1619
      %v3284 = vpop.f32.mrf.mxu0
      %v3285 = vadd.f32 %v3052, %v3284
      %v3286 = vpop.f32.mrf.mxu0
      %v3287 = vadd.f32 %v3054, %v3286
      %3288 = vmatmul.bf16.gmra.mxu0 %v1620
      %v3289 = vpop.f32.mrf.mxu0
      %v3290 = vadd.f32 %v3057, %v3289
      %v3291 = vpop.f32.mrf.mxu0
      %v3292 = vadd.f32 %v3059, %v3291
      %3293 = vmatmul.bf16.gmra.mxu0 %v1621
      %v3294 = vpop.f32.mrf.mxu0
      %v3295 = vadd.f32 %v3062, %v3294
      %v3296 = vpop.f32.mrf.mxu0
      %v3297 = vadd.f32 %v3064, %v3296
      %3298 = vmatmul.bf16.gmra.mxu0 %v1622
      %v3299 = vpop.f32.mrf.mxu0
      %v3300 = vadd.f32 %v3067, %v3299
      %v3301 = vpop.f32.mrf.mxu0
      %v3302 = vadd.f32 %v3069, %v3301
      %3303 = vmatmul.bf16.gmra.mxu0 %v1623
      %v3304 = vpop.f32.mrf.mxu0
      %v3305 = vadd.f32 %v3072, %v3304
      %v3306 = vpop.f32.mrf.mxu0
      %v3307 = vadd.f32 %v3074, %v3306
      %3308 = vmatmul.bf16.gmra.mxu0 %v1624
      %v3309 = vpop.f32.mrf.mxu0
      %v3310 = vadd.f32 %v3077, %v3309
      %v3311 = vpop.f32.mrf.mxu0
      %v3312 = vadd.f32 %v3079, %v3311
      %3313 = vmatmul.bf16.gmra.mxu0 %v1625
      %v3314 = vpop.f32.mrf.mxu0
      %v3315 = vadd.f32 %v3082, %v3314
      %v3316 = vpop.f32.mrf.mxu0
      %v3317 = vadd.f32 %v3084, %v3316
      %3318 = vmatmul.bf16.gmra.mxu0 %v1626
      %v3319 = vpop.f32.mrf.mxu0
      %v3320 = vadd.f32 %v3087, %v3319
      %v3321 = vpop.f32.mrf.mxu0
      %v3322 = vadd.f32 %v3089, %v3321
      %3323 = vmatmul.bf16.gmra.mxu0 %v1627
      %v3324 = vpop.f32.mrf.mxu0
      %v3325 = vadd.f32 %v3092, %v3324
      %v3326 = vpop.f32.mrf.mxu0
      %v3327 = vadd.f32 %v3094, %v3326
      %3328 = vdwg.mxu0
      %3329 = vmatpush.bf16.msra.mxu0 %v3207
      %3330 = vmatpush.bf16.msra.mxu0 %v3206
      %3331 = vmatpush.bf16.msra.mxu0 %v3205
      %3332 = vmatpush.bf16.msra.mxu0 %v3204
      %3333 = vmatpush.bf16.msra.mxu0 %v3203
      %3334 = vmatpush.bf16.msra.mxu0 %v3202
      %3335 = vmatpush.bf16.msra.mxu0 %v3201
      %3336 = vmatpush.bf16.msra.mxu0 %v3200
      %3337 = vmatmul.bf16.gmra.mxu0 %v1676
      %v3338 = vpop.f32.mrf.mxu0
      %v3339 = vadd.f32 %v3250, %v3338
      %v3340 = vpop.f32.mrf.mxu0
      %v3341 = vadd.f32 %v3252, %v3340
      %3342 = vmatmul.bf16.gmra.mxu0 %v1677
      %v3343 = vpop.f32.mrf.mxu0
      %v3344 = vadd.f32 %v3255, %v3343
      %v3345 = vpop.f32.mrf.mxu0
      %v3346 = vadd.f32 %v3257, %v3345
      %3347 = vmatmul.bf16.gmra.mxu0 %v1678
      %v3348 = vpop.f32.mrf.mxu0
      %v3349 = vadd.f32 %v3260, %v3348
      %v3350 = vpop.f32.mrf.mxu0
      %v3351 = vadd.f32 %v3262, %v3350
      %3352 = vmatmul.bf16.gmra.mxu0 %v1679
      %v3353 = vpop.f32.mrf.mxu0
      %v3354 = vadd.f32 %v3265, %v3353
      %v3355 = vpop.f32.mrf.mxu0
      %v3356 = vadd.f32 %v3267, %v3355
      %3357 = vmatmul.bf16.gmra.mxu0 %v1680
      %v3358 = vpop.f32.mrf.mxu0
      %v3359 = vadd.f32 %v3270, %v3358
      %v3360 = vpop.f32.mrf.mxu0
      %v3361 = vadd.f32 %v3272, %v3360
      %3362 = vmatmul.bf16.gmra.mxu0 %v1681
      %v3363 = vpop.f32.mrf.mxu0
      %v3364 = vadd.f32 %v3275, %v3363
      %v3365 = vpop.f32.mrf.mxu0
      %v3366 = vadd.f32 %v3277, %v3365
      %3367 = vmatmul.bf16.gmra.mxu0 %v1682
      %v3368 = vpop.f32.mrf.mxu0
      %v3369 = vadd.f32 %v3280, %v3368
      %v3370 = vpop.f32.mrf.mxu0
      %v3371 = vadd.f32 %v3282, %v3370
      %3372 = vmatmul.bf16.gmra.mxu0 %v1683
      %v3373 = vpop.f32.mrf.mxu0
      %v3374 = vadd.f32 %v3285, %v3373
      %v3375 = vpop.f32.mrf.mxu0
      %v3376 = vadd.f32 %v3287, %v3375
      %3377 = vmatmul.bf16.gmra.mxu0 %v1684
      %v3378 = vpop.f32.mrf.mxu0
      %v3379 = vadd.f32 %v3290, %v3378
      %v3380 = vpop.f32.mrf.mxu0
      %v3381 = vadd.f32 %v3292, %v3380
      %3382 = vmatmul.bf16.gmra.mxu0 %v1685
      %v3383 = vpop.f32.mrf.mxu0
      %v3384 = vadd.f32 %v3295, %v3383
      %v3385 = vpop.f32.mrf.mxu0
      %v3386 = vadd.f32 %v3297, %v3385
      %3387 = vmatmul.bf16.gmra.mxu0 %v1686
      %v3388 = vpop.f32.mrf.mxu0
      %v3389 = vadd.f32 %v3300, %v3388
      %v3390 = vpop.f32.mrf.mxu0
      %v3391 = vadd.f32 %v3302, %v3390
      %3392 = vmatmul.bf16.gmra.mxu0 %v1687
      %v3393 = vpop.f32.mrf.mxu0
      %v3394 = vadd.f32 %v3305, %v3393
      %v3395 = vpop.f32.mrf.mxu0
      %v3396 = vadd.f32 %v3307, %v3395
      %3397 = vmatmul.bf16.gmra.mxu0 %v1688
      %v3398 = vpop.f32.mrf.mxu0
      %v3399 = vadd.f32 %v3310, %v3398
      %v3400 = vpop.f32.mrf.mxu0
      %v3401 = vadd.f32 %v3312, %v3400
      %3402 = vmatmul.bf16.gmra.mxu0 %v1689
      %v3403 = vpop.f32.mrf.mxu0
      %v3404 = vadd.f32 %v3315, %v3403
      %v3405 = vpop.f32.mrf.mxu0
      %v3406 = vadd.f32 %v3317, %v3405
      %3407 = vmatmul.bf16.gmra.mxu0 %v1690
      %v3408 = vpop.f32.mrf.mxu0
      %v3409 = vadd.f32 %v3320, %v3408
      %v3410 = vpop.f32.mrf.mxu0
      %v3411 = vadd.f32 %v3322, %v3410
      %3412 = vmatmul.bf16.gmra.mxu0 %v1691
      %v3413 = vpop.f32.mrf.mxu0
      %v3414 = vadd.f32 %v3325, %v3413
      %v3415 = vpop.f32.mrf.mxu0
      %v3416 = vadd.f32 %v3327, %v3415
      %3417 = vdwg.mxu0
      %3418 = vmatpush.bf16.msra.mxu0 %v3215
      %3419 = vmatpush.bf16.msra.mxu0 %v3214
      %3420 = vmatpush.bf16.msra.mxu0 %v3213
      %3421 = vmatpush.bf16.msra.mxu0 %v3212
      %3422 = vmatpush.bf16.msra.mxu0 %v3211
      %3423 = vmatpush.bf16.msra.mxu0 %v3210
      %3424 = vmatpush.bf16.msra.mxu0 %v3209
      %3425 = vmatpush.bf16.msra.mxu0 %v3208
      %3426 = vmatmul.bf16.gmra.mxu0 %v1740
      %v3427 = vpop.f32.mrf.mxu0
      %v3428 = vadd.f32 %v3339, %v3427
      %v3429 = vpop.f32.mrf.mxu0
      %v3430 = vadd.f32 %v3341, %v3429
      %3431 = vmatmul.bf16.gmra.mxu0 %v1741
      %v3432 = vpop.f32.mrf.mxu0
      %v3433 = vadd.f32 %v3344, %v3432
      %v3434 = vpop.f32.mrf.mxu0
      %v3435 = vadd.f32 %v3346, %v3434
      %3436 = vmatmul.bf16.gmra.mxu0 %v1742
      %v3437 = vpop.f32.mrf.mxu0
      %v3438 = vadd.f32 %v3349, %v3437
      %v3439 = vpop.f32.mrf.mxu0
      %v3440 = vadd.f32 %v3351, %v3439
      %3441 = vmatmul.bf16.gmra.mxu0 %v1743
      %v3442 = vpop.f32.mrf.mxu0
      %v3443 = vadd.f32 %v3354, %v3442
      %v3444 = vpop.f32.mrf.mxu0
      %v3445 = vadd.f32 %v3356, %v3444
      %3446 = vmatmul.bf16.gmra.mxu0 %v1744
      %v3447 = vpop.f32.mrf.mxu0
      %v3448 = vadd.f32 %v3359, %v3447
      %v3449 = vpop.f32.mrf.mxu0
      %v3450 = vadd.f32 %v3361, %v3449
      %3451 = vmatmul.bf16.gmra.mxu0 %v1745
      %v3452 = vpop.f32.mrf.mxu0
      %v3453 = vadd.f32 %v3364, %v3452
      %v3454 = vpop.f32.mrf.mxu0
      %v3455 = vadd.f32 %v3366, %v3454
      %3456 = vmatmul.bf16.gmra.mxu0 %v1746
      %v3457 = vpop.f32.mrf.mxu0
      %v3458 = vadd.f32 %v3369, %v3457
      %v3459 = vpop.f32.mrf.mxu0
      %v3460 = vadd.f32 %v3371, %v3459
      %3461 = vmatmul.bf16.gmra.mxu0 %v1747
      %v3462 = vpop.f32.mrf.mxu0
      %v3463 = vadd.f32 %v3374, %v3462
      %v3464 = vpop.f32.mrf.mxu0
      %v3465 = vadd.f32 %v3376, %v3464
      %3466 = vmatmul.bf16.gmra.mxu0 %v1748
      %v3467 = vpop.f32.mrf.mxu0
      %v3468 = vadd.f32 %v3379, %v3467
      %v3469 = vpop.f32.mrf.mxu0
      %v3470 = vadd.f32 %v3381, %v3469
      %3471 = vmatmul.bf16.gmra.mxu0 %v1749
      %v3472 = vpop.f32.mrf.mxu0
      %v3473 = vadd.f32 %v3384, %v3472
      %v3474 = vpop.f32.mrf.mxu0
      %v3475 = vadd.f32 %v3386, %v3474
      %3476 = vmatmul.bf16.gmra.mxu0 %v1750
      %v3477 = vpop.f32.mrf.mxu0
      %v3478 = vadd.f32 %v3389, %v3477
      %v3479 = vpop.f32.mrf.mxu0
      %v3480 = vadd.f32 %v3391, %v3479
      %3481 = vmatmul.bf16.gmra.mxu0 %v1751
      %v3482 = vpop.f32.mrf.mxu0
      %v3483 = vadd.f32 %v3394, %v3482
      %v3484 = vpop.f32.mrf.mxu0
      %v3485 = vadd.f32 %v3396, %v3484
      %3486 = vmatmul.bf16.gmra.mxu0 %v1752
      %v3487 = vpop.f32.mrf.mxu0
      %v3488 = vadd.f32 %v3399, %v3487
      %v3489 = vpop.f32.mrf.mxu0
      %v3490 = vadd.f32 %v3401, %v3489
      %3491 = vmatmul.bf16.gmra.mxu0 %v1753
      %v3492 = vpop.f32.mrf.mxu0
      %v3493 = vadd.f32 %v3404, %v3492
      %v3494 = vpop.f32.mrf.mxu0
      %v3495 = vadd.f32 %v3406, %v3494
      %3496 = vmatmul.bf16.gmra.mxu0 %v1754
      %v3497 = vpop.f32.mrf.mxu0
      %v3498 = vadd.f32 %v3409, %v3497
      %v3499 = vpop.f32.mrf.mxu0
      %v3500 = vadd.f32 %v3411, %v3499
      %3501 = vmatmul.bf16.gmra.mxu0 %v1755
      %v3502 = vpop.f32.mrf.mxu0
      %v3503 = vadd.f32 %v3414, %v3502
      %v3504 = vpop.f32.mrf.mxu0
      %v3505 = vadd.f32 %v3416, %v3504
      %3506 = vdwg.mxu0
      %s3507 = scalar_lea.vmem [#allocation2], 24
      %v3508 = vld [vmem:[%s3507] sm:$0xf]
      %v3509 = vld [vmem:[%s3507 + $0x4] sm:$0xf]
      %v3510 = vld [vmem:[%s3507 + $0xc] sm:$0xf]
      %v3511 = vld [vmem:[%s3507 + $0x10] sm:$0xf]
      %v3512 = vld [vmem:[%s3507 + $0x18] sm:$0xf]
      %v3513 = vld [vmem:[%s3507 + $0x1c] sm:$0xf]
      %v3514 = vld [vmem:[%s3507 + $0x24] sm:$0xf]
      %v3515 = vld [vmem:[%s3507 + $0x28] sm:$0xf]
      %v3516 = vld [vmem:[%s3507 + $0x30] sm:$0xf]
      %v3517 = vld [vmem:[%s3507 + $0x34] sm:$0xf]
      %v3518 = vld [vmem:[%s3507 + $0x3c] sm:$0xf]
      %v3519 = vld [vmem:[%s3507 + $0x40] sm:$0xf]
      %v3520 = vld [vmem:[%s3507 + $0x48] sm:$0xf]
      %v3521 = vld [vmem:[%s3507 + $0x4c] sm:$0xf]
      %v3522 = vld [vmem:[%s3507 + $0x54] sm:$0xf]
      %v3523 = vld [vmem:[%s3507 + $0x58] sm:$0xf]
      %v3524 = vld [vmem:[%s3507 + $0x60] sm:$0xf]
      %v3525 = vld [vmem:[%s3507 + $0x64] sm:$0xf]
      %v3526 = vld [vmem:[%s3507 + $0x6c] sm:$0xf]
      %v3527 = vld [vmem:[%s3507 + $0x70] sm:$0xf]
      %v3528 = vld [vmem:[%s3507 + $0x78] sm:$0xf]
      %v3529 = vld [vmem:[%s3507 + $0x7c] sm:$0xf]
      %v3530 = vld [vmem:[%s3507 + $0x84] sm:$0xf]
      %v3531 = vld [vmem:[%s3507 + $0x88] sm:$0xf]
      %v3532 = vld [vmem:[%s3507 + $0x90] sm:$0xf]
      %v3533 = vld [vmem:[%s3507 + $0x94] sm:$0xf]
      %v3534 = vld [vmem:[%s3507 + $0x9c] sm:$0xf]
      %v3535 = vld [vmem:[%s3507 + $0xa0] sm:$0xf]
      %v3536 = vld [vmem:[%s3507 + $0xa8] sm:$0xf]
      %v3537 = vld [vmem:[%s3507 + $0xac] sm:$0xf]
      %v3538 = vld [vmem:[%s3507 + $0xb4] sm:$0xf]
      %v3539 = vld [vmem:[%s3507 + $0xb8] sm:$0xf]
      %v3540 = vld [vmem:[%s3507 + $0x8] sm:$0x1]
      %v3541 = vld [vmem:[%s3507 + $0x14] sm:$0x1]
      %v3542 = vld [vmem:[%s3507 + $0x20] sm:$0x1]
      %v3543 = vld [vmem:[%s3507 + $0x2c] sm:$0x1]
      %v3544 = vld [vmem:[%s3507 + $0x38] sm:$0x1]
      %v3545 = vld [vmem:[%s3507 + $0x44] sm:$0x1]
      %v3546 = vld [vmem:[%s3507 + $0x50] sm:$0x1]
      %v3547 = vld [vmem:[%s3507 + $0x5c] sm:$0x1]
      %v3548 = vld [vmem:[%s3507 + $0x68] sm:$0x1]
      %v3549 = vld [vmem:[%s3507 + $0x74] sm:$0x1]
      %v3550 = vld [vmem:[%s3507 + $0x80] sm:$0x1]
      %v3551 = vld [vmem:[%s3507 + $0x8c] sm:$0x1]
      %v3552 = vld [vmem:[%s3507 + $0x98] sm:$0x1]
      %v3553 = vld [vmem:[%s3507 + $0xa4] sm:$0x1]
      %v3554 = vld [vmem:[%s3507 + $0xb0] sm:$0x1]
      %v3555 = vld [vmem:[%s3507 + $0xbc] sm:$0x1]
      %v3557 = vshrl.u32 %v3508, 16
      %v3559 = vrot.slane %v3557, 4
      %v3560 = vshll.u32 %v3508, 16
      %v3562 = vrot.slane %v3560, 5
      %v3563 = vor.u32 %v3559, %v3562
      %v3564 = vrot.slane %v3563, 4
      %v3566 = vshll.u32 %v3509, 16
      %v3568 = vrot.slane %v3566, 5
      %v3569 = vsel %vm1000, %v3564, %v3568
      %v3570 = vshrl.u32 %v3509, 16
      %v3572 = vrot.slane %v3570, 4
      %v3573 = vor.u32 %v3572, %v3568
      %v3574 = vrot.slane %v3573, 4
      %v3576 = vshll.u32 %v3540, 16
      %v3578 = vrot.slane %v3576, 5
      %v3579 = vsel %vm1000, %v3574, %v3578
      %v3581 = vshrl.u32 %v3510, 16
      %v3583 = vrot.slane %v3581, 4
      %v3584 = vshll.u32 %v3510, 16
      %v3586 = vrot.slane %v3584, 5
      %v3587 = vor.u32 %v3583, %v3586
      %v3588 = vrot.slane %v3587, 4
      %v3590 = vshll.u32 %v3511, 16
      %v3592 = vrot.slane %v3590, 5
      %v3593 = vsel %vm1000, %v3588, %v3592
      %v3594 = vshrl.u32 %v3511, 16
      %v3596 = vrot.slane %v3594, 4
      %v3597 = vor.u32 %v3596, %v3592
      %v3598 = vrot.slane %v3597, 4
      %v3600 = vshll.u32 %v3541, 16
      %v3602 = vrot.slane %v3600, 5
      %v3603 = vsel %vm1000, %v3598, %v3602
      %v3605 = vshrl.u32 %v3512, 16
      %v3607 = vrot.slane %v3605, 4
      %v3608 = vshll.u32 %v3512, 16
      %v3610 = vrot.slane %v3608, 5
      %v3611 = vor.u32 %v3607, %v3610
      %v3612 = vrot.slane %v3611, 4
      %v3614 = vshll.u32 %v3513, 16
      %v3616 = vrot.slane %v3614, 5
      %v3617 = vsel %vm1000, %v3612, %v3616
      %v3618 = vshrl.u32 %v3513, 16
      %v3620 = vrot.slane %v3618, 4
      %v3621 = vor.u32 %v3620, %v3616
      %v3622 = vrot.slane %v3621, 4
      %v3624 = vshll.u32 %v3542, 16
      %v3626 = vrot.slane %v3624, 5
      %v3627 = vsel %vm1000, %v3622, %v3626
      %v3629 = vshrl.u32 %v3514, 16
      %v3631 = vrot.slane %v3629, 4
      %v3632 = vshll.u32 %v3514, 16
      %v3634 = vrot.slane %v3632, 5
      %v3635 = vor.u32 %v3631, %v3634
      %v3636 = vrot.slane %v3635, 4
      %v3638 = vshll.u32 %v3515, 16
      %v3640 = vrot.slane %v3638, 5
      %v3641 = vsel %vm1000, %v3636, %v3640
      %v3642 = vshrl.u32 %v3515, 16
      %v3644 = vrot.slane %v3642, 4
      %v3645 = vor.u32 %v3644, %v3640
      %v3646 = vrot.slane %v3645, 4
      %v3648 = vshll.u32 %v3543, 16
      %v3650 = vrot.slane %v3648, 5
      %v3651 = vsel %vm1000, %v3646, %v3650
      %v3653 = vshrl.u32 %v3516, 16
      %v3655 = vrot.slane %v3653, 4
      %v3656 = vshll.u32 %v3516, 16
      %v3658 = vrot.slane %v3656, 5
      %v3659 = vor.u32 %v3655, %v3658
      %v3660 = vrot.slane %v3659, 4
      %v3662 = vshll.u32 %v3517, 16
      %v3664 = vrot.slane %v3662, 5
      %v3665 = vsel %vm1000, %v3660, %v3664
      %v3666 = vshrl.u32 %v3517, 16
      %v3668 = vrot.slane %v3666, 4
      %v3669 = vor.u32 %v3668, %v3664
      %v3670 = vrot.slane %v3669, 4
      %v3672 = vshll.u32 %v3544, 16
      %v3674 = vrot.slane %v3672, 5
      %v3675 = vsel %vm1000, %v3670, %v3674
      %v3677 = vshrl.u32 %v3518, 16
      %v3679 = vrot.slane %v3677, 4
      %v3680 = vshll.u32 %v3518, 16
      %v3682 = vrot.slane %v3680, 5
      %v3683 = vor.u32 %v3679, %v3682
      %v3684 = vrot.slane %v3683, 4
      %v3686 = vshll.u32 %v3519, 16
      %v3688 = vrot.slane %v3686, 5
      %v3689 = vsel %vm1000, %v3684, %v3688
      %v3690 = vshrl.u32 %v3519, 16
      %v3692 = vrot.slane %v3690, 4
      %v3693 = vor.u32 %v3692, %v3688
      %v3694 = vrot.slane %v3693, 4
      %v3696 = vshll.u32 %v3545, 16
      %v3698 = vrot.slane %v3696, 5
      %v3699 = vsel %vm1000, %v3694, %v3698
      %v3701 = vshrl.u32 %v3520, 16
      %v3703 = vrot.slane %v3701, 4
      %v3704 = vshll.u32 %v3520, 16
      %v3706 = vrot.slane %v3704, 5
      %v3707 = vor.u32 %v3703, %v3706
      %v3708 = vrot.slane %v3707, 4
      %v3710 = vshll.u32 %v3521, 16
      %v3712 = vrot.slane %v3710, 5
      %v3713 = vsel %vm1000, %v3708, %v3712
      %v3714 = vshrl.u32 %v3521, 16
      %v3716 = vrot.slane %v3714, 4
      %v3717 = vor.u32 %v3716, %v3712
      %v3718 = vrot.slane %v3717, 4
      %v3720 = vshll.u32 %v3546, 16
      %v3722 = vrot.slane %v3720, 5
      %v3723 = vsel %vm1000, %v3718, %v3722
      %v3725 = vshrl.u32 %v3522, 16
      %v3727 = vrot.slane %v3725, 4
      %v3728 = vshll.u32 %v3522, 16
      %v3730 = vrot.slane %v3728, 5
      %v3731 = vor.u32 %v3727, %v3730
      %v3732 = vrot.slane %v3731, 4
      %v3734 = vshll.u32 %v3523, 16
      %v3736 = vrot.slane %v3734, 5
      %v3737 = vsel %vm1000, %v3732, %v3736
      %v3738 = vshrl.u32 %v3523, 16
      %v3740 = vrot.slane %v3738, 4
      %v3741 = vor.u32 %v3740, %v3736
      %v3742 = vrot.slane %v3741, 4
      %v3744 = vshll.u32 %v3547, 16
      %v3746 = vrot.slane %v3744, 5
      %v3747 = vsel %vm1000, %v3742, %v3746
      %v3749 = vshrl.u32 %v3524, 16
      %v3751 = vrot.slane %v3749, 4
      %v3752 = vshll.u32 %v3524, 16
      %v3754 = vrot.slane %v3752, 5
      %v3755 = vor.u32 %v3751, %v3754
      %v3756 = vrot.slane %v3755, 4
      %v3758 = vshll.u32 %v3525, 16
      %v3760 = vrot.slane %v3758, 5
      %v3761 = vsel %vm1000, %v3756, %v3760
      %v3762 = vshrl.u32 %v3525, 16
      %v3764 = vrot.slane %v3762, 4
      %v3765 = vor.u32 %v3764, %v3760
      %v3766 = vrot.slane %v3765, 4
      %v3768 = vshll.u32 %v3548, 16
      %v3770 = vrot.slane %v3768, 5
      %v3771 = vsel %vm1000, %v3766, %v3770
      %v3773 = vshrl.u32 %v3526, 16
      %v3775 = vrot.slane %v3773, 4
      %v3776 = vshll.u32 %v3526, 16
      %v3778 = vrot.slane %v3776, 5
      %v3779 = vor.u32 %v3775, %v3778
      %v3780 = vrot.slane %v3779, 4
      %v3782 = vshll.u32 %v3527, 16
      %v3784 = vrot.slane %v3782, 5
      %v3785 = vsel %vm1000, %v3780, %v3784
      %v3786 = vshrl.u32 %v3527, 16
      %v3788 = vrot.slane %v3786, 4
      %v3789 = vor.u32 %v3788, %v3784
      %v3790 = vrot.slane %v3789, 4
      %v3792 = vshll.u32 %v3549, 16
      %v3794 = vrot.slane %v3792, 5
      %v3795 = vsel %vm1000, %v3790, %v3794
      %v3797 = vshrl.u32 %v3528, 16
      %v3799 = vrot.slane %v3797, 4
      %v3800 = vshll.u32 %v3528, 16
      %v3802 = vrot.slane %v3800, 5
      %v3803 = vor.u32 %v3799, %v3802
      %v3804 = vrot.slane %v3803, 4
      %v3806 = vshll.u32 %v3529, 16
      %v3808 = vrot.slane %v3806, 5
      %v3809 = vsel %vm1000, %v3804, %v3808
      %v3810 = vshrl.u32 %v3529, 16
      %v3812 = vrot.slane %v3810, 4
      %v3813 = vor.u32 %v3812, %v3808
      %v3814 = vrot.slane %v3813, 4
      %v3816 = vshll.u32 %v3550, 16
      %v3818 = vrot.slane %v3816, 5
      %v3819 = vsel %vm1000, %v3814, %v3818
      %v3821 = vshrl.u32 %v3530, 16
      %v3823 = vrot.slane %v3821, 4
      %v3824 = vshll.u32 %v3530, 16
      %v3826 = vrot.slane %v3824, 5
      %v3827 = vor.u32 %v3823, %v3826
      %v3828 = vrot.slane %v3827, 4
      %v3830 = vshll.u32 %v3531, 16
      %v3832 = vrot.slane %v3830, 5
      %v3833 = vsel %vm1000, %v3828, %v3832
      %v3834 = vshrl.u32 %v3531, 16
      %v3836 = vrot.slane %v3834, 4
      %v3837 = vor.u32 %v3836, %v3832
      %v3838 = vrot.slane %v3837, 4
      %v3840 = vshll.u32 %v3551, 16
      %v3842 = vrot.slane %v3840, 5
      %v3843 = vsel %vm1000, %v3838, %v3842
      %v3845 = vshrl.u32 %v3532, 16
      %v3847 = vrot.slane %v3845, 4
      %v3848 = vshll.u32 %v3532, 16
      %v3850 = vrot.slane %v3848, 5
      %v3851 = vor.u32 %v3847, %v3850
      %v3852 = vrot.slane %v3851, 4
      %v3854 = vshll.u32 %v3533, 16
      %v3856 = vrot.slane %v3854, 5
      %v3857 = vsel %vm1000, %v3852, %v3856
      %v3858 = vshrl.u32 %v3533, 16
      %v3860 = vrot.slane %v3858, 4
      %v3861 = vor.u32 %v3860, %v3856
      %v3862 = vrot.slane %v3861, 4
      %v3864 = vshll.u32 %v3552, 16
      %v3866 = vrot.slane %v3864, 5
      %v3867 = vsel %vm1000, %v3862, %v3866
      %v3869 = vshrl.u32 %v3534, 16
      %v3871 = vrot.slane %v3869, 4
      %v3872 = vshll.u32 %v3534, 16
      %v3874 = vrot.slane %v3872, 5
      %v3875 = vor.u32 %v3871, %v3874
      %v3876 = vrot.slane %v3875, 4
      %v3878 = vshll.u32 %v3535, 16
      %v3880 = vrot.slane %v3878, 5
      %v3881 = vsel %vm1000, %v3876, %v3880
      %v3882 = vshrl.u32 %v3535, 16
      %v3884 = vrot.slane %v3882, 4
      %v3885 = vor.u32 %v3884, %v3880
      %v3886 = vrot.slane %v3885, 4
      %v3888 = vshll.u32 %v3553, 16
      %v3890 = vrot.slane %v3888, 5
      %v3891 = vsel %vm1000, %v3886, %v3890
      %v3893 = vshrl.u32 %v3536, 16
      %v3895 = vrot.slane %v3893, 4
      %v3896 = vshll.u32 %v3536, 16
      %v3898 = vrot.slane %v3896, 5
      %v3899 = vor.u32 %v3895, %v3898
      %v3900 = vrot.slane %v3899, 4
      %v3902 = vshll.u32 %v3537, 16
      %v3904 = vrot.slane %v3902, 5
      %v3905 = vsel %vm1000, %v3900, %v3904
      %v3906 = vshrl.u32 %v3537, 16
      %v3908 = vrot.slane %v3906, 4
      %v3909 = vor.u32 %v3908, %v3904
      %v3910 = vrot.slane %v3909, 4
      %v3912 = vshll.u32 %v3554, 16
      %v3914 = vrot.slane %v3912, 5
      %v3915 = vsel %vm1000, %v3910, %v3914
      %v3917 = vshrl.u32 %v3538, 16
      %v3919 = vrot.slane %v3917, 4
      %v3920 = vshll.u32 %v3538, 16
      %v3922 = vrot.slane %v3920, 5
      %v3923 = vor.u32 %v3919, %v3922
      %v3924 = vrot.slane %v3923, 4
      %v3926 = vshll.u32 %v3539, 16
      %v3928 = vrot.slane %v3926, 5
      %v3929 = vsel %vm1000, %v3924, %v3928
      %v3930 = vshrl.u32 %v3539, 16
      %v3932 = vrot.slane %v3930, 4
      %v3933 = vor.u32 %v3932, %v3928
      %v3934 = vrot.slane %v3933, 4
      %v3936 = vshll.u32 %v3555, 16
      %v3938 = vrot.slane %v3936, 5
      %v3939 = vsel %vm1000, %v3934, %v3938
      %v3940 = vld [vmem:[%s3507] sm:$0xe]
      %v3941 = vld [vmem:[%s3507 + $0xc] sm:$0xe]
      %v3942 = vld [vmem:[%s3507 + $0x18] sm:$0xe]
      %v3943 = vld [vmem:[%s3507 + $0x24] sm:$0xe]
      %v3944 = vld [vmem:[%s3507 + $0x30] sm:$0xe]
      %v3945 = vld [vmem:[%s3507 + $0x3c] sm:$0xe]
      %v3946 = vld [vmem:[%s3507 + $0x48] sm:$0xe]
      %v3947 = vld [vmem:[%s3507 + $0x54] sm:$0xe]
      %v3948 = vld [vmem:[%s3507 + $0x60] sm:$0xe]
      %v3949 = vld [vmem:[%s3507 + $0x6c] sm:$0xe]
      %v3950 = vld [vmem:[%s3507 + $0x78] sm:$0xe]
      %v3951 = vld [vmem:[%s3507 + $0x84] sm:$0xe]
      %v3952 = vld [vmem:[%s3507 + $0x90] sm:$0xe]
      %v3953 = vld [vmem:[%s3507 + $0x9c] sm:$0xe]
      %v3954 = vld [vmem:[%s3507 + $0xa8] sm:$0xe]
      %v3955 = vld [vmem:[%s3507 + $0xb4] sm:$0xe]
      %v4004 = vrot.slane %v3940, 5
      %v4005 = vrot.slane %v4004, 4
      %v4006 = vrot.slane %v3509, 5
      %v4007 = vsel %vm1451, %v4005, %v4006
      %v4008 = vrot.slane %v4006, 4
      %v4009 = vrot.slane %v3540, 5
      %v4010 = vsel %vm1451, %v4008, %v4009
      %v4011 = vrot.slane %v3941, 5
      %v4012 = vrot.slane %v4011, 4
      %v4013 = vrot.slane %v3511, 5
      %v4014 = vsel %vm1451, %v4012, %v4013
      %v4015 = vrot.slane %v4013, 4
      %v4016 = vrot.slane %v3541, 5
      %v4017 = vsel %vm1451, %v4015, %v4016
      %v4018 = vrot.slane %v3942, 5
      %v4019 = vrot.slane %v4018, 4
      %v4020 = vrot.slane %v3513, 5
      %v4021 = vsel %vm1451, %v4019, %v4020
      %v4022 = vrot.slane %v4020, 4
      %v4023 = vrot.slane %v3542, 5
      %v4024 = vsel %vm1451, %v4022, %v4023
      %v4025 = vrot.slane %v3943, 5
      %v4026 = vrot.slane %v4025, 4
      %v4027 = vrot.slane %v3515, 5
      %v4028 = vsel %vm1451, %v4026, %v4027
      %v4029 = vrot.slane %v4027, 4
      %v4030 = vrot.slane %v3543, 5
      %v4031 = vsel %vm1451, %v4029, %v4030
      %v4032 = vrot.slane %v3944, 5
      %v4033 = vrot.slane %v4032, 4
      %v4034 = vrot.slane %v3517, 5
      %v4035 = vsel %vm1451, %v4033, %v4034
      %v4036 = vrot.slane %v4034, 4
      %v4037 = vrot.slane %v3544, 5
      %v4038 = vsel %vm1451, %v4036, %v4037
      %v4039 = vrot.slane %v3945, 5
      %v4040 = vrot.slane %v4039, 4
      %v4041 = vrot.slane %v3519, 5
      %v4042 = vsel %vm1451, %v4040, %v4041
      %v4043 = vrot.slane %v4041, 4
      %v4044 = vrot.slane %v3545, 5
      %v4045 = vsel %vm1451, %v4043, %v4044
      %v4046 = vrot.slane %v3946, 5
      %v4047 = vrot.slane %v4046, 4
      %v4048 = vrot.slane %v3521, 5
      %v4049 = vsel %vm1451, %v4047, %v4048
      %v4050 = vrot.slane %v4048, 4
      %v4051 = vrot.slane %v3546, 5
      %v4052 = vsel %vm1451, %v4050, %v4051
      %v4053 = vrot.slane %v3947, 5
      %v4054 = vrot.slane %v4053, 4
      %v4055 = vrot.slane %v3523, 5
      %v4056 = vsel %vm1451, %v4054, %v4055
      %v4057 = vrot.slane %v4055, 4
      %v4058 = vrot.slane %v3547, 5
      %v4059 = vsel %vm1451, %v4057, %v4058
      %v4060 = vrot.slane %v3948, 5
      %v4061 = vrot.slane %v4060, 4
      %v4062 = vrot.slane %v3525, 5
      %v4063 = vsel %vm1451, %v4061, %v4062
      %v4064 = vrot.slane %v4062, 4
      %v4065 = vrot.slane %v3548, 5
      %v4066 = vsel %vm1451, %v4064, %v4065
      %v4067 = vrot.slane %v3949, 5
      %v4068 = vrot.slane %v4067, 4
      %v4069 = vrot.slane %v3527, 5
      %v4070 = vsel %vm1451, %v4068, %v4069
      %v4071 = vrot.slane %v4069, 4
      %v4072 = vrot.slane %v3549, 5
      %v4073 = vsel %vm1451, %v4071, %v4072
      %v4074 = vrot.slane %v3950, 5
      %v4075 = vrot.slane %v4074, 4
      %v4076 = vrot.slane %v3529, 5
      %v4077 = vsel %vm1451, %v4075, %v4076
      %v4078 = vrot.slane %v4076, 4
      %v4079 = vrot.slane %v3550, 5
      %v4080 = vsel %vm1451, %v4078, %v4079
      %v4081 = vrot.slane %v3951, 5
      %v4082 = vrot.slane %v4081, 4
      %v4083 = vrot.slane %v3531, 5
      %v4084 = vsel %vm1451, %v4082, %v4083
      %v4085 = vrot.slane %v4083, 4
      %v4086 = vrot.slane %v3551, 5
      %v4087 = vsel %vm1451, %v4085, %v4086
      %v4088 = vrot.slane %v3952, 5
      %v4089 = vrot.slane %v4088, 4
      %v4090 = vrot.slane %v3533, 5
      %v4091 = vsel %vm1451, %v4089, %v4090
      %v4092 = vrot.slane %v4090, 4
      %v4093 = vrot.slane %v3552, 5
      %v4094 = vsel %vm1451, %v4092, %v4093
      %v4095 = vrot.slane %v3953, 5
      %v4096 = vrot.slane %v4095, 4
      %v4097 = vrot.slane %v3535, 5
      %v4098 = vsel %vm1451, %v4096, %v4097
      %v4099 = vrot.slane %v4097, 4
      %v4100 = vrot.slane %v3553, 5
      %v4101 = vsel %vm1451, %v4099, %v4100
      %v4102 = vrot.slane %v3954, 5
      %v4103 = vrot.slane %v4102, 4
      %v4104 = vrot.slane %v3537, 5
      %v4105 = vsel %vm1451, %v4103, %v4104
      %v4106 = vrot.slane %v4104, 4
      %v4107 = vrot.slane %v3554, 5
      %v4108 = vsel %vm1451, %v4106, %v4107
      %v4109 = vrot.slane %v3955, 5
      %v4110 = vrot.slane %v4109, 4
      %v4111 = vrot.slane %v3539, 5
      %v4112 = vsel %vm1451, %v4110, %v4111
      %v4113 = vrot.slane %v4111, 4
      %v4114 = vrot.slane %v3555, 5
      %v4115 = vsel %vm1451, %v4113, %v4114
      %v4132 = vunpack.c.l.b16 %v3508
      %v4133 = vunpack.c.l.b16 %v3509
      %v4134 = vunpack.c.l.b16 %v3510
      %v4135 = vunpack.c.l.b16 %v3511
      %v4136 = vunpack.c.l.b16 %v3512
      %v4137 = vunpack.c.l.b16 %v3513
      %v4138 = vunpack.c.l.b16 %v3514
      %v4139 = vunpack.c.l.b16 %v3515
      %v4140 = vunpack.c.l.b16 %v3516
      %v4141 = vunpack.c.l.b16 %v3517
      %v4142 = vunpack.c.l.b16 %v3518
      %v4143 = vunpack.c.l.b16 %v3519
      %v4144 = vunpack.c.l.b16 %v3520
      %v4145 = vunpack.c.l.b16 %v3521
      %v4146 = vunpack.c.l.b16 %v3522
      %v4147 = vunpack.c.l.b16 %v3523
      %v4148 = vunpack.c.l.b16 %v3524
      %v4149 = vunpack.c.l.b16 %v3525
      %v4150 = vunpack.c.l.b16 %v3526
      %v4151 = vunpack.c.l.b16 %v3527
      %v4152 = vunpack.c.l.b16 %v3528
      %v4153 = vunpack.c.l.b16 %v3529
      %v4154 = vunpack.c.l.b16 %v3530
      %v4155 = vunpack.c.l.b16 %v3531
      %v4156 = vunpack.c.l.b16 %v3532
      %v4157 = vunpack.c.l.b16 %v3533
      %v4158 = vunpack.c.l.b16 %v3534
      %v4159 = vunpack.c.l.b16 %v3535
      %v4160 = vunpack.c.l.b16 %v3536
      %v4161 = vunpack.c.l.b16 %v3537
      %v4162 = vunpack.c.l.b16 %v3538
      %v4163 = vunpack.c.l.b16 %v3539
      %v4164 = vpack.c.b16 %v4133, %v4132
      %v4165 = vpack.c.b16 %v4135, %v4134
      %v4166 = vpack.c.b16 %v4137, %v4136
      %v4167 = vpack.c.b16 %v4139, %v4138
      %v4168 = vpack.c.b16 %v4141, %v4140
      %v4169 = vpack.c.b16 %v4143, %v4142
      %v4170 = vpack.c.b16 %v4145, %v4144
      %v4171 = vpack.c.b16 %v4147, %v4146
      %v4172 = vpack.c.b16 %v4149, %v4148
      %v4173 = vpack.c.b16 %v4151, %v4150
      %v4174 = vpack.c.b16 %v4153, %v4152
      %v4175 = vpack.c.b16 %v4155, %v4154
      %v4176 = vpack.c.b16 %v4157, %v4156
      %v4177 = vpack.c.b16 %v4159, %v4158
      %v4178 = vpack.c.b16 %v4161, %v4160
      %v4179 = vpack.c.b16 %v4163, %v4162
      %v4196 = vunpack.c.l.b16 %v3569
      %v4197 = vunpack.c.l.b16 %v3579
      %v4198 = vunpack.c.l.b16 %v3593
      %v4199 = vunpack.c.l.b16 %v3603
      %v4200 = vunpack.c.l.b16 %v3617
      %v4201 = vunpack.c.l.b16 %v3627
      %v4202 = vunpack.c.l.b16 %v3641
      %v4203 = vunpack.c.l.b16 %v3651
      %v4204 = vunpack.c.l.b16 %v3665
      %v4205 = vunpack.c.l.b16 %v3675
      %v4206 = vunpack.c.l.b16 %v3689
      %v4207 = vunpack.c.l.b16 %v3699
      %v4208 = vunpack.c.l.b16 %v3713
      %v4209 = vunpack.c.l.b16 %v3723
      %v4210 = vunpack.c.l.b16 %v3737
      %v4211 = vunpack.c.l.b16 %v3747
      %v4212 = vunpack.c.l.b16 %v3761
      %v4213 = vunpack.c.l.b16 %v3771
      %v4214 = vunpack.c.l.b16 %v3785
      %v4215 = vunpack.c.l.b16 %v3795
      %v4216 = vunpack.c.l.b16 %v3809
      %v4217 = vunpack.c.l.b16 %v3819
      %v4218 = vunpack.c.l.b16 %v3833
      %v4219 = vunpack.c.l.b16 %v3843
      %v4220 = vunpack.c.l.b16 %v3857
      %v4221 = vunpack.c.l.b16 %v3867
      %v4222 = vunpack.c.l.b16 %v3881
      %v4223 = vunpack.c.l.b16 %v3891
      %v4224 = vunpack.c.l.b16 %v3905
      %v4225 = vunpack.c.l.b16 %v3915
      %v4226 = vunpack.c.l.b16 %v3929
      %v4227 = vunpack.c.l.b16 %v3939
      %v4228 = vpack.c.b16 %v4197, %v4196
      %v4229 = vpack.c.b16 %v4199, %v4198
      %v4230 = vpack.c.b16 %v4201, %v4200
      %v4231 = vpack.c.b16 %v4203, %v4202
      %v4232 = vpack.c.b16 %v4205, %v4204
      %v4233 = vpack.c.b16 %v4207, %v4206
      %v4234 = vpack.c.b16 %v4209, %v4208
      %v4235 = vpack.c.b16 %v4211, %v4210
      %v4236 = vpack.c.b16 %v4213, %v4212
      %v4237 = vpack.c.b16 %v4215, %v4214
      %v4238 = vpack.c.b16 %v4217, %v4216
      %v4239 = vpack.c.b16 %v4219, %v4218
      %v4240 = vpack.c.b16 %v4221, %v4220
      %v4241 = vpack.c.b16 %v4223, %v4222
      %v4242 = vpack.c.b16 %v4225, %v4224
      %v4243 = vpack.c.b16 %v4227, %v4226
      %v4260 = vunpack.c.l.b16 %v4007
      %v4261 = vunpack.c.l.b16 %v4010
      %v4262 = vunpack.c.l.b16 %v4014
      %v4263 = vunpack.c.l.b16 %v4017
      %v4264 = vunpack.c.l.b16 %v4021
      %v4265 = vunpack.c.l.b16 %v4024
      %v4266 = vunpack.c.l.b16 %v4028
      %v4267 = vunpack.c.l.b16 %v4031
      %v4268 = vunpack.c.l.b16 %v4035
      %v4269 = vunpack.c.l.b16 %v4038
      %v4270 = vunpack.c.l.b16 %v4042
      %v4271 = vunpack.c.l.b16 %v4045
      %v4272 = vunpack.c.l.b16 %v4049
      %v4273 = vunpack.c.l.b16 %v4052
      %v4274 = vunpack.c.l.b16 %v4056
      %v4275 = vunpack.c.l.b16 %v4059
      %v4276 = vunpack.c.l.b16 %v4063
      %v4277 = vunpack.c.l.b16 %v4066
      %v4278 = vunpack.c.l.b16 %v4070
      %v4279 = vunpack.c.l.b16 %v4073
      %v4280 = vunpack.c.l.b16 %v4077
      %v4281 = vunpack.c.l.b16 %v4080
      %v4282 = vunpack.c.l.b16 %v4084
      %v4283 = vunpack.c.l.b16 %v4087
      %v4284 = vunpack.c.l.b16 %v4091
      %v4285 = vunpack.c.l.b16 %v4094
      %v4286 = vunpack.c.l.b16 %v4098
      %v4287 = vunpack.c.l.b16 %v4101
      %v4288 = vunpack.c.l.b16 %v4105
      %v4289 = vunpack.c.l.b16 %v4108
      %v4290 = vunpack.c.l.b16 %v4112
      %v4291 = vunpack.c.l.b16 %v4115
      %v4292 = vpack.c.b16 %v4261, %v4260
      %v4293 = vpack.c.b16 %v4263, %v4262
      %v4294 = vpack.c.b16 %v4265, %v4264
      %v4295 = vpack.c.b16 %v4267, %v4266
      %v4296 = vpack.c.b16 %v4269, %v4268
      %v4297 = vpack.c.b16 %v4271, %v4270
      %v4298 = vpack.c.b16 %v4273, %v4272
      %v4299 = vpack.c.b16 %v4275, %v4274
      %v4300 = vpack.c.b16 %v4277, %v4276
      %v4301 = vpack.c.b16 %v4279, %v4278
      %v4302 = vpack.c.b16 %v4281, %v4280
      %v4303 = vpack.c.b16 %v4283, %v4282
      %v4304 = vpack.c.b16 %v4285, %v4284
      %v4305 = vpack.c.b16 %v4287, %v4286
      %v4306 = vpack.c.b16 %v4289, %v4288
      %v4307 = vpack.c.b16 %v4291, %v4290
      %s4324 = scalar_lea.vmem %s3, 384
      %v4325 = vld [vmem:[%s4324] sm:$0xf]
      %v4326 = vld [vmem:[%s4324 + $0x4] sm:$0xf]
      %v4327 = vld [vmem:[%s4324 + $0x8] sm:$0xf]
      %v4328 = vld [vmem:[%s4324 + $0xc] sm:$0xf]
      %v4329 = vld [vmem:[%s4324 + $0x10] sm:$0xf]
      %v4330 = vld [vmem:[%s4324 + $0x14] sm:$0xf]
      %v4331 = vld [vmem:[%s4324 + $0x18] sm:$0xf]
      %v4332 = vld [vmem:[%s4324 + $0x1c] sm:$0xf]
      %v4333 = vld [vmem:[%s4324 + $0x20] sm:$0xf]
      %v4334 = vld [vmem:[%s4324 + $0x24] sm:$0xf]
      %v4335 = vld [vmem:[%s4324 + $0x28] sm:$0xf]
      %v4336 = vld [vmem:[%s4324 + $0x2c] sm:$0xf]
      %v4337 = vld [vmem:[%s4324 + $0x30] sm:$0xf]
      %v4338 = vld [vmem:[%s4324 + $0x34] sm:$0xf]
      %v4339 = vld [vmem:[%s4324 + $0x38] sm:$0xf]
      %v4340 = vld [vmem:[%s4324 + $0x3c] sm:$0xf]
      %v4341 = vld [vmem:[%s4324 + $0x40] sm:$0xf]
      %v4342 = vld [vmem:[%s4324 + $0x44] sm:$0xf]
      %v4343 = vld [vmem:[%s4324 + $0x48] sm:$0xf]
      %v4344 = vld [vmem:[%s4324 + $0x4c] sm:$0xf]
      %v4345 = vld [vmem:[%s4324 + $0x50] sm:$0xf]
      %v4346 = vld [vmem:[%s4324 + $0x54] sm:$0xf]
      %v4347 = vld [vmem:[%s4324 + $0x58] sm:$0xf]
      %v4348 = vld [vmem:[%s4324 + $0x5c] sm:$0xf]
      %v4349 = vld [vmem:[%s4324 + $0x60] sm:$0xf]
      %v4350 = vld [vmem:[%s4324 + $0x64] sm:$0xf]
      %v4351 = vld [vmem:[%s4324 + $0x68] sm:$0xf]
      %v4352 = vld [vmem:[%s4324 + $0x6c] sm:$0xf]
      %v4353 = vld [vmem:[%s4324 + $0x70] sm:$0xf]
      %v4354 = vld [vmem:[%s4324 + $0x74] sm:$0xf]
      %v4355 = vld [vmem:[%s4324 + $0x78] sm:$0xf]
      %v4356 = vld [vmem:[%s4324 + $0x7c] sm:$0xf]
      %v4357 = vld [vmem:[%s4324 + $0x80] sm:$0xf]
      %v4358 = vld [vmem:[%s4324 + $0x84] sm:$0xf]
      %v4359 = vld [vmem:[%s4324 + $0x88] sm:$0xf]
      %v4360 = vld [vmem:[%s4324 + $0x8c] sm:$0xf]
      %v4361 = vld [vmem:[%s4324 + $0x90] sm:$0xf]
      %v4362 = vld [vmem:[%s4324 + $0x94] sm:$0xf]
      %v4363 = vld [vmem:[%s4324 + $0x98] sm:$0xf]
      %v4364 = vld [vmem:[%s4324 + $0x9c] sm:$0xf]
      %v4365 = vld [vmem:[%s4324 + $0xa0] sm:$0xf]
      %v4366 = vld [vmem:[%s4324 + $0xa4] sm:$0xf]
      %v4367 = vld [vmem:[%s4324 + $0xa8] sm:$0xf]
      %v4368 = vld [vmem:[%s4324 + $0xac] sm:$0xf]
      %v4369 = vld [vmem:[%s4324 + $0xb0] sm:$0xf]
      %v4370 = vld [vmem:[%s4324 + $0xb4] sm:$0xf]
      %v4371 = vld [vmem:[%s4324 + $0xb8] sm:$0xf]
      %v4372 = vld [vmem:[%s4324 + $0xbc] sm:$0xf]
      %v4421 = vunpack.c.l.b16 %v4325
      %v4422 = vunpack.c.l.b16 %v4326
      %v4423 = vunpack.c.l.b16 %v4327
      %v4424 = vunpack.c.l.b16 %v4328
      %v4425 = vunpack.c.l.b16 %v4329
      %v4426 = vunpack.c.l.b16 %v4330
      %v4427 = vunpack.c.l.b16 %v4331
      %v4428 = vunpack.c.l.b16 %v4332
      %v4429 = vunpack.c.l.b16 %v4333
      %v4430 = vunpack.c.l.b16 %v4334
      %v4431 = vunpack.c.l.b16 %v4335
      %v4432 = vunpack.c.l.b16 %v4336
      %v4433 = vunpack.c.l.b16 %v4337
      %v4434 = vunpack.c.l.b16 %v4338
      %v4435 = vunpack.c.l.b16 %v4339
      %v4436 = vunpack.c.l.b16 %v4340
      %v4437 = vunpack.c.l.b16 %v4341
      %v4438 = vunpack.c.l.b16 %v4342
      %v4439 = vunpack.c.l.b16 %v4343
      %v4440 = vunpack.c.l.b16 %v4344
      %v4441 = vunpack.c.l.b16 %v4345
      %v4442 = vunpack.c.l.b16 %v4346
      %v4443 = vunpack.c.l.b16 %v4347
      %v4444 = vunpack.c.l.b16 %v4348
      %v4445 = vunpack.c.l.b16 %v4349
      %v4446 = vunpack.c.l.b16 %v4350
      %v4447 = vunpack.c.l.b16 %v4351
      %v4448 = vunpack.c.l.b16 %v4352
      %v4449 = vunpack.c.l.b16 %v4353
      %v4450 = vunpack.c.l.b16 %v4354
      %v4451 = vunpack.c.l.b16 %v4355
      %v4452 = vunpack.c.l.b16 %v4356
      %v4453 = vunpack.c.l.b16 %v4357
      %v4454 = vunpack.c.l.b16 %v4358
      %v4455 = vunpack.c.l.b16 %v4359
      %v4456 = vunpack.c.l.b16 %v4360
      %v4457 = vunpack.c.l.b16 %v4361
      %v4458 = vunpack.c.l.b16 %v4362
      %v4459 = vunpack.c.l.b16 %v4363
      %v4460 = vunpack.c.l.b16 %v4364
      %v4461 = vunpack.c.l.b16 %v4365
      %v4462 = vunpack.c.l.b16 %v4366
      %v4463 = vunpack.c.l.b16 %v4367
      %v4464 = vunpack.c.l.b16 %v4368
      %v4465 = vunpack.c.l.b16 %v4369
      %v4466 = vunpack.c.l.b16 %v4370
      %v4467 = vunpack.c.l.b16 %v4371
      %v4468 = vunpack.c.l.b16 %v4372
      %v4469 = vpack.c.b16 %v4422, %v4421
      %v4470 = vpack.c.b16 %v4424, %v4423
      %v4471 = vpack.c.b16 %v4426, %v4425
      %v4472 = vpack.c.b16 %v4428, %v4427
      %v4473 = vpack.c.b16 %v4430, %v4429
      %v4474 = vpack.c.b16 %v4432, %v4431
      %v4475 = vpack.c.b16 %v4434, %v4433
      %v4476 = vpack.c.b16 %v4436, %v4435
      %v4477 = vpack.c.b16 %v4438, %v4437
      %v4478 = vpack.c.b16 %v4440, %v4439
      %v4479 = vpack.c.b16 %v4442, %v4441
      %v4480 = vpack.c.b16 %v4444, %v4443
      %v4481 = vpack.c.b16 %v4446, %v4445
      %v4482 = vpack.c.b16 %v4448, %v4447
      %v4483 = vpack.c.b16 %v4450, %v4449
      %v4484 = vpack.c.b16 %v4452, %v4451
      %v4485 = vpack.c.b16 %v4454, %v4453
      %v4486 = vpack.c.b16 %v4456, %v4455
      %v4487 = vpack.c.b16 %v4458, %v4457
      %v4488 = vpack.c.b16 %v4460, %v4459
      %v4489 = vpack.c.b16 %v4462, %v4461
      %v4490 = vpack.c.b16 %v4464, %v4463
      %v4491 = vpack.c.b16 %v4466, %v4465
      %v4492 = vpack.c.b16 %v4468, %v4467
      %4517 = vmatpush.bf16.msra.mxu0 %v4476
      %4518 = vmatpush.bf16.msra.mxu0 %v4475
      %4519 = vmatpush.bf16.msra.mxu0 %v4474
      %4520 = vmatpush.bf16.msra.mxu0 %v4473
      %4521 = vmatpush.bf16.msra.mxu0 %v4472
      %4522 = vmatpush.bf16.msra.mxu0 %v4471
      %4523 = vmatpush.bf16.msra.mxu0 %v4470
      %4524 = vmatpush.bf16.msra.mxu0 %v4469
      %4525 = vmatmul.bf16.gmra.mxu0 %v4164
      %v4526 = vpop.f32.mrf.mxu0
      %v4527 = vadd.f32 0.0, %v4526
      %v4528 = vpop.f32.mrf.mxu0
      %v4529 = vadd.f32 0.0, %v4528
      %4530 = vmatmul.bf16.gmra.mxu0 %v4165
      %v4531 = vpop.f32.mrf.mxu0
      %v4532 = vadd.f32 0.0, %v4531
      %v4533 = vpop.f32.mrf.mxu0
      %v4534 = vadd.f32 0.0, %v4533
      %4535 = vmatmul.bf16.gmra.mxu0 %v4166
      %v4536 = vpop.f32.mrf.mxu0
      %v4537 = vadd.f32 0.0, %v4536
      %v4538 = vpop.f32.mrf.mxu0
      %v4539 = vadd.f32 0.0, %v4538
      %4540 = vmatmul.bf16.gmra.mxu0 %v4167
      %v4541 = vpop.f32.mrf.mxu0
      %v4542 = vadd.f32 0.0, %v4541
      %v4543 = vpop.f32.mrf.mxu0
      %v4544 = vadd.f32 0.0, %v4543
      %4545 = vmatmul.bf16.gmra.mxu0 %v4168
      %v4546 = vpop.f32.mrf.mxu0
      %v4547 = vadd.f32 0.0, %v4546
      %v4548 = vpop.f32.mrf.mxu0
      %v4549 = vadd.f32 0.0, %v4548
      %4550 = vmatmul.bf16.gmra.mxu0 %v4169
      %v4551 = vpop.f32.mrf.mxu0
      %v4552 = vadd.f32 0.0, %v4551
      %v4553 = vpop.f32.mrf.mxu0
      %v4554 = vadd.f32 0.0, %v4553
      %4555 = vmatmul.bf16.gmra.mxu0 %v4170
      %v4556 = vpop.f32.mrf.mxu0
      %v4557 = vadd.f32 0.0, %v4556
      %v4558 = vpop.f32.mrf.mxu0
      %v4559 = vadd.f32 0.0, %v4558
      %4560 = vmatmul.bf16.gmra.mxu0 %v4171
      %v4561 = vpop.f32.mrf.mxu0
      %v4562 = vadd.f32 0.0, %v4561
      %v4563 = vpop.f32.mrf.mxu0
      %v4564 = vadd.f32 0.0, %v4563
      %4565 = vmatmul.bf16.gmra.mxu0 %v4172
      %v4566 = vpop.f32.mrf.mxu0
      %v4567 = vadd.f32 0.0, %v4566
      %v4568 = vpop.f32.mrf.mxu0
      %v4569 = vadd.f32 0.0, %v4568
      %4570 = vmatmul.bf16.gmra.mxu0 %v4173
      %v4571 = vpop.f32.mrf.mxu0
      %v4572 = vadd.f32 0.0, %v4571
      %v4573 = vpop.f32.mrf.mxu0
      %v4574 = vadd.f32 0.0, %v4573
      %4575 = vmatmul.bf16.gmra.mxu0 %v4174
      %v4576 = vpop.f32.mrf.mxu0
      %v4577 = vadd.f32 0.0, %v4576
      %v4578 = vpop.f32.mrf.mxu0
      %v4579 = vadd.f32 0.0, %v4578
      %4580 = vmatmul.bf16.gmra.mxu0 %v4175
      %v4581 = vpop.f32.mrf.mxu0
      %v4582 = vadd.f32 0.0, %v4581
      %v4583 = vpop.f32.mrf.mxu0
      %v4584 = vadd.f32 0.0, %v4583
      %4585 = vmatmul.bf16.gmra.mxu0 %v4176
      %v4586 = vpop.f32.mrf.mxu0
      %v4587 = vadd.f32 0.0, %v4586
      %v4588 = vpop.f32.mrf.mxu0
      %v4589 = vadd.f32 0.0, %v4588
      %4590 = vmatmul.bf16.gmra.mxu0 %v4177
      %v4591 = vpop.f32.mrf.mxu0
      %v4592 = vadd.f32 0.0, %v4591
      %v4593 = vpop.f32.mrf.mxu0
      %v4594 = vadd.f32 0.0, %v4593
      %4595 = vmatmul.bf16.gmra.mxu0 %v4178
      %v4596 = vpop.f32.mrf.mxu0
      %v4597 = vadd.f32 0.0, %v4596
      %v4598 = vpop.f32.mrf.mxu0
      %v4599 = vadd.f32 0.0, %v4598
      %4600 = vmatmul.bf16.gmra.mxu0 %v4179
      %v4601 = vpop.f32.mrf.mxu0
      %v4602 = vadd.f32 0.0, %v4601
      %v4603 = vpop.f32.mrf.mxu0
      %v4604 = vadd.f32 0.0, %v4603
      %4605 = vdwg.mxu0
      %4606 = vmatpush.bf16.msra.mxu0 %v4484
      %4607 = vmatpush.bf16.msra.mxu0 %v4483
      %4608 = vmatpush.bf16.msra.mxu0 %v4482
      %4609 = vmatpush.bf16.msra.mxu0 %v4481
      %4610 = vmatpush.bf16.msra.mxu0 %v4480
      %4611 = vmatpush.bf16.msra.mxu0 %v4479
      %4612 = vmatpush.bf16.msra.mxu0 %v4478
      %4613 = vmatpush.bf16.msra.mxu0 %v4477
      %4614 = vmatmul.bf16.gmra.mxu0 %v4228
      %v4615 = vpop.f32.mrf.mxu0
      %v4616 = vadd.f32 %v4527, %v4615
      %v4617 = vpop.f32.mrf.mxu0
      %v4618 = vadd.f32 %v4529, %v4617
      %4619 = vmatmul.bf16.gmra.mxu0 %v4229
      %v4620 = vpop.f32.mrf.mxu0
      %v4621 = vadd.f32 %v4532, %v4620
      %v4622 = vpop.f32.mrf.mxu0
      %v4623 = vadd.f32 %v4534, %v4622
      %4624 = vmatmul.bf16.gmra.mxu0 %v4230
      %v4625 = vpop.f32.mrf.mxu0
      %v4626 = vadd.f32 %v4537, %v4625
      %v4627 = vpop.f32.mrf.mxu0
      %v4628 = vadd.f32 %v4539, %v4627
      %4629 = vmatmul.bf16.gmra.mxu0 %v4231
      %v4630 = vpop.f32.mrf.mxu0
      %v4631 = vadd.f32 %v4542, %v4630
      %v4632 = vpop.f32.mrf.mxu0
      %v4633 = vadd.f32 %v4544, %v4632
      %4634 = vmatmul.bf16.gmra.mxu0 %v4232
      %v4635 = vpop.f32.mrf.mxu0
      %v4636 = vadd.f32 %v4547, %v4635
      %v4637 = vpop.f32.mrf.mxu0
      %v4638 = vadd.f32 %v4549, %v4637
      %4639 = vmatmul.bf16.gmra.mxu0 %v4233
      %v4640 = vpop.f32.mrf.mxu0
      %v4641 = vadd.f32 %v4552, %v4640
      %v4642 = vpop.f32.mrf.mxu0
      %v4643 = vadd.f32 %v4554, %v4642
      %4644 = vmatmul.bf16.gmra.mxu0 %v4234
      %v4645 = vpop.f32.mrf.mxu0
      %v4646 = vadd.f32 %v4557, %v4645
      %v4647 = vpop.f32.mrf.mxu0
      %v4648 = vadd.f32 %v4559, %v4647
      %4649 = vmatmul.bf16.gmra.mxu0 %v4235
      %v4650 = vpop.f32.mrf.mxu0
      %v4651 = vadd.f32 %v4562, %v4650
      %v4652 = vpop.f32.mrf.mxu0
      %v4653 = vadd.f32 %v4564, %v4652
      %4654 = vmatmul.bf16.gmra.mxu0 %v4236
      %v4655 = vpop.f32.mrf.mxu0
      %v4656 = vadd.f32 %v4567, %v4655
      %v4657 = vpop.f32.mrf.mxu0
      %v4658 = vadd.f32 %v4569, %v4657
      %4659 = vmatmul.bf16.gmra.mxu0 %v4237
      %v4660 = vpop.f32.mrf.mxu0
      %v4661 = vadd.f32 %v4572, %v4660
      %v4662 = vpop.f32.mrf.mxu0
      %v4663 = vadd.f32 %v4574, %v4662
      %4664 = vmatmul.bf16.gmra.mxu0 %v4238
      %v4665 = vpop.f32.mrf.mxu0
      %v4666 = vadd.f32 %v4577, %v4665
      %v4667 = vpop.f32.mrf.mxu0
      %v4668 = vadd.f32 %v4579, %v4667
      %4669 = vmatmul.bf16.gmra.mxu0 %v4239
      %v4670 = vpop.f32.mrf.mxu0
      %v4671 = vadd.f32 %v4582, %v4670
      %v4672 = vpop.f32.mrf.mxu0
      %v4673 = vadd.f32 %v4584, %v4672
      %4674 = vmatmul.bf16.gmra.mxu0 %v4240
      %v4675 = vpop.f32.mrf.mxu0
      %v4676 = vadd.f32 %v4587, %v4675
      %v4677 = vpop.f32.mrf.mxu0
      %v4678 = vadd.f32 %v4589, %v4677
      %4679 = vmatmul.bf16.gmra.mxu0 %v4241
      %v4680 = vpop.f32.mrf.mxu0
      %v4681 = vadd.f32 %v4592, %v4680
      %v4682 = vpop.f32.mrf.mxu0
      %v4683 = vadd.f32 %v4594, %v4682
      %4684 = vmatmul.bf16.gmra.mxu0 %v4242
      %v4685 = vpop.f32.mrf.mxu0
      %v4686 = vadd.f32 %v4597, %v4685
      %v4687 = vpop.f32.mrf.mxu0
      %v4688 = vadd.f32 %v4599, %v4687
      %4689 = vmatmul.bf16.gmra.mxu0 %v4243
      %v4690 = vpop.f32.mrf.mxu0
      %v4691 = vadd.f32 %v4602, %v4690
      %v4692 = vpop.f32.mrf.mxu0
      %v4693 = vadd.f32 %v4604, %v4692
      %4694 = vdwg.mxu0
      %4695 = vmatpush.bf16.msra.mxu0 %v4492
      %4696 = vmatpush.bf16.msra.mxu0 %v4491
      %4697 = vmatpush.bf16.msra.mxu0 %v4490
      %4698 = vmatpush.bf16.msra.mxu0 %v4489
      %4699 = vmatpush.bf16.msra.mxu0 %v4488
      %4700 = vmatpush.bf16.msra.mxu0 %v4487
      %4701 = vmatpush.bf16.msra.mxu0 %v4486
      %4702 = vmatpush.bf16.msra.mxu0 %v4485
      %4703 = vmatmul.bf16.gmra.mxu0 %v4292
      %v4704 = vpop.f32.mrf.mxu0
      %v4705 = vadd.f32 %v4616, %v4704
      %v4706 = vpop.f32.mrf.mxu0
      %v4707 = vadd.f32 %v4618, %v4706
      %4708 = vmatmul.bf16.gmra.mxu0 %v4293
      %v4709 = vpop.f32.mrf.mxu0
      %v4710 = vadd.f32 %v4621, %v4709
      %v4711 = vpop.f32.mrf.mxu0
      %v4712 = vadd.f32 %v4623, %v4711
      %4713 = vmatmul.bf16.gmra.mxu0 %v4294
      %v4714 = vpop.f32.mrf.mxu0
      %v4715 = vadd.f32 %v4626, %v4714
      %v4716 = vpop.f32.mrf.mxu0
      %v4717 = vadd.f32 %v4628, %v4716
      %4718 = vmatmul.bf16.gmra.mxu0 %v4295
      %v4719 = vpop.f32.mrf.mxu0
      %v4720 = vadd.f32 %v4631, %v4719
      %v4721 = vpop.f32.mrf.mxu0
      %v4722 = vadd.f32 %v4633, %v4721
      %4723 = vmatmul.bf16.gmra.mxu0 %v4296
      %v4724 = vpop.f32.mrf.mxu0
      %v4725 = vadd.f32 %v4636, %v4724
      %v4726 = vpop.f32.mrf.mxu0
      %v4727 = vadd.f32 %v4638, %v4726
      %4728 = vmatmul.bf16.gmra.mxu0 %v4297
      %v4729 = vpop.f32.mrf.mxu0
      %v4730 = vadd.f32 %v4641, %v4729
      %v4731 = vpop.f32.mrf.mxu0
      %v4732 = vadd.f32 %v4643, %v4731
      %4733 = vmatmul.bf16.gmra.mxu0 %v4298
      %v4734 = vpop.f32.mrf.mxu0
      %v4735 = vadd.f32 %v4646, %v4734
      %v4736 = vpop.f32.mrf.mxu0
      %v4737 = vadd.f32 %v4648, %v4736
      %4738 = vmatmul.bf16.gmra.mxu0 %v4299
      %v4739 = vpop.f32.mrf.mxu0
      %v4740 = vadd.f32 %v4651, %v4739
      %v4741 = vpop.f32.mrf.mxu0
      %v4742 = vadd.f32 %v4653, %v4741
      %4743 = vmatmul.bf16.gmra.mxu0 %v4300
      %v4744 = vpop.f32.mrf.mxu0
      %v4745 = vadd.f32 %v4656, %v4744
      %v4746 = vpop.f32.mrf.mxu0
      %v4747 = vadd.f32 %v4658, %v4746
      %4748 = vmatmul.bf16.gmra.mxu0 %v4301
      %v4749 = vpop.f32.mrf.mxu0
      %v4750 = vadd.f32 %v4661, %v4749
      %v4751 = vpop.f32.mrf.mxu0
      %v4752 = vadd.f32 %v4663, %v4751
      %4753 = vmatmul.bf16.gmra.mxu0 %v4302
      %v4754 = vpop.f32.mrf.mxu0
      %v4755 = vadd.f32 %v4666, %v4754
      %v4756 = vpop.f32.mrf.mxu0
      %v4757 = vadd.f32 %v4668, %v4756
      %4758 = vmatmul.bf16.gmra.mxu0 %v4303
      %v4759 = vpop.f32.mrf.mxu0
      %v4760 = vadd.f32 %v4671, %v4759
      %v4761 = vpop.f32.mrf.mxu0
      %v4762 = vadd.f32 %v4673, %v4761
      %4763 = vmatmul.bf16.gmra.mxu0 %v4304
      %v4764 = vpop.f32.mrf.mxu0
      %v4765 = vadd.f32 %v4676, %v4764
      %v4766 = vpop.f32.mrf.mxu0
      %v4767 = vadd.f32 %v4678, %v4766
      %4768 = vmatmul.bf16.gmra.mxu0 %v4305
      %v4769 = vpop.f32.mrf.mxu0
      %v4770 = vadd.f32 %v4681, %v4769
      %v4771 = vpop.f32.mrf.mxu0
      %v4772 = vadd.f32 %v4683, %v4771
      %4773 = vmatmul.bf16.gmra.mxu0 %v4306
      %v4774 = vpop.f32.mrf.mxu0
      %v4775 = vadd.f32 %v4686, %v4774
      %v4776 = vpop.f32.mrf.mxu0
      %v4777 = vadd.f32 %v4688, %v4776
      %4778 = vmatmul.bf16.gmra.mxu0 %v4307
      %v4779 = vpop.f32.mrf.mxu0
      %v4780 = vadd.f32 %v4691, %v4779
      %v4781 = vpop.f32.mrf.mxu0
      %v4782 = vadd.f32 %v4693, %v4781
      %4783 = vdwg.mxu0
      %v4784 = vadd.f32 %v3428, %v4705
      %v4785 = vadd.f32 %v3430, %v4707
      %v4786 = vadd.f32 %v3433, %v4710
      %v4787 = vadd.f32 %v3435, %v4712
      %v4788 = vadd.f32 %v3438, %v4715
      %v4789 = vadd.f32 %v3440, %v4717
      %v4790 = vadd.f32 %v3443, %v4720
      %v4791 = vadd.f32 %v3445, %v4722
      %v4792 = vadd.f32 %v3448, %v4725
      %v4793 = vadd.f32 %v3450, %v4727
      %v4794 = vadd.f32 %v3453, %v4730
      %v4795 = vadd.f32 %v3455, %v4732
      %v4796 = vadd.f32 %v3458, %v4735
      %v4797 = vadd.f32 %v3460, %v4737
      %v4798 = vadd.f32 %v3463, %v4740
      %v4799 = vadd.f32 %v3465, %v4742
      %v4800 = vadd.f32 %v3468, %v4745
      %v4801 = vadd.f32 %v3470, %v4747
      %v4802 = vadd.f32 %v3473, %v4750
      %v4803 = vadd.f32 %v3475, %v4752
      %v4804 = vadd.f32 %v3478, %v4755
      %v4805 = vadd.f32 %v3480, %v4757
      %v4806 = vadd.f32 %v3483, %v4760
      %v4807 = vadd.f32 %v3485, %v4762
      %v4808 = vadd.f32 %v3488, %v4765
      %v4809 = vadd.f32 %v3490, %v4767
      %v4810 = vadd.f32 %v3493, %v4770
      %v4811 = vadd.f32 %v3495, %v4772
      %v4812 = vadd.f32 %v3498, %v4775
      %v4813 = vadd.f32 %v3500, %v4777
      %v4814 = vadd.f32 %v3503, %v4780
      %v4815 = vadd.f32 %v3505, %v4782
      %v4816 = vadd.f32 %v4784, %v4785
      %v4817 = vadd.f32 %v4816, %v4786
      %v4818 = vadd.f32 %v4817, %v4787
      %v4819 = vadd.f32 %v4818, %v4788
      %v4820 = vadd.f32 %v4819, %v4789
      %v4821 = vadd.f32 %v4820, %v4790
      %v4822 = vadd.f32 %v4821, %v4791
      %v4823 = vadd.f32 %v4822, %v4792
      %v4824 = vadd.f32 %v4823, %v4793
      %v4825 = vadd.f32 %v4824, %v4794
      %v4826 = vadd.f32 %v4825, %v4795
      %v4827 = vadd.f32 %v4826, %v4796
      %v4828 = vadd.f32 %v4827, %v4797
      %v4829 = vadd.f32 %v4828, %v4798
      %v4830 = vadd.f32 %v4829, %v4799
      %v4831 = vadd.f32 %v4830, %v4800
      %v4832 = vadd.f32 %v4831, %v4801
      %v4833 = vadd.f32 %v4832, %v4802
      %v4834 = vadd.f32 %v4833, %v4803
      %v4835 = vadd.f32 %v4834, %v4804
      %v4836 = vadd.f32 %v4835, %v4805
      %v4837 = vadd.f32 %v4836, %v4806
      %v4838 = vadd.f32 %v4837, %v4807
      %v4839 = vadd.f32 %v4838, %v4808
      %v4840 = vadd.f32 %v4839, %v4809
      %v4841 = vadd.f32 %v4840, %v4810
      %v4842 = vadd.f32 %v4841, %v4811
      %v4843 = vadd.f32 %v4842, %v4812
      %v4844 = vadd.f32 %v4843, %v4813
      %v4845 = vadd.f32 %v4844, %v4814
      %v4846 = vadd.f32 %v4845, %v4815
      %v4847 = vrot.slane %v4846, 4
      %v4848 = vadd.f32 %v4846, %v4847
      %v4849 = vrot.slane %v4848, 2
      %v4850 = vadd.f32 %v4848, %v4849
      %v4851 = vrot.slane %v4850, 1
      %v4852 = vadd.f32 %v4850, %v4851
      %v4853 = vmul.f32 %v4784, %v4784
      %v4854 = vmul.f32 %v4785, %v4785
      %v4855 = vmul.f32 %v4786, %v4786
      %v4856 = vmul.f32 %v4787, %v4787
      %v4857 = vmul.f32 %v4788, %v4788
      %v4858 = vmul.f32 %v4789, %v4789
      %v4859 = vmul.f32 %v4790, %v4790
      %v4860 = vmul.f32 %v4791, %v4791
      %v4861 = vmul.f32 %v4792, %v4792
      %v4862 = vmul.f32 %v4793, %v4793
      %v4863 = vmul.f32 %v4794, %v4794
      %v4864 = vmul.f32 %v4795, %v4795
      %v4865 = vmul.f32 %v4796, %v4796
      %v4866 = vmul.f32 %v4797, %v4797
      %v4867 = vmul.f32 %v4798, %v4798
      %v4868 = vmul.f32 %v4799, %v4799
      %v4869 = vmul.f32 %v4800, %v4800
      %v4870 = vmul.f32 %v4801, %v4801
      %v4871 = vmul.f32 %v4802, %v4802
      %v4872 = vmul.f32 %v4803, %v4803
      %v4873 = vmul.f32 %v4804, %v4804
      %v4874 = vmul.f32 %v4805, %v4805
      %v4875 = vmul.f32 %v4806, %v4806
      %v4876 = vmul.f32 %v4807, %v4807
      %v4877 = vmul.f32 %v4808, %v4808
      %v4878 = vmul.f32 %v4809, %v4809
      %v4879 = vmul.f32 %v4810, %v4810
      %v4880 = vmul.f32 %v4811, %v4811
      %v4881 = vmul.f32 %v4812, %v4812
      %v4882 = vmul.f32 %v4813, %v4813
      %v4883 = vmul.f32 %v4814, %v4814
      %v4884 = vmul.f32 %v4815, %v4815
      %v4885 = vadd.f32 %v4853, %v4854
      %v4886 = vadd.f32 %v4885, %v4855
      %v4887 = vadd.f32 %v4886, %v4856
      %v4888 = vadd.f32 %v4887, %v4857
      %v4889 = vadd.f32 %v4888, %v4858
      %v4890 = vadd.f32 %v4889, %v4859
      %v4891 = vadd.f32 %v4890, %v4860
      %v4892 = vadd.f32 %v4891, %v4861
      %v4893 = vadd.f32 %v4892, %v4862
      %v4894 = vadd.f32 %v4893, %v4863
      %v4895 = vadd.f32 %v4894, %v4864
      %v4896 = vadd.f32 %v4895, %v4865
      %v4897 = vadd.f32 %v4896, %v4866
      %v4898 = vadd.f32 %v4897, %v4867
      %v4899 = vadd.f32 %v4898, %v4868
      %v4900 = vadd.f32 %v4899, %v4869
      %v4901 = vadd.f32 %v4900, %v4870
      %v4902 = vadd.f32 %v4901, %v4871
      %v4903 = vadd.f32 %v4902, %v4872
      %v4904 = vadd.f32 %v4903, %v4873
      %v4905 = vadd.f32 %v4904, %v4874
      %v4906 = vadd.f32 %v4905, %v4875
      %v4907 = vadd.f32 %v4906, %v4876
      %v4908 = vadd.f32 %v4907, %v4877
      %v4909 = vadd.f32 %v4908, %v4878
      %v4910 = vadd.f32 %v4909, %v4879
      %v4911 = vadd.f32 %v4910, %v4880
      %v4912 = vadd.f32 %v4911, %v4881
      %v4913 = vadd.f32 %v4912, %v4882
      %v4914 = vadd.f32 %v4913, %v4883
      %v4915 = vadd.f32 %v4914, %v4884
      %v4916 = vrot.slane %v4915, 4
      %v4917 = vadd.f32 %v4915, %v4916
      %v4918 = vrot.slane %v4917, 2
      %v4919 = vadd.f32 %v4917, %v4918
      %v4920 = vrot.slane %v4919, 1
      %v4921 = vadd.f32 %v4919, %v4920
      %vm4922 = vcmask 1040384
      %v4923 = vsel %vm4922, %v4852, %v4921
      %4924 = vst [vmem:[%s235] sm:$0x3] %v4923
      %4925 = vst [vmem:[%s231] sm:$0xff] %v4784
      %4926 = vst [vmem:[%s231 + $0x8] sm:$0xff] %v4785
      %4927 = vst [vmem:[%s231 + $0x10] sm:$0xff] %v4786
      %4928 = vst [vmem:[%s231 + $0x18] sm:$0xff] %v4787
      %4929 = vst [vmem:[%s231 + $0x20] sm:$0xff] %v4788
      %4930 = vst [vmem:[%s231 + $0x28] sm:$0xff] %v4789
      %4931 = vst [vmem:[%s231 + $0x30] sm:$0xff] %v4790
      %4932 = vst [vmem:[%s231 + $0x38] sm:$0xff] %v4791
      %4933 = vst [vmem:[%s231 + $0x40] sm:$0xff] %v4792
      %4934 = vst [vmem:[%s231 + $0x48] sm:$0xff] %v4793
      %4935 = vst [vmem:[%s231 + $0x50] sm:$0xff] %v4794
      %4936 = vst [vmem:[%s231 + $0x58] sm:$0xff] %v4795
      %4937 = vst [vmem:[%s231 + $0x60] sm:$0xff] %v4796
      %4938 = vst [vmem:[%s231 + $0x68] sm:$0xff] %v4797
      %4939 = vst [vmem:[%s231 + $0x70] sm:$0xff] %v4798
      %4940 = vst [vmem:[%s231 + $0x78] sm:$0xff] %v4799
      %4941 = vst [vmem:[%s231 + $0x80] sm:$0xff] %v4800
      %4942 = vst [vmem:[%s231 + $0x88] sm:$0xff] %v4801
      %4943 = vst [vmem:[%s231 + $0x90] sm:$0xff] %v4802
      %4944 = vst [vmem:[%s231 + $0x98] sm:$0xff] %v4803
      %4945 = vst [vmem:[%s231 + $0xa0] sm:$0xff] %v4804
      %4946 = vst [vmem:[%s231 + $0xa8] sm:$0xff] %v4805
      %4947 = vst [vmem:[%s231 + $0xb0] sm:$0xff] %v4806
      %4948 = vst [vmem:[%s231 + $0xb8] sm:$0xff] %v4807
      %4949 = vst [vmem:[%s231 + $0xc0] sm:$0xff] %v4808
      %4950 = vst [vmem:[%s231 + $0xc8] sm:$0xff] %v4809
      %4951 = vst [vmem:[%s231 + $0xd0] sm:$0xff] %v4810
      %4952 = vst [vmem:[%s231 + $0xd8] sm:$0xff] %v4811
      %4953 = vst [vmem:[%s231 + $0xe0] sm:$0xff] %v4812
      %4954 = vst [vmem:[%s231 + $0xe8] sm:$0xff] %v4813
      %4955 = vst [vmem:[%s231 + $0xf0] sm:$0xff] %v4814
      %4956 = vst [vmem:[%s231 + $0xf8] sm:$0xff] %v4815
      %p4957 = scmp.lt.s32.totalorder %s17, 1
      %s4958 = scalar_select %p4957, %s17, 1
      %s4959 = smul.addr %s4958, 32
      %s4960 = smul.addr %s4959, 8
      %s4961 = scalar_lea.vmem %s4, %s4960
      %p4962 = scmp.lt.s32.totalorder %s17, 1
      %s4963 = scalar_select %p4962, %s17, 1
      %s4964 = smul.addr %s4963, 2
      %s4965 = scalar_lea.vmem %s5, %s4964
      // Predicated region
      $region37: #{basic_block_forward.4} parent=35 // pred_check
        %p4966 = pneg %p124
      $region38: #{basic_block_forward.4} parent=35 // pred_check_branch
        %4968 = sbr.rel (%p4966) target = $region40
      $region39: #{basic_block_forward.4} parent=35 // pred_region
        _
      $region40: #{basic_block_forward.4} parent=35 // pred_fallthru
        _
      // Predicated region
      $region41: #{basic_block_forward.4} parent=35 // pred_check
        %p4969 = pneg %p150
      $region42: #{basic_block_forward.4} parent=35 // pred_check_branch
        %4971 = sbr.rel (%p4969) target = $region44
      $region43: #{basic_block_forward.4} parent=35 // pred_region
        _
      $region44: #{basic_block_forward.4} parent=35 // pred_fallthru
        _
    $region36: #{basic_block_forward.4} parent=5 // pred_fallthru
      _
    %p4972 = scmp.le.s32.totalorder 2, %s12
    // Predicated region
    $region45: #{basic_block_forward.4} parent=5 // pred_check
      %p4973 = pneg %p4972
    $region46: #{basic_block_forward.4} parent=5 // pred_check_branch
      %4975 = sbr.rel (%p4973) target = $region48
    $region47: #{basic_block_forward.4} parent=5 // pred_region
      %s4976 = ssub.s32 %s12, 2
      // Predicated region
      $region49: #{basic_block_forward.4} parent=47 // pred_check
        %p4977 = pneg %p130
      $region50: #{basic_block_forward.4} parent=47 // pred_check_branch
        %4979 = sbr.rel (%p4977) target = $region52
      $region51: #{basic_block_forward.4} parent=47 // pred_region
        %p4980 = scmp.lt.s32.totalorder %s18, 1
        %s4981 = scalar_select %p4980, %s18, 1
        %s4982 = smul.addr %s4981, 32
        %s4983 = smul.addr %s4982, 8
        %s4984 = scalar_lea.vmem %s4, %s4983
      $region52: #{basic_block_forward.4} parent=47 // pred_fallthru
        _
      // Predicated region
      $region53: #{basic_block_forward.4} parent=47 // pred_check
        %p4985 = pneg %p156
      $region54: #{basic_block_forward.4} parent=47 // pred_check_branch
        %4987 = sbr.rel (%p4985) target = $region56
      $region55: #{basic_block_forward.4} parent=47 // pred_region
        %p4988 = scmp.lt.s32.totalorder %s18, 1
        %s4989 = scalar_select %p4988, %s18, 1
        %s4990 = smul.addr %s4989, 2
        %s4991 = scalar_lea.vmem %s5, %s4990
      $region56: #{basic_block_forward.4} parent=47 // pred_fallthru
        _
    $region48: #{basic_block_forward.4} parent=5 // pred_fallthru
      _
  $region6: #{basic_block_forward.4} parent=0 // loop_footer
    %s16 = sadd.s32 1, %s12
  $region7: #{basic_block_forward.4} parent=0 // loop_footer_branch
    %11 = sbr.rel target = $region3
  $region8: #{basic_block_forward.4} parent=0 // loop_exit
    _

</llo_original>
